<compile_context>
chip_gen: v7x
topology: tpu7x:2x2x1
jax: 0.10.0
libtpu: 0.0.40
codegen_flags: <defaults>
</compile_context>

<pallas_src>
import functools

import numpy as np

import jax
import jax.numpy as jnp
from jax.experimental import pallas as pl
from jax.experimental.pallas import tpu as pltpu

EPS = 1e-5  # nn.BatchNorm2d default eps

_VMEM = pl.BlockSpec(memory_space=pltpu.MemorySpace.VMEM)


# ----------------------------- fused Pallas kernel -------------------------- #

def _resnet_fused_kernel(*refs, num_units, r_index):
    """Whole forward pass. Inputs (in order):
         x_flat (N, HW*3),
         for each conv+BN unit (start, blk_i.conv1, blk_i.conv2, ...,
           policy_conv, value_conv): weff(bf16, HW*Cin x HW*Cout),
           gamma(1,C), beta(1,C),
         for each *distinct* channel count: R(HW*C, C), Rt(C, HW*C),
         wp (HW*32, A), bp (1, A), wv (HW*3, 1), bv (1, 1)
       Outputs: policy (N, A), value (N, 1).
    """
    num_blocks = (num_units - 3) // 2
    num_r = max(r_index) + 1

    it = iter(refs)
    x_ref = next(it)
    units = [tuple(next(it) for _ in range(3)) for _ in range(num_units)]
    rs = [tuple(next(it) for _ in range(2)) for _ in range(num_r)]
    wp_ref, bp_ref, wv_ref, bv_ref = (next(it) for _ in range(4))
    policy_ref, value_ref = next(it), next(it)

    def conv_bn(a_f32, ui, residual=None):
        w_ref, g_ref, b_ref = units[ui]
        r_ref, rt_ref = rs[r_index[ui]]
        # 3x3/pad=1 conv on the 3x3 board == one matmul with the effective weight.
        y = jnp.dot(a_f32.astype(jnp.bfloat16), w_ref[...],
                    preferred_element_type=jnp.float32)          # (N, HW*Cout) f32
        hw = r_ref.shape[0] // r_ref.shape[1]
        inv_n = 1.0 / (y.shape[0] * hw)                          # 1 / (N*H*W)
        # BatchNorm batch statistics (per output channel), one-pass variance.
        col_sum = jnp.sum(y, axis=0, keepdims=True)              # (1, HW*Cout)
        col_sq = jnp.sum(y * y, axis=0, keepdims=True)
        mean = jnp.dot(col_sum, r_ref[...],
                       preferred_element_type=jnp.float32) * inv_n      # (1, Cout)
        mean_sq = jnp.dot(col_sq, r_ref[...],
                          preferred_element_type=jnp.float32) * inv_n
        var = mean_sq - mean * mean
        scale = g_ref[...] * jax.lax.rsqrt(var + EPS)
        shift = b_ref[...] - mean * scale
        # Broadcast per-channel scale/shift back to the (hw, c) column layout.
        scale_b = jnp.dot(scale, rt_ref[...], preferred_element_type=jnp.float32)
        shift_b = jnp.dot(shift, rt_ref[...], preferred_element_type=jnp.float32)
        y = y * scale_b + shift_b
        if residual is not None:
            y = y + residual
        return jnp.maximum(y, 0.0)

    ui = 0
    # startBlock: Conv -> BN -> ReLU
    x = conv_bn(x_ref[...], ui); ui += 1
    # backBone of ResBlocks
    for _ in range(num_blocks):
        res = x
        x = conv_bn(x, ui); ui += 1                   # conv1 -> BN -> ReLU
        x = conv_bn(x, ui, residual=res); ui += 1     # conv2 -> BN -> +res -> ReLU
    # heads
    ph = conv_bn(x, ui); ui += 1                      # policy conv -> BN -> ReLU
    vh = conv_bn(x, ui); ui += 1                      # value  conv -> BN -> ReLU

    policy_ref[...] = (jnp.dot(ph, wp_ref[...], preferred_element_type=jnp.float32)
                       + bp_ref[...])
    value_ref[...] = jnp.tanh(jnp.dot(vh, wv_ref[...],
                                      preferred_element_type=jnp.float32)
                              + bv_ref[...])


# --------------------------- weight preparation ----------------------------- #

def _make_shift_tensor(H, W):
    """S[kh, kw, hw_out, hw_in] = 1 iff tap (kh,kw) of output pixel hw_out reads
    input pixel hw_in under a 3x3 / pad=1 convolution."""
    HW = H * W
    S = np.zeros((3, 3, HW, HW), np.float32)
    for kh in range(3):
        for kw in range(3):
            for ho in range(H):
                for wo in range(W):
                    hi, wi = ho + kh - 1, wo + kw - 1
                    if 0 <= hi < H and 0 <= wi < W:
                        S[kh, kw, ho * W + wo, hi * W + wi] = 1.0
    return S


def _make_conv_weff(w, S):
    """PyTorch conv weight (Cout, Cin, 3, 3) -> effective (HW*Cin, HW*Cout)."""
    HW = S.shape[2]
    cout, cin = w.shape[0], w.shape[1]
    weff = jnp.einsum("xyoi,cdxy->idoc", jnp.asarray(S), w)   # (hw_in, ci, hw_out, co)
    return weff.reshape(HW * cin, HW * cout)


def prepare_params(params, rows, cols):
    """One-time packing of PyTorch-layout params into kernel-ready tensors."""
    HW = rows * cols
    S = _make_shift_tensor(rows, cols)

    def prep_unit(p):
        cout = int(p["gamma"].shape[0])
        return {
            "weff": _make_conv_weff(p["w"], S).astype(jnp.bfloat16),
            "gamma": p["gamma"].reshape(1, cout).astype(jnp.float32),
            "beta": p["beta"].reshape(1, cout).astype(jnp.float32),
        }
        # NOTE: conv bias p["b"] is intentionally unused — it cancels under
        # batch-statistic BatchNorm and cannot affect the forward output.

    units = [prep_unit(params["start"])]
    for blk in params["blocks"]:
        units.append(prep_unit(blk["conv1"]))
        units.append(prep_unit(blk["conv2"]))
    units.append(prep_unit(params["policy_conv"]))
    units.append(prep_unit(params["value_conv"]))

    # Deduplicate the constant reduce/broadcast matrices across channel counts.
    couts = []
    for u in units:
        c = int(u["gamma"].shape[1])
        if c not in couts:
            couts.append(c)
    rs = []
    for c in couts:
        r = jnp.tile(jnp.eye(c, dtype=jnp.float32), (HW, 1))   # (HW*C, C)
        rs.append({"r": r, "rt": r.T})

    def perm_fc(w, c):
        # rows from PyTorch flatten order (c*HW + hw) -> NHWC flatten (hw*C + c)
        fout = w.shape[1]
        return w.reshape(c, HW, fout).transpose(1, 0, 2).reshape(HW * c, fout)

    return {
        "units": units,
        "rs": rs,
        "wp": perm_fc(params["policy_fc"]["w"], 32).astype(jnp.float32),
        "bp": params["policy_fc"]["b"].reshape(1, -1).astype(jnp.float32),
        "wv": perm_fc(params["value_fc"]["w"], 3).astype(jnp.float32),
        "bv": params["value_fc"]["b"].reshape(1, -1).astype(jnp.float32),
    }


# ------------------------------ forward pass -------------------------------- #

def resnet_forward(prepped, x_nchw):
    units = prepped["units"]
    rs = prepped["rs"]
    N = x_nchw.shape[0]
    # NHWC flatten per batch row: column index = (h*W + w)*C + c
    x_flat = x_nchw.transpose(0, 2, 3, 1).reshape(N, -1).astype(jnp.float32)

    # Map every conv+BN unit to its (deduplicated) R / R^T pair. Uses static
    # shapes only, so it stays a Python constant under jit.
    r_index = tuple(
        next(i for i, rp in enumerate(rs)
             if rp["rt"].shape[0] == u["gamma"].shape[1])
        for u in units)

    args = [x_flat]
    for u in units:
        args += [u["weff"], u["gamma"], u["beta"]]
    for rp in rs:
        args += [rp["r"], rp["rt"]]
    args += [prepped["wp"], prepped["bp"], prepped["wv"], prepped["bv"]]

    action_size = prepped["wp"].shape[1]
    policy, value = pl.pallas_call(
        functools.partial(_resnet_fused_kernel,
                          num_units=len(units), r_index=r_index),
        out_shape=(jax.ShapeDtypeStruct((N, action_size), jnp.float32),
                   jax.ShapeDtypeStruct((N, 1), jnp.float32)),
        in_specs=[_VMEM] * len(args),
        out_specs=(_VMEM, _VMEM),
    )(*args)
    return policy, value


# --------------------------- parameter creation ----------------------------- #

def init_params(key, num_res_blocks, num_hidden, rows, cols, action_size):
    def conv_p(k, cin, cout):
        k1, k2 = jax.random.split(k)
        return {
            "w": jax.random.normal(k1, (cout, cin, 3, 3), jnp.float32)
                 * (1.0 / jnp.sqrt(cin * 9.0)),
            "b": jax.random.normal(k2, (cout,), jnp.float32) * 0.01,  # cancelled by BN
            "gamma": jnp.ones((cout,), jnp.float32),   # BN default init
            "beta": jnp.zeros((cout,), jnp.float32),
        }

    def lin_p(k, fin, fout):
        k1, k2 = jax.random.split(k)
        return {
            "w": jax.random.normal(k1, (fin, fout), jnp.float32)
                 * (1.0 / jnp.sqrt(float(fin))),
            "b": jax.random.normal(k2, (fout,), jnp.float32) * 0.01,
        }

    keys = jax.random.split(key, 2 * num_res_blocks + 5)
    params = {"start": conv_p(keys[0], 3, num_hidden), "blocks": []}
    for i in range(num_res_blocks):
        params["blocks"].append({
            "conv1": conv_p(keys[1 + 2 * i], num_hidden, num_hidden),
            "conv2": conv_p(keys[2 + 2 * i], num_hidden, num_hidden),
        })
    k0 = 2 * num_res_blocks + 1
    params["policy_conv"] = conv_p(keys[k0], num_hidden, 32)
    params["policy_fc"] = lin_p(keys[k0 + 1], 32 * rows * cols, action_size)
    params["value_conv"] = conv_p(keys[k0 + 2], num_hidden, 3)
    params["value_fc"] = lin_p(keys[k0 + 3], 3 * rows * cols, 1)
    return params


# ---------------------------------- main ------------------------------------ #

if __name__ == "__main__":
    # TicTacToe game: 3x3 board, 9 actions, 3 input planes.
    ROWS, COLS, ACTION_SIZE = 3, 3, 9
    NUM_RES_BLOCKS, NUM_HIDDEN = 2, 32
    BATCH = 32  # MCTS-style leaf batch; keeps sublanes/MXU reasonably fed.

    key = jax.random.PRNGKey(0)
    kx, kp = jax.random.split(key)
    x = jax.random.normal(kx, (BATCH, 3, ROWS, COLS), jnp.float32)  # NCHW

    params = init_params(kp, NUM_RES_BLOCKS, NUM_HIDDEN, ROWS, COLS, ACTION_SIZE)
    prepped = prepare_params(params, ROWS, COLS)

    fwd = jax.jit(resnet_forward)
    policy, value = fwd(prepped, x)
    jax.block_until_ready((policy, value))

    assert policy.shape == (BATCH, ACTION_SIZE) and value.shape == (BATCH, 1)
    assert bool(jnp.all(jnp.isfinite(policy))) and bool(jnp.all(jnp.isfinite(value)))
    print("KERNEL_OK")
</pallas_src>

<mosaic_0001>
module attributes {stable_mosaic.version = 11 : i64} {
  func.func @_resnet_fused_kernel(%arg0: memref<32x27xf32, #tpu.memory_space<vmem>>, %arg1: memref<27x288xbf16, #tpu.memory_space<vmem>>, %arg2: memref<1x32xf32, #tpu.memory_space<vmem>>, %arg3: memref<1x32xf32, #tpu.memory_space<vmem>>, %arg4: memref<288x288xbf16, #tpu.memory_space<vmem>>, %arg5: memref<1x32xf32, #tpu.memory_space<vmem>>, %arg6: memref<1x32xf32, #tpu.memory_space<vmem>>, %arg7: memref<288x288xbf16, #tpu.memory_space<vmem>>, %arg8: memref<1x32xf32, #tpu.memory_space<vmem>>, %arg9: memref<1x32xf32, #tpu.memory_space<vmem>>, %arg10: memref<288x288xbf16, #tpu.memory_space<vmem>>, %arg11: memref<1x32xf32, #tpu.memory_space<vmem>>, %arg12: memref<1x32xf32, #tpu.memory_space<vmem>>, %arg13: memref<288x288xbf16, #tpu.memory_space<vmem>>, %arg14: memref<1x32xf32, #tpu.memory_space<vmem>>, %arg15: memref<1x32xf32, #tpu.memory_space<vmem>>, %arg16: memref<288x288xbf16, #tpu.memory_space<vmem>>, %arg17: memref<1x32xf32, #tpu.memory_space<vmem>>, %arg18: memref<1x32xf32, #tpu.memory_space<vmem>>, %arg19: memref<288x27xbf16, #tpu.memory_space<vmem>>, %arg20: memref<1x3xf32, #tpu.memory_space<vmem>>, %arg21: memref<1x3xf32, #tpu.memory_space<vmem>>, %arg22: memref<288x32xf32, #tpu.memory_space<vmem>>, %arg23: memref<32x288xf32, #tpu.memory_space<vmem>>, %arg24: memref<27x3xf32, #tpu.memory_space<vmem>>, %arg25: memref<3x27xf32, #tpu.memory_space<vmem>>, %arg26: memref<288x9xf32, #tpu.memory_space<vmem>>, %arg27: memref<1x9xf32, #tpu.memory_space<vmem>>, %arg28: memref<27x1xf32, #tpu.memory_space<vmem>>, %arg29: memref<1x1xf32, #tpu.memory_space<vmem>>, %arg30: memref<32x9xf32, #tpu.memory_space<vmem>>, %arg31: memref<32x1xf32, #tpu.memory_space<vmem>>) attributes {dimension_semantics = [], scalar_prefetch = 0 : i64, scratch_operands = 0 : i64, tpu.core_type = #tpu.core_type<tc>} {
    %c0 = arith.constant 0 : index
    %c0_0 = arith.constant 0 : index
    %0 = vector.load %arg0[%c0, %c0_0] : memref<32x27xf32, #tpu.memory_space<vmem>>, vector<32x27xf32>
    %1 = arith.truncf %0 : vector<32x27xf32> to vector<32x27xbf16>
    %c0_1 = arith.constant 0 : index
    %c0_2 = arith.constant 0 : index
    %2 = vector.load %arg1[%c0_1, %c0_2] : memref<27x288xbf16, #tpu.memory_space<vmem>>, vector<27x288xbf16>
    %cst = arith.constant dense<0.000000e+00> : vector<32x288xf32>
    %3 = tpu.matmul %1, %2, %cst {dimension_numbers = #tpu.dot_dimension_numbers<[1], [0], [0], [1], [0, 0, 1, 1], [], []>} : vector<32x27xbf16>, vector<27x288xbf16>, vector<32x288xf32> -> vector<32x288xf32>
    %cst_3 = arith.constant dense<0.000000e+00> : vector<288xf32>
    %4 = vector.multi_reduction <add>, %3, %cst_3 [0] : vector<32x288xf32> to vector<288xf32>
    %5 = vector.shape_cast %4 : vector<288xf32> to vector<1x288xf32>
    %6 = arith.mulf %3, %3 : vector<32x288xf32>
    %cst_4 = arith.constant dense<0.000000e+00> : vector<288xf32>
    %7 = vector.multi_reduction <add>, %6, %cst_4 [0] : vector<32x288xf32> to vector<288xf32>
    %8 = vector.shape_cast %7 : vector<288xf32> to vector<1x288xf32>
    %c0_5 = arith.constant 0 : index
    %c0_6 = arith.constant 0 : index
    %9 = vector.load %arg22[%c0_5, %c0_6] : memref<288x32xf32, #tpu.memory_space<vmem>>, vector<288x32xf32>
    %cst_7 = arith.constant dense<0.000000e+00> : vector<1x32xf32>
    %10 = tpu.matmul %5, %9, %cst_7 {dimension_numbers = #tpu.dot_dimension_numbers<[1], [0], [0], [1], [0, 0, 1, 1], [], []>} : vector<1x288xf32>, vector<288x32xf32>, vector<1x32xf32> -> vector<1x32xf32>
    %cst_8 = arith.constant 0.00347222225 : f32
    %11 = vector.broadcast %cst_8 : f32 to vector<1x32xf32>
    %12 = arith.mulf %10, %11 : vector<1x32xf32>
    %c0_9 = arith.constant 0 : index
    %c0_10 = arith.constant 0 : index
    %13 = vector.load %arg22[%c0_9, %c0_10] : memref<288x32xf32, #tpu.memory_space<vmem>>, vector<288x32xf32>
    %cst_11 = arith.constant dense<0.000000e+00> : vector<1x32xf32>
    %14 = tpu.matmul %8, %13, %cst_11 {dimension_numbers = #tpu.dot_dimension_numbers<[1], [0], [0], [1], [0, 0, 1, 1], [], []>} : vector<1x288xf32>, vector<288x32xf32>, vector<1x32xf32> -> vector<1x32xf32>
    %cst_12 = arith.constant 0.00347222225 : f32
    %15 = vector.broadcast %cst_12 : f32 to vector<1x32xf32>
    %16 = arith.mulf %14, %15 : vector<1x32xf32>
    %17 = arith.mulf %12, %12 : vector<1x32xf32>
    %18 = arith.subf %16, %17 : vector<1x32xf32>
    %c0_13 = arith.constant 0 : index
    %c0_14 = arith.constant 0 : index
    %19 = vector.load %arg2[%c0_13, %c0_14] : memref<1x32xf32, #tpu.memory_space<vmem>>, vector<1x32xf32>
    %cst_15 = arith.constant 9.99999974E-6 : f32
    %20 = vector.broadcast %cst_15 : f32 to vector<1x32xf32>
    %21 = arith.addf %18, %20 : vector<1x32xf32>
    %22 = math.rsqrt %21 : vector<1x32xf32>
    %23 = arith.mulf %19, %22 : vector<1x32xf32>
    %c0_16 = arith.constant 0 : index
    %c0_17 = arith.constant 0 : index
    %24 = vector.load %arg3[%c0_16, %c0_17] : memref<1x32xf32, #tpu.memory_space<vmem>>, vector<1x32xf32>
    %25 = arith.mulf %12, %23 : vector<1x32xf32>
    %26 = arith.subf %24, %25 : vector<1x32xf32>
    %c0_18 = arith.constant 0 : index
    %c0_19 = arith.constant 0 : index
    %27 = vector.load %arg23[%c0_18, %c0_19] : memref<32x288xf32, #tpu.memory_space<vmem>>, vector<32x288xf32>
    %cst_20 = arith.constant dense<0.000000e+00> : vector<1x288xf32>
    %28 = tpu.matmul %23, %27, %cst_20 {dimension_numbers = #tpu.dot_dimension_numbers<[1], [0], [0], [1], [0, 0, 1, 1], [], []>} : vector<1x32xf32>, vector<32x288xf32>, vector<1x288xf32> -> vector<1x288xf32>
    %c0_21 = arith.constant 0 : index
    %c0_22 = arith.constant 0 : index
    %29 = vector.load %arg23[%c0_21, %c0_22] : memref<32x288xf32, #tpu.memory_space<vmem>>, vector<32x288xf32>
    %cst_23 = arith.constant dense<0.000000e+00> : vector<1x288xf32>
    %30 = tpu.matmul %26, %29, %cst_23 {dimension_numbers = #tpu.dot_dimension_numbers<[1], [0], [0], [1], [0, 0, 1, 1], [], []>} : vector<1x32xf32>, vector<32x288xf32>, vector<1x288xf32> -> vector<1x288xf32>
    %31 = vector.broadcast %28 : vector<1x288xf32> to vector<32x288xf32>
    %32 = arith.mulf %3, %31 : vector<32x288xf32>
    %33 = vector.broadcast %30 : vector<1x288xf32> to vector<32x288xf32>
    %34 = arith.addf %32, %33 : vector<32x288xf32>
    %cst_24 = arith.constant 0.000000e+00 : f32
    %35 = vector.broadcast %cst_24 : f32 to vector<32x288xf32>
    %36 = arith.maximumf %34, %35 : vector<32x288xf32>
    %37 = arith.truncf %36 : vector<32x288xf32> to vector<32x288xbf16>
    %c0_25 = arith.constant 0 : index
    %c0_26 = arith.constant 0 : index
    %38 = vector.load %arg4[%c0_25, %c0_26] : memref<288x288xbf16, #tpu.memory_space<vmem>>, vector<288x288xbf16>
    %cst_27 = arith.constant dense<0.000000e+00> : vector<32x288xf32>
    %39 = tpu.matmul %37, %38, %cst_27 {dimension_numbers = #tpu.dot_dimension_numbers<[1], [0], [0], [1], [0, 0, 1, 1], [], []>} : vector<32x288xbf16>, vector<288x288xbf16>, vector<32x288xf32> -> vector<32x288xf32>
    %cst_28 = arith.constant dense<0.000000e+00> : vector<288xf32>
    %40 = vector.multi_reduction <add>, %39, %cst_28 [0] : vector<32x288xf32> to vector<288xf32>
    %41 = vector.shape_cast %40 : vector<288xf32> to vector<1x288xf32>
    %42 = arith.mulf %39, %39 : vector<32x288xf32>
    %cst_29 = arith.constant dense<0.000000e+00> : vector<288xf32>
    %43 = vector.multi_reduction <add>, %42, %cst_29 [0] : vector<32x288xf32> to vector<288xf32>
    %44 = vector.shape_cast %43 : vector<288xf32> to vector<1x288xf32>
    %c0_30 = arith.constant 0 : index
    %c0_31 = arith.constant 0 : index
    %45 = vector.load %arg22[%c0_30, %c0_31] : memref<288x32xf32, #tpu.memory_space<vmem>>, vector<288x32xf32>
    %cst_32 = arith.constant dense<0.000000e+00> : vector<1x32xf32>
    %46 = tpu.matmul %41, %45, %cst_32 {dimension_numbers = #tpu.dot_dimension_numbers<[1], [0], [0], [1], [0, 0, 1, 1], [], []>} : vector<1x288xf32>, vector<288x32xf32>, vector<1x32xf32> -> vector<1x32xf32>
    %cst_33 = arith.constant 0.00347222225 : f32
    %47 = vector.broadcast %cst_33 : f32 to vector<1x32xf32>
    %48 = arith.mulf %46, %47 : vector<1x32xf32>
    %c0_34 = arith.constant 0 : index
    %c0_35 = arith.constant 0 : index
    %49 = vector.load %arg22[%c0_34, %c0_35] : memref<288x32xf32, #tpu.memory_space<vmem>>, vector<288x32xf32>
    %cst_36 = arith.constant dense<0.000000e+00> : vector<1x32xf32>
    %50 = tpu.matmul %44, %49, %cst_36 {dimension_numbers = #tpu.dot_dimension_numbers<[1], [0], [0], [1], [0, 0, 1, 1], [], []>} : vector<1x288xf32>, vector<288x32xf32>, vector<1x32xf32> -> vector<1x32xf32>
    %cst_37 = arith.constant 0.00347222225 : f32
    %51 = vector.broadcast %cst_37 : f32 to vector<1x32xf32>
    %52 = arith.mulf %50, %51 : vector<1x32xf32>
    %53 = arith.mulf %48, %48 : vector<1x32xf32>
    %54 = arith.subf %52, %53 : vector<1x32xf32>
    %c0_38 = arith.constant 0 : index
    %c0_39 = arith.constant 0 : index
    %55 = vector.load %arg5[%c0_38, %c0_39] : memref<1x32xf32, #tpu.memory_space<vmem>>, vector<1x32xf32>
    %cst_40 = arith.constant 9.99999974E-6 : f32
    %56 = vector.broadcast %cst_40 : f32 to vector<1x32xf32>
    %57 = arith.addf %54, %56 : vector<1x32xf32>
    %58 = math.rsqrt %57 : vector<1x32xf32>
    %59 = arith.mulf %55, %58 : vector<1x32xf32>
    %c0_41 = arith.constant 0 : index
    %c0_42 = arith.constant 0 : index
    %60 = vector.load %arg6[%c0_41, %c0_42] : memref<1x32xf32, #tpu.memory_space<vmem>>, vector<1x32xf32>
    %61 = arith.mulf %48, %59 : vector<1x32xf32>
    %62 = arith.subf %60, %61 : vector<1x32xf32>
    %c0_43 = arith.constant 0 : index
    %c0_44 = arith.constant 0 : index
    %63 = vector.load %arg23[%c0_43, %c0_44] : memref<32x288xf32, #tpu.memory_space<vmem>>, vector<32x288xf32>
    %cst_45 = arith.constant dense<0.000000e+00> : vector<1x288xf32>
    %64 = tpu.matmul %59, %63, %cst_45 {dimension_numbers = #tpu.dot_dimension_numbers<[1], [0], [0], [1], [0, 0, 1, 1], [], []>} : vector<1x32xf32>, vector<32x288xf32>, vector<1x288xf32> -> vector<1x288xf32>
    %c0_46 = arith.constant 0 : index
    %c0_47 = arith.constant 0 : index
    %65 = vector.load %arg23[%c0_46, %c0_47] : memref<32x288xf32, #tpu.memory_space<vmem>>, vector<32x288xf32>
    %cst_48 = arith.constant dense<0.000000e+00> : vector<1x288xf32>
    %66 = tpu.matmul %62, %65, %cst_48 {dimension_numbers = #tpu.dot_dimension_numbers<[1], [0], [0], [1], [0, 0, 1, 1], [], []>} : vector<1x32xf32>, vector<32x288xf32>, vector<1x288xf32> -> vector<1x288xf32>
    %67 = vector.broadcast %64 : vector<1x288xf32> to vector<32x288xf32>
    %68 = arith.mulf %39, %67 : vector<32x288xf32>
    %69 = vector.broadcast %66 : vector<1x288xf32> to vector<32x288xf32>
    %70 = arith.addf %68, %69 : vector<32x288xf32>
    %cst_49 = arith.constant 0.000000e+00 : f32
    %71 = vector.broadcast %cst_49 : f32 to vector<32x288xf32>
    %72 = arith.maximumf %70, %71 : vector<32x288xf32>
    %73 = arith.truncf %72 : vector<32x288xf32> to vector<32x288xbf16>
    %c0_50 = arith.constant 0 : index
    %c0_51 = arith.constant 0 : index
    %74 = vector.load %arg7[%c0_50, %c0_51] : memref<288x288xbf16, #tpu.memory_space<vmem>>, vector<288x288xbf16>
    %cst_52 = arith.constant dense<0.000000e+00> : vector<32x288xf32>
    %75 = tpu.matmul %73, %74, %cst_52 {dimension_numbers = #tpu.dot_dimension_numbers<[1], [0], [0], [1], [0, 0, 1, 1], [], []>} : vector<32x288xbf16>, vector<288x288xbf16>, vector<32x288xf32> -> vector<32x288xf32>
    %cst_53 = arith.constant dense<0.000000e+00> : vector<288xf32>
    %76 = vector.multi_reduction <add>, %75, %cst_53 [0] : vector<32x288xf32> to vector<288xf32>
    %77 = vector.shape_cast %76 : vector<288xf32> to vector<1x288xf32>
    %78 = arith.mulf %75, %75 : vector<32x288xf32>
    %cst_54 = arith.constant dense<0.000000e+00> : vector<288xf32>
    %79 = vector.multi_reduction <add>, %78, %cst_54 [0] : vector<32x288xf32> to vector<288xf32>
    %80 = vector.shape_cast %79 : vector<288xf32> to vector<1x288xf32>
    %c0_55 = arith.constant 0 : index
    %c0_56 = arith.constant 0 : index
    %81 = vector.load %arg22[%c0_55, %c0_56] : memref<288x32xf32, #tpu.memory_space<vmem>>, vector<288x32xf32>
    %cst_57 = arith.constant dense<0.000000e+00> : vector<1x32xf32>
    %82 = tpu.matmul %77, %81, %cst_57 {dimension_numbers = #tpu.dot_dimension_numbers<[1], [0], [0], [1], [0, 0, 1, 1], [], []>} : vector<1x288xf32>, vector<288x32xf32>, vector<1x32xf32> -> vector<1x32xf32>
    %cst_58 = arith.constant 0.00347222225 : f32
    %83 = vector.broadcast %cst_58 : f32 to vector<1x32xf32>
    %84 = arith.mulf %82, %83 : vector<1x32xf32>
    %c0_59 = arith.constant 0 : index
    %c0_60 = arith.constant 0 : index
    %85 = vector.load %arg22[%c0_59, %c0_60] : memref<288x32xf32, #tpu.memory_space<vmem>>, vector<288x32xf32>
    %cst_61 = arith.constant dense<0.000000e+00> : vector<1x32xf32>
    %86 = tpu.matmul %80, %85, %cst_61 {dimension_numbers = #tpu.dot_dimension_numbers<[1], [0], [0], [1], [0, 0, 1, 1], [], []>} : vector<1x288xf32>, vector<288x32xf32>, vector<1x32xf32> -> vector<1x32xf32>
    %cst_62 = arith.constant 0.00347222225 : f32
    %87 = vector.broadcast %cst_62 : f32 to vector<1x32xf32>
    %88 = arith.mulf %86, %87 : vector<1x32xf32>
    %89 = arith.mulf %84, %84 : vector<1x32xf32>
    %90 = arith.subf %88, %89 : vector<1x32xf32>
    %c0_63 = arith.constant 0 : index
    %c0_64 = arith.constant 0 : index
    %91 = vector.load %arg8[%c0_63, %c0_64] : memref<1x32xf32, #tpu.memory_space<vmem>>, vector<1x32xf32>
    %cst_65 = arith.constant 9.99999974E-6 : f32
    %92 = vector.broadcast %cst_65 : f32 to vector<1x32xf32>
    %93 = arith.addf %90, %92 : vector<1x32xf32>
    %94 = math.rsqrt %93 : vector<1x32xf32>
    %95 = arith.mulf %91, %94 : vector<1x32xf32>
    %c0_66 = arith.constant 0 : index
    %c0_67 = arith.constant 0 : index
    %96 = vector.load %arg9[%c0_66, %c0_67] : memref<1x32xf32, #tpu.memory_space<vmem>>, vector<1x32xf32>
    %97 = arith.mulf %84, %95 : vector<1x32xf32>
    %98 = arith.subf %96, %97 : vector<1x32xf32>
    %c0_68 = arith.constant 0 : index
    %c0_69 = arith.constant 0 : index
    %99 = vector.load %arg23[%c0_68, %c0_69] : memref<32x288xf32, #tpu.memory_space<vmem>>, vector<32x288xf32>
    %cst_70 = arith.constant dense<0.000000e+00> : vector<1x288xf32>
    %100 = tpu.matmul %95, %99, %cst_70 {dimension_numbers = #tpu.dot_dimension_numbers<[1], [0], [0], [1], [0, 0, 1, 1], [], []>} : vector<1x32xf32>, vector<32x288xf32>, vector<1x288xf32> -> vector<1x288xf32>
    %c0_71 = arith.constant 0 : index
    %c0_72 = arith.constant 0 : index
    %101 = vector.load %arg23[%c0_71, %c0_72] : memref<32x288xf32, #tpu.memory_space<vmem>>, vector<32x288xf32>
    %cst_73 = arith.constant dense<0.000000e+00> : vector<1x288xf32>
    %102 = tpu.matmul %98, %101, %cst_73 {dimension_numbers = #tpu.dot_dimension_numbers<[1], [0], [0], [1], [0, 0, 1, 1], [], []>} : vector<1x32xf32>, vector<32x288xf32>, vector<1x288xf32> -> vector<1x288xf32>
    %103 = vector.broadcast %100 : vector<1x288xf32> to vector<32x288xf32>
    %104 = arith.mulf %75, %103 : vector<32x288xf32>
    %105 = vector.broadcast %102 : vector<1x288xf32> to vector<32x288xf32>
    %106 = arith.addf %104, %105 : vector<32x288xf32>
    %107 = arith.addf %106, %36 : vector<32x288xf32>
    %cst_74 = arith.constant 0.000000e+00 : f32
    %108 = vector.broadcast %cst_74 : f32 to vector<32x288xf32>
    %109 = arith.maximumf %107, %108 : vector<32x288xf32>
    %110 = arith.truncf %109 : vector<32x288xf32> to vector<32x288xbf16>
    %c0_75 = arith.constant 0 : index
    %c0_76 = arith.constant 0 : index
    %111 = vector.load %arg10[%c0_75, %c0_76] : memref<288x288xbf16, #tpu.memory_space<vmem>>, vector<288x288xbf16>
    %cst_77 = arith.constant dense<0.000000e+00> : vector<32x288xf32>
    %112 = tpu.matmul %110, %111, %cst_77 {dimension_numbers = #tpu.dot_dimension_numbers<[1], [0], [0], [1], [0, 0, 1, 1], [], []>} : vector<32x288xbf16>, vector<288x288xbf16>, vector<32x288xf32> -> vector<32x288xf32>
    %cst_78 = arith.constant dense<0.000000e+00> : vector<288xf32>
    %113 = vector.multi_reduction <add>, %112, %cst_78 [0] : vector<32x288xf32> to vector<288xf32>
    %114 = vector.shape_cast %113 : vector<288xf32> to vector<1x288xf32>
    %115 = arith.mulf %112, %112 : vector<32x288xf32>
    %cst_79 = arith.constant dense<0.000000e+00> : vector<288xf32>
    %116 = vector.multi_reduction <add>, %115, %cst_79 [0] : vector<32x288xf32> to vector<288xf32>
    %117 = vector.shape_cast %116 : vector<288xf32> to vector<1x288xf32>
    %c0_80 = arith.constant 0 : index
    %c0_81 = arith.constant 0 : index
    %118 = vector.load %arg22[%c0_80, %c0_81] : memref<288x32xf32, #tpu.memory_space<vmem>>, vector<288x32xf32>
    %cst_82 = arith.constant dense<0.000000e+00> : vector<1x32xf32>
    %119 = tpu.matmul %114, %118, %cst_82 {dimension_numbers = #tpu.dot_dimension_numbers<[1], [0], [0], [1], [0, 0, 1, 1], [], []>} : vector<1x288xf32>, vector<288x32xf32>, vector<1x32xf32> -> vector<1x32xf32>
    %cst_83 = arith.constant 0.00347222225 : f32
    %120 = vector.broadcast %cst_83 : f32 to vector<1x32xf32>
    %121 = arith.mulf %119, %120 : vector<1x32xf32>
    %c0_84 = arith.constant 0 : index
    %c0_85 = arith.constant 0 : index
    %122 = vector.load %arg22[%c0_84, %c0_85] : memref<288x32xf32, #tpu.memory_space<vmem>>, vector<288x32xf32>
    %cst_86 = arith.constant dense<0.000000e+00> : vector<1x32xf32>
    %123 = tpu.matmul %117, %122, %cst_86 {dimension_numbers = #tpu.dot_dimension_numbers<[1], [0], [0], [1], [0, 0, 1, 1], [], []>} : vector<1x288xf32>, vector<288x32xf32>, vector<1x32xf32> -> vector<1x32xf32>
    %cst_87 = arith.constant 0.00347222225 : f32
    %124 = vector.broadcast %cst_87 : f32 to vector<1x32xf32>
    %125 = arith.mulf %123, %124 : vector<1x32xf32>
    %126 = arith.mulf %121, %121 : vector<1x32xf32>
    %127 = arith.subf %125, %126 : vector<1x32xf32>
    %c0_88 = arith.constant 0 : index
    %c0_89 = arith.constant 0 : index
    %128 = vector.load %arg11[%c0_88, %c0_89] : memref<1x32xf32, #tpu.memory_space<vmem>>, vector<1x32xf32>
    %cst_90 = arith.constant 9.99999974E-6 : f32
    %129 = vector.broadcast %cst_90 : f32 to vector<1x32xf32>
    %130 = arith.addf %127, %129 : vector<1x32xf32>
    %131 = math.rsqrt %130 : vector<1x32xf32>
    %132 = arith.mulf %128, %131 : vector<1x32xf32>
    %c0_91 = arith.constant 0 : index
    %c0_92 = arith.constant 0 : index
    %133 = vector.load %arg12[%c0_91, %c0_92] : memref<1x32xf32, #tpu.memory_space<vmem>>, vector<1x32xf32>
    %134 = arith.mulf %121, %132 : vector<1x32xf32>
    %135 = arith.subf %133, %134 : vector<1x32xf32>
    %c0_93 = arith.constant 0 : index
    %c0_94 = arith.constant 0 : index
    %136 = vector.load %arg23[%c0_93, %c0_94] : memref<32x288xf32, #tpu.memory_space<vmem>>, vector<32x288xf32>
    %cst_95 = arith.constant dense<0.000000e+00> : vector<1x288xf32>
    %137 = tpu.matmul %132, %136, %cst_95 {dimension_numbers = #tpu.dot_dimension_numbers<[1], [0], [0], [1], [0, 0, 1, 1], [], []>} : vector<1x32xf32>, vector<32x288xf32>, vector<1x288xf32> -> vector<1x288xf32>
    %c0_96 = arith.constant 0 : index
    %c0_97 = arith.constant 0 : index
    %138 = vector.load %arg23[%c0_96, %c0_97] : memref<32x288xf32, #tpu.memory_space<vmem>>, vector<32x288xf32>
    %cst_98 = arith.constant dense<0.000000e+00> : vector<1x288xf32>
    %139 = tpu.matmul %135, %138, %cst_98 {dimension_numbers = #tpu.dot_dimension_numbers<[1], [0], [0], [1], [0, 0, 1, 1], [], []>} : vector<1x32xf32>, vector<32x288xf32>, vector<1x288xf32> -> vector<1x288xf32>
    %140 = vector.broadcast %137 : vector<1x288xf32> to vector<32x288xf32>
    %141 = arith.mulf %112, %140 : vector<32x288xf32>
    %142 = vector.broadcast %139 : vector<1x288xf32> to vector<32x288xf32>
    %143 = arith.addf %141, %142 : vector<32x288xf32>
    %cst_99 = arith.constant 0.000000e+00 : f32
    %144 = vector.broadcast %cst_99 : f32 to vector<32x288xf32>
    %145 = arith.maximumf %143, %144 : vector<32x288xf32>
    %146 = arith.truncf %145 : vector<32x288xf32> to vector<32x288xbf16>
    %c0_100 = arith.constant 0 : index
    %c0_101 = arith.constant 0 : index
    %147 = vector.load %arg13[%c0_100, %c0_101] : memref<288x288xbf16, #tpu.memory_space<vmem>>, vector<288x288xbf16>
    %cst_102 = arith.constant dense<0.000000e+00> : vector<32x288xf32>
    %148 = tpu.matmul %146, %147, %cst_102 {dimension_numbers = #tpu.dot_dimension_numbers<[1], [0], [0], [1], [0, 0, 1, 1], [], []>} : vector<32x288xbf16>, vector<288x288xbf16>, vector<32x288xf32> -> vector<32x288xf32>
    %cst_103 = arith.constant dense<0.000000e+00> : vector<288xf32>
    %149 = vector.multi_reduction <add>, %148, %cst_103 [0] : vector<32x288xf32> to vector<288xf32>
    %150 = vector.shape_cast %149 : vector<288xf32> to vector<1x288xf32>
    %151 = arith.mulf %148, %148 : vector<32x288xf32>
    %cst_104 = arith.constant dense<0.000000e+00> : vector<288xf32>
    %152 = vector.multi_reduction <add>, %151, %cst_104 [0] : vector<32x288xf32> to vector<288xf32>
    %153 = vector.shape_cast %152 : vector<288xf32> to vector<1x288xf32>
    %c0_105 = arith.constant 0 : index
    %c0_106 = arith.constant 0 : index
    %154 = vector.load %arg22[%c0_105, %c0_106] : memref<288x32xf32, #tpu.memory_space<vmem>>, vector<288x32xf32>
    %cst_107 = arith.constant dense<0.000000e+00> : vector<1x32xf32>
    %155 = tpu.matmul %150, %154, %cst_107 {dimension_numbers = #tpu.dot_dimension_numbers<[1], [0], [0], [1], [0, 0, 1, 1], [], []>} : vector<1x288xf32>, vector<288x32xf32>, vector<1x32xf32> -> vector<1x32xf32>
    %cst_108 = arith.constant 0.00347222225 : f32
    %156 = vector.broadcast %cst_108 : f32 to vector<1x32xf32>
    %157 = arith.mulf %155, %156 : vector<1x32xf32>
    %c0_109 = arith.constant 0 : index
    %c0_110 = arith.constant 0 : index
    %158 = vector.load %arg22[%c0_109, %c0_110] : memref<288x32xf32, #tpu.memory_space<vmem>>, vector<288x32xf32>
    %cst_111 = arith.constant dense<0.000000e+00> : vector<1x32xf32>
    %159 = tpu.matmul %153, %158, %cst_111 {dimension_numbers = #tpu.dot_dimension_numbers<[1], [0], [0], [1], [0, 0, 1, 1], [], []>} : vector<1x288xf32>, vector<288x32xf32>, vector<1x32xf32> -> vector<1x32xf32>
    %cst_112 = arith.constant 0.00347222225 : f32
    %160 = vector.broadcast %cst_112 : f32 to vector<1x32xf32>
    %161 = arith.mulf %159, %160 : vector<1x32xf32>
    %162 = arith.mulf %157, %157 : vector<1x32xf32>
    %163 = arith.subf %161, %162 : vector<1x32xf32>
    %c0_113 = arith.constant 0 : index
    %c0_114 = arith.constant 0 : index
    %164 = vector.load %arg14[%c0_113, %c0_114] : memref<1x32xf32, #tpu.memory_space<vmem>>, vector<1x32xf32>
    %cst_115 = arith.constant 9.99999974E-6 : f32
    %165 = vector.broadcast %cst_115 : f32 to vector<1x32xf32>
    %166 = arith.addf %163, %165 : vector<1x32xf32>
    %167 = math.rsqrt %166 : vector<1x32xf32>
    %168 = arith.mulf %164, %167 : vector<1x32xf32>
    %c0_116 = arith.constant 0 : index
    %c0_117 = arith.constant 0 : index
    %169 = vector.load %arg15[%c0_116, %c0_117] : memref<1x32xf32, #tpu.memory_space<vmem>>, vector<1x32xf32>
    %170 = arith.mulf %157, %168 : vector<1x32xf32>
    %171 = arith.subf %169, %170 : vector<1x32xf32>
    %c0_118 = arith.constant 0 : index
    %c0_119 = arith.constant 0 : index
    %172 = vector.load %arg23[%c0_118, %c0_119] : memref<32x288xf32, #tpu.memory_space<vmem>>, vector<32x288xf32>
    %cst_120 = arith.constant dense<0.000000e+00> : vector<1x288xf32>
    %173 = tpu.matmul %168, %172, %cst_120 {dimension_numbers = #tpu.dot_dimension_numbers<[1], [0], [0], [1], [0, 0, 1, 1], [], []>} : vector<1x32xf32>, vector<32x288xf32>, vector<1x288xf32> -> vector<1x288xf32>
    %c0_121 = arith.constant 0 : index
    %c0_122 = arith.constant 0 : index
    %174 = vector.load %arg23[%c0_121, %c0_122] : memref<32x288xf32, #tpu.memory_space<vmem>>, vector<32x288xf32>
    %cst_123 = arith.constant dense<0.000000e+00> : vector<1x288xf32>
    %175 = tpu.matmul %171, %174, %cst_123 {dimension_numbers = #tpu.dot_dimension_numbers<[1], [0], [0], [1], [0, 0, 1, 1], [], []>} : vector<1x32xf32>, vector<32x288xf32>, vector<1x288xf32> -> vector<1x288xf32>
    %176 = vector.broadcast %173 : vector<1x288xf32> to vector<32x288xf32>
    %177 = arith.mulf %148, %176 : vector<32x288xf32>
    %178 = vector.broadcast %175 : vector<1x288xf32> to vector<32x288xf32>
    %179 = arith.addf %177, %178 : vector<32x288xf32>
    %180 = arith.addf %179, %109 : vector<32x288xf32>
    %cst_124 = arith.constant 0.000000e+00 : f32
    %181 = vector.broadcast %cst_124 : f32 to vector<32x288xf32>
    %182 = arith.maximumf %180, %181 : vector<32x288xf32>
    %183 = arith.truncf %182 : vector<32x288xf32> to vector<32x288xbf16>
    %c0_125 = arith.constant 0 : index
    %c0_126 = arith.constant 0 : index
    %184 = vector.load %arg16[%c0_125, %c0_126] : memref<288x288xbf16, #tpu.memory_space<vmem>>, vector<288x288xbf16>
    %cst_127 = arith.constant dense<0.000000e+00> : vector<32x288xf32>
    %185 = tpu.matmul %183, %184, %cst_127 {dimension_numbers = #tpu.dot_dimension_numbers<[1], [0], [0], [1], [0, 0, 1, 1], [], []>} : vector<32x288xbf16>, vector<288x288xbf16>, vector<32x288xf32> -> vector<32x288xf32>
    %cst_128 = arith.constant dense<0.000000e+00> : vector<288xf32>
    %186 = vector.multi_reduction <add>, %185, %cst_128 [0] : vector<32x288xf32> to vector<288xf32>
    %187 = vector.shape_cast %186 : vector<288xf32> to vector<1x288xf32>
    %188 = arith.mulf %185, %185 : vector<32x288xf32>
    %cst_129 = arith.constant dense<0.000000e+00> : vector<288xf32>
    %189 = vector.multi_reduction <add>, %188, %cst_129 [0] : vector<32x288xf32> to vector<288xf32>
    %190 = vector.shape_cast %189 : vector<288xf32> to vector<1x288xf32>
    %c0_130 = arith.constant 0 : index
    %c0_131 = arith.constant 0 : index
    %191 = vector.load %arg22[%c0_130, %c0_131] : memref<288x32xf32, #tpu.memory_space<vmem>>, vector<288x32xf32>
    %cst_132 = arith.constant dense<0.000000e+00> : vector<1x32xf32>
    %192 = tpu.matmul %187, %191, %cst_132 {dimension_numbers = #tpu.dot_dimension_numbers<[1], [0], [0], [1], [0, 0, 1, 1], [], []>} : vector<1x288xf32>, vector<288x32xf32>, vector<1x32xf32> -> vector<1x32xf32>
    %cst_133 = arith.constant 0.00347222225 : f32
    %193 = vector.broadcast %cst_133 : f32 to vector<1x32xf32>
    %194 = arith.mulf %192, %193 : vector<1x32xf32>
    %c0_134 = arith.constant 0 : index
    %c0_135 = arith.constant 0 : index
    %195 = vector.load %arg22[%c0_134, %c0_135] : memref<288x32xf32, #tpu.memory_space<vmem>>, vector<288x32xf32>
    %cst_136 = arith.constant dense<0.000000e+00> : vector<1x32xf32>
    %196 = tpu.matmul %190, %195, %cst_136 {dimension_numbers = #tpu.dot_dimension_numbers<[1], [0], [0], [1], [0, 0, 1, 1], [], []>} : vector<1x288xf32>, vector<288x32xf32>, vector<1x32xf32> -> vector<1x32xf32>
    %cst_137 = arith.constant 0.00347222225 : f32
    %197 = vector.broadcast %cst_137 : f32 to vector<1x32xf32>
    %198 = arith.mulf %196, %197 : vector<1x32xf32>
    %199 = arith.mulf %194, %194 : vector<1x32xf32>
    %200 = arith.subf %198, %199 : vector<1x32xf32>
    %c0_138 = arith.constant 0 : index
    %c0_139 = arith.constant 0 : index
    %201 = vector.load %arg17[%c0_138, %c0_139] : memref<1x32xf32, #tpu.memory_space<vmem>>, vector<1x32xf32>
    %cst_140 = arith.constant 9.99999974E-6 : f32
    %202 = vector.broadcast %cst_140 : f32 to vector<1x32xf32>
    %203 = arith.addf %200, %202 : vector<1x32xf32>
    %204 = math.rsqrt %203 : vector<1x32xf32>
    %205 = arith.mulf %201, %204 : vector<1x32xf32>
    %c0_141 = arith.constant 0 : index
    %c0_142 = arith.constant 0 : index
    %206 = vector.load %arg18[%c0_141, %c0_142] : memref<1x32xf32, #tpu.memory_space<vmem>>, vector<1x32xf32>
    %207 = arith.mulf %194, %205 : vector<1x32xf32>
    %208 = arith.subf %206, %207 : vector<1x32xf32>
    %c0_143 = arith.constant 0 : index
    %c0_144 = arith.constant 0 : index
    %209 = vector.load %arg23[%c0_143, %c0_144] : memref<32x288xf32, #tpu.memory_space<vmem>>, vector<32x288xf32>
    %cst_145 = arith.constant dense<0.000000e+00> : vector<1x288xf32>
    %210 = tpu.matmul %205, %209, %cst_145 {dimension_numbers = #tpu.dot_dimension_numbers<[1], [0], [0], [1], [0, 0, 1, 1], [], []>} : vector<1x32xf32>, vector<32x288xf32>, vector<1x288xf32> -> vector<1x288xf32>
    %c0_146 = arith.constant 0 : index
    %c0_147 = arith.constant 0 : index
    %211 = vector.load %arg23[%c0_146, %c0_147] : memref<32x288xf32, #tpu.memory_space<vmem>>, vector<32x288xf32>
    %cst_148 = arith.constant dense<0.000000e+00> : vector<1x288xf32>
    %212 = tpu.matmul %208, %211, %cst_148 {dimension_numbers = #tpu.dot_dimension_numbers<[1], [0], [0], [1], [0, 0, 1, 1], [], []>} : vector<1x32xf32>, vector<32x288xf32>, vector<1x288xf32> -> vector<1x288xf32>
    %213 = vector.broadcast %210 : vector<1x288xf32> to vector<32x288xf32>
    %214 = arith.mulf %185, %213 : vector<32x288xf32>
    %215 = vector.broadcast %212 : vector<1x288xf32> to vector<32x288xf32>
    %216 = arith.addf %214, %215 : vector<32x288xf32>
    %cst_149 = arith.constant 0.000000e+00 : f32
    %217 = vector.broadcast %cst_149 : f32 to vector<32x288xf32>
    %218 = arith.maximumf %216, %217 : vector<32x288xf32>
    %219 = arith.truncf %182 : vector<32x288xf32> to vector<32x288xbf16>
    %c0_150 = arith.constant 0 : index
    %c0_151 = arith.constant 0 : index
    %220 = vector.load %arg19[%c0_150, %c0_151] : memref<288x27xbf16, #tpu.memory_space<vmem>>, vector<288x27xbf16>
    %cst_152 = arith.constant dense<0.000000e+00> : vector<32x27xf32>
    %221 = tpu.matmul %219, %220, %cst_152 {dimension_numbers = #tpu.dot_dimension_numbers<[1], [0], [0], [1], [0, 0, 1, 1], [], []>} : vector<32x288xbf16>, vector<288x27xbf16>, vector<32x27xf32> -> vector<32x27xf32>
    %cst_153 = arith.constant dense<0.000000e+00> : vector<27xf32>
    %222 = vector.multi_reduction <add>, %221, %cst_153 [0] : vector<32x27xf32> to vector<27xf32>
    %223 = vector.shape_cast %222 : vector<27xf32> to vector<1x27xf32>
    %224 = arith.mulf %221, %221 : vector<32x27xf32>
    %cst_154 = arith.constant dense<0.000000e+00> : vector<27xf32>
    %225 = vector.multi_reduction <add>, %224, %cst_154 [0] : vector<32x27xf32> to vector<27xf32>
    %226 = vector.shape_cast %225 : vector<27xf32> to vector<1x27xf32>
    %c0_155 = arith.constant 0 : index
    %c0_156 = arith.constant 0 : index
    %227 = vector.load %arg24[%c0_155, %c0_156] : memref<27x3xf32, #tpu.memory_space<vmem>>, vector<27x3xf32>
    %cst_157 = arith.constant dense<0.000000e+00> : vector<1x3xf32>
    %228 = tpu.matmul %223, %227, %cst_157 {dimension_numbers = #tpu.dot_dimension_numbers<[1], [0], [0], [1], [0, 0, 1, 1], [], []>} : vector<1x27xf32>, vector<27x3xf32>, vector<1x3xf32> -> vector<1x3xf32>
    %cst_158 = arith.constant 0.00347222225 : f32
    %229 = vector.broadcast %cst_158 : f32 to vector<1x3xf32>
    %230 = arith.mulf %228, %229 : vector<1x3xf32>
    %c0_159 = arith.constant 0 : index
    %c0_160 = arith.constant 0 : index
    %231 = vector.load %arg24[%c0_159, %c0_160] : memref<27x3xf32, #tpu.memory_space<vmem>>, vector<27x3xf32>
    %cst_161 = arith.constant dense<0.000000e+00> : vector<1x3xf32>
    %232 = tpu.matmul %226, %231, %cst_161 {dimension_numbers = #tpu.dot_dimension_numbers<[1], [0], [0], [1], [0, 0, 1, 1], [], []>} : vector<1x27xf32>, vector<27x3xf32>, vector<1x3xf32> -> vector<1x3xf32>
    %cst_162 = arith.constant 0.00347222225 : f32
    %233 = vector.broadcast %cst_162 : f32 to vector<1x3xf32>
    %234 = arith.mulf %232, %233 : vector<1x3xf32>
    %235 = arith.mulf %230, %230 : vector<1x3xf32>
    %236 = arith.subf %234, %235 : vector<1x3xf32>
    %c0_163 = arith.constant 0 : index
    %c0_164 = arith.constant 0 : index
    %237 = vector.load %arg20[%c0_163, %c0_164] : memref<1x3xf32, #tpu.memory_space<vmem>>, vector<1x3xf32>
    %cst_165 = arith.constant 9.99999974E-6 : f32
    %238 = vector.broadcast %cst_165 : f32 to vector<1x3xf32>
    %239 = arith.addf %236, %238 : vector<1x3xf32>
    %240 = math.rsqrt %239 : vector<1x3xf32>
    %241 = arith.mulf %237, %240 : vector<1x3xf32>
    %c0_166 = arith.constant 0 : index
    %c0_167 = arith.constant 0 : index
    %242 = vector.load %arg21[%c0_166, %c0_167] : memref<1x3xf32, #tpu.memory_space<vmem>>, vector<1x3xf32>
    %243 = arith.mulf %230, %241 : vector<1x3xf32>
    %244 = arith.subf %242, %243 : vector<1x3xf32>
    %c0_168 = arith.constant 0 : index
    %c0_169 = arith.constant 0 : index
    %245 = vector.load %arg25[%c0_168, %c0_169] : memref<3x27xf32, #tpu.memory_space<vmem>>, vector<3x27xf32>
    %cst_170 = arith.constant dense<0.000000e+00> : vector<1x27xf32>
    %246 = tpu.matmul %241, %245, %cst_170 {dimension_numbers = #tpu.dot_dimension_numbers<[1], [0], [0], [1], [0, 0, 1, 1], [], []>} : vector<1x3xf32>, vector<3x27xf32>, vector<1x27xf32> -> vector<1x27xf32>
    %c0_171 = arith.constant 0 : index
    %c0_172 = arith.constant 0 : index
    %247 = vector.load %arg25[%c0_171, %c0_172] : memref<3x27xf32, #tpu.memory_space<vmem>>, vector<3x27xf32>
    %cst_173 = arith.constant dense<0.000000e+00> : vector<1x27xf32>
    %248 = tpu.matmul %244, %247, %cst_173 {dimension_numbers = #tpu.dot_dimension_numbers<[1], [0], [0], [1], [0, 0, 1, 1], [], []>} : vector<1x3xf32>, vector<3x27xf32>, vector<1x27xf32> -> vector<1x27xf32>
    %249 = vector.broadcast %246 : vector<1x27xf32> to vector<32x27xf32>
    %250 = arith.mulf %221, %249 : vector<32x27xf32>
    %251 = vector.broadcast %248 : vector<1x27xf32> to vector<32x27xf32>
    %252 = arith.addf %250, %251 : vector<32x27xf32>
    %cst_174 = arith.constant 0.000000e+00 : f32
    %253 = vector.broadcast %cst_174 : f32 to vector<32x27xf32>
    %254 = arith.maximumf %252, %253 : vector<32x27xf32>
    %c0_175 = arith.constant 0 : index
    %c0_176 = arith.constant 0 : index
    %255 = vector.load %arg26[%c0_175, %c0_176] : memref<288x9xf32, #tpu.memory_space<vmem>>, vector<288x9xf32>
    %cst_177 = arith.constant dense<0.000000e+00> : vector<32x9xf32>
    %256 = tpu.matmul %218, %255, %cst_177 {dimension_numbers = #tpu.dot_dimension_numbers<[1], [0], [0], [1], [0, 0, 1, 1], [], []>} : vector<32x288xf32>, vector<288x9xf32>, vector<32x9xf32> -> vector<32x9xf32>
    %c0_178 = arith.constant 0 : index
    %c0_179 = arith.constant 0 : index
    %257 = vector.load %arg27[%c0_178, %c0_179] : memref<1x9xf32, #tpu.memory_space<vmem>>, vector<1x9xf32>
    %258 = vector.broadcast %257 : vector<1x9xf32> to vector<32x9xf32>
    %259 = arith.addf %256, %258 : vector<32x9xf32>
    %c0_180 = arith.constant 0 : index
    %c0_181 = arith.constant 0 : index
    %260 = vector.load %arg30[%c0_180, %c0_181] : memref<32x9xf32, #tpu.memory_space<vmem>>, vector<32x9xf32>
    tpu.vector_store %arg30[%c0_180, %c0_181], %259 {strides = array<i32>} : memref<32x9xf32, #tpu.memory_space<vmem>>, vector<32x9xf32>,
    %c0_182 = arith.constant 0 : index
    %c0_183 = arith.constant 0 : index
    %261 = vector.load %arg28[%c0_182, %c0_183] : memref<27x1xf32, #tpu.memory_space<vmem>>, vector<27x1xf32>
    %cst_184 = arith.constant dense<0.000000e+00> : vector<32x1xf32>
    %262 = tpu.matmul %254, %261, %cst_184 {dimension_numbers = #tpu.dot_dimension_numbers<[1], [0], [0], [1], [0, 0, 1, 1], [], []>} : vector<32x27xf32>, vector<27x1xf32>, vector<32x1xf32> -> vector<32x1xf32>
    %c0_185 = arith.constant 0 : index
    %c0_186 = arith.constant 0 : index
    %263 = vector.load %arg29[%c0_185, %c0_186] : memref<1x1xf32, #tpu.memory_space<vmem>>, vector<1x1xf32>
    %264 = vector.broadcast %263 : vector<1x1xf32> to vector<32x1xf32>
    %265 = arith.addf %262, %264 : vector<32x1xf32>
    %266 = math.tanh %265 : vector<32x1xf32>
    %c0_187 = arith.constant 0 : index
    %c0_188 = arith.constant 0 : index
    %267 = vector.load %arg31[%c0_187, %c0_188] : memref<32x1xf32, #tpu.memory_space<vmem>>, vector<32x1xf32>
    tpu.vector_store %arg31[%c0_187, %c0_188], %266 {strides = array<i32>} : memref<32x1xf32, #tpu.memory_space<vmem>>, vector<32x1xf32>,
    return
  }
}

</mosaic_0001>

<llo_original>
// kernel: resnet_forward.1
$region0: #{resnet_forward.1}
  #allocation0 [shape = 'u32[]', space=smem, size = 0x4, offset = 0x4, fixed_abs, tag = 'smem constant byte address 0x4 - core index']
  #allocation1 [shape = 'u32[144,128]{1,0:T(1,128)}', space=vmem, size = 0x12000, scoped, tag = 'internal scratch']
  #allocation2 [shape = 'f32[1,1]{1,0:T(1,128)S(1)}', space=vmem, size = 0x200, scoped, tag = 'scoped memory for resnet_forward.1']
  %s0 = inlined_call_operand.smem [shape: u32[32], index: -1, kind: input, shape index: {}]
  %s1 = sld [smem:[%s0]]
  %s2 = scalar_lea.smem %s0, 1
  %s3 = sld [smem:[%s2]]
  %s4 = scalar_lea.smem %s0, 2
  %s5 = sld [smem:[%s4]]
  %s6 = scalar_lea.smem %s0, 3
  %s7 = sld [smem:[%s6]]
  %s8 = scalar_lea.smem %s0, 4
  %s9 = sld [smem:[%s8]]
  %s10 = scalar_lea.smem %s0, 5
  %s11 = sld [smem:[%s10]]
  %s12 = scalar_lea.smem %s0, 6
  %s13 = sld [smem:[%s12]]
  %s14 = scalar_lea.smem %s0, 7
  %s15 = sld [smem:[%s14]]
  %s16 = scalar_lea.smem %s0, 8
  %s17 = sld [smem:[%s16]]
  %s18 = scalar_lea.smem %s0, 9
  %s19 = sld [smem:[%s18]]
  %s20 = scalar_lea.smem %s0, 10
  %s21 = sld [smem:[%s20]]
  %s22 = scalar_lea.smem %s0, 11
  %s23 = sld [smem:[%s22]]
  %s24 = scalar_lea.smem %s0, 12
  %s25 = sld [smem:[%s24]]
  %s26 = scalar_lea.smem %s0, 13
  %s27 = sld [smem:[%s26]]
  %s28 = scalar_lea.smem %s0, 14
  %s29 = sld [smem:[%s28]]
  %s30 = scalar_lea.smem %s0, 15
  %s31 = sld [smem:[%s30]]
  %s32 = scalar_lea.smem %s0, 16
  %s33 = sld [smem:[%s32]]
  %s34 = scalar_lea.smem %s0, 17
  %s35 = sld [smem:[%s34]]
  %s36 = scalar_lea.smem %s0, 18
  %s37 = sld [smem:[%s36]]
  %s38 = scalar_lea.smem %s0, 19
  %s39 = sld [smem:[%s38]]
  %s40 = scalar_lea.smem %s0, 20
  %s41 = sld [smem:[%s40]]
  %s42 = scalar_lea.smem %s0, 21
  %s43 = sld [smem:[%s42]]
  %s44 = scalar_lea.smem %s0, 22
  %s45 = sld [smem:[%s44]]
  %s46 = scalar_lea.smem %s0, 23
  %s47 = sld [smem:[%s46]]
  %s48 = scalar_lea.smem %s0, 24
  %s49 = sld [smem:[%s48]]
  %s50 = scalar_lea.smem %s0, 25
  %s51 = sld [smem:[%s50]]
  %s52 = scalar_lea.smem %s0, 26
  %s53 = sld [smem:[%s52]]
  %s54 = scalar_lea.smem %s0, 27
  %s55 = sld [smem:[%s54]]
  %s56 = scalar_lea.smem %s0, 28
  %s57 = sld [smem:[%s56]]
  %s58 = scalar_lea.smem %s0, 29
  %s59 = sld [smem:[%s58]]
  %s60 = scalar_lea.smem %s0, 30
  %s61 = sld [smem:[%s60]]
  %s62 = scalar_lea.smem %s0, 31
  %s63 = sld [smem:[%s62]]
  %64 = xla_tuple %s61, %s63
  %s65 = sld [smem:[#allocation0]]
  $region174: #{resnet_forward.1} parent=0
    _
  %s67 = ssub.s32 1, %s65
  %s68 = scalar_select 0, %s67, %s65
  %v69 = vstv %s59
  %70 = vst [vmem:[#allocation2] sm:$0x1] %v69
  $region1: #{resnet_forward.1} parent=0
    #allocation3 [shape = 'u8[512]{0}', space=vmem, size = 0x400, scoped, tag = 'input window, operand 3, single buffered']
    #allocation4 [shape = 's32[1]{0}', space=sflag, size = 0x4, scoped, tag = 'scoped memory for resnet_forward.1']
    #allocation5 [shape = 'u8[512]{0}', space=vmem, size = 0x400, scoped, tag = 'input window, operand 6, single buffered']
    #allocation6 [shape = 's32[1]{0}', space=sflag, size = 0x4, scoped, tag = 'scoped memory for resnet_forward.1']
    #allocation7 [shape = 'u8[512]{0}', space=vmem, size = 0x400, scoped, tag = 'input window, operand 8, single buffered']
    #allocation8 [shape = 'u8[512]{0}', space=vmem, size = 0x400, scoped, tag = 'input window, operand 9, single buffered']
    #allocation9 [shape = 's32[1]{0}', space=sflag, size = 0x4, scoped, tag = 'scoped memory for resnet_forward.1']
    #allocation10 [shape = 'u8[221184]{0}', space=vmem, size = 0x36000, scoped, tag = 'input window, operand 10, single buffered']
    #allocation11 [shape = 'u8[221184]{0}', space=vmem, size = 0x36000, scoped, tag = 'input window, operand 13, single buffered']
    #allocation12 [shape = 's32[1]{0}', space=sflag, size = 0x4, scoped, tag = 'scoped memory for resnet_forward.1']
    #allocation13 [shape = 'u8[221184]{0}', space=vmem, size = 0x36000, scoped, tag = 'input window, operand 16, single buffered']
    #allocation14 [shape = 'u8[2048]{0}', space=vmem, size = 0x800, scoped, tag = 'input window, operand 25, single buffered']
    #allocation15 [shape = 's32[1]{0}', space=sflag, size = 0x4, scoped, tag = 'scoped memory for resnet_forward.1']
    #allocation16 [shape = 'u8[512]{0}', space=vmem, size = 0x400, scoped, tag = 'input window, operand 27, single buffered']
    %71 = vsyncpa [#allocation4], 0
    %72 = vsyncpa [#allocation6], 0
    %73 = vsyncpa [#allocation9], 0
    %74 = vsyncpa [#allocation12], 0
    %75 = vsyncpa [#allocation15], 0
    // Predicated region
    $region2: #{resnet_forward.1} parent=1 // pred_check
      _
    $region3: #{resnet_forward.1} parent=1 // pred_check_branch
      %77 = sbr.rel (0) target = $region5
    $region4: #{resnet_forward.1} parent=1 // pred_region
      _
    $region5: #{resnet_forward.1} parent=1 // pred_fallthru
      _
    // Predicated region
    $region6: #{resnet_forward.1} parent=1 // pred_check
      _
    $region7: #{resnet_forward.1} parent=1 // pred_check_branch
      %79 = sbr.rel (0) target = $region9
    $region8: #{resnet_forward.1} parent=1 // pred_region
      _
    $region9: #{resnet_forward.1} parent=1 // pred_fallthru
      _
    // Predicated region
    $region10: #{resnet_forward.1} parent=1 // pred_check
      _
    $region11: #{resnet_forward.1} parent=1 // pred_check_branch
      %81 = sbr.rel (0) target = $region13
    $region12: #{resnet_forward.1} parent=1 // pred_region
      _
    $region13: #{resnet_forward.1} parent=1 // pred_fallthru
      _
    // Predicated region
    $region14: #{resnet_forward.1} parent=1 // pred_check
      _
    $region15: #{resnet_forward.1} parent=1 // pred_check_branch
      %83 = sbr.rel (0) target = $region17
    $region16: #{resnet_forward.1} parent=1 // pred_region
      %s85 = ssub.s32 16, 16
      %86 = vsyncadd [#allocation4], %s85
      %s88 = sshll.u32 [#allocation3], 4
      %s89 = int_to_ptr.vmem [resolvable:$true] %s88
      %91 = dma.hbm_to_vmem [thread:$0]  %s7, 16, %s89, [#allocation4]
    $region17: #{resnet_forward.1} parent=1 // pred_fallthru
      _
    // Predicated region
    $region18: #{resnet_forward.1} parent=1 // pred_check
      _
    $region19: #{resnet_forward.1} parent=1 // pred_check_branch
      %93 = sbr.rel (0) target = $region21
    $region20: #{resnet_forward.1} parent=1 // pred_region
      _
    $region21: #{resnet_forward.1} parent=1 // pred_fallthru
      _
    // Predicated region
    $region22: #{resnet_forward.1} parent=1 // pred_check
      _
    $region23: #{resnet_forward.1} parent=1 // pred_check_branch
      %95 = sbr.rel (0) target = $region25
    $region24: #{resnet_forward.1} parent=1 // pred_region
      _
    $region25: #{resnet_forward.1} parent=1 // pred_fallthru
      _
    // Predicated region
    $region26: #{resnet_forward.1} parent=1 // pred_check
      _
    $region27: #{resnet_forward.1} parent=1 // pred_check_branch
      %97 = sbr.rel (0) target = $region29
    $region28: #{resnet_forward.1} parent=1 // pred_region
      %s99 = ssub.s32 16, 16
      %100 = vsyncadd [#allocation6], %s99
      %s102 = sshll.u32 [#allocation5], 4
      %s103 = int_to_ptr.vmem [resolvable:$true] %s102
      %105 = dma.hbm_to_vmem [thread:$0]  %s13, 16, %s103, [#allocation6]
    $region29: #{resnet_forward.1} parent=1 // pred_fallthru
      _
    // Predicated region
    $region30: #{resnet_forward.1} parent=1 // pred_check
      _
    $region31: #{resnet_forward.1} parent=1 // pred_check_branch
      %107 = sbr.rel (0) target = $region33
    $region32: #{resnet_forward.1} parent=1 // pred_region
      _
    $region33: #{resnet_forward.1} parent=1 // pred_fallthru
      _
    // Predicated region
    $region34: #{resnet_forward.1} parent=1 // pred_check
      _
    $region35: #{resnet_forward.1} parent=1 // pred_check_branch
      %109 = sbr.rel (0) target = $region37
    $region36: #{resnet_forward.1} parent=1 // pred_region
      %s111 = ssub.s32 16, 16
      %112 = vsyncadd [#allocation6], %s111
      %s114 = sshll.u32 [#allocation7], 4
      %s115 = int_to_ptr.vmem [resolvable:$true] %s114
      %117 = dma.hbm_to_vmem [thread:$0]  %s17, 16, %s115, [#allocation6]
    $region37: #{resnet_forward.1} parent=1 // pred_fallthru
      _
    // Predicated region
    $region38: #{resnet_forward.1} parent=1 // pred_check
      _
    $region39: #{resnet_forward.1} parent=1 // pred_check_branch
      %119 = sbr.rel (0) target = $region41
    $region40: #{resnet_forward.1} parent=1 // pred_region
      %s121 = ssub.s32 16, 16
      %122 = vsyncadd [#allocation9], %s121
      %s124 = sshll.u32 [#allocation8], 4
      %s125 = int_to_ptr.vmem [resolvable:$true] %s124
      %127 = dma.hbm_to_vmem [thread:$0]  %s19, 16, %s125, [#allocation9]
    $region41: #{resnet_forward.1} parent=1 // pred_fallthru
      _
    // Predicated region
    $region42: #{resnet_forward.1} parent=1 // pred_check
      _
    $region43: #{resnet_forward.1} parent=1 // pred_check_branch
      %129 = sbr.rel (0) target = $region45
    $region44: #{resnet_forward.1} parent=1 // pred_region
      %s131 = ssub.s32 6912, 6912
      %132 = vsyncadd [#allocation9], %s131
      %s133 = sshll.u32 [#allocation10], 4
      %s134 = int_to_ptr.vmem [resolvable:$true] %s133
      %139 = dma.hbm_to_vmem [thread:$0]  %s21, 6912, %s134, [#allocation9], 192, 192, 12
    $region45: #{resnet_forward.1} parent=1 // pred_fallthru
      _
    // Predicated region
    $region46: #{resnet_forward.1} parent=1 // pred_check
      _
    $region47: #{resnet_forward.1} parent=1 // pred_check_branch
      %141 = sbr.rel (0) target = $region49
    $region48: #{resnet_forward.1} parent=1 // pred_region
      _
    $region49: #{resnet_forward.1} parent=1 // pred_fallthru
      _
    // Predicated region
    $region50: #{resnet_forward.1} parent=1 // pred_check
      _
    $region51: #{resnet_forward.1} parent=1 // pred_check_branch
      %143 = sbr.rel (0) target = $region53
    $region52: #{resnet_forward.1} parent=1 // pred_region
      _
    $region53: #{resnet_forward.1} parent=1 // pred_fallthru
      _
    // Predicated region
    $region54: #{resnet_forward.1} parent=1 // pred_check
      _
    $region55: #{resnet_forward.1} parent=1 // pred_check_branch
      %145 = sbr.rel (0) target = $region57
    $region56: #{resnet_forward.1} parent=1 // pred_region
      %s147 = ssub.s32 6912, 6912
      %148 = vsyncadd [#allocation12], %s147
      %s149 = sshll.u32 [#allocation11], 4
      %s150 = int_to_ptr.vmem [resolvable:$true] %s149
      %155 = dma.hbm_to_vmem [thread:$0]  %s27, 6912, %s150, [#allocation12], 192, 192, 12
    $region57: #{resnet_forward.1} parent=1 // pred_fallthru
      _
    // Predicated region
    $region58: #{resnet_forward.1} parent=1 // pred_check
      _
    $region59: #{resnet_forward.1} parent=1 // pred_check_branch
      %157 = sbr.rel (0) target = $region61
    $region60: #{resnet_forward.1} parent=1 // pred_region
      _
    $region61: #{resnet_forward.1} parent=1 // pred_fallthru
      _
    // Predicated region
    $region62: #{resnet_forward.1} parent=1 // pred_check
      _
    $region63: #{resnet_forward.1} parent=1 // pred_check_branch
      %159 = sbr.rel (0) target = $region65
    $region64: #{resnet_forward.1} parent=1 // pred_region
      _
    $region65: #{resnet_forward.1} parent=1 // pred_fallthru
      _
    // Predicated region
    $region66: #{resnet_forward.1} parent=1 // pred_check
      _
    $region67: #{resnet_forward.1} parent=1 // pred_check_branch
      %161 = sbr.rel (0) target = $region69
    $region68: #{resnet_forward.1} parent=1 // pred_region
      %s163 = ssub.s32 6912, 6912
      %164 = vsyncadd [#allocation12], %s163
      %s165 = sshll.u32 [#allocation13], 4
      %s166 = int_to_ptr.vmem [resolvable:$true] %s165
      %171 = dma.hbm_to_vmem [thread:$0]  %s33, 6912, %s166, [#allocation12], 192, 192, 12
    $region69: #{resnet_forward.1} parent=1 // pred_fallthru
      _
    // Predicated region
    $region70: #{resnet_forward.1} parent=1 // pred_check
      _
    $region71: #{resnet_forward.1} parent=1 // pred_check_branch
      %173 = sbr.rel (0) target = $region73
    $region72: #{resnet_forward.1} parent=1 // pred_region
      _
    $region73: #{resnet_forward.1} parent=1 // pred_fallthru
      _
    // Predicated region
    $region74: #{resnet_forward.1} parent=1 // pred_check
      _
    $region75: #{resnet_forward.1} parent=1 // pred_check_branch
      %175 = sbr.rel (0) target = $region77
    $region76: #{resnet_forward.1} parent=1 // pred_region
      _
    $region77: #{resnet_forward.1} parent=1 // pred_fallthru
      _
    // Predicated region
    $region78: #{resnet_forward.1} parent=1 // pred_check
      _
    $region79: #{resnet_forward.1} parent=1 // pred_check_branch
      %177 = sbr.rel (0) target = $region81
    $region80: #{resnet_forward.1} parent=1 // pred_region
      _
    $region81: #{resnet_forward.1} parent=1 // pred_fallthru
      _
    // Predicated region
    $region82: #{resnet_forward.1} parent=1 // pred_check
      _
    $region83: #{resnet_forward.1} parent=1 // pred_check_branch
      %179 = sbr.rel (0) target = $region85
    $region84: #{resnet_forward.1} parent=1 // pred_region
      _
    $region85: #{resnet_forward.1} parent=1 // pred_fallthru
      _
    // Predicated region
    $region86: #{resnet_forward.1} parent=1 // pred_check
      _
    $region87: #{resnet_forward.1} parent=1 // pred_check_branch
      %181 = sbr.rel (0) target = $region89
    $region88: #{resnet_forward.1} parent=1 // pred_region
      _
    $region89: #{resnet_forward.1} parent=1 // pred_fallthru
      _
    // Predicated region
    $region90: #{resnet_forward.1} parent=1 // pred_check
      _
    $region91: #{resnet_forward.1} parent=1 // pred_check_branch
      %183 = sbr.rel (0) target = $region93
    $region92: #{resnet_forward.1} parent=1 // pred_region
      _
    $region93: #{resnet_forward.1} parent=1 // pred_fallthru
      _
    // Predicated region
    $region94: #{resnet_forward.1} parent=1 // pred_check
      _
    $region95: #{resnet_forward.1} parent=1 // pred_check_branch
      %185 = sbr.rel (0) target = $region97
    $region96: #{resnet_forward.1} parent=1 // pred_region
      _
    $region97: #{resnet_forward.1} parent=1 // pred_fallthru
      _
    // Predicated region
    $region98: #{resnet_forward.1} parent=1 // pred_check
      _
    $region99: #{resnet_forward.1} parent=1 // pred_check_branch
      %187 = sbr.rel (0) target = $region101
    $region100: #{resnet_forward.1} parent=1 // pred_region
      _
    $region101: #{resnet_forward.1} parent=1 // pred_fallthru
      _
    // Predicated region
    $region102: #{resnet_forward.1} parent=1 // pred_check
      _
    $region103: #{resnet_forward.1} parent=1 // pred_check_branch
      %189 = sbr.rel (0) target = $region105
    $region104: #{resnet_forward.1} parent=1 // pred_region
      %s191 = ssub.s32 64, 64
      %192 = vsyncadd [#allocation15], %s191
      %s194 = sshll.u32 [#allocation14], 4
      %s195 = int_to_ptr.vmem [resolvable:$true] %s194
      %197 = dma.hbm_to_vmem [thread:$0]  %s51, 64, %s195, [#allocation15]
    $region105: #{resnet_forward.1} parent=1 // pred_fallthru
      _
    // Predicated region
    $region106: #{resnet_forward.1} parent=1 // pred_check
      _
    $region107: #{resnet_forward.1} parent=1 // pred_check_branch
      %199 = sbr.rel (0) target = $region109
    $region108: #{resnet_forward.1} parent=1 // pred_region
      _
    $region109: #{resnet_forward.1} parent=1 // pred_fallthru
      _
    // Predicated region
    $region110: #{resnet_forward.1} parent=1 // pred_check
      _
    $region111: #{resnet_forward.1} parent=1 // pred_check_branch
      %201 = sbr.rel (0) target = $region113
    $region112: #{resnet_forward.1} parent=1 // pred_region
      %s203 = ssub.s32 16, 16
      %204 = vsyncadd [#allocation15], %s203
      %s206 = sshll.u32 [#allocation16], 4
      %s207 = int_to_ptr.vmem [resolvable:$true] %s206
      %209 = dma.hbm_to_vmem [thread:$0]  %s55, 16, %s207, [#allocation15]
    $region113: #{resnet_forward.1} parent=1 // pred_fallthru
      _
    // Predicated region
    $region114: #{resnet_forward.1} parent=1 // pred_check
      _
    $region115: #{resnet_forward.1} parent=1 // pred_check_branch
      %211 = sbr.rel (0) target = $region117
    $region116: #{resnet_forward.1} parent=1 // pred_region
      _
    $region117: #{resnet_forward.1} parent=1 // pred_fallthru
      _
    // Predicated region
    $region118: #{resnet_forward.1} parent=1 // pred_check
      _
    $region119: #{resnet_forward.1} parent=1 // pred_check_branch
      %213 = sbr.rel (0) target = $region121
    $region120: #{resnet_forward.1} parent=1 // pred_region
      _
    $region121: #{resnet_forward.1} parent=1 // pred_fallthru
      _
    // Predicated region
    $region122: #{resnet_forward.1} parent=1 // pred_check
      _
    $region123: #{resnet_forward.1} parent=1 // pred_check_branch
      %215 = sbr.rel (0) target = $region125
    $region124: #{resnet_forward.1} parent=1 // pred_region
      %216 = dma.done [#allocation4], 16
    $region125: #{resnet_forward.1} parent=1 // pred_fallthru
      _
    // Predicated region
    $region126: #{resnet_forward.1} parent=1 // pred_check
      _
    $region127: #{resnet_forward.1} parent=1 // pred_check_branch
      %218 = sbr.rel (0) target = $region129
    $region128: #{resnet_forward.1} parent=1 // pred_region
      %219 = dma.done [#allocation6], 16
    $region129: #{resnet_forward.1} parent=1 // pred_fallthru
      _
    // Predicated region
    $region130: #{resnet_forward.1} parent=1 // pred_check
      _
    $region131: #{resnet_forward.1} parent=1 // pred_check_branch
      %221 = sbr.rel (0) target = $region133
    $region132: #{resnet_forward.1} parent=1 // pred_region
      %222 = dma.done [#allocation6], 16
    $region133: #{resnet_forward.1} parent=1 // pred_fallthru
      _
    // Predicated region
    $region134: #{resnet_forward.1} parent=1 // pred_check
      _
    $region135: #{resnet_forward.1} parent=1 // pred_check_branch
      %224 = sbr.rel (0) target = $region137
    $region136: #{resnet_forward.1} parent=1 // pred_region
      %225 = dma.done [#allocation9], 16
    $region137: #{resnet_forward.1} parent=1 // pred_fallthru
      _
    // Predicated region
    $region138: #{resnet_forward.1} parent=1 // pred_check
      _
    $region139: #{resnet_forward.1} parent=1 // pred_check_branch
      %227 = sbr.rel (0) target = $region141
    $region140: #{resnet_forward.1} parent=1 // pred_region
      %228 = dma.done [#allocation9], 6912
    $region141: #{resnet_forward.1} parent=1 // pred_fallthru
      _
    // Predicated region
    $region142: #{resnet_forward.1} parent=1 // pred_check
      _
    $region143: #{resnet_forward.1} parent=1 // pred_check_branch
      %230 = sbr.rel (0) target = $region145
    $region144: #{resnet_forward.1} parent=1 // pred_region
      %231 = dma.done [#allocation12], 6912
    $region145: #{resnet_forward.1} parent=1 // pred_fallthru
      _
    // Predicated region
    $region146: #{resnet_forward.1} parent=1 // pred_check
      _
    $region147: #{resnet_forward.1} parent=1 // pred_check_branch
      %233 = sbr.rel (0) target = $region149
    $region148: #{resnet_forward.1} parent=1 // pred_region
      %234 = dma.done [#allocation12], 6912
    $region149: #{resnet_forward.1} parent=1 // pred_fallthru
      _
    // Predicated region
    $region150: #{resnet_forward.1} parent=1 // pred_check
      _
    $region151: #{resnet_forward.1} parent=1 // pred_check_branch
      %236 = sbr.rel (0) target = $region153
    $region152: #{resnet_forward.1} parent=1 // pred_region
      %237 = dma.done [#allocation15], 64
    $region153: #{resnet_forward.1} parent=1 // pred_fallthru
      _
    // Predicated region
    $region154: #{resnet_forward.1} parent=1 // pred_check
      _
    $region155: #{resnet_forward.1} parent=1 // pred_check_branch
      %239 = sbr.rel (0) target = $region157
    $region156: #{resnet_forward.1} parent=1 // pred_region
      %240 = dma.done [#allocation15], 16
    $region157: #{resnet_forward.1} parent=1 // pred_fallthru
      _
    %v242 = vld [vmem:[%s1] sm:$0xff]
    %v243 = vld [vmem:[%s1 + $0x8] sm:$0xff]
    %v244 = vld [vmem:[%s1 + $0x10] sm:$0xff]
    %v245 = vld [vmem:[%s1 + $0x18] sm:$0xff]
    %v246 = vpack.c.bf16 %v243, %v242
    %v247 = vpack.c.bf16 %v245, %v244
    %v248 = vld [vmem:[%s3] sm:$0xff]
    %v249 = vld [vmem:[%s3 + $0x8] sm:$0xf]
    %v250 = vld [vmem:[%s3 + $0xc] sm:$0xff]
    %v251 = vld [vmem:[%s3 + $0x14] sm:$0xf]
    %v252 = vld [vmem:[%s3 + $0x18] sm:$0xff]
    %v253 = vld [vmem:[%s3 + $0x20] sm:$0xf]
    %v254 = vld [vmem:[%s3 + $0x24] sm:$0x33]
    %v255 = vld [vmem:[%s3 + $0x2c] sm:$0x3]
    %v264 = vunpack.c.l.b16 %v248
    %v265 = vunpack.c.h.b16 %v248
    %v266 = vunpack.c.l.b16 %v249
    %v267 = vunpack.c.l.b16 %v250
    %v268 = vunpack.c.h.b16 %v250
    %v269 = vunpack.c.l.b16 %v251
    %v270 = vunpack.c.l.b16 %v252
    %v271 = vunpack.c.h.b16 %v252
    %v272 = vunpack.c.l.b16 %v253
    %v273 = vunpack.c.l.b16 %v254
    %v274 = vunpack.c.h.b16 %v254
    %v275 = vunpack.c.l.b16 %v255
    %v276 = vpack.c.b16 %v267, %v264
    %v277 = vpack.c.b16 %v268, %v265
    %v278 = vpack.c.b16 %v269, %v266
    %v279 = vpack.c.b16 %v273, %v270
    %v280 = vpack.c.b16 %v274, %v271
    %v281 = vpack.c.b16 %v275, %v272
    %vm285 = vcmask 220160
    %v287 = vsel %vm285, %v246, 0
    %v290 = vsel %vm285, %v247, 0
    %vm292 = vcmask 1044480
    %vm293 = vcmask 1045504
    %v294 = vsel %vm292, 4294967295, 65535
    %v295 = vsel %vm293, %v294, 0
    %v297 = vand.u32 %v279, %v295
    %v300 = vand.u32 %v280, %v295
    %v303 = vand.u32 %v281, %v295
    %305 = vmatprep.subr.bf16.mxu0 %v277
    %306 = vmatpush1.bf16.msra.mxu0 %v276
    %307 = vmatprep.subr.bf16.mxu0 %v300
    %308 = vmatpush1.bf16.msra.mxu0 %v297
    %309 = vmatprep.subr.bf16.mxu0 0
    %310 = vmatpush1.bf16.msra.mxu0 0
    %311 = vmatprep.subr.bf16.mxu0 0
    %312 = vmatpush1.bf16.msra.mxu0 0
    %313 = vmatprep.subr.bf16.mxu0 0
    %314 = vmatpush1.bf16.msra.mxu0 0
    %315 = vmatprep.subr.bf16.mxu0 0
    %316 = vmatpush1.bf16.msra.mxu0 0
    %317 = vmatprep.subr.bf16.mxu0 0
    %318 = vmatpush1.bf16.msra.mxu0 0
    %319 = vmatprep.subr.bf16.mxu0 0
    %320 = vmatpush1.bf16.msra.mxu0 0
    %321 = vmatprep.subr.bf16.mxu0 0
    %322 = vmatpush1.bf16.msra.mxu0 0
    %323 = vmatprep.subr.bf16.mxu0 0
    %324 = vmatpush1.bf16.msra.mxu0 0
    %325 = vmatprep.subr.bf16.mxu0 0
    %326 = vmatpush1.bf16.msra.mxu0 0
    %327 = vmatprep.subr.bf16.mxu0 0
    %328 = vmatpush1.bf16.msra.mxu0 0
    %329 = vmatprep.subr.bf16.mxu0 0
    %330 = vmatpush1.bf16.msra.mxu0 0
    %331 = vmatprep.subr.bf16.mxu0 0
    %332 = vmatpush1.bf16.msra.mxu0 0
    %333 = vmatprep.subr.bf16.mxu0 0
    %334 = vmatpush1.bf16.msra.mxu0 0
    %335 = vmatprep.subr.bf16.mxu0 0
    %336 = vmatpush1.bf16.msra.mxu0 0
    %337 = vmatprep.mubr.bf16.mxu0 0
    %338 = vmatmul.mubr.bf16.gmra.mrb[0].mxu0 %v287
    %v339 = vpop.f32.mrb[0].mxu0
    %v340 = vadd.f32 0.0, %v339
    %v341 = vpop.f32.mrb[0].mxu0
    %v342 = vadd.f32 0.0, %v341
    %v343 = vpop.f32.mrb[0].mxu0
    %v344 = vadd.f32 0.0, %v343
    %v345 = vpop.f32.mrb[0].mxu0
    %v346 = vadd.f32 0.0, %v345
    %347 = vmatprep.mubr.bf16.mxu0 0
    %348 = vmatmul.mubr.bf16.gmra.mrb[0].mxu0 %v290
    %v349 = vpop.f32.mrb[0].mxu0
    %v350 = vadd.f32 0.0, %v349
    %v351 = vpop.f32.mrb[0].mxu0
    %v352 = vadd.f32 0.0, %v351
    %v353 = vpop.f32.mrb[0].mxu0
    %v354 = vadd.f32 0.0, %v353
    %v355 = vpop.f32.mrb[0].mxu0
    %v356 = vadd.f32 0.0, %v355
    %357 = vdwg.mxu0
    %358 = vmatprep.subr.bf16.mxu0 0
    %359 = vmatpush1.bf16.msra.mxu0 %v278
    %360 = vmatprep.subr.bf16.mxu0 0
    %361 = vmatpush1.bf16.msra.mxu0 %v303
    %362 = vmatprep.subr.bf16.mxu0 0
    %363 = vmatpush1.bf16.msra.mxu0 0
    %364 = vmatprep.subr.bf16.mxu0 0
    %365 = vmatpush1.bf16.msra.mxu0 0
    %366 = vmatprep.subr.bf16.mxu0 0
    %367 = vmatpush1.bf16.msra.mxu0 0
    %368 = vmatprep.subr.bf16.mxu0 0
    %369 = vmatpush1.bf16.msra.mxu0 0
    %370 = vmatprep.subr.bf16.mxu0 0
    %371 = vmatpush1.bf16.msra.mxu0 0
    %372 = vmatprep.subr.bf16.mxu0 0
    %373 = vmatpush1.bf16.msra.mxu0 0
    %374 = vmatprep.subr.bf16.mxu0 0
    %375 = vmatpush1.bf16.msra.mxu0 0
    %376 = vmatprep.subr.bf16.mxu0 0
    %377 = vmatpush1.bf16.msra.mxu0 0
    %378 = vmatprep.subr.bf16.mxu0 0
    %379 = vmatpush1.bf16.msra.mxu0 0
    %380 = vmatprep.subr.bf16.mxu0 0
    %381 = vmatpush1.bf16.msra.mxu0 0
    %382 = vmatprep.subr.bf16.mxu0 0
    %383 = vmatpush1.bf16.msra.mxu0 0
    %384 = vmatprep.subr.bf16.mxu0 0
    %385 = vmatpush1.bf16.msra.mxu0 0
    %386 = vmatprep.subr.bf16.mxu0 0
    %387 = vmatpush1.bf16.msra.mxu0 0
    %388 = vmatprep.subr.bf16.mxu0 0
    %389 = vmatpush1.bf16.msra.mxu0 0
    %390 = vmatprep.mubr.bf16.mxu0 0
    %391 = vmatmul.mubr.bf16.gmra.mrb[0].mxu0 %v287
    %v392 = vpop.f32.mrb[0].mxu0
    %v393 = vadd.f32 0.0, %v392
    %v394 = vpop.f32.mrb[0].mxu0
    %v395 = vpop.f32.mrb[0].mxu0
    %v396 = vadd.f32 0.0, %v395
    %v397 = vpop.f32.mrb[0].mxu0
    %398 = vmatprep.mubr.bf16.mxu0 0
    %399 = vmatmul.mubr.bf16.gmra.mrb[0].mxu0 %v290
    %v400 = vpop.f32.mrb[0].mxu0
    %v401 = vadd.f32 0.0, %v400
    %v402 = vpop.f32.mrb[0].mxu0
    %v403 = vpop.f32.mrb[0].mxu0
    %v404 = vadd.f32 0.0, %v403
    %v405 = vpop.f32.mrb[0].mxu0
    %406 = vdwg.mxu0
    %v407 = vadd.f32 %v340, %v344
    %v408 = vadd.f32 %v407, %v350
    %v409 = vadd.f32 %v408, %v354
    %v410 = vrot.slane %v409, 4
    %v411 = vadd.f32 %v409, %v410
    %v412 = vrot.slane %v411, 2
    %v413 = vadd.f32 %v411, %v412
    %v414 = vrot.slane %v413, 1
    %v415 = vadd.f32 %v413, %v414
    %v416 = vadd.f32 %v342, %v346
    %v417 = vadd.f32 %v416, %v352
    %v418 = vadd.f32 %v417, %v356
    %v419 = vrot.slane %v418, 4
    %v420 = vadd.f32 %v418, %v419
    %v421 = vrot.slane %v420, 2
    %v422 = vadd.f32 %v420, %v421
    %v423 = vrot.slane %v422, 1
    %v424 = vadd.f32 %v422, %v423
    %vm425 = vcmask 261120
    %v426 = vsel %vm425, %v393, 0.0
    %v427 = vsel %vm425, %v396, 0.0
    %v428 = vadd.f32 %v426, %v427
    %v429 = vsel %vm425, %v401, 0.0
    %v430 = vadd.f32 %v428, %v429
    %v431 = vsel %vm425, %v404, 0.0
    %v432 = vadd.f32 %v430, %v431
    %v433 = vrot.slane %v432, 4
    %v434 = vadd.f32 %v432, %v433
    %v435 = vrot.slane %v434, 2
    %v436 = vadd.f32 %v434, %v435
    %v437 = vrot.slane %v436, 1
    %v438 = vadd.f32 %v436, %v437
    %v439 = vmul.f32 %v340, %v340
    %v440 = vmul.f32 %v342, %v342
    %v441 = vmul.f32 %v393, %v393
    %v442 = vmul.f32 %v344, %v344
    %v443 = vmul.f32 %v346, %v346
    %v444 = vmul.f32 %v396, %v396
    %v445 = vmul.f32 %v350, %v350
    %v446 = vmul.f32 %v352, %v352
    %v447 = vmul.f32 %v401, %v401
    %v448 = vmul.f32 %v354, %v354
    %v449 = vmul.f32 %v356, %v356
    %v450 = vmul.f32 %v404, %v404
    %v451 = vadd.f32 %v439, %v442
    %v452 = vadd.f32 %v451, %v445
    %v453 = vadd.f32 %v452, %v448
    %v454 = vrot.slane %v453, 4
    %v455 = vadd.f32 %v453, %v454
    %v456 = vrot.slane %v455, 2
    %v457 = vadd.f32 %v455, %v456
    %v458 = vrot.slane %v457, 1
    %v459 = vadd.f32 %v457, %v458
    %v460 = vadd.f32 %v440, %v443
    %v461 = vadd.f32 %v460, %v446
    %v462 = vadd.f32 %v461, %v449
    %v463 = vrot.slane %v462, 4
    %v464 = vadd.f32 %v462, %v463
    %v465 = vrot.slane %v464, 2
    %v466 = vadd.f32 %v464, %v465
    %v467 = vrot.slane %v466, 1
    %v468 = vadd.f32 %v466, %v467
    %v469 = vsel %vm425, %v441, 0.0
    %v470 = vsel %vm425, %v444, 0.0
    %v471 = vadd.f32 %v469, %v470
    %v472 = vsel %vm425, %v447, 0.0
    %v473 = vadd.f32 %v471, %v472
    %v474 = vsel %vm425, %v450, 0.0
    %v475 = vadd.f32 %v473, %v474
    %v476 = vrot.slane %v475, 4
    %v477 = vadd.f32 %v475, %v476
    %v478 = vrot.slane %v477, 2
    %v479 = vadd.f32 %v477, %v478
    %v480 = vrot.slane %v479, 1
    %v481 = vadd.f32 %v479, %v480
    %v482 = vld [vmem:[%s45] sm:$0xff]
    %v483 = vld [vmem:[%s45 + $0x8] sm:$0xff]
    %v484 = vld [vmem:[%s45 + $0x10] sm:$0xff]
    %v485 = vld [vmem:[%s45 + $0x18] sm:$0xff]
    %v486 = vld [vmem:[%s45 + $0x20] sm:$0xff]
    %v487 = vld [vmem:[%s45 + $0x28] sm:$0xff]
    %v488 = vld [vmem:[%s45 + $0x30] sm:$0xff]
    %v489 = vld [vmem:[%s45 + $0x38] sm:$0xff]
    %v490 = vld [vmem:[%s45 + $0x40] sm:$0xff]
    %v491 = vld [vmem:[%s45 + $0x48] sm:$0xff]
    %v492 = vld [vmem:[%s45 + $0x50] sm:$0xff]
    %v493 = vld [vmem:[%s45 + $0x58] sm:$0xff]
    %v494 = vld [vmem:[%s45 + $0x60] sm:$0xff]
    %v495 = vld [vmem:[%s45 + $0x68] sm:$0xff]
    %v496 = vld [vmem:[%s45 + $0x70] sm:$0xff]
    %v497 = vld [vmem:[%s45 + $0x78] sm:$0xff]
    %v498 = vld [vmem:[%s45 + $0x80] sm:$0xff]
    %v499 = vld [vmem:[%s45 + $0x88] sm:$0xff]
    %v500 = vld [vmem:[%s45 + $0x90] sm:$0xff]
    %v501 = vld [vmem:[%s45 + $0x98] sm:$0xff]
    %v502 = vld [vmem:[%s45 + $0xa0] sm:$0xff]
    %v503 = vld [vmem:[%s45 + $0xa8] sm:$0xff]
    %v504 = vld [vmem:[%s45 + $0xb0] sm:$0xff]
    %v505 = vld [vmem:[%s45 + $0xb8] sm:$0xff]
    %v506 = vld [vmem:[%s45 + $0xc0] sm:$0xff]
    %v507 = vld [vmem:[%s45 + $0xc8] sm:$0xff]
    %v508 = vld [vmem:[%s45 + $0xd0] sm:$0xff]
    %v509 = vld [vmem:[%s45 + $0xd8] sm:$0xff]
    %v510 = vld [vmem:[%s45 + $0xe0] sm:$0xff]
    %v511 = vld [vmem:[%s45 + $0xe8] sm:$0xff]
    %v512 = vld [vmem:[%s45 + $0xf0] sm:$0xff]
    %v513 = vld [vmem:[%s45 + $0xf8] sm:$0xff]
    %v514 = vld [vmem:[%s45 + $0x100] sm:$0xff]
    %v515 = vld [vmem:[%s45 + $0x108] sm:$0xff]
    %v516 = vld [vmem:[%s45 + $0x110] sm:$0xff]
    %v517 = vld [vmem:[%s45 + $0x118] sm:$0xff]
    %v519 = vsel %vm425, %v438, 0
    %521 = vmatprep.subr.mxu0 0.0
    %522 = vmatpush1.msra.mxu0 %v482
    %523 = vmatprep.subr.mxu0 0.0
    %524 = vmatpush1.msra.mxu0 %v483
    %525 = vmatprep.subr.mxu0 0.0
    %526 = vmatpush1.msra.mxu0 %v484
    %527 = vmatprep.subr.mxu0 0.0
    %528 = vmatpush1.msra.mxu0 %v485
    %529 = vmatprep.subr.mxu0 0.0
    %530 = vmatpush1.msra.mxu0 %v486
    %531 = vmatprep.subr.mxu0 0.0
    %532 = vmatpush1.msra.mxu0 %v487
    %533 = vmatprep.subr.mxu0 0.0
    %534 = vmatpush1.msra.mxu0 %v488
    %535 = vmatprep.subr.mxu0 0.0
    %536 = vmatpush1.msra.mxu0 %v489
    %537 = vmatprep.subr.mxu0 0.0
    %538 = vmatpush1.msra.mxu0 %v490
    %539 = vmatprep.subr.mxu0 0.0
    %540 = vmatpush1.msra.mxu0 %v491
    %541 = vmatprep.subr.mxu0 0.0
    %542 = vmatpush1.msra.mxu0 %v492
    %543 = vmatprep.subr.mxu0 0.0
    %544 = vmatpush1.msra.mxu0 %v493
    %545 = vmatprep.subr.mxu0 0.0
    %546 = vmatpush1.msra.mxu0 %v494
    %547 = vmatprep.subr.mxu0 0.0
    %548 = vmatpush1.msra.mxu0 %v495
    %549 = vmatprep.subr.mxu0 0.0
    %550 = vmatpush1.msra.mxu0 %v496
    %551 = vmatprep.subr.mxu0 0.0
    %552 = vmatpush1.msra.mxu0 %v497
    %553 = vmatprep.subr.mxu0 0.0
    %554 = vmatpush1.msra.mxu0 %v498
    %555 = vmatprep.subr.mxu0 0.0
    %556 = vmatpush1.msra.mxu0 %v499
    %557 = vmatprep.subr.mxu0 0.0
    %558 = vmatpush1.msra.mxu0 %v500
    %559 = vmatprep.subr.mxu0 0.0
    %560 = vmatpush1.msra.mxu0 %v501
    %561 = vmatprep.subr.mxu0 0.0
    %562 = vmatpush1.msra.mxu0 %v502
    %563 = vmatprep.subr.mxu0 0.0
    %564 = vmatpush1.msra.mxu0 %v503
    %565 = vmatprep.subr.mxu0 0.0
    %566 = vmatpush1.msra.mxu0 %v504
    %567 = vmatprep.subr.mxu0 0.0
    %568 = vmatpush1.msra.mxu0 %v505
    %569 = vmatprep.subr.mxu0 0.0
    %570 = vmatpush1.msra.mxu0 %v506
    %571 = vmatprep.subr.mxu0 0.0
    %572 = vmatpush1.msra.mxu0 %v507
    %573 = vmatprep.subr.mxu0 0.0
    %574 = vmatpush1.msra.mxu0 %v508
    %575 = vmatprep.subr.mxu0 0.0
    %576 = vmatpush1.msra.mxu0 %v509
    %577 = vmatprep.subr.mxu0 0.0
    %578 = vmatpush1.msra.mxu0 %v510
    %579 = vmatprep.subr.mxu0 0.0
    %580 = vmatpush1.msra.mxu0 %v511
    %581 = vmatprep.subr.mxu0 0.0
    %582 = vmatpush1.msra.mxu0 %v512
    %583 = vmatprep.subr.mxu0 0.0
    %584 = vmatpush1.msra.mxu0 %v513
    %585 = vmatprep.mubr.f32.mxu0 %v424
    %586 = vmatmul.mubr.f32.gmra.mrb[0].mxu0 %v415
    %v587 = vpop.f32.mrb[0].mxu0
    %v588 = vadd.f32 0.0, %v587
    %v589 = vpop.f32.mrb[0].mxu0
    %590 = vdwg.mxu0
    %591 = vmatprep.subr.mxu0 0.0
    %592 = vmatpush1.msra.mxu0 %v514
    %593 = vmatprep.subr.mxu0 0.0
    %594 = vmatpush1.msra.mxu0 %v515
    %595 = vmatprep.subr.mxu0 0.0
    %596 = vmatpush1.msra.mxu0 %v516
    %597 = vmatprep.subr.mxu0 0.0
    %598 = vmatpush1.msra.mxu0 %v517
    %599 = vmatprep.subr.mxu0 0.0
    %600 = vmatpush1.msra.mxu0 0.0
    %601 = vmatprep.subr.mxu0 0.0
    %602 = vmatpush1.msra.mxu0 0.0
    %603 = vmatprep.subr.mxu0 0.0
    %604 = vmatpush1.msra.mxu0 0.0
    %605 = vmatprep.subr.mxu0 0.0
    %606 = vmatpush1.msra.mxu0 0.0
    %607 = vmatprep.subr.mxu0 0.0
    %608 = vmatpush1.msra.mxu0 0.0
    %609 = vmatprep.subr.mxu0 0.0
    %610 = vmatpush1.msra.mxu0 0.0
    %611 = vmatprep.subr.mxu0 0.0
    %612 = vmatpush1.msra.mxu0 0.0
    %613 = vmatprep.subr.mxu0 0.0
    %614 = vmatpush1.msra.mxu0 0.0
    %615 = vmatprep.subr.mxu0 0.0
    %616 = vmatpush1.msra.mxu0 0.0
    %617 = vmatprep.subr.mxu0 0.0
    %618 = vmatpush1.msra.mxu0 0.0
    %619 = vmatprep.subr.mxu0 0.0
    %620 = vmatpush1.msra.mxu0 0.0
    %621 = vmatprep.subr.mxu0 0.0
    %622 = vmatpush1.msra.mxu0 0.0
    %623 = vmatprep.subr.mxu0 0.0
    %624 = vmatpush1.msra.mxu0 0.0
    %625 = vmatprep.subr.mxu0 0.0
    %626 = vmatpush1.msra.mxu0 0.0
    %627 = vmatprep.subr.mxu0 0.0
    %628 = vmatpush1.msra.mxu0 0.0
    %629 = vmatprep.subr.mxu0 0.0
    %630 = vmatpush1.msra.mxu0 0.0
    %631 = vmatprep.subr.mxu0 0.0
    %632 = vmatpush1.msra.mxu0 0.0
    %633 = vmatprep.subr.mxu0 0.0
    %634 = vmatpush1.msra.mxu0 0.0
    %635 = vmatprep.subr.mxu0 0.0
    %636 = vmatpush1.msra.mxu0 0.0
    %637 = vmatprep.subr.mxu0 0.0
    %638 = vmatpush1.msra.mxu0 0.0
    %639 = vmatprep.subr.mxu0 0.0
    %640 = vmatpush1.msra.mxu0 0.0
    %641 = vmatprep.subr.mxu0 0.0
    %642 = vmatpush1.msra.mxu0 0.0
    %643 = vmatprep.subr.mxu0 0.0
    %644 = vmatpush1.msra.mxu0 0.0
    %645 = vmatprep.subr.mxu0 0.0
    %646 = vmatpush1.msra.mxu0 0.0
    %647 = vmatprep.subr.mxu0 0.0
    %648 = vmatpush1.msra.mxu0 0.0
    %649 = vmatprep.subr.mxu0 0.0
    %650 = vmatpush1.msra.mxu0 0.0
    %651 = vmatprep.subr.mxu0 0.0
    %652 = vmatpush1.msra.mxu0 0.0
    %653 = vmatprep.subr.mxu0 0.0
    %654 = vmatpush1.msra.mxu0 0.0
    %655 = vmatprep.mubr.f32.mxu0 0.0
    %656 = vmatmul.mubr.f32.gmra.mrb[0].mxu0 %v519
    %v657 = vpop.f32.mrb[0].mxu0
    %v658 = vadd.f32 %v588, %v657
    %v659 = vpop.f32.mrb[0].mxu0
    %660 = vdwg.mxu0
    %v661 = vmul.f32 %v658, 0.0034722222
    %v663 = vsel %vm425, %v481, 0
    %665 = vmatprep.subr.mxu0 0.0
    %666 = vmatpush1.msra.mxu0 %v482
    %667 = vmatprep.subr.mxu0 0.0
    %668 = vmatpush1.msra.mxu0 %v483
    %669 = vmatprep.subr.mxu0 0.0
    %670 = vmatpush1.msra.mxu0 %v484
    %671 = vmatprep.subr.mxu0 0.0
    %672 = vmatpush1.msra.mxu0 %v485
    %673 = vmatprep.subr.mxu0 0.0
    %674 = vmatpush1.msra.mxu0 %v486
    %675 = vmatprep.subr.mxu0 0.0
    %676 = vmatpush1.msra.mxu0 %v487
    %677 = vmatprep.subr.mxu0 0.0
    %678 = vmatpush1.msra.mxu0 %v488
    %679 = vmatprep.subr.mxu0 0.0
    %680 = vmatpush1.msra.mxu0 %v489
    %681 = vmatprep.subr.mxu0 0.0
    %682 = vmatpush1.msra.mxu0 %v490
    %683 = vmatprep.subr.mxu0 0.0
    %684 = vmatpush1.msra.mxu0 %v491
    %685 = vmatprep.subr.mxu0 0.0
    %686 = vmatpush1.msra.mxu0 %v492
    %687 = vmatprep.subr.mxu0 0.0
    %688 = vmatpush1.msra.mxu0 %v493
    %689 = vmatprep.subr.mxu0 0.0
    %690 = vmatpush1.msra.mxu0 %v494
    %691 = vmatprep.subr.mxu0 0.0
    %692 = vmatpush1.msra.mxu0 %v495
    %693 = vmatprep.subr.mxu0 0.0
    %694 = vmatpush1.msra.mxu0 %v496
    %695 = vmatprep.subr.mxu0 0.0
    %696 = vmatpush1.msra.mxu0 %v497
    %697 = vmatprep.subr.mxu0 0.0
    %698 = vmatpush1.msra.mxu0 %v498
    %699 = vmatprep.subr.mxu0 0.0
    %700 = vmatpush1.msra.mxu0 %v499
    %701 = vmatprep.subr.mxu0 0.0
    %702 = vmatpush1.msra.mxu0 %v500
    %703 = vmatprep.subr.mxu0 0.0
    %704 = vmatpush1.msra.mxu0 %v501
    %705 = vmatprep.subr.mxu0 0.0
    %706 = vmatpush1.msra.mxu0 %v502
    %707 = vmatprep.subr.mxu0 0.0
    %708 = vmatpush1.msra.mxu0 %v503
    %709 = vmatprep.subr.mxu0 0.0
    %710 = vmatpush1.msra.mxu0 %v504
    %711 = vmatprep.subr.mxu0 0.0
    %712 = vmatpush1.msra.mxu0 %v505
    %713 = vmatprep.subr.mxu0 0.0
    %714 = vmatpush1.msra.mxu0 %v506
    %715 = vmatprep.subr.mxu0 0.0
    %716 = vmatpush1.msra.mxu0 %v507
    %717 = vmatprep.subr.mxu0 0.0
    %718 = vmatpush1.msra.mxu0 %v508
    %719 = vmatprep.subr.mxu0 0.0
    %720 = vmatpush1.msra.mxu0 %v509
    %721 = vmatprep.subr.mxu0 0.0
    %722 = vmatpush1.msra.mxu0 %v510
    %723 = vmatprep.subr.mxu0 0.0
    %724 = vmatpush1.msra.mxu0 %v511
    %725 = vmatprep.subr.mxu0 0.0
    %726 = vmatpush1.msra.mxu0 %v512
    %727 = vmatprep.subr.mxu0 0.0
    %728 = vmatpush1.msra.mxu0 %v513
    %729 = vmatprep.mubr.f32.mxu0 %v468
    %730 = vmatmul.mubr.f32.gmra.mrb[0].mxu0 %v459
    %v731 = vpop.f32.mrb[0].mxu0
    %v732 = vadd.f32 0.0, %v731
    %v733 = vpop.f32.mrb[0].mxu0
    %734 = vdwg.mxu0
    %735 = vmatprep.subr.mxu0 0.0
    %736 = vmatpush1.msra.mxu0 %v514
    %737 = vmatprep.subr.mxu0 0.0
    %738 = vmatpush1.msra.mxu0 %v515
    %739 = vmatprep.subr.mxu0 0.0
    %740 = vmatpush1.msra.mxu0 %v516
    %741 = vmatprep.subr.mxu0 0.0
    %742 = vmatpush1.msra.mxu0 %v517
    %743 = vmatprep.subr.mxu0 0.0
    %744 = vmatpush1.msra.mxu0 0.0
    %745 = vmatprep.subr.mxu0 0.0
    %746 = vmatpush1.msra.mxu0 0.0
    %747 = vmatprep.subr.mxu0 0.0
    %748 = vmatpush1.msra.mxu0 0.0
    %749 = vmatprep.subr.mxu0 0.0
    %750 = vmatpush1.msra.mxu0 0.0
    %751 = vmatprep.subr.mxu0 0.0
    %752 = vmatpush1.msra.mxu0 0.0
    %753 = vmatprep.subr.mxu0 0.0
    %754 = vmatpush1.msra.mxu0 0.0
    %755 = vmatprep.subr.mxu0 0.0
    %756 = vmatpush1.msra.mxu0 0.0
    %757 = vmatprep.subr.mxu0 0.0
    %758 = vmatpush1.msra.mxu0 0.0
    %759 = vmatprep.subr.mxu0 0.0
    %760 = vmatpush1.msra.mxu0 0.0
    %761 = vmatprep.subr.mxu0 0.0
    %762 = vmatpush1.msra.mxu0 0.0
    %763 = vmatprep.subr.mxu0 0.0
    %764 = vmatpush1.msra.mxu0 0.0
    %765 = vmatprep.subr.mxu0 0.0
    %766 = vmatpush1.msra.mxu0 0.0
    %767 = vmatprep.subr.mxu0 0.0
    %768 = vmatpush1.msra.mxu0 0.0
    %769 = vmatprep.subr.mxu0 0.0
    %770 = vmatpush1.msra.mxu0 0.0
    %771 = vmatprep.subr.mxu0 0.0
    %772 = vmatpush1.msra.mxu0 0.0
    %773 = vmatprep.subr.mxu0 0.0
    %774 = vmatpush1.msra.mxu0 0.0
    %775 = vmatprep.subr.mxu0 0.0
    %776 = vmatpush1.msra.mxu0 0.0
    %777 = vmatprep.subr.mxu0 0.0
    %778 = vmatpush1.msra.mxu0 0.0
    %779 = vmatprep.subr.mxu0 0.0
    %780 = vmatpush1.msra.mxu0 0.0
    %781 = vmatprep.subr.mxu0 0.0
    %782 = vmatpush1.msra.mxu0 0.0
    %783 = vmatprep.subr.mxu0 0.0
    %784 = vmatpush1.msra.mxu0 0.0
    %785 = vmatprep.subr.mxu0 0.0
    %786 = vmatpush1.msra.mxu0 0.0
    %787 = vmatprep.subr.mxu0 0.0
    %788 = vmatpush1.msra.mxu0 0.0
    %789 = vmatprep.subr.mxu0 0.0
    %790 = vmatpush1.msra.mxu0 0.0
    %791 = vmatprep.subr.mxu0 0.0
    %792 = vmatpush1.msra.mxu0 0.0
    %793 = vmatprep.subr.mxu0 0.0
    %794 = vmatpush1.msra.mxu0 0.0
    %795 = vmatprep.subr.mxu0 0.0
    %796 = vmatpush1.msra.mxu0 0.0
    %797 = vmatprep.subr.mxu0 0.0
    %798 = vmatpush1.msra.mxu0 0.0
    %799 = vmatprep.mubr.f32.mxu0 0.0
    %800 = vmatmul.mubr.f32.gmra.mrb[0].mxu0 %v663
    %v801 = vpop.f32.mrb[0].mxu0
    %v802 = vadd.f32 %v732, %v801
    %v803 = vpop.f32.mrb[0].mxu0
    %804 = vdwg.mxu0
    %v805 = vmul.f32 %v802, 0.0034722222
    %v806 = vmul.f32 %v661, %v661
    %v807 = vsub.f32 %v805, %v806
    %v808 = vld [vmem:[%s5] sm:$0x1]
    %v809 = vadd.f32 %v807, 1e-05
    %v810 = vrsqrt.pop %v809
    %v811 = vmul.f32 %v808, %v810
    %v812 = vld [vmem:[#allocation3] sm:$0x1]
    %v813 = vmul.f32 %v661, %v811
    %v814 = vsub.f32 %v812, %v813
    %v815 = vld [vmem:[%s47] sm:$0xff]
    %v816 = vld [vmem:[%s47 + $0x8] sm:$0xff]
    %v817 = vld [vmem:[%s47 + $0x10] sm:$0xff]
    %v818 = vld [vmem:[%s47 + $0x18] sm:$0xff]
    %v819 = vld [vmem:[%s47 + $0x20] sm:$0xff]
    %v820 = vld [vmem:[%s47 + $0x28] sm:$0xff]
    %v821 = vld [vmem:[%s47 + $0x30] sm:$0xff]
    %v822 = vld [vmem:[%s47 + $0x38] sm:$0xff]
    %v823 = vld [vmem:[%s47 + $0x40] sm:$0xff]
    %v824 = vld [vmem:[%s47 + $0x48] sm:$0xff]
    %v825 = vld [vmem:[%s47 + $0x50] sm:$0xff]
    %v826 = vld [vmem:[%s47 + $0x58] sm:$0xff]
    %v828 = vsel %vm425, %v811, 0
    %830 = vmatprep.subr.mxu0 %v816
    %831 = vmatpush1.msra.mxu0 %v815
    %832 = vmatprep.subr.mxu0 %v819
    %833 = vmatpush1.msra.mxu0 %v818
    %834 = vmatprep.subr.mxu0 %v822
    %835 = vmatpush1.msra.mxu0 %v821
    %836 = vmatprep.subr.mxu0 %v825
    %837 = vmatpush1.msra.mxu0 %v824
    %838 = vmatprep.subr.mxu0 0.0
    %839 = vmatpush1.msra.mxu0 0.0
    %840 = vmatprep.subr.mxu0 0.0
    %841 = vmatpush1.msra.mxu0 0.0
    %842 = vmatprep.subr.mxu0 0.0
    %843 = vmatpush1.msra.mxu0 0.0
    %844 = vmatprep.subr.mxu0 0.0
    %845 = vmatpush1.msra.mxu0 0.0
    %846 = vmatprep.subr.mxu0 0.0
    %847 = vmatpush1.msra.mxu0 0.0
    %848 = vmatprep.subr.mxu0 0.0
    %849 = vmatpush1.msra.mxu0 0.0
    %850 = vmatprep.subr.mxu0 0.0
    %851 = vmatpush1.msra.mxu0 0.0
    %852 = vmatprep.subr.mxu0 0.0
    %853 = vmatpush1.msra.mxu0 0.0
    %854 = vmatprep.subr.mxu0 0.0
    %855 = vmatpush1.msra.mxu0 0.0
    %856 = vmatprep.subr.mxu0 0.0
    %857 = vmatpush1.msra.mxu0 0.0
    %858 = vmatprep.subr.mxu0 0.0
    %859 = vmatpush1.msra.mxu0 0.0
    %860 = vmatprep.subr.mxu0 0.0
    %861 = vmatpush1.msra.mxu0 0.0
    %862 = vmatprep.subr.mxu0 0.0
    %863 = vmatpush1.msra.mxu0 0.0
    %864 = vmatprep.subr.mxu0 0.0
    %865 = vmatpush1.msra.mxu0 0.0
    %866 = vmatprep.subr.mxu0 0.0
    %867 = vmatpush1.msra.mxu0 0.0
    %868 = vmatprep.subr.mxu0 0.0
    %869 = vmatpush1.msra.mxu0 0.0
    %870 = vmatprep.subr.mxu0 0.0
    %871 = vmatpush1.msra.mxu0 0.0
    %872 = vmatprep.subr.mxu0 0.0
    %873 = vmatpush1.msra.mxu0 0.0
    %874 = vmatprep.subr.mxu0 0.0
    %875 = vmatpush1.msra.mxu0 0.0
    %876 = vmatprep.subr.mxu0 0.0
    %877 = vmatpush1.msra.mxu0 0.0
    %878 = vmatprep.subr.mxu0 0.0
    %879 = vmatpush1.msra.mxu0 0.0
    %880 = vmatprep.subr.mxu0 0.0
    %881 = vmatpush1.msra.mxu0 0.0
    %882 = vmatprep.subr.mxu0 0.0
    %883 = vmatpush1.msra.mxu0 0.0
    %884 = vmatprep.subr.mxu0 0.0
    %885 = vmatpush1.msra.mxu0 0.0
    %886 = vmatprep.subr.mxu0 0.0
    %887 = vmatpush1.msra.mxu0 0.0
    %888 = vmatprep.subr.mxu0 0.0
    %889 = vmatpush1.msra.mxu0 0.0
    %890 = vmatprep.subr.mxu0 0.0
    %891 = vmatpush1.msra.mxu0 0.0
    %892 = vmatprep.subr.mxu0 0.0
    %893 = vmatpush1.msra.mxu0 0.0
    %894 = vmatprep.mubr.f32.mxu0 0.0
    %895 = vmatmul.mubr.f32.gmra.mrb[0].mxu0 %v828
    %v896 = vpop.f32.mrb[0].mxu0
    %v897 = vadd.f32 0.0, %v896
    %v898 = vpop.f32.mrb[0].mxu0
    %v899 = vadd.f32 0.0, %v898
    %900 = vdwg.mxu0
    %901 = vmatprep.subr.mxu0 0.0
    %902 = vmatpush1.msra.mxu0 %v817
    %903 = vmatprep.subr.mxu0 0.0
    %904 = vmatpush1.msra.mxu0 %v820
    %905 = vmatprep.subr.mxu0 0.0
    %906 = vmatpush1.msra.mxu0 %v823
    %907 = vmatprep.subr.mxu0 0.0
    %908 = vmatpush1.msra.mxu0 %v826
    %909 = vmatprep.subr.mxu0 0.0
    %910 = vmatpush1.msra.mxu0 0.0
    %911 = vmatprep.subr.mxu0 0.0
    %912 = vmatpush1.msra.mxu0 0.0
    %913 = vmatprep.subr.mxu0 0.0
    %914 = vmatpush1.msra.mxu0 0.0
    %915 = vmatprep.subr.mxu0 0.0
    %916 = vmatpush1.msra.mxu0 0.0
    %917 = vmatprep.subr.mxu0 0.0
    %918 = vmatpush1.msra.mxu0 0.0
    %919 = vmatprep.subr.mxu0 0.0
    %920 = vmatpush1.msra.mxu0 0.0
    %921 = vmatprep.subr.mxu0 0.0
    %922 = vmatpush1.msra.mxu0 0.0
    %923 = vmatprep.subr.mxu0 0.0
    %924 = vmatpush1.msra.mxu0 0.0
    %925 = vmatprep.subr.mxu0 0.0
    %926 = vmatpush1.msra.mxu0 0.0
    %927 = vmatprep.subr.mxu0 0.0
    %928 = vmatpush1.msra.mxu0 0.0
    %929 = vmatprep.subr.mxu0 0.0
    %930 = vmatpush1.msra.mxu0 0.0
    %931 = vmatprep.subr.mxu0 0.0
    %932 = vmatpush1.msra.mxu0 0.0
    %933 = vmatprep.subr.mxu0 0.0
    %934 = vmatpush1.msra.mxu0 0.0
    %935 = vmatprep.subr.mxu0 0.0
    %936 = vmatpush1.msra.mxu0 0.0
    %937 = vmatprep.subr.mxu0 0.0
    %938 = vmatpush1.msra.mxu0 0.0
    %939 = vmatprep.subr.mxu0 0.0
    %940 = vmatpush1.msra.mxu0 0.0
    %941 = vmatprep.subr.mxu0 0.0
    %942 = vmatpush1.msra.mxu0 0.0
    %943 = vmatprep.subr.mxu0 0.0
    %944 = vmatpush1.msra.mxu0 0.0
    %945 = vmatprep.subr.mxu0 0.0
    %946 = vmatpush1.msra.mxu0 0.0
    %947 = vmatprep.subr.mxu0 0.0
    %948 = vmatpush1.msra.mxu0 0.0
    %949 = vmatprep.subr.mxu0 0.0
    %950 = vmatpush1.msra.mxu0 0.0
    %951 = vmatprep.subr.mxu0 0.0
    %952 = vmatpush1.msra.mxu0 0.0
    %953 = vmatprep.subr.mxu0 0.0
    %954 = vmatpush1.msra.mxu0 0.0
    %955 = vmatprep.subr.mxu0 0.0
    %956 = vmatpush1.msra.mxu0 0.0
    %957 = vmatprep.subr.mxu0 0.0
    %958 = vmatpush1.msra.mxu0 0.0
    %959 = vmatprep.subr.mxu0 0.0
    %960 = vmatpush1.msra.mxu0 0.0
    %961 = vmatprep.subr.mxu0 0.0
    %962 = vmatpush1.msra.mxu0 0.0
    %963 = vmatprep.subr.mxu0 0.0
    %964 = vmatpush1.msra.mxu0 0.0
    %965 = vmatprep.mubr.f32.mxu0 0.0
    %966 = vmatmul.mubr.f32.gmra.mrb[0].mxu0 %v828
    %v967 = vpop.f32.mrb[0].mxu0
    %v968 = vadd.f32 0.0, %v967
    %v969 = vpop.f32.mrb[0].mxu0
    %970 = vdwg.mxu0
    %v972 = vsel %vm425, %v814, 0
    %974 = vmatprep.subr.mxu0 %v816
    %975 = vmatpush1.msra.mxu0 %v815
    %976 = vmatprep.subr.mxu0 %v819
    %977 = vmatpush1.msra.mxu0 %v818
    %978 = vmatprep.subr.mxu0 %v822
    %979 = vmatpush1.msra.mxu0 %v821
    %980 = vmatprep.subr.mxu0 %v825
    %981 = vmatpush1.msra.mxu0 %v824
    %982 = vmatprep.subr.mxu0 0.0
    %983 = vmatpush1.msra.mxu0 0.0
    %984 = vmatprep.subr.mxu0 0.0
    %985 = vmatpush1.msra.mxu0 0.0
    %986 = vmatprep.subr.mxu0 0.0
    %987 = vmatpush1.msra.mxu0 0.0
    %988 = vmatprep.subr.mxu0 0.0
    %989 = vmatpush1.msra.mxu0 0.0
    %990 = vmatprep.subr.mxu0 0.0
    %991 = vmatpush1.msra.mxu0 0.0
    %992 = vmatprep.subr.mxu0 0.0
    %993 = vmatpush1.msra.mxu0 0.0
    %994 = vmatprep.subr.mxu0 0.0
    %995 = vmatpush1.msra.mxu0 0.0
    %996 = vmatprep.subr.mxu0 0.0
    %997 = vmatpush1.msra.mxu0 0.0
    %998 = vmatprep.subr.mxu0 0.0
    %999 = vmatpush1.msra.mxu0 0.0
    %1000 = vmatprep.subr.mxu0 0.0
    %1001 = vmatpush1.msra.mxu0 0.0
    %1002 = vmatprep.subr.mxu0 0.0
    %1003 = vmatpush1.msra.mxu0 0.0
    %1004 = vmatprep.subr.mxu0 0.0
    %1005 = vmatpush1.msra.mxu0 0.0
    %1006 = vmatprep.subr.mxu0 0.0
    %1007 = vmatpush1.msra.mxu0 0.0
    %1008 = vmatprep.subr.mxu0 0.0
    %1009 = vmatpush1.msra.mxu0 0.0
    %1010 = vmatprep.subr.mxu0 0.0
    %1011 = vmatpush1.msra.mxu0 0.0
    %1012 = vmatprep.subr.mxu0 0.0
    %1013 = vmatpush1.msra.mxu0 0.0
    %1014 = vmatprep.subr.mxu0 0.0
    %1015 = vmatpush1.msra.mxu0 0.0
    %1016 = vmatprep.subr.mxu0 0.0
    %1017 = vmatpush1.msra.mxu0 0.0
    %1018 = vmatprep.subr.mxu0 0.0
    %1019 = vmatpush1.msra.mxu0 0.0
    %1020 = vmatprep.subr.mxu0 0.0
    %1021 = vmatpush1.msra.mxu0 0.0
    %1022 = vmatprep.subr.mxu0 0.0
    %1023 = vmatpush1.msra.mxu0 0.0
    %1024 = vmatprep.subr.mxu0 0.0
    %1025 = vmatpush1.msra.mxu0 0.0
    %1026 = vmatprep.subr.mxu0 0.0
    %1027 = vmatpush1.msra.mxu0 0.0
    %1028 = vmatprep.subr.mxu0 0.0
    %1029 = vmatpush1.msra.mxu0 0.0
    %1030 = vmatprep.subr.mxu0 0.0
    %1031 = vmatpush1.msra.mxu0 0.0
    %1032 = vmatprep.subr.mxu0 0.0
    %1033 = vmatpush1.msra.mxu0 0.0
    %1034 = vmatprep.subr.mxu0 0.0
    %1035 = vmatpush1.msra.mxu0 0.0
    %1036 = vmatprep.subr.mxu0 0.0
    %1037 = vmatpush1.msra.mxu0 0.0
    %1038 = vmatprep.mubr.f32.mxu0 0.0
    %1039 = vmatmul.mubr.f32.gmra.mrb[0].mxu0 %v972
    %v1040 = vpop.f32.mrb[0].mxu0
    %v1041 = vadd.f32 0.0, %v1040
    %v1042 = vpop.f32.mrb[0].mxu0
    %v1043 = vadd.f32 0.0, %v1042
    %1044 = vdwg.mxu0
    %1045 = vmatprep.subr.mxu0 0.0
    %1046 = vmatpush1.msra.mxu0 %v817
    %1047 = vmatprep.subr.mxu0 0.0
    %1048 = vmatpush1.msra.mxu0 %v820
    %1049 = vmatprep.subr.mxu0 0.0
    %1050 = vmatpush1.msra.mxu0 %v823
    %1051 = vmatprep.subr.mxu0 0.0
    %1052 = vmatpush1.msra.mxu0 %v826
    %1053 = vmatprep.subr.mxu0 0.0
    %1054 = vmatpush1.msra.mxu0 0.0
    %1055 = vmatprep.subr.mxu0 0.0
    %1056 = vmatpush1.msra.mxu0 0.0
    %1057 = vmatprep.subr.mxu0 0.0
    %1058 = vmatpush1.msra.mxu0 0.0
    %1059 = vmatprep.subr.mxu0 0.0
    %1060 = vmatpush1.msra.mxu0 0.0
    %1061 = vmatprep.subr.mxu0 0.0
    %1062 = vmatpush1.msra.mxu0 0.0
    %1063 = vmatprep.subr.mxu0 0.0
    %1064 = vmatpush1.msra.mxu0 0.0
    %1065 = vmatprep.subr.mxu0 0.0
    %1066 = vmatpush1.msra.mxu0 0.0
    %1067 = vmatprep.subr.mxu0 0.0
    %1068 = vmatpush1.msra.mxu0 0.0
    %1069 = vmatprep.subr.mxu0 0.0
    %1070 = vmatpush1.msra.mxu0 0.0
    %1071 = vmatprep.subr.mxu0 0.0
    %1072 = vmatpush1.msra.mxu0 0.0
    %1073 = vmatprep.subr.mxu0 0.0
    %1074 = vmatpush1.msra.mxu0 0.0
    %1075 = vmatprep.subr.mxu0 0.0
    %1076 = vmatpush1.msra.mxu0 0.0
    %1077 = vmatprep.subr.mxu0 0.0
    %1078 = vmatpush1.msra.mxu0 0.0
    %1079 = vmatprep.subr.mxu0 0.0
    %1080 = vmatpush1.msra.mxu0 0.0
    %1081 = vmatprep.subr.mxu0 0.0
    %1082 = vmatpush1.msra.mxu0 0.0
    %1083 = vmatprep.subr.mxu0 0.0
    %1084 = vmatpush1.msra.mxu0 0.0
    %1085 = vmatprep.subr.mxu0 0.0
    %1086 = vmatpush1.msra.mxu0 0.0
    %1087 = vmatprep.subr.mxu0 0.0
    %1088 = vmatpush1.msra.mxu0 0.0
    %1089 = vmatprep.subr.mxu0 0.0
    %1090 = vmatpush1.msra.mxu0 0.0
    %1091 = vmatprep.subr.mxu0 0.0
    %1092 = vmatpush1.msra.mxu0 0.0
    %1093 = vmatprep.subr.mxu0 0.0
    %1094 = vmatpush1.msra.mxu0 0.0
    %1095 = vmatprep.subr.mxu0 0.0
    %1096 = vmatpush1.msra.mxu0 0.0
    %1097 = vmatprep.subr.mxu0 0.0
    %1098 = vmatpush1.msra.mxu0 0.0
    %1099 = vmatprep.subr.mxu0 0.0
    %1100 = vmatpush1.msra.mxu0 0.0
    %1101 = vmatprep.subr.mxu0 0.0
    %1102 = vmatpush1.msra.mxu0 0.0
    %1103 = vmatprep.subr.mxu0 0.0
    %1104 = vmatpush1.msra.mxu0 0.0
    %1105 = vmatprep.subr.mxu0 0.0
    %1106 = vmatpush1.msra.mxu0 0.0
    %1107 = vmatprep.subr.mxu0 0.0
    %1108 = vmatpush1.msra.mxu0 0.0
    %1109 = vmatprep.mubr.f32.mxu0 0.0
    %1110 = vmatmul.mubr.f32.gmra.mrb[0].mxu0 %v972
    %v1111 = vpop.f32.mrb[0].mxu0
    %v1112 = vadd.f32 0.0, %v1111
    %v1113 = vpop.f32.mrb[0].mxu0
    %1114 = vdwg.mxu0
    %v1115 = vlaneseq
    %v1116 = vshrl.u32 %v1115, 7
    %v1117 = vsub.s32 0, %v1116
    %v1118 = vrot.slane %v897, %v1117
    %v1119 = vlaneseq
    %v1120 = vshrl.u32 %v1119, 7
    %v1121 = vsub.s32 0, %v1120
    %v1122 = vrot.slane %v899, %v1121
    %v1123 = vlaneseq
    %v1124 = vshrl.u32 %v1123, 7
    %v1125 = vsub.s32 0, %v1124
    %v1126 = vrot.slane %v968, %v1125
    %v1127 = vmul.f32 %v340, %v1118
    %v1128 = vmul.f32 %v342, %v1122
    %v1129 = vmul.f32 %v393, %v1126
    %v1130 = vmul.f32 %v344, %v1118
    %v1131 = vmul.f32 %v346, %v1122
    %v1132 = vmul.f32 %v396, %v1126
    %v1133 = vmul.f32 %v350, %v1118
    %v1134 = vmul.f32 %v352, %v1122
    %v1135 = vmul.f32 %v401, %v1126
    %v1136 = vmul.f32 %v354, %v1118
    %v1137 = vmul.f32 %v356, %v1122
    %v1138 = vmul.f32 %v404, %v1126
    %v1139 = vlaneseq
    %v1140 = vshrl.u32 %v1139, 7
    %v1141 = vsub.s32 0, %v1140
    %v1142 = vrot.slane %v1041, %v1141
    %v1143 = vlaneseq
    %v1144 = vshrl.u32 %v1143, 7
    %v1145 = vsub.s32 0, %v1144
    %v1146 = vrot.slane %v1043, %v1145
    %v1147 = vlaneseq
    %v1148 = vshrl.u32 %v1147, 7
    %v1149 = vsub.s32 0, %v1148
    %v1150 = vrot.slane %v1112, %v1149
    %v1151 = vadd.f32 %v1127, %v1142
    %v1152 = vadd.f32 %v1128, %v1146
    %v1153 = vadd.f32 %v1129, %v1150
    %v1154 = vadd.f32 %v1130, %v1142
    %v1155 = vadd.f32 %v1131, %v1146
    %v1156 = vadd.f32 %v1132, %v1150
    %v1157 = vadd.f32 %v1133, %v1142
    %v1158 = vadd.f32 %v1134, %v1146
    %v1159 = vadd.f32 %v1135, %v1150
    %v1160 = vadd.f32 %v1136, %v1142
    %v1161 = vadd.f32 %v1137, %v1146
    %v1162 = vadd.f32 %v1138, %v1150
    %v1163 = vmax.f32 %v1151, 0.0
    %v1164 = vmax.f32 %v1152, 0.0
    %v1165 = vmax.f32 %v1153, 0.0
    %v1166 = vmax.f32 %v1154, 0.0
    %v1167 = vmax.f32 %v1155, 0.0
    %v1168 = vmax.f32 %v1156, 0.0
    %v1169 = vmax.f32 %v1157, 0.0
    %v1170 = vmax.f32 %v1158, 0.0
    %v1171 = vmax.f32 %v1159, 0.0
    %v1172 = vmax.f32 %v1160, 0.0
    %v1173 = vmax.f32 %v1161, 0.0
    %v1174 = vmax.f32 %v1162, 0.0
    %v1175 = vpack.c.bf16 %v1166, %v1163
    %v1176 = vpack.c.bf16 %v1167, %v1164
    %v1177 = vpack.c.bf16 %v1168, %v1165
    %v1178 = vpack.c.bf16 %v1172, %v1169
    %v1179 = vpack.c.bf16 %v1173, %v1170
    %v1180 = vpack.c.bf16 %v1174, %v1171
    %v1181 = vld [vmem:[%s9] sm:$0xff]
    %v1182 = vld [vmem:[%s9 + $0x8] sm:$0xf]
    %v1183 = vld [vmem:[%s9 + $0xc] sm:$0xff]
    %v1184 = vld [vmem:[%s9 + $0x14] sm:$0xf]
    %v1185 = vld [vmem:[%s9 + $0x18] sm:$0xff]
    %v1186 = vld [vmem:[%s9 + $0x20] sm:$0xf]
    %v1187 = vld [vmem:[%s9 + $0x24] sm:$0xff]
    %v1188 = vld [vmem:[%s9 + $0x2c] sm:$0xf]
    %v1189 = vld [vmem:[%s9 + $0x30] sm:$0xff]
    %v1190 = vld [vmem:[%s9 + $0x38] sm:$0xf]
    %v1191 = vld [vmem:[%s9 + $0x3c] sm:$0xff]
    %v1192 = vld [vmem:[%s9 + $0x44] sm:$0xf]
    %v1193 = vld [vmem:[%s9 + $0x48] sm:$0xff]
    %v1194 = vld [vmem:[%s9 + $0x50] sm:$0xf]
    %v1195 = vld [vmem:[%s9 + $0x54] sm:$0xff]
    %v1196 = vld [vmem:[%s9 + $0x5c] sm:$0xf]
    %v1197 = vld [vmem:[%s9 + $0x60] sm:$0xff]
    %v1198 = vld [vmem:[%s9 + $0x68] sm:$0xf]
    %v1199 = vld [vmem:[%s9 + $0x6c] sm:$0xff]
    %v1200 = vld [vmem:[%s9 + $0x74] sm:$0xf]
    %v1201 = vld [vmem:[%s9 + $0x78] sm:$0xff]
    %v1202 = vld [vmem:[%s9 + $0x80] sm:$0xf]
    %v1203 = vld [vmem:[%s9 + $0x84] sm:$0xff]
    %v1204 = vld [vmem:[%s9 + $0x8c] sm:$0xf]
    %v1205 = vld [vmem:[%s9 + $0x90] sm:$0xff]
    %v1206 = vld [vmem:[%s9 + $0x98] sm:$0xf]
    %v1207 = vld [vmem:[%s9 + $0x9c] sm:$0xff]
    %v1208 = vld [vmem:[%s9 + $0xa4] sm:$0xf]
    %v1209 = vld [vmem:[%s9 + $0xa8] sm:$0xff]
    %v1210 = vld [vmem:[%s9 + $0xb0] sm:$0xf]
    %v1211 = vld [vmem:[%s9 + $0xb4] sm:$0xff]
    %v1212 = vld [vmem:[%s9 + $0xbc] sm:$0xf]
    %v1213 = vld [vmem:[%s9 + $0xc0] sm:$0xff]
    %v1214 = vld [vmem:[%s9 + $0xc8] sm:$0xf]
    %v1215 = vld [vmem:[%s9 + $0xcc] sm:$0xff]
    %v1216 = vld [vmem:[%s9 + $0xd4] sm:$0xf]
    %v1217 = vld [vmem:[%s9 + $0xd8] sm:$0xff]
    %v1218 = vld [vmem:[%s9 + $0xe0] sm:$0xf]
    %v1219 = vld [vmem:[%s9 + $0xe4] sm:$0xff]
    %v1220 = vld [vmem:[%s9 + $0xec] sm:$0xf]
    %v1221 = vld [vmem:[%s9 + $0xf0] sm:$0xff]
    %v1222 = vld [vmem:[%s9 + $0xf8] sm:$0xf]
    %v1223 = vld [vmem:[%s9 + $0xfc] sm:$0xff]
    %v1224 = vld [vmem:[%s9 + $0x104] sm:$0xf]
    %v1225 = vld [vmem:[%s9 + $0x108] sm:$0xff]
    %v1226 = vld [vmem:[%s9 + $0x110] sm:$0xf]
    %v1227 = vld [vmem:[%s9 + $0x114] sm:$0xff]
    %v1228 = vld [vmem:[%s9 + $0x11c] sm:$0xf]
    %v1229 = vld [vmem:[%s9 + $0x120] sm:$0xff]
    %v1230 = vld [vmem:[%s9 + $0x128] sm:$0xf]
    %v1231 = vld [vmem:[%s9 + $0x12c] sm:$0xff]
    %v1232 = vld [vmem:[%s9 + $0x134] sm:$0xf]
    %v1233 = vld [vmem:[%s9 + $0x138] sm:$0xff]
    %v1234 = vld [vmem:[%s9 + $0x140] sm:$0xf]
    %v1235 = vld [vmem:[%s9 + $0x144] sm:$0xff]
    %v1236 = vld [vmem:[%s9 + $0x14c] sm:$0xf]
    %v1237 = vld [vmem:[%s9 + $0x150] sm:$0xff]
    %v1238 = vld [vmem:[%s9 + $0x158] sm:$0xf]
    %v1239 = vld [vmem:[%s9 + $0x15c] sm:$0xff]
    %v1240 = vld [vmem:[%s9 + $0x164] sm:$0xf]
    %v1241 = vld [vmem:[%s9 + $0x168] sm:$0xff]
    %v1242 = vld [vmem:[%s9 + $0x170] sm:$0xf]
    %v1243 = vld [vmem:[%s9 + $0x174] sm:$0xff]
    %v1244 = vld [vmem:[%s9 + $0x17c] sm:$0xf]
    %v1245 = vld [vmem:[%s9 + $0x180] sm:$0xff]
    %v1246 = vld [vmem:[%s9 + $0x188] sm:$0xf]
    %v1247 = vld [vmem:[%s9 + $0x18c] sm:$0xff]
    %v1248 = vld [vmem:[%s9 + $0x194] sm:$0xf]
    %v1249 = vld [vmem:[%s9 + $0x198] sm:$0xff]
    %v1250 = vld [vmem:[%s9 + $0x1a0] sm:$0xf]
    %v1251 = vld [vmem:[%s9 + $0x1a4] sm:$0xff]
    %v1252 = vld [vmem:[%s9 + $0x1ac] sm:$0xf]
    %v1325 = vunpack.c.l.b16 %v1181
    %v1326 = vunpack.c.h.b16 %v1181
    %v1327 = vunpack.c.l.b16 %v1182
    %v1328 = vunpack.c.l.b16 %v1183
    %v1329 = vunpack.c.h.b16 %v1183
    %v1330 = vunpack.c.l.b16 %v1184
    %v1331 = vunpack.c.l.b16 %v1185
    %v1332 = vunpack.c.h.b16 %v1185
    %v1333 = vunpack.c.l.b16 %v1186
    %v1334 = vunpack.c.l.b16 %v1187
    %v1335 = vunpack.c.h.b16 %v1187
    %v1336 = vunpack.c.l.b16 %v1188
    %v1337 = vunpack.c.l.b16 %v1189
    %v1338 = vunpack.c.h.b16 %v1189
    %v1339 = vunpack.c.l.b16 %v1190
    %v1340 = vunpack.c.l.b16 %v1191
    %v1341 = vunpack.c.h.b16 %v1191
    %v1342 = vunpack.c.l.b16 %v1192
    %v1343 = vunpack.c.l.b16 %v1193
    %v1344 = vunpack.c.h.b16 %v1193
    %v1345 = vunpack.c.l.b16 %v1194
    %v1346 = vunpack.c.l.b16 %v1195
    %v1347 = vunpack.c.h.b16 %v1195
    %v1348 = vunpack.c.l.b16 %v1196
    %v1349 = vunpack.c.l.b16 %v1197
    %v1350 = vunpack.c.h.b16 %v1197
    %v1351 = vunpack.c.l.b16 %v1198
    %v1352 = vunpack.c.l.b16 %v1199
    %v1353 = vunpack.c.h.b16 %v1199
    %v1354 = vunpack.c.l.b16 %v1200
    %v1355 = vunpack.c.l.b16 %v1201
    %v1356 = vunpack.c.h.b16 %v1201
    %v1357 = vunpack.c.l.b16 %v1202
    %v1358 = vunpack.c.l.b16 %v1203
    %v1359 = vunpack.c.h.b16 %v1203
    %v1360 = vunpack.c.l.b16 %v1204
    %v1361 = vunpack.c.l.b16 %v1205
    %v1362 = vunpack.c.h.b16 %v1205
    %v1363 = vunpack.c.l.b16 %v1206
    %v1364 = vunpack.c.l.b16 %v1207
    %v1365 = vunpack.c.h.b16 %v1207
    %v1366 = vunpack.c.l.b16 %v1208
    %v1367 = vunpack.c.l.b16 %v1209
    %v1368 = vunpack.c.h.b16 %v1209
    %v1369 = vunpack.c.l.b16 %v1210
    %v1370 = vunpack.c.l.b16 %v1211
    %v1371 = vunpack.c.h.b16 %v1211
    %v1372 = vunpack.c.l.b16 %v1212
    %v1373 = vunpack.c.l.b16 %v1213
    %v1374 = vunpack.c.h.b16 %v1213
    %v1375 = vunpack.c.l.b16 %v1214
    %v1376 = vunpack.c.l.b16 %v1215
    %v1377 = vunpack.c.h.b16 %v1215
    %v1378 = vunpack.c.l.b16 %v1216
    %v1379 = vunpack.c.l.b16 %v1217
    %v1380 = vunpack.c.h.b16 %v1217
    %v1381 = vunpack.c.l.b16 %v1218
    %v1382 = vunpack.c.l.b16 %v1219
    %v1383 = vunpack.c.h.b16 %v1219
    %v1384 = vunpack.c.l.b16 %v1220
    %v1385 = vunpack.c.l.b16 %v1221
    %v1386 = vunpack.c.h.b16 %v1221
    %v1387 = vunpack.c.l.b16 %v1222
    %v1388 = vunpack.c.l.b16 %v1223
    %v1389 = vunpack.c.h.b16 %v1223
    %v1390 = vunpack.c.l.b16 %v1224
    %v1391 = vunpack.c.l.b16 %v1225
    %v1392 = vunpack.c.h.b16 %v1225
    %v1393 = vunpack.c.l.b16 %v1226
    %v1394 = vunpack.c.l.b16 %v1227
    %v1395 = vunpack.c.h.b16 %v1227
    %v1396 = vunpack.c.l.b16 %v1228
    %v1397 = vunpack.c.l.b16 %v1229
    %v1398 = vunpack.c.h.b16 %v1229
    %v1399 = vunpack.c.l.b16 %v1230
    %v1400 = vunpack.c.l.b16 %v1231
    %v1401 = vunpack.c.h.b16 %v1231
    %v1402 = vunpack.c.l.b16 %v1232
    %v1403 = vunpack.c.l.b16 %v1233
    %v1404 = vunpack.c.h.b16 %v1233
    %v1405 = vunpack.c.l.b16 %v1234
    %v1406 = vunpack.c.l.b16 %v1235
    %v1407 = vunpack.c.h.b16 %v1235
    %v1408 = vunpack.c.l.b16 %v1236
    %v1409 = vunpack.c.l.b16 %v1237
    %v1410 = vunpack.c.h.b16 %v1237
    %v1411 = vunpack.c.l.b16 %v1238
    %v1412 = vunpack.c.l.b16 %v1239
    %v1413 = vunpack.c.h.b16 %v1239
    %v1414 = vunpack.c.l.b16 %v1240
    %v1415 = vunpack.c.l.b16 %v1241
    %v1416 = vunpack.c.h.b16 %v1241
    %v1417 = vunpack.c.l.b16 %v1242
    %v1418 = vunpack.c.l.b16 %v1243
    %v1419 = vunpack.c.h.b16 %v1243
    %v1420 = vunpack.c.l.b16 %v1244
    %v1421 = vunpack.c.l.b16 %v1245
    %v1422 = vunpack.c.h.b16 %v1245
    %v1423 = vunpack.c.l.b16 %v1246
    %v1424 = vunpack.c.l.b16 %v1247
    %v1425 = vunpack.c.h.b16 %v1247
    %v1426 = vunpack.c.l.b16 %v1248
    %v1427 = vunpack.c.l.b16 %v1249
    %v1428 = vunpack.c.h.b16 %v1249
    %v1429 = vunpack.c.l.b16 %v1250
    %v1430 = vunpack.c.l.b16 %v1251
    %v1431 = vunpack.c.h.b16 %v1251
    %v1432 = vunpack.c.l.b16 %v1252
    %v1433 = vpack.c.b16 %v1328, %v1325
    %v1434 = vpack.c.b16 %v1329, %v1326
    %v1435 = vpack.c.b16 %v1330, %v1327
    %v1436 = vpack.c.b16 %v1334, %v1331
    %v1437 = vpack.c.b16 %v1335, %v1332
    %v1438 = vpack.c.b16 %v1336, %v1333
    %v1439 = vpack.c.b16 %v1340, %v1337
    %v1440 = vpack.c.b16 %v1341, %v1338
    %v1441 = vpack.c.b16 %v1342, %v1339
    %v1442 = vpack.c.b16 %v1346, %v1343
    %v1443 = vpack.c.b16 %v1347, %v1344
    %v1444 = vpack.c.b16 %v1348, %v1345
    %v1445 = vpack.c.b16 %v1352, %v1349
    %v1446 = vpack.c.b16 %v1353, %v1350
    %v1447 = vpack.c.b16 %v1354, %v1351
    %v1448 = vpack.c.b16 %v1358, %v1355
    %v1449 = vpack.c.b16 %v1359, %v1356
    %v1450 = vpack.c.b16 %v1360, %v1357
    %v1451 = vpack.c.b16 %v1364, %v1361
    %v1452 = vpack.c.b16 %v1365, %v1362
    %v1453 = vpack.c.b16 %v1366, %v1363
    %v1454 = vpack.c.b16 %v1370, %v1367
    %v1455 = vpack.c.b16 %v1371, %v1368
    %v1456 = vpack.c.b16 %v1372, %v1369
    %v1457 = vpack.c.b16 %v1376, %v1373
    %v1458 = vpack.c.b16 %v1377, %v1374
    %v1459 = vpack.c.b16 %v1378, %v1375
    %v1460 = vpack.c.b16 %v1382, %v1379
    %v1461 = vpack.c.b16 %v1383, %v1380
    %v1462 = vpack.c.b16 %v1384, %v1381
    %v1463 = vpack.c.b16 %v1388, %v1385
    %v1464 = vpack.c.b16 %v1389, %v1386
    %v1465 = vpack.c.b16 %v1390, %v1387
    %v1466 = vpack.c.b16 %v1394, %v1391
    %v1467 = vpack.c.b16 %v1395, %v1392
    %v1468 = vpack.c.b16 %v1396, %v1393
    %v1469 = vpack.c.b16 %v1400, %v1397
    %v1470 = vpack.c.b16 %v1401, %v1398
    %v1471 = vpack.c.b16 %v1402, %v1399
    %v1472 = vpack.c.b16 %v1406, %v1403
    %v1473 = vpack.c.b16 %v1407, %v1404
    %v1474 = vpack.c.b16 %v1408, %v1405
    %v1475 = vpack.c.b16 %v1412, %v1409
    %v1476 = vpack.c.b16 %v1413, %v1410
    %v1477 = vpack.c.b16 %v1414, %v1411
    %v1478 = vpack.c.b16 %v1418, %v1415
    %v1479 = vpack.c.b16 %v1419, %v1416
    %v1480 = vpack.c.b16 %v1420, %v1417
    %v1481 = vpack.c.b16 %v1424, %v1421
    %v1482 = vpack.c.b16 %v1425, %v1422
    %v1483 = vpack.c.b16 %v1426, %v1423
    %v1484 = vpack.c.b16 %v1430, %v1427
    %v1485 = vpack.c.b16 %v1431, %v1428
    %v1486 = vpack.c.b16 %v1432, %v1429
    %v1542 = vsel %vm425, %v1177, 0
    %v1545 = vsel %vm425, %v1180, 0
    %1547 = vmatprep.subr.bf16.mxu0 %v1434
    %1548 = vmatpush1.bf16.msra.mxu0 %v1433
    %1549 = vmatprep.subr.bf16.mxu0 %v1437
    %1550 = vmatpush1.bf16.msra.mxu0 %v1436
    %1551 = vmatprep.subr.bf16.mxu0 %v1440
    %1552 = vmatpush1.bf16.msra.mxu0 %v1439
    %1553 = vmatprep.subr.bf16.mxu0 %v1443
    %1554 = vmatpush1.bf16.msra.mxu0 %v1442
    %1555 = vmatprep.subr.bf16.mxu0 %v1446
    %1556 = vmatpush1.bf16.msra.mxu0 %v1445
    %1557 = vmatprep.subr.bf16.mxu0 %v1449
    %1558 = vmatpush1.bf16.msra.mxu0 %v1448
    %1559 = vmatprep.subr.bf16.mxu0 %v1452
    %1560 = vmatpush1.bf16.msra.mxu0 %v1451
    %1561 = vmatprep.subr.bf16.mxu0 %v1455
    %1562 = vmatpush1.bf16.msra.mxu0 %v1454
    %1563 = vmatprep.subr.bf16.mxu0 %v1458
    %1564 = vmatpush1.bf16.msra.mxu0 %v1457
    %1565 = vmatprep.subr.bf16.mxu0 %v1461
    %1566 = vmatpush1.bf16.msra.mxu0 %v1460
    %1567 = vmatprep.subr.bf16.mxu0 %v1464
    %1568 = vmatpush1.bf16.msra.mxu0 %v1463
    %1569 = vmatprep.subr.bf16.mxu0 %v1467
    %1570 = vmatpush1.bf16.msra.mxu0 %v1466
    %1571 = vmatprep.subr.bf16.mxu0 %v1470
    %1572 = vmatpush1.bf16.msra.mxu0 %v1469
    %1573 = vmatprep.subr.bf16.mxu0 %v1473
    %1574 = vmatpush1.bf16.msra.mxu0 %v1472
    %1575 = vmatprep.subr.bf16.mxu0 %v1476
    %1576 = vmatpush1.bf16.msra.mxu0 %v1475
    %1577 = vmatprep.subr.bf16.mxu0 %v1479
    %1578 = vmatpush1.bf16.msra.mxu0 %v1478
    %1579 = vmatprep.mubr.bf16.mxu0 %v1176
    %1580 = vmatmul.mubr.bf16.gmra.mrb[0].mxu0 %v1175
    %v1581 = vpop.f32.mrb[0].mxu0
    %v1582 = vadd.f32 0.0, %v1581
    %v1583 = vpop.f32.mrb[0].mxu0
    %v1584 = vadd.f32 0.0, %v1583
    %v1585 = vpop.f32.mrb[0].mxu0
    %v1586 = vadd.f32 0.0, %v1585
    %v1587 = vpop.f32.mrb[0].mxu0
    %v1588 = vadd.f32 0.0, %v1587
    %1589 = vmatprep.mubr.bf16.mxu0 %v1179
    %1590 = vmatmul.mubr.bf16.gmra.mrb[0].mxu0 %v1178
    %v1591 = vpop.f32.mrb[0].mxu0
    %v1592 = vadd.f32 0.0, %v1591
    %v1593 = vpop.f32.mrb[0].mxu0
    %v1594 = vadd.f32 0.0, %v1593
    %v1595 = vpop.f32.mrb[0].mxu0
    %v1596 = vadd.f32 0.0, %v1595
    %v1597 = vpop.f32.mrb[0].mxu0
    %v1598 = vadd.f32 0.0, %v1597
    %1599 = vdwg.mxu0
    %1600 = vmatprep.subr.bf16.mxu0 %v1482
    %1601 = vmatpush1.bf16.msra.mxu0 %v1481
    %1602 = vmatprep.subr.bf16.mxu0 %v1485
    %1603 = vmatpush1.bf16.msra.mxu0 %v1484
    %1604 = vmatprep.subr.bf16.mxu0 0
    %1605 = vmatpush1.bf16.msra.mxu0 0
    %1606 = vmatprep.subr.bf16.mxu0 0
    %1607 = vmatpush1.bf16.msra.mxu0 0
    %1608 = vmatprep.subr.bf16.mxu0 0
    %1609 = vmatpush1.bf16.msra.mxu0 0
    %1610 = vmatprep.subr.bf16.mxu0 0
    %1611 = vmatpush1.bf16.msra.mxu0 0
    %1612 = vmatprep.subr.bf16.mxu0 0
    %1613 = vmatpush1.bf16.msra.mxu0 0
    %1614 = vmatprep.subr.bf16.mxu0 0
    %1615 = vmatpush1.bf16.msra.mxu0 0
    %1616 = vmatprep.subr.bf16.mxu0 0
    %1617 = vmatpush1.bf16.msra.mxu0 0
    %1618 = vmatprep.subr.bf16.mxu0 0
    %1619 = vmatpush1.bf16.msra.mxu0 0
    %1620 = vmatprep.subr.bf16.mxu0 0
    %1621 = vmatpush1.bf16.msra.mxu0 0
    %1622 = vmatprep.subr.bf16.mxu0 0
    %1623 = vmatpush1.bf16.msra.mxu0 0
    %1624 = vmatprep.subr.bf16.mxu0 0
    %1625 = vmatpush1.bf16.msra.mxu0 0
    %1626 = vmatprep.subr.bf16.mxu0 0
    %1627 = vmatpush1.bf16.msra.mxu0 0
    %1628 = vmatprep.subr.bf16.mxu0 0
    %1629 = vmatpush1.bf16.msra.mxu0 0
    %1630 = vmatprep.subr.bf16.mxu0 0
    %1631 = vmatpush1.bf16.msra.mxu0 0
    %1632 = vmatprep.mubr.bf16.mxu0 0
    %1633 = vmatmul.mubr.bf16.gmra.mrb[0].mxu0 %v1542
    %v1634 = vpop.f32.mrb[0].mxu0
    %v1635 = vadd.f32 %v1582, %v1634
    %v1636 = vpop.f32.mrb[0].mxu0
    %v1637 = vadd.f32 %v1584, %v1636
    %v1638 = vpop.f32.mrb[0].mxu0
    %v1639 = vadd.f32 %v1586, %v1638
    %v1640 = vpop.f32.mrb[0].mxu0
    %v1641 = vadd.f32 %v1588, %v1640
    %1642 = vmatprep.mubr.bf16.mxu0 0
    %1643 = vmatmul.mubr.bf16.gmra.mrb[0].mxu0 %v1545
    %v1644 = vpop.f32.mrb[0].mxu0
    %v1645 = vadd.f32 %v1592, %v1644
    %v1646 = vpop.f32.mrb[0].mxu0
    %v1647 = vadd.f32 %v1594, %v1646
    %v1648 = vpop.f32.mrb[0].mxu0
    %v1649 = vadd.f32 %v1596, %v1648
    %v1650 = vpop.f32.mrb[0].mxu0
    %v1651 = vadd.f32 %v1598, %v1650
    %1652 = vdwg.mxu0
    %1653 = vmatprep.subr.bf16.mxu0 0
    %1654 = vmatpush1.bf16.msra.mxu0 %v1435
    %1655 = vmatprep.subr.bf16.mxu0 0
    %1656 = vmatpush1.bf16.msra.mxu0 %v1438
    %1657 = vmatprep.subr.bf16.mxu0 0
    %1658 = vmatpush1.bf16.msra.mxu0 %v1441
    %1659 = vmatprep.subr.bf16.mxu0 0
    %1660 = vmatpush1.bf16.msra.mxu0 %v1444
    %1661 = vmatprep.subr.bf16.mxu0 0
    %1662 = vmatpush1.bf16.msra.mxu0 %v1447
    %1663 = vmatprep.subr.bf16.mxu0 0
    %1664 = vmatpush1.bf16.msra.mxu0 %v1450
    %1665 = vmatprep.subr.bf16.mxu0 0
    %1666 = vmatpush1.bf16.msra.mxu0 %v1453
    %1667 = vmatprep.subr.bf16.mxu0 0
    %1668 = vmatpush1.bf16.msra.mxu0 %v1456
    %1669 = vmatprep.subr.bf16.mxu0 0
    %1670 = vmatpush1.bf16.msra.mxu0 %v1459
    %1671 = vmatprep.subr.bf16.mxu0 0
    %1672 = vmatpush1.bf16.msra.mxu0 %v1462
    %1673 = vmatprep.subr.bf16.mxu0 0
    %1674 = vmatpush1.bf16.msra.mxu0 %v1465
    %1675 = vmatprep.subr.bf16.mxu0 0
    %1676 = vmatpush1.bf16.msra.mxu0 %v1468
    %1677 = vmatprep.subr.bf16.mxu0 0
    %1678 = vmatpush1.bf16.msra.mxu0 %v1471
    %1679 = vmatprep.subr.bf16.mxu0 0
    %1680 = vmatpush1.bf16.msra.mxu0 %v1474
    %1681 = vmatprep.subr.bf16.mxu0 0
    %1682 = vmatpush1.bf16.msra.mxu0 %v1477
    %1683 = vmatprep.subr.bf16.mxu0 0
    %1684 = vmatpush1.bf16.msra.mxu0 %v1480
    %1685 = vmatprep.mubr.bf16.mxu0 %v1176
    %1686 = vmatmul.mubr.bf16.gmra.mrb[0].mxu0 %v1175
    %v1687 = vpop.f32.mrb[0].mxu0
    %v1688 = vadd.f32 0.0, %v1687
    %v1689 = vpop.f32.mrb[0].mxu0
    %v1690 = vpop.f32.mrb[0].mxu0
    %v1691 = vadd.f32 0.0, %v1690
    %v1692 = vpop.f32.mrb[0].mxu0
    %1693 = vmatprep.mubr.bf16.mxu0 %v1179
    %1694 = vmatmul.mubr.bf16.gmra.mrb[0].mxu0 %v1178
    %v1695 = vpop.f32.mrb[0].mxu0
    %v1696 = vadd.f32 0.0, %v1695
    %v1697 = vpop.f32.mrb[0].mxu0
    %v1698 = vpop.f32.mrb[0].mxu0
    %v1699 = vadd.f32 0.0, %v1698
    %v1700 = vpop.f32.mrb[0].mxu0
    %1701 = vdwg.mxu0
    %1702 = vmatprep.subr.bf16.mxu0 0
    %1703 = vmatpush1.bf16.msra.mxu0 %v1483
    %1704 = vmatprep.subr.bf16.mxu0 0
    %1705 = vmatpush1.bf16.msra.mxu0 %v1486
    %1706 = vmatprep.subr.bf16.mxu0 0
    %1707 = vmatpush1.bf16.msra.mxu0 0
    %1708 = vmatprep.subr.bf16.mxu0 0
    %1709 = vmatpush1.bf16.msra.mxu0 0
    %1710 = vmatprep.subr.bf16.mxu0 0
    %1711 = vmatpush1.bf16.msra.mxu0 0
    %1712 = vmatprep.subr.bf16.mxu0 0
    %1713 = vmatpush1.bf16.msra.mxu0 0
    %1714 = vmatprep.subr.bf16.mxu0 0
    %1715 = vmatpush1.bf16.msra.mxu0 0
    %1716 = vmatprep.subr.bf16.mxu0 0
    %1717 = vmatpush1.bf16.msra.mxu0 0
    %1718 = vmatprep.subr.bf16.mxu0 0
    %1719 = vmatpush1.bf16.msra.mxu0 0
    %1720 = vmatprep.subr.bf16.mxu0 0
    %1721 = vmatpush1.bf16.msra.mxu0 0
    %1722 = vmatprep.subr.bf16.mxu0 0
    %1723 = vmatpush1.bf16.msra.mxu0 0
    %1724 = vmatprep.subr.bf16.mxu0 0
    %1725 = vmatpush1.bf16.msra.mxu0 0
    %1726 = vmatprep.subr.bf16.mxu0 0
    %1727 = vmatpush1.bf16.msra.mxu0 0
    %1728 = vmatprep.subr.bf16.mxu0 0
    %1729 = vmatpush1.bf16.msra.mxu0 0
    %1730 = vmatprep.subr.bf16.mxu0 0
    %1731 = vmatpush1.bf16.msra.mxu0 0
    %1732 = vmatprep.subr.bf16.mxu0 0
    %1733 = vmatpush1.bf16.msra.mxu0 0
    %1734 = vmatprep.mubr.bf16.mxu0 0
    %1735 = vmatmul.mubr.bf16.gmra.mrb[0].mxu0 %v1542
    %v1736 = vpop.f32.mrb[0].mxu0
    %v1737 = vadd.f32 %v1688, %v1736
    %v1738 = vpop.f32.mrb[0].mxu0
    %v1739 = vpop.f32.mrb[0].mxu0
    %v1740 = vadd.f32 %v1691, %v1739
    %v1741 = vpop.f32.mrb[0].mxu0
    %1742 = vmatprep.mubr.bf16.mxu0 0
    %1743 = vmatmul.mubr.bf16.gmra.mrb[0].mxu0 %v1545
    %v1744 = vpop.f32.mrb[0].mxu0
    %v1745 = vadd.f32 %v1696, %v1744
    %v1746 = vpop.f32.mrb[0].mxu0
    %v1747 = vpop.f32.mrb[0].mxu0
    %v1748 = vadd.f32 %v1699, %v1747
    %v1749 = vpop.f32.mrb[0].mxu0
    %1750 = vdwg.mxu0
    %v1751 = vadd.f32 %v1635, %v1639
    %v1752 = vadd.f32 %v1751, %v1645
    %v1753 = vadd.f32 %v1752, %v1649
    %v1754 = vrot.slane %v1753, 4
    %v1755 = vadd.f32 %v1753, %v1754
    %v1756 = vrot.slane %v1755, 2
    %v1757 = vadd.f32 %v1755, %v1756
    %v1758 = vrot.slane %v1757, 1
    %v1759 = vadd.f32 %v1757, %v1758
    %v1760 = vadd.f32 %v1637, %v1641
    %v1761 = vadd.f32 %v1760, %v1647
    %v1762 = vadd.f32 %v1761, %v1651
    %v1763 = vrot.slane %v1762, 4
    %v1764 = vadd.f32 %v1762, %v1763
    %v1765 = vrot.slane %v1764, 2
    %v1766 = vadd.f32 %v1764, %v1765
    %v1767 = vrot.slane %v1766, 1
    %v1768 = vadd.f32 %v1766, %v1767
    %v1769 = vsel %vm425, %v1737, 0.0
    %v1770 = vsel %vm425, %v1740, 0.0
    %v1771 = vadd.f32 %v1769, %v1770
    %v1772 = vsel %vm425, %v1745, 0.0
    %v1773 = vadd.f32 %v1771, %v1772
    %v1774 = vsel %vm425, %v1748, 0.0
    %v1775 = vadd.f32 %v1773, %v1774
    %v1776 = vrot.slane %v1775, 4
    %v1777 = vadd.f32 %v1775, %v1776
    %v1778 = vrot.slane %v1777, 2
    %v1779 = vadd.f32 %v1777, %v1778
    %v1780 = vrot.slane %v1779, 1
    %v1781 = vadd.f32 %v1779, %v1780
    %v1782 = vmul.f32 %v1635, %v1635
    %v1783 = vmul.f32 %v1637, %v1637
    %v1784 = vmul.f32 %v1737, %v1737
    %v1785 = vmul.f32 %v1639, %v1639
    %v1786 = vmul.f32 %v1641, %v1641
    %v1787 = vmul.f32 %v1740, %v1740
    %v1788 = vmul.f32 %v1645, %v1645
    %v1789 = vmul.f32 %v1647, %v1647
    %v1790 = vmul.f32 %v1745, %v1745
    %v1791 = vmul.f32 %v1649, %v1649
    %v1792 = vmul.f32 %v1651, %v1651
    %v1793 = vmul.f32 %v1748, %v1748
    %v1794 = vadd.f32 %v1782, %v1785
    %v1795 = vadd.f32 %v1794, %v1788
    %v1796 = vadd.f32 %v1795, %v1791
    %v1797 = vrot.slane %v1796, 4
    %v1798 = vadd.f32 %v1796, %v1797
    %v1799 = vrot.slane %v1798, 2
    %v1800 = vadd.f32 %v1798, %v1799
    %v1801 = vrot.slane %v1800, 1
    %v1802 = vadd.f32 %v1800, %v1801
    %v1803 = vadd.f32 %v1783, %v1786
    %v1804 = vadd.f32 %v1803, %v1789
    %v1805 = vadd.f32 %v1804, %v1792
    %v1806 = vrot.slane %v1805, 4
    %v1807 = vadd.f32 %v1805, %v1806
    %v1808 = vrot.slane %v1807, 2
    %v1809 = vadd.f32 %v1807, %v1808
    %v1810 = vrot.slane %v1809, 1
    %v1811 = vadd.f32 %v1809, %v1810
    %v1812 = vsel %vm425, %v1784, 0.0
    %v1813 = vsel %vm425, %v1787, 0.0
    %v1814 = vadd.f32 %v1812, %v1813
    %v1815 = vsel %vm425, %v1790, 0.0
    %v1816 = vadd.f32 %v1814, %v1815
    %v1817 = vsel %vm425, %v1793, 0.0
    %v1818 = vadd.f32 %v1816, %v1817
    %v1819 = vrot.slane %v1818, 4
    %v1820 = vadd.f32 %v1818, %v1819
    %v1821 = vrot.slane %v1820, 2
    %v1822 = vadd.f32 %v1820, %v1821
    %v1823 = vrot.slane %v1822, 1
    %v1824 = vadd.f32 %v1822, %v1823
    %v1826 = vsel %vm425, %v1781, 0
    %1828 = vmatprep.subr.mxu0 0.0
    %1829 = vmatpush1.msra.mxu0 %v482
    %1830 = vmatprep.subr.mxu0 0.0
    %1831 = vmatpush1.msra.mxu0 %v483
    %1832 = vmatprep.subr.mxu0 0.0
    %1833 = vmatpush1.msra.mxu0 %v484
    %1834 = vmatprep.subr.mxu0 0.0
    %1835 = vmatpush1.msra.mxu0 %v485
    %1836 = vmatprep.subr.mxu0 0.0
    %1837 = vmatpush1.msra.mxu0 %v486
    %1838 = vmatprep.subr.mxu0 0.0
    %1839 = vmatpush1.msra.mxu0 %v487
    %1840 = vmatprep.subr.mxu0 0.0
    %1841 = vmatpush1.msra.mxu0 %v488
    %1842 = vmatprep.subr.mxu0 0.0
    %1843 = vmatpush1.msra.mxu0 %v489
    %1844 = vmatprep.subr.mxu0 0.0
    %1845 = vmatpush1.msra.mxu0 %v490
    %1846 = vmatprep.subr.mxu0 0.0
    %1847 = vmatpush1.msra.mxu0 %v491
    %1848 = vmatprep.subr.mxu0 0.0
    %1849 = vmatpush1.msra.mxu0 %v492
    %1850 = vmatprep.subr.mxu0 0.0
    %1851 = vmatpush1.msra.mxu0 %v493
    %1852 = vmatprep.subr.mxu0 0.0
    %1853 = vmatpush1.msra.mxu0 %v494
    %1854 = vmatprep.subr.mxu0 0.0
    %1855 = vmatpush1.msra.mxu0 %v495
    %1856 = vmatprep.subr.mxu0 0.0
    %1857 = vmatpush1.msra.mxu0 %v496
    %1858 = vmatprep.subr.mxu0 0.0
    %1859 = vmatpush1.msra.mxu0 %v497
    %1860 = vmatprep.subr.mxu0 0.0
    %1861 = vmatpush1.msra.mxu0 %v498
    %1862 = vmatprep.subr.mxu0 0.0
    %1863 = vmatpush1.msra.mxu0 %v499
    %1864 = vmatprep.subr.mxu0 0.0
    %1865 = vmatpush1.msra.mxu0 %v500
    %1866 = vmatprep.subr.mxu0 0.0
    %1867 = vmatpush1.msra.mxu0 %v501
    %1868 = vmatprep.subr.mxu0 0.0
    %1869 = vmatpush1.msra.mxu0 %v502
    %1870 = vmatprep.subr.mxu0 0.0
    %1871 = vmatpush1.msra.mxu0 %v503
    %1872 = vmatprep.subr.mxu0 0.0
    %1873 = vmatpush1.msra.mxu0 %v504
    %1874 = vmatprep.subr.mxu0 0.0
    %1875 = vmatpush1.msra.mxu0 %v505
    %1876 = vmatprep.subr.mxu0 0.0
    %1877 = vmatpush1.msra.mxu0 %v506
    %1878 = vmatprep.subr.mxu0 0.0
    %1879 = vmatpush1.msra.mxu0 %v507
    %1880 = vmatprep.subr.mxu0 0.0
    %1881 = vmatpush1.msra.mxu0 %v508
    %1882 = vmatprep.subr.mxu0 0.0
    %1883 = vmatpush1.msra.mxu0 %v509
    %1884 = vmatprep.subr.mxu0 0.0
    %1885 = vmatpush1.msra.mxu0 %v510
    %1886 = vmatprep.subr.mxu0 0.0
    %1887 = vmatpush1.msra.mxu0 %v511
    %1888 = vmatprep.subr.mxu0 0.0
    %1889 = vmatpush1.msra.mxu0 %v512
    %1890 = vmatprep.subr.mxu0 0.0
    %1891 = vmatpush1.msra.mxu0 %v513
    %1892 = vmatprep.mubr.f32.mxu0 %v1768
    %1893 = vmatmul.mubr.f32.gmra.mrb[0].mxu0 %v1759
    %v1894 = vpop.f32.mrb[0].mxu0
    %v1895 = vadd.f32 0.0, %v1894
    %v1896 = vpop.f32.mrb[0].mxu0
    %1897 = vdwg.mxu0
    %1898 = vmatprep.subr.mxu0 0.0
    %1899 = vmatpush1.msra.mxu0 %v514
    %1900 = vmatprep.subr.mxu0 0.0
    %1901 = vmatpush1.msra.mxu0 %v515
    %1902 = vmatprep.subr.mxu0 0.0
    %1903 = vmatpush1.msra.mxu0 %v516
    %1904 = vmatprep.subr.mxu0 0.0
    %1905 = vmatpush1.msra.mxu0 %v517
    %1906 = vmatprep.subr.mxu0 0.0
    %1907 = vmatpush1.msra.mxu0 0.0
    %1908 = vmatprep.subr.mxu0 0.0
    %1909 = vmatpush1.msra.mxu0 0.0
    %1910 = vmatprep.subr.mxu0 0.0
    %1911 = vmatpush1.msra.mxu0 0.0
    %1912 = vmatprep.subr.mxu0 0.0
    %1913 = vmatpush1.msra.mxu0 0.0
    %1914 = vmatprep.subr.mxu0 0.0
    %1915 = vmatpush1.msra.mxu0 0.0
    %1916 = vmatprep.subr.mxu0 0.0
    %1917 = vmatpush1.msra.mxu0 0.0
    %1918 = vmatprep.subr.mxu0 0.0
    %1919 = vmatpush1.msra.mxu0 0.0
    %1920 = vmatprep.subr.mxu0 0.0
    %1921 = vmatpush1.msra.mxu0 0.0
    %1922 = vmatprep.subr.mxu0 0.0
    %1923 = vmatpush1.msra.mxu0 0.0
    %1924 = vmatprep.subr.mxu0 0.0
    %1925 = vmatpush1.msra.mxu0 0.0
    %1926 = vmatprep.subr.mxu0 0.0
    %1927 = vmatpush1.msra.mxu0 0.0
    %1928 = vmatprep.subr.mxu0 0.0
    %1929 = vmatpush1.msra.mxu0 0.0
    %1930 = vmatprep.subr.mxu0 0.0
    %1931 = vmatpush1.msra.mxu0 0.0
    %1932 = vmatprep.subr.mxu0 0.0
    %1933 = vmatpush1.msra.mxu0 0.0
    %1934 = vmatprep.subr.mxu0 0.0
    %1935 = vmatpush1.msra.mxu0 0.0
    %1936 = vmatprep.subr.mxu0 0.0
    %1937 = vmatpush1.msra.mxu0 0.0
    %1938 = vmatprep.subr.mxu0 0.0
    %1939 = vmatpush1.msra.mxu0 0.0
    %1940 = vmatprep.subr.mxu0 0.0
    %1941 = vmatpush1.msra.mxu0 0.0
    %1942 = vmatprep.subr.mxu0 0.0
    %1943 = vmatpush1.msra.mxu0 0.0
    %1944 = vmatprep.subr.mxu0 0.0
    %1945 = vmatpush1.msra.mxu0 0.0
    %1946 = vmatprep.subr.mxu0 0.0
    %1947 = vmatpush1.msra.mxu0 0.0
    %1948 = vmatprep.subr.mxu0 0.0
    %1949 = vmatpush1.msra.mxu0 0.0
    %1950 = vmatprep.subr.mxu0 0.0
    %1951 = vmatpush1.msra.mxu0 0.0
    %1952 = vmatprep.subr.mxu0 0.0
    %1953 = vmatpush1.msra.mxu0 0.0
    %1954 = vmatprep.subr.mxu0 0.0
    %1955 = vmatpush1.msra.mxu0 0.0
    %1956 = vmatprep.subr.mxu0 0.0
    %1957 = vmatpush1.msra.mxu0 0.0
    %1958 = vmatprep.subr.mxu0 0.0
    %1959 = vmatpush1.msra.mxu0 0.0
    %1960 = vmatprep.subr.mxu0 0.0
    %1961 = vmatpush1.msra.mxu0 0.0
    %1962 = vmatprep.mubr.f32.mxu0 0.0
    %1963 = vmatmul.mubr.f32.gmra.mrb[0].mxu0 %v1826
    %v1964 = vpop.f32.mrb[0].mxu0
    %v1965 = vadd.f32 %v1895, %v1964
    %v1966 = vpop.f32.mrb[0].mxu0
    %1967 = vdwg.mxu0
    %v1968 = vmul.f32 %v1965, 0.0034722222
    %v1970 = vsel %vm425, %v1824, 0
    %1972 = vmatprep.subr.mxu0 0.0
    %1973 = vmatpush1.msra.mxu0 %v482
    %1974 = vmatprep.subr.mxu0 0.0
    %1975 = vmatpush1.msra.mxu0 %v483
    %1976 = vmatprep.subr.mxu0 0.0
    %1977 = vmatpush1.msra.mxu0 %v484
    %1978 = vmatprep.subr.mxu0 0.0
    %1979 = vmatpush1.msra.mxu0 %v485
    %1980 = vmatprep.subr.mxu0 0.0
    %1981 = vmatpush1.msra.mxu0 %v486
    %1982 = vmatprep.subr.mxu0 0.0
    %1983 = vmatpush1.msra.mxu0 %v487
    %1984 = vmatprep.subr.mxu0 0.0
    %1985 = vmatpush1.msra.mxu0 %v488
    %1986 = vmatprep.subr.mxu0 0.0
    %1987 = vmatpush1.msra.mxu0 %v489
    %1988 = vmatprep.subr.mxu0 0.0
    %1989 = vmatpush1.msra.mxu0 %v490
    %1990 = vmatprep.subr.mxu0 0.0
    %1991 = vmatpush1.msra.mxu0 %v491
    %1992 = vmatprep.subr.mxu0 0.0
    %1993 = vmatpush1.msra.mxu0 %v492
    %1994 = vmatprep.subr.mxu0 0.0
    %1995 = vmatpush1.msra.mxu0 %v493
    %1996 = vmatprep.subr.mxu0 0.0
    %1997 = vmatpush1.msra.mxu0 %v494
    %1998 = vmatprep.subr.mxu0 0.0
    %1999 = vmatpush1.msra.mxu0 %v495
    %2000 = vmatprep.subr.mxu0 0.0
    %2001 = vmatpush1.msra.mxu0 %v496
    %2002 = vmatprep.subr.mxu0 0.0
    %2003 = vmatpush1.msra.mxu0 %v497
    %2004 = vmatprep.subr.mxu0 0.0
    %2005 = vmatpush1.msra.mxu0 %v498
    %2006 = vmatprep.subr.mxu0 0.0
    %2007 = vmatpush1.msra.mxu0 %v499
    %2008 = vmatprep.subr.mxu0 0.0
    %2009 = vmatpush1.msra.mxu0 %v500
    %2010 = vmatprep.subr.mxu0 0.0
    %2011 = vmatpush1.msra.mxu0 %v501
    %2012 = vmatprep.subr.mxu0 0.0
    %2013 = vmatpush1.msra.mxu0 %v502
    %2014 = vmatprep.subr.mxu0 0.0
    %2015 = vmatpush1.msra.mxu0 %v503
    %2016 = vmatprep.subr.mxu0 0.0
    %2017 = vmatpush1.msra.mxu0 %v504
    %2018 = vmatprep.subr.mxu0 0.0
    %2019 = vmatpush1.msra.mxu0 %v505
    %2020 = vmatprep.subr.mxu0 0.0
    %2021 = vmatpush1.msra.mxu0 %v506
    %2022 = vmatprep.subr.mxu0 0.0
    %2023 = vmatpush1.msra.mxu0 %v507
    %2024 = vmatprep.subr.mxu0 0.0
    %2025 = vmatpush1.msra.mxu0 %v508
    %2026 = vmatprep.subr.mxu0 0.0
    %2027 = vmatpush1.msra.mxu0 %v509
    %2028 = vmatprep.subr.mxu0 0.0
    %2029 = vmatpush1.msra.mxu0 %v510
    %2030 = vmatprep.subr.mxu0 0.0
    %2031 = vmatpush1.msra.mxu0 %v511
    %2032 = vmatprep.subr.mxu0 0.0
    %2033 = vmatpush1.msra.mxu0 %v512
    %2034 = vmatprep.subr.mxu0 0.0
    %2035 = vmatpush1.msra.mxu0 %v513
    %2036 = vmatprep.mubr.f32.mxu0 %v1811
    %2037 = vmatmul.mubr.f32.gmra.mrb[0].mxu0 %v1802
    %v2038 = vpop.f32.mrb[0].mxu0
    %v2039 = vadd.f32 0.0, %v2038
    %v2040 = vpop.f32.mrb[0].mxu0
    %2041 = vdwg.mxu0
    %2042 = vmatprep.subr.mxu0 0.0
    %2043 = vmatpush1.msra.mxu0 %v514
    %2044 = vmatprep.subr.mxu0 0.0
    %2045 = vmatpush1.msra.mxu0 %v515
    %2046 = vmatprep.subr.mxu0 0.0
    %2047 = vmatpush1.msra.mxu0 %v516
    %2048 = vmatprep.subr.mxu0 0.0
    %2049 = vmatpush1.msra.mxu0 %v517
    %2050 = vmatprep.subr.mxu0 0.0
    %2051 = vmatpush1.msra.mxu0 0.0
    %2052 = vmatprep.subr.mxu0 0.0
    %2053 = vmatpush1.msra.mxu0 0.0
    %2054 = vmatprep.subr.mxu0 0.0
    %2055 = vmatpush1.msra.mxu0 0.0
    %2056 = vmatprep.subr.mxu0 0.0
    %2057 = vmatpush1.msra.mxu0 0.0
    %2058 = vmatprep.subr.mxu0 0.0
    %2059 = vmatpush1.msra.mxu0 0.0
    %2060 = vmatprep.subr.mxu0 0.0
    %2061 = vmatpush1.msra.mxu0 0.0
    %2062 = vmatprep.subr.mxu0 0.0
    %2063 = vmatpush1.msra.mxu0 0.0
    %2064 = vmatprep.subr.mxu0 0.0
    %2065 = vmatpush1.msra.mxu0 0.0
    %2066 = vmatprep.subr.mxu0 0.0
    %2067 = vmatpush1.msra.mxu0 0.0
    %2068 = vmatprep.subr.mxu0 0.0
    %2069 = vmatpush1.msra.mxu0 0.0
    %2070 = vmatprep.subr.mxu0 0.0
    %2071 = vmatpush1.msra.mxu0 0.0
    %2072 = vmatprep.subr.mxu0 0.0
    %2073 = vmatpush1.msra.mxu0 0.0
    %2074 = vmatprep.subr.mxu0 0.0
    %2075 = vmatpush1.msra.mxu0 0.0
    %2076 = vmatprep.subr.mxu0 0.0
    %2077 = vmatpush1.msra.mxu0 0.0
    %2078 = vmatprep.subr.mxu0 0.0
    %2079 = vmatpush1.msra.mxu0 0.0
    %2080 = vmatprep.subr.mxu0 0.0
    %2081 = vmatpush1.msra.mxu0 0.0
    %2082 = vmatprep.subr.mxu0 0.0
    %2083 = vmatpush1.msra.mxu0 0.0
    %2084 = vmatprep.subr.mxu0 0.0
    %2085 = vmatpush1.msra.mxu0 0.0
    %2086 = vmatprep.subr.mxu0 0.0
    %2087 = vmatpush1.msra.mxu0 0.0
    %2088 = vmatprep.subr.mxu0 0.0
    %2089 = vmatpush1.msra.mxu0 0.0
    %2090 = vmatprep.subr.mxu0 0.0
    %2091 = vmatpush1.msra.mxu0 0.0
    %2092 = vmatprep.subr.mxu0 0.0
    %2093 = vmatpush1.msra.mxu0 0.0
    %2094 = vmatprep.subr.mxu0 0.0
    %2095 = vmatpush1.msra.mxu0 0.0
    %2096 = vmatprep.subr.mxu0 0.0
    %2097 = vmatpush1.msra.mxu0 0.0
    %2098 = vmatprep.subr.mxu0 0.0
    %2099 = vmatpush1.msra.mxu0 0.0
    %2100 = vmatprep.subr.mxu0 0.0
    %2101 = vmatpush1.msra.mxu0 0.0
    %2102 = vmatprep.subr.mxu0 0.0
    %2103 = vmatpush1.msra.mxu0 0.0
    %2104 = vmatprep.subr.mxu0 0.0
    %2105 = vmatpush1.msra.mxu0 0.0
    %2106 = vmatprep.mubr.f32.mxu0 0.0
    %2107 = vmatmul.mubr.f32.gmra.mrb[0].mxu0 %v1970
    %v2108 = vpop.f32.mrb[0].mxu0
    %v2109 = vadd.f32 %v2039, %v2108
    %v2110 = vpop.f32.mrb[0].mxu0
    %2111 = vdwg.mxu0
    %v2112 = vmul.f32 %v2109, 0.0034722222
    %v2113 = vmul.f32 %v1968, %v1968
    %v2114 = vsub.f32 %v2112, %v2113
    %v2115 = vld [vmem:[%s11] sm:$0x1]
    %v2116 = vadd.f32 %v2114, 1e-05
    %v2117 = vrsqrt.pop %v2116
    %v2118 = vmul.f32 %v2115, %v2117
    %v2119 = vld [vmem:[#allocation5] sm:$0x1]
    %v2120 = vmul.f32 %v1968, %v2118
    %v2121 = vsub.f32 %v2119, %v2120
    %v2123 = vsel %vm425, %v2118, 0
    %2125 = vmatprep.subr.mxu0 %v816
    %2126 = vmatpush1.msra.mxu0 %v815
    %2127 = vmatprep.subr.mxu0 %v819
    %2128 = vmatpush1.msra.mxu0 %v818
    %2129 = vmatprep.subr.mxu0 %v822
    %2130 = vmatpush1.msra.mxu0 %v821
    %2131 = vmatprep.subr.mxu0 %v825
    %2132 = vmatpush1.msra.mxu0 %v824
    %2133 = vmatprep.subr.mxu0 0.0
    %2134 = vmatpush1.msra.mxu0 0.0
    %2135 = vmatprep.subr.mxu0 0.0
    %2136 = vmatpush1.msra.mxu0 0.0
    %2137 = vmatprep.subr.mxu0 0.0
    %2138 = vmatpush1.msra.mxu0 0.0
    %2139 = vmatprep.subr.mxu0 0.0
    %2140 = vmatpush1.msra.mxu0 0.0
    %2141 = vmatprep.subr.mxu0 0.0
    %2142 = vmatpush1.msra.mxu0 0.0
    %2143 = vmatprep.subr.mxu0 0.0
    %2144 = vmatpush1.msra.mxu0 0.0
    %2145 = vmatprep.subr.mxu0 0.0
    %2146 = vmatpush1.msra.mxu0 0.0
    %2147 = vmatprep.subr.mxu0 0.0
    %2148 = vmatpush1.msra.mxu0 0.0
    %2149 = vmatprep.subr.mxu0 0.0
    %2150 = vmatpush1.msra.mxu0 0.0
    %2151 = vmatprep.subr.mxu0 0.0
    %2152 = vmatpush1.msra.mxu0 0.0
    %2153 = vmatprep.subr.mxu0 0.0
    %2154 = vmatpush1.msra.mxu0 0.0
    %2155 = vmatprep.subr.mxu0 0.0
    %2156 = vmatpush1.msra.mxu0 0.0
    %2157 = vmatprep.subr.mxu0 0.0
    %2158 = vmatpush1.msra.mxu0 0.0
    %2159 = vmatprep.subr.mxu0 0.0
    %2160 = vmatpush1.msra.mxu0 0.0
    %2161 = vmatprep.subr.mxu0 0.0
    %2162 = vmatpush1.msra.mxu0 0.0
    %2163 = vmatprep.subr.mxu0 0.0
    %2164 = vmatpush1.msra.mxu0 0.0
    %2165 = vmatprep.subr.mxu0 0.0
    %2166 = vmatpush1.msra.mxu0 0.0
    %2167 = vmatprep.subr.mxu0 0.0
    %2168 = vmatpush1.msra.mxu0 0.0
    %2169 = vmatprep.subr.mxu0 0.0
    %2170 = vmatpush1.msra.mxu0 0.0
    %2171 = vmatprep.subr.mxu0 0.0
    %2172 = vmatpush1.msra.mxu0 0.0
    %2173 = vmatprep.subr.mxu0 0.0
    %2174 = vmatpush1.msra.mxu0 0.0
    %2175 = vmatprep.subr.mxu0 0.0
    %2176 = vmatpush1.msra.mxu0 0.0
    %2177 = vmatprep.subr.mxu0 0.0
    %2178 = vmatpush1.msra.mxu0 0.0
    %2179 = vmatprep.subr.mxu0 0.0
    %2180 = vmatpush1.msra.mxu0 0.0
    %2181 = vmatprep.subr.mxu0 0.0
    %2182 = vmatpush1.msra.mxu0 0.0
    %2183 = vmatprep.subr.mxu0 0.0
    %2184 = vmatpush1.msra.mxu0 0.0
    %2185 = vmatprep.subr.mxu0 0.0
    %2186 = vmatpush1.msra.mxu0 0.0
    %2187 = vmatprep.subr.mxu0 0.0
    %2188 = vmatpush1.msra.mxu0 0.0
    %2189 = vmatprep.mubr.f32.mxu0 0.0
    %2190 = vmatmul.mubr.f32.gmra.mrb[0].mxu0 %v2123
    %v2191 = vpop.f32.mrb[0].mxu0
    %v2192 = vadd.f32 0.0, %v2191
    %v2193 = vpop.f32.mrb[0].mxu0
    %v2194 = vadd.f32 0.0, %v2193
    %2195 = vdwg.mxu0
    %2196 = vmatprep.subr.mxu0 0.0
    %2197 = vmatpush1.msra.mxu0 %v817
    %2198 = vmatprep.subr.mxu0 0.0
    %2199 = vmatpush1.msra.mxu0 %v820
    %2200 = vmatprep.subr.mxu0 0.0
    %2201 = vmatpush1.msra.mxu0 %v823
    %2202 = vmatprep.subr.mxu0 0.0
    %2203 = vmatpush1.msra.mxu0 %v826
    %2204 = vmatprep.subr.mxu0 0.0
    %2205 = vmatpush1.msra.mxu0 0.0
    %2206 = vmatprep.subr.mxu0 0.0
    %2207 = vmatpush1.msra.mxu0 0.0
    %2208 = vmatprep.subr.mxu0 0.0
    %2209 = vmatpush1.msra.mxu0 0.0
    %2210 = vmatprep.subr.mxu0 0.0
    %2211 = vmatpush1.msra.mxu0 0.0
    %2212 = vmatprep.subr.mxu0 0.0
    %2213 = vmatpush1.msra.mxu0 0.0
    %2214 = vmatprep.subr.mxu0 0.0
    %2215 = vmatpush1.msra.mxu0 0.0
    %2216 = vmatprep.subr.mxu0 0.0
    %2217 = vmatpush1.msra.mxu0 0.0
    %2218 = vmatprep.subr.mxu0 0.0
    %2219 = vmatpush1.msra.mxu0 0.0
    %2220 = vmatprep.subr.mxu0 0.0
    %2221 = vmatpush1.msra.mxu0 0.0
    %2222 = vmatprep.subr.mxu0 0.0
    %2223 = vmatpush1.msra.mxu0 0.0
    %2224 = vmatprep.subr.mxu0 0.0
    %2225 = vmatpush1.msra.mxu0 0.0
    %2226 = vmatprep.subr.mxu0 0.0
    %2227 = vmatpush1.msra.mxu0 0.0
    %2228 = vmatprep.subr.mxu0 0.0
    %2229 = vmatpush1.msra.mxu0 0.0
    %2230 = vmatprep.subr.mxu0 0.0
    %2231 = vmatpush1.msra.mxu0 0.0
    %2232 = vmatprep.subr.mxu0 0.0
    %2233 = vmatpush1.msra.mxu0 0.0
    %2234 = vmatprep.subr.mxu0 0.0
    %2235 = vmatpush1.msra.mxu0 0.0
    %2236 = vmatprep.subr.mxu0 0.0
    %2237 = vmatpush1.msra.mxu0 0.0
    %2238 = vmatprep.subr.mxu0 0.0
    %2239 = vmatpush1.msra.mxu0 0.0
    %2240 = vmatprep.subr.mxu0 0.0
    %2241 = vmatpush1.msra.mxu0 0.0
    %2242 = vmatprep.subr.mxu0 0.0
    %2243 = vmatpush1.msra.mxu0 0.0
    %2244 = vmatprep.subr.mxu0 0.0
    %2245 = vmatpush1.msra.mxu0 0.0
    %2246 = vmatprep.subr.mxu0 0.0
    %2247 = vmatpush1.msra.mxu0 0.0
    %2248 = vmatprep.subr.mxu0 0.0
    %2249 = vmatpush1.msra.mxu0 0.0
    %2250 = vmatprep.subr.mxu0 0.0
    %2251 = vmatpush1.msra.mxu0 0.0
    %2252 = vmatprep.subr.mxu0 0.0
    %2253 = vmatpush1.msra.mxu0 0.0
    %2254 = vmatprep.subr.mxu0 0.0
    %2255 = vmatpush1.msra.mxu0 0.0
    %2256 = vmatprep.subr.mxu0 0.0
    %2257 = vmatpush1.msra.mxu0 0.0
    %2258 = vmatprep.subr.mxu0 0.0
    %2259 = vmatpush1.msra.mxu0 0.0
    %2260 = vmatprep.mubr.f32.mxu0 0.0
    %2261 = vmatmul.mubr.f32.gmra.mrb[0].mxu0 %v2123
    %v2262 = vpop.f32.mrb[0].mxu0
    %v2263 = vadd.f32 0.0, %v2262
    %v2264 = vpop.f32.mrb[0].mxu0
    %2265 = vdwg.mxu0
    %v2267 = vsel %vm425, %v2121, 0
    %2269 = vmatprep.subr.mxu0 %v816
    %2270 = vmatpush1.msra.mxu0 %v815
    %2271 = vmatprep.subr.mxu0 %v819
    %2272 = vmatpush1.msra.mxu0 %v818
    %2273 = vmatprep.subr.mxu0 %v822
    %2274 = vmatpush1.msra.mxu0 %v821
    %2275 = vmatprep.subr.mxu0 %v825
    %2276 = vmatpush1.msra.mxu0 %v824
    %2277 = vmatprep.subr.mxu0 0.0
    %2278 = vmatpush1.msra.mxu0 0.0
    %2279 = vmatprep.subr.mxu0 0.0
    %2280 = vmatpush1.msra.mxu0 0.0
    %2281 = vmatprep.subr.mxu0 0.0
    %2282 = vmatpush1.msra.mxu0 0.0
    %2283 = vmatprep.subr.mxu0 0.0
    %2284 = vmatpush1.msra.mxu0 0.0
    %2285 = vmatprep.subr.mxu0 0.0
    %2286 = vmatpush1.msra.mxu0 0.0
    %2287 = vmatprep.subr.mxu0 0.0
    %2288 = vmatpush1.msra.mxu0 0.0
    %2289 = vmatprep.subr.mxu0 0.0
    %2290 = vmatpush1.msra.mxu0 0.0
    %2291 = vmatprep.subr.mxu0 0.0
    %2292 = vmatpush1.msra.mxu0 0.0
    %2293 = vmatprep.subr.mxu0 0.0
    %2294 = vmatpush1.msra.mxu0 0.0
    %2295 = vmatprep.subr.mxu0 0.0
    %2296 = vmatpush1.msra.mxu0 0.0
    %2297 = vmatprep.subr.mxu0 0.0
    %2298 = vmatpush1.msra.mxu0 0.0
    %2299 = vmatprep.subr.mxu0 0.0
    %2300 = vmatpush1.msra.mxu0 0.0
    %2301 = vmatprep.subr.mxu0 0.0
    %2302 = vmatpush1.msra.mxu0 0.0
    %2303 = vmatprep.subr.mxu0 0.0
    %2304 = vmatpush1.msra.mxu0 0.0
    %2305 = vmatprep.subr.mxu0 0.0
    %2306 = vmatpush1.msra.mxu0 0.0
    %2307 = vmatprep.subr.mxu0 0.0
    %2308 = vmatpush1.msra.mxu0 0.0
    %2309 = vmatprep.subr.mxu0 0.0
    %2310 = vmatpush1.msra.mxu0 0.0
    %2311 = vmatprep.subr.mxu0 0.0
    %2312 = vmatpush1.msra.mxu0 0.0
    %2313 = vmatprep.subr.mxu0 0.0
    %2314 = vmatpush1.msra.mxu0 0.0
    %2315 = vmatprep.subr.mxu0 0.0
    %2316 = vmatpush1.msra.mxu0 0.0
    %2317 = vmatprep.subr.mxu0 0.0
    %2318 = vmatpush1.msra.mxu0 0.0
    %2319 = vmatprep.subr.mxu0 0.0
    %2320 = vmatpush1.msra.mxu0 0.0
    %2321 = vmatprep.subr.mxu0 0.0
    %2322 = vmatpush1.msra.mxu0 0.0
    %2323 = vmatprep.subr.mxu0 0.0
    %2324 = vmatpush1.msra.mxu0 0.0
    %2325 = vmatprep.subr.mxu0 0.0
    %2326 = vmatpush1.msra.mxu0 0.0
    %2327 = vmatprep.subr.mxu0 0.0
    %2328 = vmatpush1.msra.mxu0 0.0
    %2329 = vmatprep.subr.mxu0 0.0
    %2330 = vmatpush1.msra.mxu0 0.0
    %2331 = vmatprep.subr.mxu0 0.0
    %2332 = vmatpush1.msra.mxu0 0.0
    %2333 = vmatprep.mubr.f32.mxu0 0.0
    %2334 = vmatmul.mubr.f32.gmra.mrb[0].mxu0 %v2267
    %v2335 = vpop.f32.mrb[0].mxu0
    %v2336 = vadd.f32 0.0, %v2335
    %v2337 = vpop.f32.mrb[0].mxu0
    %v2338 = vadd.f32 0.0, %v2337
    %2339 = vdwg.mxu0
    %2340 = vmatprep.subr.mxu0 0.0
    %2341 = vmatpush1.msra.mxu0 %v817
    %2342 = vmatprep.subr.mxu0 0.0
    %2343 = vmatpush1.msra.mxu0 %v820
    %2344 = vmatprep.subr.mxu0 0.0
    %2345 = vmatpush1.msra.mxu0 %v823
    %2346 = vmatprep.subr.mxu0 0.0
    %2347 = vmatpush1.msra.mxu0 %v826
    %2348 = vmatprep.subr.mxu0 0.0
    %2349 = vmatpush1.msra.mxu0 0.0
    %2350 = vmatprep.subr.mxu0 0.0
    %2351 = vmatpush1.msra.mxu0 0.0
    %2352 = vmatprep.subr.mxu0 0.0
    %2353 = vmatpush1.msra.mxu0 0.0
    %2354 = vmatprep.subr.mxu0 0.0
    %2355 = vmatpush1.msra.mxu0 0.0
    %2356 = vmatprep.subr.mxu0 0.0
    %2357 = vmatpush1.msra.mxu0 0.0
    %2358 = vmatprep.subr.mxu0 0.0
    %2359 = vmatpush1.msra.mxu0 0.0
    %2360 = vmatprep.subr.mxu0 0.0
    %2361 = vmatpush1.msra.mxu0 0.0
    %2362 = vmatprep.subr.mxu0 0.0
    %2363 = vmatpush1.msra.mxu0 0.0
    %2364 = vmatprep.subr.mxu0 0.0
    %2365 = vmatpush1.msra.mxu0 0.0
    %2366 = vmatprep.subr.mxu0 0.0
    %2367 = vmatpush1.msra.mxu0 0.0
    %2368 = vmatprep.subr.mxu0 0.0
    %2369 = vmatpush1.msra.mxu0 0.0
    %2370 = vmatprep.subr.mxu0 0.0
    %2371 = vmatpush1.msra.mxu0 0.0
    %2372 = vmatprep.subr.mxu0 0.0
    %2373 = vmatpush1.msra.mxu0 0.0
    %2374 = vmatprep.subr.mxu0 0.0
    %2375 = vmatpush1.msra.mxu0 0.0
    %2376 = vmatprep.subr.mxu0 0.0
    %2377 = vmatpush1.msra.mxu0 0.0
    %2378 = vmatprep.subr.mxu0 0.0
    %2379 = vmatpush1.msra.mxu0 0.0
    %2380 = vmatprep.subr.mxu0 0.0
    %2381 = vmatpush1.msra.mxu0 0.0
    %2382 = vmatprep.subr.mxu0 0.0
    %2383 = vmatpush1.msra.mxu0 0.0
    %2384 = vmatprep.subr.mxu0 0.0
    %2385 = vmatpush1.msra.mxu0 0.0
    %2386 = vmatprep.subr.mxu0 0.0
    %2387 = vmatpush1.msra.mxu0 0.0
    %2388 = vmatprep.subr.mxu0 0.0
    %2389 = vmatpush1.msra.mxu0 0.0
    %2390 = vmatprep.subr.mxu0 0.0
    %2391 = vmatpush1.msra.mxu0 0.0
    %2392 = vmatprep.subr.mxu0 0.0
    %2393 = vmatpush1.msra.mxu0 0.0
    %2394 = vmatprep.subr.mxu0 0.0
    %2395 = vmatpush1.msra.mxu0 0.0
    %2396 = vmatprep.subr.mxu0 0.0
    %2397 = vmatpush1.msra.mxu0 0.0
    %2398 = vmatprep.subr.mxu0 0.0
    %2399 = vmatpush1.msra.mxu0 0.0
    %2400 = vmatprep.subr.mxu0 0.0
    %2401 = vmatpush1.msra.mxu0 0.0
    %2402 = vmatprep.subr.mxu0 0.0
    %2403 = vmatpush1.msra.mxu0 0.0
    %2404 = vmatprep.mubr.f32.mxu0 0.0
    %2405 = vmatmul.mubr.f32.gmra.mrb[0].mxu0 %v2267
    %v2406 = vpop.f32.mrb[0].mxu0
    %v2407 = vadd.f32 0.0, %v2406
    %v2408 = vpop.f32.mrb[0].mxu0
    %2409 = vdwg.mxu0
    %v2410 = vlaneseq
    %v2411 = vshrl.u32 %v2410, 7
    %v2412 = vsub.s32 0, %v2411
    %v2413 = vrot.slane %v2192, %v2412
    %v2414 = vlaneseq
    %v2415 = vshrl.u32 %v2414, 7
    %v2416 = vsub.s32 0, %v2415
    %v2417 = vrot.slane %v2194, %v2416
    %v2418 = vlaneseq
    %v2419 = vshrl.u32 %v2418, 7
    %v2420 = vsub.s32 0, %v2419
    %v2421 = vrot.slane %v2263, %v2420
    %v2422 = vmul.f32 %v1635, %v2413
    %v2423 = vmul.f32 %v1637, %v2417
    %v2424 = vmul.f32 %v1737, %v2421
    %v2425 = vmul.f32 %v1639, %v2413
    %v2426 = vmul.f32 %v1641, %v2417
    %v2427 = vmul.f32 %v1740, %v2421
    %v2428 = vmul.f32 %v1645, %v2413
    %v2429 = vmul.f32 %v1647, %v2417
    %v2430 = vmul.f32 %v1745, %v2421
    %v2431 = vmul.f32 %v1649, %v2413
    %v2432 = vmul.f32 %v1651, %v2417
    %v2433 = vmul.f32 %v1748, %v2421
    %v2434 = vlaneseq
    %v2435 = vshrl.u32 %v2434, 7
    %v2436 = vsub.s32 0, %v2435
    %v2437 = vrot.slane %v2336, %v2436
    %v2438 = vlaneseq
    %v2439 = vshrl.u32 %v2438, 7
    %v2440 = vsub.s32 0, %v2439
    %v2441 = vrot.slane %v2338, %v2440
    %v2442 = vlaneseq
    %v2443 = vshrl.u32 %v2442, 7
    %v2444 = vsub.s32 0, %v2443
    %v2445 = vrot.slane %v2407, %v2444
    %v2446 = vadd.f32 %v2422, %v2437
    %v2447 = vadd.f32 %v2423, %v2441
    %v2448 = vadd.f32 %v2424, %v2445
    %v2449 = vadd.f32 %v2425, %v2437
    %v2450 = vadd.f32 %v2426, %v2441
    %v2451 = vadd.f32 %v2427, %v2445
    %v2452 = vadd.f32 %v2428, %v2437
    %v2453 = vadd.f32 %v2429, %v2441
    %v2454 = vadd.f32 %v2430, %v2445
    %v2455 = vadd.f32 %v2431, %v2437
    %v2456 = vadd.f32 %v2432, %v2441
    %v2457 = vadd.f32 %v2433, %v2445
    %v2458 = vmax.f32 %v2446, 0.0
    %v2459 = vmax.f32 %v2447, 0.0
    %v2460 = vmax.f32 %v2448, 0.0
    %v2461 = vmax.f32 %v2449, 0.0
    %v2462 = vmax.f32 %v2450, 0.0
    %v2463 = vmax.f32 %v2451, 0.0
    %v2464 = vmax.f32 %v2452, 0.0
    %v2465 = vmax.f32 %v2453, 0.0
    %v2466 = vmax.f32 %v2454, 0.0
    %v2467 = vmax.f32 %v2455, 0.0
    %v2468 = vmax.f32 %v2456, 0.0
    %v2469 = vmax.f32 %v2457, 0.0
    %v2470 = vpack.c.bf16 %v2461, %v2458
    %v2471 = vpack.c.bf16 %v2462, %v2459
    %v2472 = vpack.c.bf16 %v2463, %v2460
    %v2473 = vpack.c.bf16 %v2467, %v2464
    %v2474 = vpack.c.bf16 %v2468, %v2465
    %v2475 = vpack.c.bf16 %v2469, %v2466
    %v2476 = vld [vmem:[%s15] sm:$0xff]
    %v2477 = vld [vmem:[%s15 + $0x8] sm:$0xf]
    %v2478 = vld [vmem:[%s15 + $0xc] sm:$0xff]
    %v2479 = vld [vmem:[%s15 + $0x14] sm:$0xf]
    %v2480 = vld [vmem:[%s15 + $0x18] sm:$0xff]
    %v2481 = vld [vmem:[%s15 + $0x20] sm:$0xf]
    %v2482 = vld [vmem:[%s15 + $0x24] sm:$0xff]
    %v2483 = vld [vmem:[%s15 + $0x2c] sm:$0xf]
    %v2484 = vld [vmem:[%s15 + $0x30] sm:$0xff]
    %v2485 = vld [vmem:[%s15 + $0x38] sm:$0xf]
    %v2486 = vld [vmem:[%s15 + $0x3c] sm:$0xff]
    %v2487 = vld [vmem:[%s15 + $0x44] sm:$0xf]
    %v2488 = vld [vmem:[%s15 + $0x48] sm:$0xff]
    %v2489 = vld [vmem:[%s15 + $0x50] sm:$0xf]
    %v2490 = vld [vmem:[%s15 + $0x54] sm:$0xff]
    %v2491 = vld [vmem:[%s15 + $0x5c] sm:$0xf]
    %v2492 = vld [vmem:[%s15 + $0x60] sm:$0xff]
    %v2493 = vld [vmem:[%s15 + $0x68] sm:$0xf]
    %v2494 = vld [vmem:[%s15 + $0x6c] sm:$0xff]
    %v2495 = vld [vmem:[%s15 + $0x74] sm:$0xf]
    %v2496 = vld [vmem:[%s15 + $0x78] sm:$0xff]
    %v2497 = vld [vmem:[%s15 + $0x80] sm:$0xf]
    %v2498 = vld [vmem:[%s15 + $0x84] sm:$0xff]
    %v2499 = vld [vmem:[%s15 + $0x8c] sm:$0xf]
    %v2500 = vld [vmem:[%s15 + $0x90] sm:$0xff]
    %v2501 = vld [vmem:[%s15 + $0x98] sm:$0xf]
    %v2502 = vld [vmem:[%s15 + $0x9c] sm:$0xff]
    %v2503 = vld [vmem:[%s15 + $0xa4] sm:$0xf]
    %v2504 = vld [vmem:[%s15 + $0xa8] sm:$0xff]
    %v2505 = vld [vmem:[%s15 + $0xb0] sm:$0xf]
    %v2506 = vld [vmem:[%s15 + $0xb4] sm:$0xff]
    %v2507 = vld [vmem:[%s15 + $0xbc] sm:$0xf]
    %v2508 = vld [vmem:[%s15 + $0xc0] sm:$0xff]
    %v2509 = vld [vmem:[%s15 + $0xc8] sm:$0xf]
    %v2510 = vld [vmem:[%s15 + $0xcc] sm:$0xff]
    %v2511 = vld [vmem:[%s15 + $0xd4] sm:$0xf]
    %v2512 = vld [vmem:[%s15 + $0xd8] sm:$0xff]
    %v2513 = vld [vmem:[%s15 + $0xe0] sm:$0xf]
    %v2514 = vld [vmem:[%s15 + $0xe4] sm:$0xff]
    %v2515 = vld [vmem:[%s15 + $0xec] sm:$0xf]
    %v2516 = vld [vmem:[%s15 + $0xf0] sm:$0xff]
    %v2517 = vld [vmem:[%s15 + $0xf8] sm:$0xf]
    %v2518 = vld [vmem:[%s15 + $0xfc] sm:$0xff]
    %v2519 = vld [vmem:[%s15 + $0x104] sm:$0xf]
    %v2520 = vld [vmem:[%s15 + $0x108] sm:$0xff]
    %v2521 = vld [vmem:[%s15 + $0x110] sm:$0xf]
    %v2522 = vld [vmem:[%s15 + $0x114] sm:$0xff]
    %v2523 = vld [vmem:[%s15 + $0x11c] sm:$0xf]
    %v2524 = vld [vmem:[%s15 + $0x120] sm:$0xff]
    %v2525 = vld [vmem:[%s15 + $0x128] sm:$0xf]
    %v2526 = vld [vmem:[%s15 + $0x12c] sm:$0xff]
    %v2527 = vld [vmem:[%s15 + $0x134] sm:$0xf]
    %v2528 = vld [vmem:[%s15 + $0x138] sm:$0xff]
    %v2529 = vld [vmem:[%s15 + $0x140] sm:$0xf]
    %v2530 = vld [vmem:[%s15 + $0x144] sm:$0xff]
    %v2531 = vld [vmem:[%s15 + $0x14c] sm:$0xf]
    %v2532 = vld [vmem:[%s15 + $0x150] sm:$0xff]
    %v2533 = vld [vmem:[%s15 + $0x158] sm:$0xf]
    %v2534 = vld [vmem:[%s15 + $0x15c] sm:$0xff]
    %v2535 = vld [vmem:[%s15 + $0x164] sm:$0xf]
    %v2536 = vld [vmem:[%s15 + $0x168] sm:$0xff]
    %v2537 = vld [vmem:[%s15 + $0x170] sm:$0xf]
    %v2538 = vld [vmem:[%s15 + $0x174] sm:$0xff]
    %v2539 = vld [vmem:[%s15 + $0x17c] sm:$0xf]
    %v2540 = vld [vmem:[%s15 + $0x180] sm:$0xff]
    %v2541 = vld [vmem:[%s15 + $0x188] sm:$0xf]
    %v2542 = vld [vmem:[%s15 + $0x18c] sm:$0xff]
    %v2543 = vld [vmem:[%s15 + $0x194] sm:$0xf]
    %v2544 = vld [vmem:[%s15 + $0x198] sm:$0xff]
    %v2545 = vld [vmem:[%s15 + $0x1a0] sm:$0xf]
    %v2546 = vld [vmem:[%s15 + $0x1a4] sm:$0xff]
    %v2547 = vld [vmem:[%s15 + $0x1ac] sm:$0xf]
    %v2620 = vunpack.c.l.b16 %v2476
    %v2621 = vunpack.c.h.b16 %v2476
    %v2622 = vunpack.c.l.b16 %v2477
    %v2623 = vunpack.c.l.b16 %v2478
    %v2624 = vunpack.c.h.b16 %v2478
    %v2625 = vunpack.c.l.b16 %v2479
    %v2626 = vunpack.c.l.b16 %v2480
    %v2627 = vunpack.c.h.b16 %v2480
    %v2628 = vunpack.c.l.b16 %v2481
    %v2629 = vunpack.c.l.b16 %v2482
    %v2630 = vunpack.c.h.b16 %v2482
    %v2631 = vunpack.c.l.b16 %v2483
    %v2632 = vunpack.c.l.b16 %v2484
    %v2633 = vunpack.c.h.b16 %v2484
    %v2634 = vunpack.c.l.b16 %v2485
    %v2635 = vunpack.c.l.b16 %v2486
    %v2636 = vunpack.c.h.b16 %v2486
    %v2637 = vunpack.c.l.b16 %v2487
    %v2638 = vunpack.c.l.b16 %v2488
    %v2639 = vunpack.c.h.b16 %v2488
    %v2640 = vunpack.c.l.b16 %v2489
    %v2641 = vunpack.c.l.b16 %v2490
    %v2642 = vunpack.c.h.b16 %v2490
    %v2643 = vunpack.c.l.b16 %v2491
    %v2644 = vunpack.c.l.b16 %v2492
    %v2645 = vunpack.c.h.b16 %v2492
    %v2646 = vunpack.c.l.b16 %v2493
    %v2647 = vunpack.c.l.b16 %v2494
    %v2648 = vunpack.c.h.b16 %v2494
    %v2649 = vunpack.c.l.b16 %v2495
    %v2650 = vunpack.c.l.b16 %v2496
    %v2651 = vunpack.c.h.b16 %v2496
    %v2652 = vunpack.c.l.b16 %v2497
    %v2653 = vunpack.c.l.b16 %v2498
    %v2654 = vunpack.c.h.b16 %v2498
    %v2655 = vunpack.c.l.b16 %v2499
    %v2656 = vunpack.c.l.b16 %v2500
    %v2657 = vunpack.c.h.b16 %v2500
    %v2658 = vunpack.c.l.b16 %v2501
    %v2659 = vunpack.c.l.b16 %v2502
    %v2660 = vunpack.c.h.b16 %v2502
    %v2661 = vunpack.c.l.b16 %v2503
    %v2662 = vunpack.c.l.b16 %v2504
    %v2663 = vunpack.c.h.b16 %v2504
    %v2664 = vunpack.c.l.b16 %v2505
    %v2665 = vunpack.c.l.b16 %v2506
    %v2666 = vunpack.c.h.b16 %v2506
    %v2667 = vunpack.c.l.b16 %v2507
    %v2668 = vunpack.c.l.b16 %v2508
    %v2669 = vunpack.c.h.b16 %v2508
    %v2670 = vunpack.c.l.b16 %v2509
    %v2671 = vunpack.c.l.b16 %v2510
    %v2672 = vunpack.c.h.b16 %v2510
    %v2673 = vunpack.c.l.b16 %v2511
    %v2674 = vunpack.c.l.b16 %v2512
    %v2675 = vunpack.c.h.b16 %v2512
    %v2676 = vunpack.c.l.b16 %v2513
    %v2677 = vunpack.c.l.b16 %v2514
    %v2678 = vunpack.c.h.b16 %v2514
    %v2679 = vunpack.c.l.b16 %v2515
    %v2680 = vunpack.c.l.b16 %v2516
    %v2681 = vunpack.c.h.b16 %v2516
    %v2682 = vunpack.c.l.b16 %v2517
    %v2683 = vunpack.c.l.b16 %v2518
    %v2684 = vunpack.c.h.b16 %v2518
    %v2685 = vunpack.c.l.b16 %v2519
    %v2686 = vunpack.c.l.b16 %v2520
    %v2687 = vunpack.c.h.b16 %v2520
    %v2688 = vunpack.c.l.b16 %v2521
    %v2689 = vunpack.c.l.b16 %v2522
    %v2690 = vunpack.c.h.b16 %v2522
    %v2691 = vunpack.c.l.b16 %v2523
    %v2692 = vunpack.c.l.b16 %v2524
    %v2693 = vunpack.c.h.b16 %v2524
    %v2694 = vunpack.c.l.b16 %v2525
    %v2695 = vunpack.c.l.b16 %v2526
    %v2696 = vunpack.c.h.b16 %v2526
    %v2697 = vunpack.c.l.b16 %v2527
    %v2698 = vunpack.c.l.b16 %v2528
    %v2699 = vunpack.c.h.b16 %v2528
    %v2700 = vunpack.c.l.b16 %v2529
    %v2701 = vunpack.c.l.b16 %v2530
    %v2702 = vunpack.c.h.b16 %v2530
    %v2703 = vunpack.c.l.b16 %v2531
    %v2704 = vunpack.c.l.b16 %v2532
    %v2705 = vunpack.c.h.b16 %v2532
    %v2706 = vunpack.c.l.b16 %v2533
    %v2707 = vunpack.c.l.b16 %v2534
    %v2708 = vunpack.c.h.b16 %v2534
    %v2709 = vunpack.c.l.b16 %v2535
    %v2710 = vunpack.c.l.b16 %v2536
    %v2711 = vunpack.c.h.b16 %v2536
    %v2712 = vunpack.c.l.b16 %v2537
    %v2713 = vunpack.c.l.b16 %v2538
    %v2714 = vunpack.c.h.b16 %v2538
    %v2715 = vunpack.c.l.b16 %v2539
    %v2716 = vunpack.c.l.b16 %v2540
    %v2717 = vunpack.c.h.b16 %v2540
    %v2718 = vunpack.c.l.b16 %v2541
    %v2719 = vunpack.c.l.b16 %v2542
    %v2720 = vunpack.c.h.b16 %v2542
    %v2721 = vunpack.c.l.b16 %v2543
    %v2722 = vunpack.c.l.b16 %v2544
    %v2723 = vunpack.c.h.b16 %v2544
    %v2724 = vunpack.c.l.b16 %v2545
    %v2725 = vunpack.c.l.b16 %v2546
    %v2726 = vunpack.c.h.b16 %v2546
    %v2727 = vunpack.c.l.b16 %v2547
    %v2728 = vpack.c.b16 %v2623, %v2620
    %v2729 = vpack.c.b16 %v2624, %v2621
    %v2730 = vpack.c.b16 %v2625, %v2622
    %v2731 = vpack.c.b16 %v2629, %v2626
    %v2732 = vpack.c.b16 %v2630, %v2627
    %v2733 = vpack.c.b16 %v2631, %v2628
    %v2734 = vpack.c.b16 %v2635, %v2632
    %v2735 = vpack.c.b16 %v2636, %v2633
    %v2736 = vpack.c.b16 %v2637, %v2634
    %v2737 = vpack.c.b16 %v2641, %v2638
    %v2738 = vpack.c.b16 %v2642, %v2639
    %v2739 = vpack.c.b16 %v2643, %v2640
    %v2740 = vpack.c.b16 %v2647, %v2644
    %v2741 = vpack.c.b16 %v2648, %v2645
    %v2742 = vpack.c.b16 %v2649, %v2646
    %v2743 = vpack.c.b16 %v2653, %v2650
    %v2744 = vpack.c.b16 %v2654, %v2651
    %v2745 = vpack.c.b16 %v2655, %v2652
    %v2746 = vpack.c.b16 %v2659, %v2656
    %v2747 = vpack.c.b16 %v2660, %v2657
    %v2748 = vpack.c.b16 %v2661, %v2658
    %v2749 = vpack.c.b16 %v2665, %v2662
    %v2750 = vpack.c.b16 %v2666, %v2663
    %v2751 = vpack.c.b16 %v2667, %v2664
    %v2752 = vpack.c.b16 %v2671, %v2668
    %v2753 = vpack.c.b16 %v2672, %v2669
    %v2754 = vpack.c.b16 %v2673, %v2670
    %v2755 = vpack.c.b16 %v2677, %v2674
    %v2756 = vpack.c.b16 %v2678, %v2675
    %v2757 = vpack.c.b16 %v2679, %v2676
    %v2758 = vpack.c.b16 %v2683, %v2680
    %v2759 = vpack.c.b16 %v2684, %v2681
    %v2760 = vpack.c.b16 %v2685, %v2682
    %v2761 = vpack.c.b16 %v2689, %v2686
    %v2762 = vpack.c.b16 %v2690, %v2687
    %v2763 = vpack.c.b16 %v2691, %v2688
    %v2764 = vpack.c.b16 %v2695, %v2692
    %v2765 = vpack.c.b16 %v2696, %v2693
    %v2766 = vpack.c.b16 %v2697, %v2694
    %v2767 = vpack.c.b16 %v2701, %v2698
    %v2768 = vpack.c.b16 %v2702, %v2699
    %v2769 = vpack.c.b16 %v2703, %v2700
    %v2770 = vpack.c.b16 %v2707, %v2704
    %v2771 = vpack.c.b16 %v2708, %v2705
    %v2772 = vpack.c.b16 %v2709, %v2706
    %v2773 = vpack.c.b16 %v2713, %v2710
    %v2774 = vpack.c.b16 %v2714, %v2711
    %v2775 = vpack.c.b16 %v2715, %v2712
    %v2776 = vpack.c.b16 %v2719, %v2716
    %v2777 = vpack.c.b16 %v2720, %v2717
    %v2778 = vpack.c.b16 %v2721, %v2718
    %v2779 = vpack.c.b16 %v2725, %v2722
    %v2780 = vpack.c.b16 %v2726, %v2723
    %v2781 = vpack.c.b16 %v2727, %v2724
    %v2837 = vsel %vm425, %v2472, 0
    %v2840 = vsel %vm425, %v2475, 0
    %2842 = vmatprep.subr.bf16.mxu0 %v2729
    %2843 = vmatpush1.bf16.msra.mxu0 %v2728
    %2844 = vmatprep.subr.bf16.mxu0 %v2732
    %2845 = vmatpush1.bf16.msra.mxu0 %v2731
    %2846 = vmatprep.subr.bf16.mxu0 %v2735
    %2847 = vmatpush1.bf16.msra.mxu0 %v2734
    %2848 = vmatprep.subr.bf16.mxu0 %v2738
    %2849 = vmatpush1.bf16.msra.mxu0 %v2737
    %2850 = vmatprep.subr.bf16.mxu0 %v2741
    %2851 = vmatpush1.bf16.msra.mxu0 %v2740
    %2852 = vmatprep.subr.bf16.mxu0 %v2744
    %2853 = vmatpush1.bf16.msra.mxu0 %v2743
    %2854 = vmatprep.subr.bf16.mxu0 %v2747
    %2855 = vmatpush1.bf16.msra.mxu0 %v2746
    %2856 = vmatprep.subr.bf16.mxu0 %v2750
    %2857 = vmatpush1.bf16.msra.mxu0 %v2749
    %2858 = vmatprep.subr.bf16.mxu0 %v2753
    %2859 = vmatpush1.bf16.msra.mxu0 %v2752
    %2860 = vmatprep.subr.bf16.mxu0 %v2756
    %2861 = vmatpush1.bf16.msra.mxu0 %v2755
    %2862 = vmatprep.subr.bf16.mxu0 %v2759
    %2863 = vmatpush1.bf16.msra.mxu0 %v2758
    %2864 = vmatprep.subr.bf16.mxu0 %v2762
    %2865 = vmatpush1.bf16.msra.mxu0 %v2761
    %2866 = vmatprep.subr.bf16.mxu0 %v2765
    %2867 = vmatpush1.bf16.msra.mxu0 %v2764
    %2868 = vmatprep.subr.bf16.mxu0 %v2768
    %2869 = vmatpush1.bf16.msra.mxu0 %v2767
    %2870 = vmatprep.subr.bf16.mxu0 %v2771
    %2871 = vmatpush1.bf16.msra.mxu0 %v2770
    %2872 = vmatprep.subr.bf16.mxu0 %v2774
    %2873 = vmatpush1.bf16.msra.mxu0 %v2773
    %2874 = vmatprep.mubr.bf16.mxu0 %v2471
    %2875 = vmatmul.mubr.bf16.gmra.mrb[0].mxu0 %v2470
    %v2876 = vpop.f32.mrb[0].mxu0
    %v2877 = vadd.f32 0.0, %v2876
    %v2878 = vpop.f32.mrb[0].mxu0
    %v2879 = vadd.f32 0.0, %v2878
    %v2880 = vpop.f32.mrb[0].mxu0
    %v2881 = vadd.f32 0.0, %v2880
    %v2882 = vpop.f32.mrb[0].mxu0
    %v2883 = vadd.f32 0.0, %v2882
    %2884 = vmatprep.mubr.bf16.mxu0 %v2474
    %2885 = vmatmul.mubr.bf16.gmra.mrb[0].mxu0 %v2473
    %v2886 = vpop.f32.mrb[0].mxu0
    %v2887 = vadd.f32 0.0, %v2886
    %v2888 = vpop.f32.mrb[0].mxu0
    %v2889 = vadd.f32 0.0, %v2888
    %v2890 = vpop.f32.mrb[0].mxu0
    %v2891 = vadd.f32 0.0, %v2890
    %v2892 = vpop.f32.mrb[0].mxu0
    %v2893 = vadd.f32 0.0, %v2892
    %2894 = vdwg.mxu0
    %2895 = vmatprep.subr.bf16.mxu0 %v2777
    %2896 = vmatpush1.bf16.msra.mxu0 %v2776
    %2897 = vmatprep.subr.bf16.mxu0 %v2780
    %2898 = vmatpush1.bf16.msra.mxu0 %v2779
    %2899 = vmatprep.subr.bf16.mxu0 0
    %2900 = vmatpush1.bf16.msra.mxu0 0
    %2901 = vmatprep.subr.bf16.mxu0 0
    %2902 = vmatpush1.bf16.msra.mxu0 0
    %2903 = vmatprep.subr.bf16.mxu0 0
    %2904 = vmatpush1.bf16.msra.mxu0 0
    %2905 = vmatprep.subr.bf16.mxu0 0
    %2906 = vmatpush1.bf16.msra.mxu0 0
    %2907 = vmatprep.subr.bf16.mxu0 0
    %2908 = vmatpush1.bf16.msra.mxu0 0
    %2909 = vmatprep.subr.bf16.mxu0 0
    %2910 = vmatpush1.bf16.msra.mxu0 0
    %2911 = vmatprep.subr.bf16.mxu0 0
    %2912 = vmatpush1.bf16.msra.mxu0 0
    %2913 = vmatprep.subr.bf16.mxu0 0
    %2914 = vmatpush1.bf16.msra.mxu0 0
    %2915 = vmatprep.subr.bf16.mxu0 0
    %2916 = vmatpush1.bf16.msra.mxu0 0
    %2917 = vmatprep.subr.bf16.mxu0 0
    %2918 = vmatpush1.bf16.msra.mxu0 0
    %2919 = vmatprep.subr.bf16.mxu0 0
    %2920 = vmatpush1.bf16.msra.mxu0 0
    %2921 = vmatprep.subr.bf16.mxu0 0
    %2922 = vmatpush1.bf16.msra.mxu0 0
    %2923 = vmatprep.subr.bf16.mxu0 0
    %2924 = vmatpush1.bf16.msra.mxu0 0
    %2925 = vmatprep.subr.bf16.mxu0 0
    %2926 = vmatpush1.bf16.msra.mxu0 0
    %2927 = vmatprep.mubr.bf16.mxu0 0
    %2928 = vmatmul.mubr.bf16.gmra.mrb[0].mxu0 %v2837
    %v2929 = vpop.f32.mrb[0].mxu0
    %v2930 = vadd.f32 %v2877, %v2929
    %v2931 = vpop.f32.mrb[0].mxu0
    %v2932 = vadd.f32 %v2879, %v2931
    %v2933 = vpop.f32.mrb[0].mxu0
    %v2934 = vadd.f32 %v2881, %v2933
    %v2935 = vpop.f32.mrb[0].mxu0
    %v2936 = vadd.f32 %v2883, %v2935
    %2937 = vmatprep.mubr.bf16.mxu0 0
    %2938 = vmatmul.mubr.bf16.gmra.mrb[0].mxu0 %v2840
    %v2939 = vpop.f32.mrb[0].mxu0
    %v2940 = vadd.f32 %v2887, %v2939
    %v2941 = vpop.f32.mrb[0].mxu0
    %v2942 = vadd.f32 %v2889, %v2941
    %v2943 = vpop.f32.mrb[0].mxu0
    %v2944 = vadd.f32 %v2891, %v2943
    %v2945 = vpop.f32.mrb[0].mxu0
    %v2946 = vadd.f32 %v2893, %v2945
    %2947 = vdwg.mxu0
    %2948 = vmatprep.subr.bf16.mxu0 0
    %2949 = vmatpush1.bf16.msra.mxu0 %v2730
    %2950 = vmatprep.subr.bf16.mxu0 0
    %2951 = vmatpush1.bf16.msra.mxu0 %v2733
    %2952 = vmatprep.subr.bf16.mxu0 0
    %2953 = vmatpush1.bf16.msra.mxu0 %v2736
    %2954 = vmatprep.subr.bf16.mxu0 0
    %2955 = vmatpush1.bf16.msra.mxu0 %v2739
    %2956 = vmatprep.subr.bf16.mxu0 0
    %2957 = vmatpush1.bf16.msra.mxu0 %v2742
    %2958 = vmatprep.subr.bf16.mxu0 0
    %2959 = vmatpush1.bf16.msra.mxu0 %v2745
    %2960 = vmatprep.subr.bf16.mxu0 0
    %2961 = vmatpush1.bf16.msra.mxu0 %v2748
    %2962 = vmatprep.subr.bf16.mxu0 0
    %2963 = vmatpush1.bf16.msra.mxu0 %v2751
    %2964 = vmatprep.subr.bf16.mxu0 0
    %2965 = vmatpush1.bf16.msra.mxu0 %v2754
    %2966 = vmatprep.subr.bf16.mxu0 0
    %2967 = vmatpush1.bf16.msra.mxu0 %v2757
    %2968 = vmatprep.subr.bf16.mxu0 0
    %2969 = vmatpush1.bf16.msra.mxu0 %v2760
    %2970 = vmatprep.subr.bf16.mxu0 0
    %2971 = vmatpush1.bf16.msra.mxu0 %v2763
    %2972 = vmatprep.subr.bf16.mxu0 0
    %2973 = vmatpush1.bf16.msra.mxu0 %v2766
    %2974 = vmatprep.subr.bf16.mxu0 0
    %2975 = vmatpush1.bf16.msra.mxu0 %v2769
    %2976 = vmatprep.subr.bf16.mxu0 0
    %2977 = vmatpush1.bf16.msra.mxu0 %v2772
    %2978 = vmatprep.subr.bf16.mxu0 0
    %2979 = vmatpush1.bf16.msra.mxu0 %v2775
    %2980 = vmatprep.mubr.bf16.mxu0 %v2471
    %2981 = vmatmul.mubr.bf16.gmra.mrb[0].mxu0 %v2470
    %v2982 = vpop.f32.mrb[0].mxu0
    %v2983 = vadd.f32 0.0, %v2982
    %v2984 = vpop.f32.mrb[0].mxu0
    %v2985 = vpop.f32.mrb[0].mxu0
    %v2986 = vadd.f32 0.0, %v2985
    %v2987 = vpop.f32.mrb[0].mxu0
    %2988 = vmatprep.mubr.bf16.mxu0 %v2474
    %2989 = vmatmul.mubr.bf16.gmra.mrb[0].mxu0 %v2473
    %v2990 = vpop.f32.mrb[0].mxu0
    %v2991 = vadd.f32 0.0, %v2990
    %v2992 = vpop.f32.mrb[0].mxu0
    %v2993 = vpop.f32.mrb[0].mxu0
    %v2994 = vadd.f32 0.0, %v2993
    %v2995 = vpop.f32.mrb[0].mxu0
    %2996 = vdwg.mxu0
    %2997 = vmatprep.subr.bf16.mxu0 0
    %2998 = vmatpush1.bf16.msra.mxu0 %v2778
    %2999 = vmatprep.subr.bf16.mxu0 0
    %3000 = vmatpush1.bf16.msra.mxu0 %v2781
    %3001 = vmatprep.subr.bf16.mxu0 0
    %3002 = vmatpush1.bf16.msra.mxu0 0
    %3003 = vmatprep.subr.bf16.mxu0 0
    %3004 = vmatpush1.bf16.msra.mxu0 0
    %3005 = vmatprep.subr.bf16.mxu0 0
    %3006 = vmatpush1.bf16.msra.mxu0 0
    %3007 = vmatprep.subr.bf16.mxu0 0
    %3008 = vmatpush1.bf16.msra.mxu0 0
    %3009 = vmatprep.subr.bf16.mxu0 0
    %3010 = vmatpush1.bf16.msra.mxu0 0
    %3011 = vmatprep.subr.bf16.mxu0 0
    %3012 = vmatpush1.bf16.msra.mxu0 0
    %3013 = vmatprep.subr.bf16.mxu0 0
    %3014 = vmatpush1.bf16.msra.mxu0 0
    %3015 = vmatprep.subr.bf16.mxu0 0
    %3016 = vmatpush1.bf16.msra.mxu0 0
    %3017 = vmatprep.subr.bf16.mxu0 0
    %3018 = vmatpush1.bf16.msra.mxu0 0
    %3019 = vmatprep.subr.bf16.mxu0 0
    %3020 = vmatpush1.bf16.msra.mxu0 0
    %3021 = vmatprep.subr.bf16.mxu0 0
    %3022 = vmatpush1.bf16.msra.mxu0 0
    %3023 = vmatprep.subr.bf16.mxu0 0
    %3024 = vmatpush1.bf16.msra.mxu0 0
    %3025 = vmatprep.subr.bf16.mxu0 0
    %3026 = vmatpush1.bf16.msra.mxu0 0
    %3027 = vmatprep.subr.bf16.mxu0 0
    %3028 = vmatpush1.bf16.msra.mxu0 0
    %3029 = vmatprep.mubr.bf16.mxu0 0
    %3030 = vmatmul.mubr.bf16.gmra.mrb[0].mxu0 %v2837
    %v3031 = vpop.f32.mrb[0].mxu0
    %v3032 = vadd.f32 %v2983, %v3031
    %v3033 = vpop.f32.mrb[0].mxu0
    %v3034 = vpop.f32.mrb[0].mxu0
    %v3035 = vadd.f32 %v2986, %v3034
    %v3036 = vpop.f32.mrb[0].mxu0
    %3037 = vmatprep.mubr.bf16.mxu0 0
    %3038 = vmatmul.mubr.bf16.gmra.mrb[0].mxu0 %v2840
    %v3039 = vpop.f32.mrb[0].mxu0
    %v3040 = vadd.f32 %v2991, %v3039
    %v3041 = vpop.f32.mrb[0].mxu0
    %v3042 = vpop.f32.mrb[0].mxu0
    %v3043 = vadd.f32 %v2994, %v3042
    %v3044 = vpop.f32.mrb[0].mxu0
    %3045 = vdwg.mxu0
    %v3046 = vadd.f32 %v2930, %v2934
    %v3047 = vadd.f32 %v3046, %v2940
    %v3048 = vadd.f32 %v3047, %v2944
    %v3049 = vrot.slane %v3048, 4
    %v3050 = vadd.f32 %v3048, %v3049
    %v3051 = vrot.slane %v3050, 2
    %v3052 = vadd.f32 %v3050, %v3051
    %v3053 = vrot.slane %v3052, 1
    %v3054 = vadd.f32 %v3052, %v3053
    %v3055 = vadd.f32 %v2932, %v2936
    %v3056 = vadd.f32 %v3055, %v2942
    %v3057 = vadd.f32 %v3056, %v2946
    %v3058 = vrot.slane %v3057, 4
    %v3059 = vadd.f32 %v3057, %v3058
    %v3060 = vrot.slane %v3059, 2
    %v3061 = vadd.f32 %v3059, %v3060
    %v3062 = vrot.slane %v3061, 1
    %v3063 = vadd.f32 %v3061, %v3062
    %v3064 = vsel %vm425, %v3032, 0.0
    %v3065 = vsel %vm425, %v3035, 0.0
    %v3066 = vadd.f32 %v3064, %v3065
    %v3067 = vsel %vm425, %v3040, 0.0
    %v3068 = vadd.f32 %v3066, %v3067
    %v3069 = vsel %vm425, %v3043, 0.0
    %v3070 = vadd.f32 %v3068, %v3069
    %v3071 = vrot.slane %v3070, 4
    %v3072 = vadd.f32 %v3070, %v3071
    %v3073 = vrot.slane %v3072, 2
    %v3074 = vadd.f32 %v3072, %v3073
    %v3075 = vrot.slane %v3074, 1
    %v3076 = vadd.f32 %v3074, %v3075
    %v3077 = vmul.f32 %v2930, %v2930
    %v3078 = vmul.f32 %v2932, %v2932
    %v3079 = vmul.f32 %v3032, %v3032
    %v3080 = vmul.f32 %v2934, %v2934
    %v3081 = vmul.f32 %v2936, %v2936
    %v3082 = vmul.f32 %v3035, %v3035
    %v3083 = vmul.f32 %v2940, %v2940
    %v3084 = vmul.f32 %v2942, %v2942
    %v3085 = vmul.f32 %v3040, %v3040
    %v3086 = vmul.f32 %v2944, %v2944
    %v3087 = vmul.f32 %v2946, %v2946
    %v3088 = vmul.f32 %v3043, %v3043
    %v3089 = vadd.f32 %v3077, %v3080
    %v3090 = vadd.f32 %v3089, %v3083
    %v3091 = vadd.f32 %v3090, %v3086
    %v3092 = vrot.slane %v3091, 4
    %v3093 = vadd.f32 %v3091, %v3092
    %v3094 = vrot.slane %v3093, 2
    %v3095 = vadd.f32 %v3093, %v3094
    %v3096 = vrot.slane %v3095, 1
    %v3097 = vadd.f32 %v3095, %v3096
    %v3098 = vadd.f32 %v3078, %v3081
    %v3099 = vadd.f32 %v3098, %v3084
    %v3100 = vadd.f32 %v3099, %v3087
    %v3101 = vrot.slane %v3100, 4
    %v3102 = vadd.f32 %v3100, %v3101
    %v3103 = vrot.slane %v3102, 2
    %v3104 = vadd.f32 %v3102, %v3103
    %v3105 = vrot.slane %v3104, 1
    %v3106 = vadd.f32 %v3104, %v3105
    %v3107 = vsel %vm425, %v3079, 0.0
    %v3108 = vsel %vm425, %v3082, 0.0
    %v3109 = vadd.f32 %v3107, %v3108
    %v3110 = vsel %vm425, %v3085, 0.0
    %v3111 = vadd.f32 %v3109, %v3110
    %v3112 = vsel %vm425, %v3088, 0.0
    %v3113 = vadd.f32 %v3111, %v3112
    %v3114 = vrot.slane %v3113, 4
    %v3115 = vadd.f32 %v3113, %v3114
    %v3116 = vrot.slane %v3115, 2
    %v3117 = vadd.f32 %v3115, %v3116
    %v3118 = vrot.slane %v3117, 1
    %v3119 = vadd.f32 %v3117, %v3118
    %v3121 = vsel %vm425, %v3076, 0
    %3123 = vmatprep.subr.mxu0 0.0
    %3124 = vmatpush1.msra.mxu0 %v482
    %3125 = vmatprep.subr.mxu0 0.0
    %3126 = vmatpush1.msra.mxu0 %v483
    %3127 = vmatprep.subr.mxu0 0.0
    %3128 = vmatpush1.msra.mxu0 %v484
    %3129 = vmatprep.subr.mxu0 0.0
    %3130 = vmatpush1.msra.mxu0 %v485
    %3131 = vmatprep.subr.mxu0 0.0
    %3132 = vmatpush1.msra.mxu0 %v486
    %3133 = vmatprep.subr.mxu0 0.0
    %3134 = vmatpush1.msra.mxu0 %v487
    %3135 = vmatprep.subr.mxu0 0.0
    %3136 = vmatpush1.msra.mxu0 %v488
    %3137 = vmatprep.subr.mxu0 0.0
    %3138 = vmatpush1.msra.mxu0 %v489
    %3139 = vmatprep.subr.mxu0 0.0
    %3140 = vmatpush1.msra.mxu0 %v490
    %3141 = vmatprep.subr.mxu0 0.0
    %3142 = vmatpush1.msra.mxu0 %v491
    %3143 = vmatprep.subr.mxu0 0.0
    %3144 = vmatpush1.msra.mxu0 %v492
    %3145 = vmatprep.subr.mxu0 0.0
    %3146 = vmatpush1.msra.mxu0 %v493
    %3147 = vmatprep.subr.mxu0 0.0
    %3148 = vmatpush1.msra.mxu0 %v494
    %3149 = vmatprep.subr.mxu0 0.0
    %3150 = vmatpush1.msra.mxu0 %v495
    %3151 = vmatprep.subr.mxu0 0.0
    %3152 = vmatpush1.msra.mxu0 %v496
    %3153 = vmatprep.subr.mxu0 0.0
    %3154 = vmatpush1.msra.mxu0 %v497
    %3155 = vmatprep.subr.mxu0 0.0
    %3156 = vmatpush1.msra.mxu0 %v498
    %3157 = vmatprep.subr.mxu0 0.0
    %3158 = vmatpush1.msra.mxu0 %v499
    %3159 = vmatprep.subr.mxu0 0.0
    %3160 = vmatpush1.msra.mxu0 %v500
    %3161 = vmatprep.subr.mxu0 0.0
    %3162 = vmatpush1.msra.mxu0 %v501
    %3163 = vmatprep.subr.mxu0 0.0
    %3164 = vmatpush1.msra.mxu0 %v502
    %3165 = vmatprep.subr.mxu0 0.0
    %3166 = vmatpush1.msra.mxu0 %v503
    %3167 = vmatprep.subr.mxu0 0.0
    %3168 = vmatpush1.msra.mxu0 %v504
    %3169 = vmatprep.subr.mxu0 0.0
    %3170 = vmatpush1.msra.mxu0 %v505
    %3171 = vmatprep.subr.mxu0 0.0
    %3172 = vmatpush1.msra.mxu0 %v506
    %3173 = vmatprep.subr.mxu0 0.0
    %3174 = vmatpush1.msra.mxu0 %v507
    %3175 = vmatprep.subr.mxu0 0.0
    %3176 = vmatpush1.msra.mxu0 %v508
    %3177 = vmatprep.subr.mxu0 0.0
    %3178 = vmatpush1.msra.mxu0 %v509
    %3179 = vmatprep.subr.mxu0 0.0
    %3180 = vmatpush1.msra.mxu0 %v510
    %3181 = vmatprep.subr.mxu0 0.0
    %3182 = vmatpush1.msra.mxu0 %v511
    %3183 = vmatprep.subr.mxu0 0.0
    %3184 = vmatpush1.msra.mxu0 %v512
    %3185 = vmatprep.subr.mxu0 0.0
    %3186 = vmatpush1.msra.mxu0 %v513
    %3187 = vmatprep.mubr.f32.mxu0 %v3063
    %3188 = vmatmul.mubr.f32.gmra.mrb[0].mxu0 %v3054
    %v3189 = vpop.f32.mrb[0].mxu0
    %v3190 = vadd.f32 0.0, %v3189
    %v3191 = vpop.f32.mrb[0].mxu0
    %3192 = vdwg.mxu0
    %3193 = vmatprep.subr.mxu0 0.0
    %3194 = vmatpush1.msra.mxu0 %v514
    %3195 = vmatprep.subr.mxu0 0.0
    %3196 = vmatpush1.msra.mxu0 %v515
    %3197 = vmatprep.subr.mxu0 0.0
    %3198 = vmatpush1.msra.mxu0 %v516
    %3199 = vmatprep.subr.mxu0 0.0
    %3200 = vmatpush1.msra.mxu0 %v517
    %3201 = vmatprep.subr.mxu0 0.0
    %3202 = vmatpush1.msra.mxu0 0.0
    %3203 = vmatprep.subr.mxu0 0.0
    %3204 = vmatpush1.msra.mxu0 0.0
    %3205 = vmatprep.subr.mxu0 0.0
    %3206 = vmatpush1.msra.mxu0 0.0
    %3207 = vmatprep.subr.mxu0 0.0
    %3208 = vmatpush1.msra.mxu0 0.0
    %3209 = vmatprep.subr.mxu0 0.0
    %3210 = vmatpush1.msra.mxu0 0.0
    %3211 = vmatprep.subr.mxu0 0.0
    %3212 = vmatpush1.msra.mxu0 0.0
    %3213 = vmatprep.subr.mxu0 0.0
    %3214 = vmatpush1.msra.mxu0 0.0
    %3215 = vmatprep.subr.mxu0 0.0
    %3216 = vmatpush1.msra.mxu0 0.0
    %3217 = vmatprep.subr.mxu0 0.0
    %3218 = vmatpush1.msra.mxu0 0.0
    %3219 = vmatprep.subr.mxu0 0.0
    %3220 = vmatpush1.msra.mxu0 0.0
    %3221 = vmatprep.subr.mxu0 0.0
    %3222 = vmatpush1.msra.mxu0 0.0
    %3223 = vmatprep.subr.mxu0 0.0
    %3224 = vmatpush1.msra.mxu0 0.0
    %3225 = vmatprep.subr.mxu0 0.0
    %3226 = vmatpush1.msra.mxu0 0.0
    %3227 = vmatprep.subr.mxu0 0.0
    %3228 = vmatpush1.msra.mxu0 0.0
    %3229 = vmatprep.subr.mxu0 0.0
    %3230 = vmatpush1.msra.mxu0 0.0
    %3231 = vmatprep.subr.mxu0 0.0
    %3232 = vmatpush1.msra.mxu0 0.0
    %3233 = vmatprep.subr.mxu0 0.0
    %3234 = vmatpush1.msra.mxu0 0.0
    %3235 = vmatprep.subr.mxu0 0.0
    %3236 = vmatpush1.msra.mxu0 0.0
    %3237 = vmatprep.subr.mxu0 0.0
    %3238 = vmatpush1.msra.mxu0 0.0
    %3239 = vmatprep.subr.mxu0 0.0
    %3240 = vmatpush1.msra.mxu0 0.0
    %3241 = vmatprep.subr.mxu0 0.0
    %3242 = vmatpush1.msra.mxu0 0.0
    %3243 = vmatprep.subr.mxu0 0.0
    %3244 = vmatpush1.msra.mxu0 0.0
    %3245 = vmatprep.subr.mxu0 0.0
    %3246 = vmatpush1.msra.mxu0 0.0
    %3247 = vmatprep.subr.mxu0 0.0
    %3248 = vmatpush1.msra.mxu0 0.0
    %3249 = vmatprep.subr.mxu0 0.0
    %3250 = vmatpush1.msra.mxu0 0.0
    %3251 = vmatprep.subr.mxu0 0.0
    %3252 = vmatpush1.msra.mxu0 0.0
    %3253 = vmatprep.subr.mxu0 0.0
    %3254 = vmatpush1.msra.mxu0 0.0
    %3255 = vmatprep.subr.mxu0 0.0
    %3256 = vmatpush1.msra.mxu0 0.0
    %3257 = vmatprep.mubr.f32.mxu0 0.0
    %3258 = vmatmul.mubr.f32.gmra.mrb[0].mxu0 %v3121
    %v3259 = vpop.f32.mrb[0].mxu0
    %v3260 = vadd.f32 %v3190, %v3259
    %v3261 = vpop.f32.mrb[0].mxu0
    %3262 = vdwg.mxu0
    %v3263 = vmul.f32 %v3260, 0.0034722222
    %v3265 = vsel %vm425, %v3119, 0
    %3267 = vmatprep.subr.mxu0 0.0
    %3268 = vmatpush1.msra.mxu0 %v482
    %3269 = vmatprep.subr.mxu0 0.0
    %3270 = vmatpush1.msra.mxu0 %v483
    %3271 = vmatprep.subr.mxu0 0.0
    %3272 = vmatpush1.msra.mxu0 %v484
    %3273 = vmatprep.subr.mxu0 0.0
    %3274 = vmatpush1.msra.mxu0 %v485
    %3275 = vmatprep.subr.mxu0 0.0
    %3276 = vmatpush1.msra.mxu0 %v486
    %3277 = vmatprep.subr.mxu0 0.0
    %3278 = vmatpush1.msra.mxu0 %v487
    %3279 = vmatprep.subr.mxu0 0.0
    %3280 = vmatpush1.msra.mxu0 %v488
    %3281 = vmatprep.subr.mxu0 0.0
    %3282 = vmatpush1.msra.mxu0 %v489
    %3283 = vmatprep.subr.mxu0 0.0
    %3284 = vmatpush1.msra.mxu0 %v490
    %3285 = vmatprep.subr.mxu0 0.0
    %3286 = vmatpush1.msra.mxu0 %v491
    %3287 = vmatprep.subr.mxu0 0.0
    %3288 = vmatpush1.msra.mxu0 %v492
    %3289 = vmatprep.subr.mxu0 0.0
    %3290 = vmatpush1.msra.mxu0 %v493
    %3291 = vmatprep.subr.mxu0 0.0
    %3292 = vmatpush1.msra.mxu0 %v494
    %3293 = vmatprep.subr.mxu0 0.0
    %3294 = vmatpush1.msra.mxu0 %v495
    %3295 = vmatprep.subr.mxu0 0.0
    %3296 = vmatpush1.msra.mxu0 %v496
    %3297 = vmatprep.subr.mxu0 0.0
    %3298 = vmatpush1.msra.mxu0 %v497
    %3299 = vmatprep.subr.mxu0 0.0
    %3300 = vmatpush1.msra.mxu0 %v498
    %3301 = vmatprep.subr.mxu0 0.0
    %3302 = vmatpush1.msra.mxu0 %v499
    %3303 = vmatprep.subr.mxu0 0.0
    %3304 = vmatpush1.msra.mxu0 %v500
    %3305 = vmatprep.subr.mxu0 0.0
    %3306 = vmatpush1.msra.mxu0 %v501
    %3307 = vmatprep.subr.mxu0 0.0
    %3308 = vmatpush1.msra.mxu0 %v502
    %3309 = vmatprep.subr.mxu0 0.0
    %3310 = vmatpush1.msra.mxu0 %v503
    %3311 = vmatprep.subr.mxu0 0.0
    %3312 = vmatpush1.msra.mxu0 %v504
    %3313 = vmatprep.subr.mxu0 0.0
    %3314 = vmatpush1.msra.mxu0 %v505
    %3315 = vmatprep.subr.mxu0 0.0
    %3316 = vmatpush1.msra.mxu0 %v506
    %3317 = vmatprep.subr.mxu0 0.0
    %3318 = vmatpush1.msra.mxu0 %v507
    %3319 = vmatprep.subr.mxu0 0.0
    %3320 = vmatpush1.msra.mxu0 %v508
    %3321 = vmatprep.subr.mxu0 0.0
    %3322 = vmatpush1.msra.mxu0 %v509
    %3323 = vmatprep.subr.mxu0 0.0
    %3324 = vmatpush1.msra.mxu0 %v510
    %3325 = vmatprep.subr.mxu0 0.0
    %3326 = vmatpush1.msra.mxu0 %v511
    %3327 = vmatprep.subr.mxu0 0.0
    %3328 = vmatpush1.msra.mxu0 %v512
    %3329 = vmatprep.subr.mxu0 0.0
    %3330 = vmatpush1.msra.mxu0 %v513
    %3331 = vmatprep.mubr.f32.mxu0 %v3106
    %3332 = vmatmul.mubr.f32.gmra.mrb[0].mxu0 %v3097
    %v3333 = vpop.f32.mrb[0].mxu0
    %v3334 = vadd.f32 0.0, %v3333
    %v3335 = vpop.f32.mrb[0].mxu0
    %3336 = vdwg.mxu0
    %3337 = vmatprep.subr.mxu0 0.0
    %3338 = vmatpush1.msra.mxu0 %v514
    %3339 = vmatprep.subr.mxu0 0.0
    %3340 = vmatpush1.msra.mxu0 %v515
    %3341 = vmatprep.subr.mxu0 0.0
    %3342 = vmatpush1.msra.mxu0 %v516
    %3343 = vmatprep.subr.mxu0 0.0
    %3344 = vmatpush1.msra.mxu0 %v517
    %3345 = vmatprep.subr.mxu0 0.0
    %3346 = vmatpush1.msra.mxu0 0.0
    %3347 = vmatprep.subr.mxu0 0.0
    %3348 = vmatpush1.msra.mxu0 0.0
    %3349 = vmatprep.subr.mxu0 0.0
    %3350 = vmatpush1.msra.mxu0 0.0
    %3351 = vmatprep.subr.mxu0 0.0
    %3352 = vmatpush1.msra.mxu0 0.0
    %3353 = vmatprep.subr.mxu0 0.0
    %3354 = vmatpush1.msra.mxu0 0.0
    %3355 = vmatprep.subr.mxu0 0.0
    %3356 = vmatpush1.msra.mxu0 0.0
    %3357 = vmatprep.subr.mxu0 0.0
    %3358 = vmatpush1.msra.mxu0 0.0
    %3359 = vmatprep.subr.mxu0 0.0
    %3360 = vmatpush1.msra.mxu0 0.0
    %3361 = vmatprep.subr.mxu0 0.0
    %3362 = vmatpush1.msra.mxu0 0.0
    %3363 = vmatprep.subr.mxu0 0.0
    %3364 = vmatpush1.msra.mxu0 0.0
    %3365 = vmatprep.subr.mxu0 0.0
    %3366 = vmatpush1.msra.mxu0 0.0
    %3367 = vmatprep.subr.mxu0 0.0
    %3368 = vmatpush1.msra.mxu0 0.0
    %3369 = vmatprep.subr.mxu0 0.0
    %3370 = vmatpush1.msra.mxu0 0.0
    %3371 = vmatprep.subr.mxu0 0.0
    %3372 = vmatpush1.msra.mxu0 0.0
    %3373 = vmatprep.subr.mxu0 0.0
    %3374 = vmatpush1.msra.mxu0 0.0
    %3375 = vmatprep.subr.mxu0 0.0
    %3376 = vmatpush1.msra.mxu0 0.0
    %3377 = vmatprep.subr.mxu0 0.0
    %3378 = vmatpush1.msra.mxu0 0.0
    %3379 = vmatprep.subr.mxu0 0.0
    %3380 = vmatpush1.msra.mxu0 0.0
    %3381 = vmatprep.subr.mxu0 0.0
    %3382 = vmatpush1.msra.mxu0 0.0
    %3383 = vmatprep.subr.mxu0 0.0
    %3384 = vmatpush1.msra.mxu0 0.0
    %3385 = vmatprep.subr.mxu0 0.0
    %3386 = vmatpush1.msra.mxu0 0.0
    %3387 = vmatprep.subr.mxu0 0.0
    %3388 = vmatpush1.msra.mxu0 0.0
    %3389 = vmatprep.subr.mxu0 0.0
    %3390 = vmatpush1.msra.mxu0 0.0
    %3391 = vmatprep.subr.mxu0 0.0
    %3392 = vmatpush1.msra.mxu0 0.0
    %3393 = vmatprep.subr.mxu0 0.0
    %3394 = vmatpush1.msra.mxu0 0.0
    %3395 = vmatprep.subr.mxu0 0.0
    %3396 = vmatpush1.msra.mxu0 0.0
    %3397 = vmatprep.subr.mxu0 0.0
    %3398 = vmatpush1.msra.mxu0 0.0
    %3399 = vmatprep.subr.mxu0 0.0
    %3400 = vmatpush1.msra.mxu0 0.0
    %3401 = vmatprep.mubr.f32.mxu0 0.0
    %3402 = vmatmul.mubr.f32.gmra.mrb[0].mxu0 %v3265
    %v3403 = vpop.f32.mrb[0].mxu0
    %v3404 = vadd.f32 %v3334, %v3403
    %v3405 = vpop.f32.mrb[0].mxu0
    %3406 = vdwg.mxu0
    %v3407 = vmul.f32 %v3404, 0.0034722222
    %v3408 = vmul.f32 %v3263, %v3263
    %v3409 = vsub.f32 %v3407, %v3408
    %v3410 = vld [vmem:[#allocation7] sm:$0x1]
    %v3411 = vadd.f32 %v3409, 1e-05
    %v3412 = vrsqrt.pop %v3411
    %v3413 = vmul.f32 %v3410, %v3412
    %v3414 = vld [vmem:[#allocation8] sm:$0x1]
    %v3415 = vmul.f32 %v3263, %v3413
    %v3416 = vsub.f32 %v3414, %v3415
    %v3418 = vsel %vm425, %v3413, 0
    %3420 = vmatprep.subr.mxu0 %v816
    %3421 = vmatpush1.msra.mxu0 %v815
    %3422 = vmatprep.subr.mxu0 %v819
    %3423 = vmatpush1.msra.mxu0 %v818
    %3424 = vmatprep.subr.mxu0 %v822
    %3425 = vmatpush1.msra.mxu0 %v821
    %3426 = vmatprep.subr.mxu0 %v825
    %3427 = vmatpush1.msra.mxu0 %v824
    %3428 = vmatprep.subr.mxu0 0.0
    %3429 = vmatpush1.msra.mxu0 0.0
    %3430 = vmatprep.subr.mxu0 0.0
    %3431 = vmatpush1.msra.mxu0 0.0
    %3432 = vmatprep.subr.mxu0 0.0
    %3433 = vmatpush1.msra.mxu0 0.0
    %3434 = vmatprep.subr.mxu0 0.0
    %3435 = vmatpush1.msra.mxu0 0.0
    %3436 = vmatprep.subr.mxu0 0.0
    %3437 = vmatpush1.msra.mxu0 0.0
    %3438 = vmatprep.subr.mxu0 0.0
    %3439 = vmatpush1.msra.mxu0 0.0
    %3440 = vmatprep.subr.mxu0 0.0
    %3441 = vmatpush1.msra.mxu0 0.0
    %3442 = vmatprep.subr.mxu0 0.0
    %3443 = vmatpush1.msra.mxu0 0.0
    %3444 = vmatprep.subr.mxu0 0.0
    %3445 = vmatpush1.msra.mxu0 0.0
    %3446 = vmatprep.subr.mxu0 0.0
    %3447 = vmatpush1.msra.mxu0 0.0
    %3448 = vmatprep.subr.mxu0 0.0
    %3449 = vmatpush1.msra.mxu0 0.0
    %3450 = vmatprep.subr.mxu0 0.0
    %3451 = vmatpush1.msra.mxu0 0.0
    %3452 = vmatprep.subr.mxu0 0.0
    %3453 = vmatpush1.msra.mxu0 0.0
    %3454 = vmatprep.subr.mxu0 0.0
    %3455 = vmatpush1.msra.mxu0 0.0
    %3456 = vmatprep.subr.mxu0 0.0
    %3457 = vmatpush1.msra.mxu0 0.0
    %3458 = vmatprep.subr.mxu0 0.0
    %3459 = vmatpush1.msra.mxu0 0.0
    %3460 = vmatprep.subr.mxu0 0.0
    %3461 = vmatpush1.msra.mxu0 0.0
    %3462 = vmatprep.subr.mxu0 0.0
    %3463 = vmatpush1.msra.mxu0 0.0
    %3464 = vmatprep.subr.mxu0 0.0
    %3465 = vmatpush1.msra.mxu0 0.0
    %3466 = vmatprep.subr.mxu0 0.0
    %3467 = vmatpush1.msra.mxu0 0.0
    %3468 = vmatprep.subr.mxu0 0.0
    %3469 = vmatpush1.msra.mxu0 0.0
    %3470 = vmatprep.subr.mxu0 0.0
    %3471 = vmatpush1.msra.mxu0 0.0
    %3472 = vmatprep.subr.mxu0 0.0
    %3473 = vmatpush1.msra.mxu0 0.0
    %3474 = vmatprep.subr.mxu0 0.0
    %3475 = vmatpush1.msra.mxu0 0.0
    %3476 = vmatprep.subr.mxu0 0.0
    %3477 = vmatpush1.msra.mxu0 0.0
    %3478 = vmatprep.subr.mxu0 0.0
    %3479 = vmatpush1.msra.mxu0 0.0
    %3480 = vmatprep.subr.mxu0 0.0
    %3481 = vmatpush1.msra.mxu0 0.0
    %3482 = vmatprep.subr.mxu0 0.0
    %3483 = vmatpush1.msra.mxu0 0.0
    %3484 = vmatprep.mubr.f32.mxu0 0.0
    %3485 = vmatmul.mubr.f32.gmra.mrb[0].mxu0 %v3418
    %v3486 = vpop.f32.mrb[0].mxu0
    %v3487 = vadd.f32 0.0, %v3486
    %v3488 = vpop.f32.mrb[0].mxu0
    %v3489 = vadd.f32 0.0, %v3488
    %3490 = vdwg.mxu0
    %3491 = vmatprep.subr.mxu0 0.0
    %3492 = vmatpush1.msra.mxu0 %v817
    %3493 = vmatprep.subr.mxu0 0.0
    %3494 = vmatpush1.msra.mxu0 %v820
    %3495 = vmatprep.subr.mxu0 0.0
    %3496 = vmatpush1.msra.mxu0 %v823
    %3497 = vmatprep.subr.mxu0 0.0
    %3498 = vmatpush1.msra.mxu0 %v826
    %3499 = vmatprep.subr.mxu0 0.0
    %3500 = vmatpush1.msra.mxu0 0.0
    %3501 = vmatprep.subr.mxu0 0.0
    %3502 = vmatpush1.msra.mxu0 0.0
    %3503 = vmatprep.subr.mxu0 0.0
    %3504 = vmatpush1.msra.mxu0 0.0
    %3505 = vmatprep.subr.mxu0 0.0
    %3506 = vmatpush1.msra.mxu0 0.0
    %3507 = vmatprep.subr.mxu0 0.0
    %3508 = vmatpush1.msra.mxu0 0.0
    %3509 = vmatprep.subr.mxu0 0.0
    %3510 = vmatpush1.msra.mxu0 0.0
    %3511 = vmatprep.subr.mxu0 0.0
    %3512 = vmatpush1.msra.mxu0 0.0
    %3513 = vmatprep.subr.mxu0 0.0
    %3514 = vmatpush1.msra.mxu0 0.0
    %3515 = vmatprep.subr.mxu0 0.0
    %3516 = vmatpush1.msra.mxu0 0.0
    %3517 = vmatprep.subr.mxu0 0.0
    %3518 = vmatpush1.msra.mxu0 0.0
    %3519 = vmatprep.subr.mxu0 0.0
    %3520 = vmatpush1.msra.mxu0 0.0
    %3521 = vmatprep.subr.mxu0 0.0
    %3522 = vmatpush1.msra.mxu0 0.0
    %3523 = vmatprep.subr.mxu0 0.0
    %3524 = vmatpush1.msra.mxu0 0.0
    %3525 = vmatprep.subr.mxu0 0.0
    %3526 = vmatpush1.msra.mxu0 0.0
    %3527 = vmatprep.subr.mxu0 0.0
    %3528 = vmatpush1.msra.mxu0 0.0
    %3529 = vmatprep.subr.mxu0 0.0
    %3530 = vmatpush1.msra.mxu0 0.0
    %3531 = vmatprep.subr.mxu0 0.0
    %3532 = vmatpush1.msra.mxu0 0.0
    %3533 = vmatprep.subr.mxu0 0.0
    %3534 = vmatpush1.msra.mxu0 0.0
    %3535 = vmatprep.subr.mxu0 0.0
    %3536 = vmatpush1.msra.mxu0 0.0
    %3537 = vmatprep.subr.mxu0 0.0
    %3538 = vmatpush1.msra.mxu0 0.0
    %3539 = vmatprep.subr.mxu0 0.0
    %3540 = vmatpush1.msra.mxu0 0.0
    %3541 = vmatprep.subr.mxu0 0.0
    %3542 = vmatpush1.msra.mxu0 0.0
    %3543 = vmatprep.subr.mxu0 0.0
    %3544 = vmatpush1.msra.mxu0 0.0
    %3545 = vmatprep.subr.mxu0 0.0
    %3546 = vmatpush1.msra.mxu0 0.0
    %3547 = vmatprep.subr.mxu0 0.0
    %3548 = vmatpush1.msra.mxu0 0.0
    %3549 = vmatprep.subr.mxu0 0.0
    %3550 = vmatpush1.msra.mxu0 0.0
    %3551 = vmatprep.subr.mxu0 0.0
    %3552 = vmatpush1.msra.mxu0 0.0
    %3553 = vmatprep.subr.mxu0 0.0
    %3554 = vmatpush1.msra.mxu0 0.0
    %3555 = vmatprep.mubr.f32.mxu0 0.0
    %3556 = vmatmul.mubr.f32.gmra.mrb[0].mxu0 %v3418
    %v3557 = vpop.f32.mrb[0].mxu0
    %v3558 = vadd.f32 0.0, %v3557
    %v3559 = vpop.f32.mrb[0].mxu0
    %3560 = vdwg.mxu0
    %v3562 = vsel %vm425, %v3416, 0
    %3564 = vmatprep.subr.mxu0 %v816
    %3565 = vmatpush1.msra.mxu0 %v815
    %3566 = vmatprep.subr.mxu0 %v819
    %3567 = vmatpush1.msra.mxu0 %v818
    %3568 = vmatprep.subr.mxu0 %v822
    %3569 = vmatpush1.msra.mxu0 %v821
    %3570 = vmatprep.subr.mxu0 %v825
    %3571 = vmatpush1.msra.mxu0 %v824
    %3572 = vmatprep.subr.mxu0 0.0
    %3573 = vmatpush1.msra.mxu0 0.0
    %3574 = vmatprep.subr.mxu0 0.0
    %3575 = vmatpush1.msra.mxu0 0.0
    %3576 = vmatprep.subr.mxu0 0.0
    %3577 = vmatpush1.msra.mxu0 0.0
    %3578 = vmatprep.subr.mxu0 0.0
    %3579 = vmatpush1.msra.mxu0 0.0
    %3580 = vmatprep.subr.mxu0 0.0
    %3581 = vmatpush1.msra.mxu0 0.0
    %3582 = vmatprep.subr.mxu0 0.0
    %3583 = vmatpush1.msra.mxu0 0.0
    %3584 = vmatprep.subr.mxu0 0.0
    %3585 = vmatpush1.msra.mxu0 0.0
    %3586 = vmatprep.subr.mxu0 0.0
    %3587 = vmatpush1.msra.mxu0 0.0
    %3588 = vmatprep.subr.mxu0 0.0
    %3589 = vmatpush1.msra.mxu0 0.0
    %3590 = vmatprep.subr.mxu0 0.0
    %3591 = vmatpush1.msra.mxu0 0.0
    %3592 = vmatprep.subr.mxu0 0.0
    %3593 = vmatpush1.msra.mxu0 0.0
    %3594 = vmatprep.subr.mxu0 0.0
    %3595 = vmatpush1.msra.mxu0 0.0
    %3596 = vmatprep.subr.mxu0 0.0
    %3597 = vmatpush1.msra.mxu0 0.0
    %3598 = vmatprep.subr.mxu0 0.0
    %3599 = vmatpush1.msra.mxu0 0.0
    %3600 = vmatprep.subr.mxu0 0.0
    %3601 = vmatpush1.msra.mxu0 0.0
    %3602 = vmatprep.subr.mxu0 0.0
    %3603 = vmatpush1.msra.mxu0 0.0
    %3604 = vmatprep.subr.mxu0 0.0
    %3605 = vmatpush1.msra.mxu0 0.0
    %3606 = vmatprep.subr.mxu0 0.0
    %3607 = vmatpush1.msra.mxu0 0.0
    %3608 = vmatprep.subr.mxu0 0.0
    %3609 = vmatpush1.msra.mxu0 0.0
    %3610 = vmatprep.subr.mxu0 0.0
    %3611 = vmatpush1.msra.mxu0 0.0
    %3612 = vmatprep.subr.mxu0 0.0
    %3613 = vmatpush1.msra.mxu0 0.0
    %3614 = vmatprep.subr.mxu0 0.0
    %3615 = vmatpush1.msra.mxu0 0.0
    %3616 = vmatprep.subr.mxu0 0.0
    %3617 = vmatpush1.msra.mxu0 0.0
    %3618 = vmatprep.subr.mxu0 0.0
    %3619 = vmatpush1.msra.mxu0 0.0
    %3620 = vmatprep.subr.mxu0 0.0
    %3621 = vmatpush1.msra.mxu0 0.0
    %3622 = vmatprep.subr.mxu0 0.0
    %3623 = vmatpush1.msra.mxu0 0.0
    %3624 = vmatprep.subr.mxu0 0.0
    %3625 = vmatpush1.msra.mxu0 0.0
    %3626 = vmatprep.subr.mxu0 0.0
    %3627 = vmatpush1.msra.mxu0 0.0
    %3628 = vmatprep.mubr.f32.mxu0 0.0
    %3629 = vmatmul.mubr.f32.gmra.mrb[0].mxu0 %v3562
    %v3630 = vpop.f32.mrb[0].mxu0
    %v3631 = vadd.f32 0.0, %v3630
    %v3632 = vpop.f32.mrb[0].mxu0
    %v3633 = vadd.f32 0.0, %v3632
    %3634 = vdwg.mxu0
    %3635 = vmatprep.subr.mxu0 0.0
    %3636 = vmatpush1.msra.mxu0 %v817
    %3637 = vmatprep.subr.mxu0 0.0
    %3638 = vmatpush1.msra.mxu0 %v820
    %3639 = vmatprep.subr.mxu0 0.0
    %3640 = vmatpush1.msra.mxu0 %v823
    %3641 = vmatprep.subr.mxu0 0.0
    %3642 = vmatpush1.msra.mxu0 %v826
    %3643 = vmatprep.subr.mxu0 0.0
    %3644 = vmatpush1.msra.mxu0 0.0
    %3645 = vmatprep.subr.mxu0 0.0
    %3646 = vmatpush1.msra.mxu0 0.0
    %3647 = vmatprep.subr.mxu0 0.0
    %3648 = vmatpush1.msra.mxu0 0.0
    %3649 = vmatprep.subr.mxu0 0.0
    %3650 = vmatpush1.msra.mxu0 0.0
    %3651 = vmatprep.subr.mxu0 0.0
    %3652 = vmatpush1.msra.mxu0 0.0
    %3653 = vmatprep.subr.mxu0 0.0
    %3654 = vmatpush1.msra.mxu0 0.0
    %3655 = vmatprep.subr.mxu0 0.0
    %3656 = vmatpush1.msra.mxu0 0.0
    %3657 = vmatprep.subr.mxu0 0.0
    %3658 = vmatpush1.msra.mxu0 0.0
    %3659 = vmatprep.subr.mxu0 0.0
    %3660 = vmatpush1.msra.mxu0 0.0
    %3661 = vmatprep.subr.mxu0 0.0
    %3662 = vmatpush1.msra.mxu0 0.0
    %3663 = vmatprep.subr.mxu0 0.0
    %3664 = vmatpush1.msra.mxu0 0.0
    %3665 = vmatprep.subr.mxu0 0.0
    %3666 = vmatpush1.msra.mxu0 0.0
    %3667 = vmatprep.subr.mxu0 0.0
    %3668 = vmatpush1.msra.mxu0 0.0
    %3669 = vmatprep.subr.mxu0 0.0
    %3670 = vmatpush1.msra.mxu0 0.0
    %3671 = vmatprep.subr.mxu0 0.0
    %3672 = vmatpush1.msra.mxu0 0.0
    %3673 = vmatprep.subr.mxu0 0.0
    %3674 = vmatpush1.msra.mxu0 0.0
    %3675 = vmatprep.subr.mxu0 0.0
    %3676 = vmatpush1.msra.mxu0 0.0
    %3677 = vmatprep.subr.mxu0 0.0
    %3678 = vmatpush1.msra.mxu0 0.0
    %3679 = vmatprep.subr.mxu0 0.0
    %3680 = vmatpush1.msra.mxu0 0.0
    %3681 = vmatprep.subr.mxu0 0.0
    %3682 = vmatpush1.msra.mxu0 0.0
    %3683 = vmatprep.subr.mxu0 0.0
    %3684 = vmatpush1.msra.mxu0 0.0
    %3685 = vmatprep.subr.mxu0 0.0
    %3686 = vmatpush1.msra.mxu0 0.0
    %3687 = vmatprep.subr.mxu0 0.0
    %3688 = vmatpush1.msra.mxu0 0.0
    %3689 = vmatprep.subr.mxu0 0.0
    %3690 = vmatpush1.msra.mxu0 0.0
    %3691 = vmatprep.subr.mxu0 0.0
    %3692 = vmatpush1.msra.mxu0 0.0
    %3693 = vmatprep.subr.mxu0 0.0
    %3694 = vmatpush1.msra.mxu0 0.0
    %3695 = vmatprep.subr.mxu0 0.0
    %3696 = vmatpush1.msra.mxu0 0.0
    %3697 = vmatprep.subr.mxu0 0.0
    %3698 = vmatpush1.msra.mxu0 0.0
    %3699 = vmatprep.mubr.f32.mxu0 0.0
    %3700 = vmatmul.mubr.f32.gmra.mrb[0].mxu0 %v3562
    %v3701 = vpop.f32.mrb[0].mxu0
    %v3702 = vadd.f32 0.0, %v3701
    %v3703 = vpop.f32.mrb[0].mxu0
    %3704 = vdwg.mxu0
    %v3705 = vlaneseq
    %v3706 = vshrl.u32 %v3705, 7
    %v3707 = vsub.s32 0, %v3706
    %v3708 = vrot.slane %v3487, %v3707
    %v3709 = vlaneseq
    %v3710 = vshrl.u32 %v3709, 7
    %v3711 = vsub.s32 0, %v3710
    %v3712 = vrot.slane %v3489, %v3711
    %v3713 = vlaneseq
    %v3714 = vshrl.u32 %v3713, 7
    %v3715 = vsub.s32 0, %v3714
    %v3716 = vrot.slane %v3558, %v3715
    %v3717 = vmul.f32 %v2930, %v3708
    %v3718 = vmul.f32 %v2932, %v3712
    %v3719 = vmul.f32 %v3032, %v3716
    %v3720 = vmul.f32 %v2934, %v3708
    %v3721 = vmul.f32 %v2936, %v3712
    %v3722 = vmul.f32 %v3035, %v3716
    %v3723 = vmul.f32 %v2940, %v3708
    %v3724 = vmul.f32 %v2942, %v3712
    %v3725 = vmul.f32 %v3040, %v3716
    %v3726 = vmul.f32 %v2944, %v3708
    %v3727 = vmul.f32 %v2946, %v3712
    %v3728 = vmul.f32 %v3043, %v3716
    %v3729 = vlaneseq
    %v3730 = vshrl.u32 %v3729, 7
    %v3731 = vsub.s32 0, %v3730
    %v3732 = vrot.slane %v3631, %v3731
    %v3733 = vlaneseq
    %v3734 = vshrl.u32 %v3733, 7
    %v3735 = vsub.s32 0, %v3734
    %v3736 = vrot.slane %v3633, %v3735
    %v3737 = vlaneseq
    %v3738 = vshrl.u32 %v3737, 7
    %v3739 = vsub.s32 0, %v3738
    %v3740 = vrot.slane %v3702, %v3739
    %v3741 = vadd.f32 %v3717, %v3732
    %v3742 = vadd.f32 %v3718, %v3736
    %v3743 = vadd.f32 %v3719, %v3740
    %v3744 = vadd.f32 %v3720, %v3732
    %v3745 = vadd.f32 %v3721, %v3736
    %v3746 = vadd.f32 %v3722, %v3740
    %v3747 = vadd.f32 %v3723, %v3732
    %v3748 = vadd.f32 %v3724, %v3736
    %v3749 = vadd.f32 %v3725, %v3740
    %v3750 = vadd.f32 %v3726, %v3732
    %v3751 = vadd.f32 %v3727, %v3736
    %v3752 = vadd.f32 %v3728, %v3740
    %v3753 = vadd.f32 %v3741, %v1163
    %v3754 = vadd.f32 %v3742, %v1164
    %v3755 = vadd.f32 %v3743, %v1165
    %v3756 = vadd.f32 %v3744, %v1166
    %v3757 = vadd.f32 %v3745, %v1167
    %v3758 = vadd.f32 %v3746, %v1168
    %v3759 = vadd.f32 %v3747, %v1169
    %v3760 = vadd.f32 %v3748, %v1170
    %v3761 = vadd.f32 %v3749, %v1171
    %v3762 = vadd.f32 %v3750, %v1172
    %v3763 = vadd.f32 %v3751, %v1173
    %v3764 = vadd.f32 %v3752, %v1174
    %v3765 = vmax.f32 %v3753, 0.0
    %v3766 = vmax.f32 %v3754, 0.0
    %v3767 = vmax.f32 %v3755, 0.0
    %v3768 = vmax.f32 %v3756, 0.0
    %v3769 = vmax.f32 %v3757, 0.0
    %v3770 = vmax.f32 %v3758, 0.0
    %v3771 = vmax.f32 %v3759, 0.0
    %v3772 = vmax.f32 %v3760, 0.0
    %v3773 = vmax.f32 %v3761, 0.0
    %v3774 = vmax.f32 %v3762, 0.0
    %v3775 = vmax.f32 %v3763, 0.0
    %v3776 = vmax.f32 %v3764, 0.0
    %v3777 = vpack.c.bf16 %v3768, %v3765
    %v3778 = vpack.c.bf16 %v3769, %v3766
    %v3779 = vpack.c.bf16 %v3770, %v3767
    %v3780 = vpack.c.bf16 %v3774, %v3771
    %v3781 = vpack.c.bf16 %v3775, %v3772
    %v3782 = vpack.c.bf16 %v3776, %v3773
    %v3783 = vld [vmem:[#allocation10] sm:$0xff]
    %v3784 = vld [vmem:[#allocation10 + $0x8] sm:$0xf]
    %v3785 = vld [vmem:[#allocation10 + $0xc] sm:$0xff]
    %v3786 = vld [vmem:[#allocation10 + $0x14] sm:$0xf]
    %v3787 = vld [vmem:[#allocation10 + $0x18] sm:$0xff]
    %v3788 = vld [vmem:[#allocation10 + $0x20] sm:$0xf]
    %v3789 = vld [vmem:[#allocation10 + $0x24] sm:$0xff]
    %v3790 = vld [vmem:[#allocation10 + $0x2c] sm:$0xf]
    %v3791 = vld [vmem:[#allocation10 + $0x30] sm:$0xff]
    %v3792 = vld [vmem:[#allocation10 + $0x38] sm:$0xf]
    %v3793 = vld [vmem:[#allocation10 + $0x3c] sm:$0xff]
    %v3794 = vld [vmem:[#allocation10 + $0x44] sm:$0xf]
    %v3795 = vld [vmem:[#allocation10 + $0x48] sm:$0xff]
    %v3796 = vld [vmem:[#allocation10 + $0x50] sm:$0xf]
    %v3797 = vld [vmem:[#allocation10 + $0x54] sm:$0xff]
    %v3798 = vld [vmem:[#allocation10 + $0x5c] sm:$0xf]
    %v3799 = vld [vmem:[#allocation10 + $0x60] sm:$0xff]
    %v3800 = vld [vmem:[#allocation10 + $0x68] sm:$0xf]
    %v3801 = vld [vmem:[#allocation10 + $0x6c] sm:$0xff]
    %v3802 = vld [vmem:[#allocation10 + $0x74] sm:$0xf]
    %v3803 = vld [vmem:[#allocation10 + $0x78] sm:$0xff]
    %v3804 = vld [vmem:[#allocation10 + $0x80] sm:$0xf]
    %v3805 = vld [vmem:[#allocation10 + $0x84] sm:$0xff]
    %v3806 = vld [vmem:[#allocation10 + $0x8c] sm:$0xf]
    %v3807 = vld [vmem:[#allocation10 + $0x90] sm:$0xff]
    %v3808 = vld [vmem:[#allocation10 + $0x98] sm:$0xf]
    %v3809 = vld [vmem:[#allocation10 + $0x9c] sm:$0xff]
    %v3810 = vld [vmem:[#allocation10 + $0xa4] sm:$0xf]
    %v3811 = vld [vmem:[#allocation10 + $0xa8] sm:$0xff]
    %v3812 = vld [vmem:[#allocation10 + $0xb0] sm:$0xf]
    %v3813 = vld [vmem:[#allocation10 + $0xb4] sm:$0xff]
    %v3814 = vld [vmem:[#allocation10 + $0xbc] sm:$0xf]
    %v3815 = vld [vmem:[#allocation10 + $0xc0] sm:$0xff]
    %v3816 = vld [vmem:[#allocation10 + $0xc8] sm:$0xf]
    %v3817 = vld [vmem:[#allocation10 + $0xcc] sm:$0xff]
    %v3818 = vld [vmem:[#allocation10 + $0xd4] sm:$0xf]
    %v3819 = vld [vmem:[#allocation10 + $0xd8] sm:$0xff]
    %v3820 = vld [vmem:[#allocation10 + $0xe0] sm:$0xf]
    %v3821 = vld [vmem:[#allocation10 + $0xe4] sm:$0xff]
    %v3822 = vld [vmem:[#allocation10 + $0xec] sm:$0xf]
    %v3823 = vld [vmem:[#allocation10 + $0xf0] sm:$0xff]
    %v3824 = vld [vmem:[#allocation10 + $0xf8] sm:$0xf]
    %v3825 = vld [vmem:[#allocation10 + $0xfc] sm:$0xff]
    %v3826 = vld [vmem:[#allocation10 + $0x104] sm:$0xf]
    %v3827 = vld [vmem:[#allocation10 + $0x108] sm:$0xff]
    %v3828 = vld [vmem:[#allocation10 + $0x110] sm:$0xf]
    %v3829 = vld [vmem:[#allocation10 + $0x114] sm:$0xff]
    %v3830 = vld [vmem:[#allocation10 + $0x11c] sm:$0xf]
    %v3831 = vld [vmem:[#allocation10 + $0x120] sm:$0xff]
    %v3832 = vld [vmem:[#allocation10 + $0x128] sm:$0xf]
    %v3833 = vld [vmem:[#allocation10 + $0x12c] sm:$0xff]
    %v3834 = vld [vmem:[#allocation10 + $0x134] sm:$0xf]
    %v3835 = vld [vmem:[#allocation10 + $0x138] sm:$0xff]
    %v3836 = vld [vmem:[#allocation10 + $0x140] sm:$0xf]
    %v3837 = vld [vmem:[#allocation10 + $0x144] sm:$0xff]
    %v3838 = vld [vmem:[#allocation10 + $0x14c] sm:$0xf]
    %v3839 = vld [vmem:[#allocation10 + $0x150] sm:$0xff]
    %v3840 = vld [vmem:[#allocation10 + $0x158] sm:$0xf]
    %v3841 = vld [vmem:[#allocation10 + $0x15c] sm:$0xff]
    %v3842 = vld [vmem:[#allocation10 + $0x164] sm:$0xf]
    %v3843 = vld [vmem:[#allocation10 + $0x168] sm:$0xff]
    %v3844 = vld [vmem:[#allocation10 + $0x170] sm:$0xf]
    %v3845 = vld [vmem:[#allocation10 + $0x174] sm:$0xff]
    %v3846 = vld [vmem:[#allocation10 + $0x17c] sm:$0xf]
    %v3847 = vld [vmem:[#allocation10 + $0x180] sm:$0xff]
    %v3848 = vld [vmem:[#allocation10 + $0x188] sm:$0xf]
    %v3849 = vld [vmem:[#allocation10 + $0x18c] sm:$0xff]
    %v3850 = vld [vmem:[#allocation10 + $0x194] sm:$0xf]
    %v3851 = vld [vmem:[#allocation10 + $0x198] sm:$0xff]
    %v3852 = vld [vmem:[#allocation10 + $0x1a0] sm:$0xf]
    %v3853 = vld [vmem:[#allocation10 + $0x1a4] sm:$0xff]
    %v3854 = vld [vmem:[#allocation10 + $0x1ac] sm:$0xf]
    %v3927 = vunpack.c.l.b16 %v3783
    %v3928 = vunpack.c.h.b16 %v3783
    %v3929 = vunpack.c.l.b16 %v3784
    %v3930 = vunpack.c.l.b16 %v3785
    %v3931 = vunpack.c.h.b16 %v3785
    %v3932 = vunpack.c.l.b16 %v3786
    %v3933 = vunpack.c.l.b16 %v3787
    %v3934 = vunpack.c.h.b16 %v3787
    %v3935 = vunpack.c.l.b16 %v3788
    %v3936 = vunpack.c.l.b16 %v3789
    %v3937 = vunpack.c.h.b16 %v3789
    %v3938 = vunpack.c.l.b16 %v3790
    %v3939 = vunpack.c.l.b16 %v3791
    %v3940 = vunpack.c.h.b16 %v3791
    %v3941 = vunpack.c.l.b16 %v3792
    %v3942 = vunpack.c.l.b16 %v3793
    %v3943 = vunpack.c.h.b16 %v3793
    %v3944 = vunpack.c.l.b16 %v3794
    %v3945 = vunpack.c.l.b16 %v3795
    %v3946 = vunpack.c.h.b16 %v3795
    %v3947 = vunpack.c.l.b16 %v3796
    %v3948 = vunpack.c.l.b16 %v3797
    %v3949 = vunpack.c.h.b16 %v3797
    %v3950 = vunpack.c.l.b16 %v3798
    %v3951 = vunpack.c.l.b16 %v3799
    %v3952 = vunpack.c.h.b16 %v3799
    %v3953 = vunpack.c.l.b16 %v3800
    %v3954 = vunpack.c.l.b16 %v3801
    %v3955 = vunpack.c.h.b16 %v3801
    %v3956 = vunpack.c.l.b16 %v3802
    %v3957 = vunpack.c.l.b16 %v3803
    %v3958 = vunpack.c.h.b16 %v3803
    %v3959 = vunpack.c.l.b16 %v3804
    %v3960 = vunpack.c.l.b16 %v3805
    %v3961 = vunpack.c.h.b16 %v3805
    %v3962 = vunpack.c.l.b16 %v3806
    %v3963 = vunpack.c.l.b16 %v3807
    %v3964 = vunpack.c.h.b16 %v3807
    %v3965 = vunpack.c.l.b16 %v3808
    %v3966 = vunpack.c.l.b16 %v3809
    %v3967 = vunpack.c.h.b16 %v3809
    %v3968 = vunpack.c.l.b16 %v3810
    %v3969 = vunpack.c.l.b16 %v3811
    %v3970 = vunpack.c.h.b16 %v3811
    %v3971 = vunpack.c.l.b16 %v3812
    %v3972 = vunpack.c.l.b16 %v3813
    %v3973 = vunpack.c.h.b16 %v3813
    %v3974 = vunpack.c.l.b16 %v3814
    %v3975 = vunpack.c.l.b16 %v3815
    %v3976 = vunpack.c.h.b16 %v3815
    %v3977 = vunpack.c.l.b16 %v3816
    %v3978 = vunpack.c.l.b16 %v3817
    %v3979 = vunpack.c.h.b16 %v3817
    %v3980 = vunpack.c.l.b16 %v3818
    %v3981 = vunpack.c.l.b16 %v3819
    %v3982 = vunpack.c.h.b16 %v3819
    %v3983 = vunpack.c.l.b16 %v3820
    %v3984 = vunpack.c.l.b16 %v3821
    %v3985 = vunpack.c.h.b16 %v3821
    %v3986 = vunpack.c.l.b16 %v3822
    %v3987 = vunpack.c.l.b16 %v3823
    %v3988 = vunpack.c.h.b16 %v3823
    %v3989 = vunpack.c.l.b16 %v3824
    %v3990 = vunpack.c.l.b16 %v3825
    %v3991 = vunpack.c.h.b16 %v3825
    %v3992 = vunpack.c.l.b16 %v3826
    %v3993 = vunpack.c.l.b16 %v3827
    %v3994 = vunpack.c.h.b16 %v3827
    %v3995 = vunpack.c.l.b16 %v3828
    %v3996 = vunpack.c.l.b16 %v3829
    %v3997 = vunpack.c.h.b16 %v3829
    %v3998 = vunpack.c.l.b16 %v3830
    %v3999 = vunpack.c.l.b16 %v3831
    %v4000 = vunpack.c.h.b16 %v3831
    %v4001 = vunpack.c.l.b16 %v3832
    %v4002 = vunpack.c.l.b16 %v3833
    %v4003 = vunpack.c.h.b16 %v3833
    %v4004 = vunpack.c.l.b16 %v3834
    %v4005 = vunpack.c.l.b16 %v3835
    %v4006 = vunpack.c.h.b16 %v3835
    %v4007 = vunpack.c.l.b16 %v3836
    %v4008 = vunpack.c.l.b16 %v3837
    %v4009 = vunpack.c.h.b16 %v3837
    %v4010 = vunpack.c.l.b16 %v3838
    %v4011 = vunpack.c.l.b16 %v3839
    %v4012 = vunpack.c.h.b16 %v3839
    %v4013 = vunpack.c.l.b16 %v3840
    %v4014 = vunpack.c.l.b16 %v3841
    %v4015 = vunpack.c.h.b16 %v3841
    %v4016 = vunpack.c.l.b16 %v3842
    %v4017 = vunpack.c.l.b16 %v3843
    %v4018 = vunpack.c.h.b16 %v3843
    %v4019 = vunpack.c.l.b16 %v3844
    %v4020 = vunpack.c.l.b16 %v3845
    %v4021 = vunpack.c.h.b16 %v3845
    %v4022 = vunpack.c.l.b16 %v3846
    %v4023 = vunpack.c.l.b16 %v3847
    %v4024 = vunpack.c.h.b16 %v3847
    %v4025 = vunpack.c.l.b16 %v3848
    %v4026 = vunpack.c.l.b16 %v3849
    %v4027 = vunpack.c.h.b16 %v3849
    %v4028 = vunpack.c.l.b16 %v3850
    %v4029 = vunpack.c.l.b16 %v3851
    %v4030 = vunpack.c.h.b16 %v3851
    %v4031 = vunpack.c.l.b16 %v3852
    %v4032 = vunpack.c.l.b16 %v3853
    %v4033 = vunpack.c.h.b16 %v3853
    %v4034 = vunpack.c.l.b16 %v3854
    %v4035 = vpack.c.b16 %v3930, %v3927
    %v4036 = vpack.c.b16 %v3931, %v3928
    %v4037 = vpack.c.b16 %v3932, %v3929
    %v4038 = vpack.c.b16 %v3936, %v3933
    %v4039 = vpack.c.b16 %v3937, %v3934
    %v4040 = vpack.c.b16 %v3938, %v3935
    %v4041 = vpack.c.b16 %v3942, %v3939
    %v4042 = vpack.c.b16 %v3943, %v3940
    %v4043 = vpack.c.b16 %v3944, %v3941
    %v4044 = vpack.c.b16 %v3948, %v3945
    %v4045 = vpack.c.b16 %v3949, %v3946
    %v4046 = vpack.c.b16 %v3950, %v3947
    %v4047 = vpack.c.b16 %v3954, %v3951
    %v4048 = vpack.c.b16 %v3955, %v3952
    %v4049 = vpack.c.b16 %v3956, %v3953
    %v4050 = vpack.c.b16 %v3960, %v3957
    %v4051 = vpack.c.b16 %v3961, %v3958
    %v4052 = vpack.c.b16 %v3962, %v3959
    %v4053 = vpack.c.b16 %v3966, %v3963
    %v4054 = vpack.c.b16 %v3967, %v3964
    %v4055 = vpack.c.b16 %v3968, %v3965
    %v4056 = vpack.c.b16 %v3972, %v3969
    %v4057 = vpack.c.b16 %v3973, %v3970
    %v4058 = vpack.c.b16 %v3974, %v3971
    %v4059 = vpack.c.b16 %v3978, %v3975
    %v4060 = vpack.c.b16 %v3979, %v3976
    %v4061 = vpack.c.b16 %v3980, %v3977
    %v4062 = vpack.c.b16 %v3984, %v3981
    %v4063 = vpack.c.b16 %v3985, %v3982
    %v4064 = vpack.c.b16 %v3986, %v3983
    %v4065 = vpack.c.b16 %v3990, %v3987
    %v4066 = vpack.c.b16 %v3991, %v3988
    %v4067 = vpack.c.b16 %v3992, %v3989
    %v4068 = vpack.c.b16 %v3996, %v3993
    %v4069 = vpack.c.b16 %v3997, %v3994
    %v4070 = vpack.c.b16 %v3998, %v3995
    %v4071 = vpack.c.b16 %v4002, %v3999
    %v4072 = vpack.c.b16 %v4003, %v4000
    %v4073 = vpack.c.b16 %v4004, %v4001
    %v4074 = vpack.c.b16 %v4008, %v4005
    %v4075 = vpack.c.b16 %v4009, %v4006
    %v4076 = vpack.c.b16 %v4010, %v4007
    %v4077 = vpack.c.b16 %v4014, %v4011
    %v4078 = vpack.c.b16 %v4015, %v4012
    %v4079 = vpack.c.b16 %v4016, %v4013
    %v4080 = vpack.c.b16 %v4020, %v4017
    %v4081 = vpack.c.b16 %v4021, %v4018
    %v4082 = vpack.c.b16 %v4022, %v4019
    %v4083 = vpack.c.b16 %v4026, %v4023
    %v4084 = vpack.c.b16 %v4027, %v4024
    %v4085 = vpack.c.b16 %v4028, %v4025
    %v4086 = vpack.c.b16 %v4032, %v4029
    %v4087 = vpack.c.b16 %v4033, %v4030
    %v4088 = vpack.c.b16 %v4034, %v4031
    %v4144 = vsel %vm425, %v3779, 0
    %v4147 = vsel %vm425, %v3782, 0
    %4149 = vmatprep.subr.bf16.mxu0 %v4036
    %4150 = vmatpush1.bf16.msra.mxu0 %v4035
    %4151 = vmatprep.subr.bf16.mxu0 %v4039
    %4152 = vmatpush1.bf16.msra.mxu0 %v4038
    %4153 = vmatprep.subr.bf16.mxu0 %v4042
    %4154 = vmatpush1.bf16.msra.mxu0 %v4041
    %4155 = vmatprep.subr.bf16.mxu0 %v4045
    %4156 = vmatpush1.bf16.msra.mxu0 %v4044
    %4157 = vmatprep.subr.bf16.mxu0 %v4048
    %4158 = vmatpush1.bf16.msra.mxu0 %v4047
    %4159 = vmatprep.subr.bf16.mxu0 %v4051
    %4160 = vmatpush1.bf16.msra.mxu0 %v4050
    %4161 = vmatprep.subr.bf16.mxu0 %v4054
    %4162 = vmatpush1.bf16.msra.mxu0 %v4053
    %4163 = vmatprep.subr.bf16.mxu0 %v4057
    %4164 = vmatpush1.bf16.msra.mxu0 %v4056
    %4165 = vmatprep.subr.bf16.mxu0 %v4060
    %4166 = vmatpush1.bf16.msra.mxu0 %v4059
    %4167 = vmatprep.subr.bf16.mxu0 %v4063
    %4168 = vmatpush1.bf16.msra.mxu0 %v4062
    %4169 = vmatprep.subr.bf16.mxu0 %v4066
    %4170 = vmatpush1.bf16.msra.mxu0 %v4065
    %4171 = vmatprep.subr.bf16.mxu0 %v4069
    %4172 = vmatpush1.bf16.msra.mxu0 %v4068
    %4173 = vmatprep.subr.bf16.mxu0 %v4072
    %4174 = vmatpush1.bf16.msra.mxu0 %v4071
    %4175 = vmatprep.subr.bf16.mxu0 %v4075
    %4176 = vmatpush1.bf16.msra.mxu0 %v4074
    %4177 = vmatprep.subr.bf16.mxu0 %v4078
    %4178 = vmatpush1.bf16.msra.mxu0 %v4077
    %4179 = vmatprep.subr.bf16.mxu0 %v4081
    %4180 = vmatpush1.bf16.msra.mxu0 %v4080
    %4181 = vmatprep.mubr.bf16.mxu0 %v3778
    %4182 = vmatmul.mubr.bf16.gmra.mrb[0].mxu0 %v3777
    %v4183 = vpop.f32.mrb[0].mxu0
    %v4184 = vadd.f32 0.0, %v4183
    %v4185 = vpop.f32.mrb[0].mxu0
    %v4186 = vadd.f32 0.0, %v4185
    %v4187 = vpop.f32.mrb[0].mxu0
    %v4188 = vadd.f32 0.0, %v4187
    %v4189 = vpop.f32.mrb[0].mxu0
    %v4190 = vadd.f32 0.0, %v4189
    %4191 = vmatprep.mubr.bf16.mxu0 %v3781
    %4192 = vmatmul.mubr.bf16.gmra.mrb[0].mxu0 %v3780
    %v4193 = vpop.f32.mrb[0].mxu0
    %v4194 = vadd.f32 0.0, %v4193
    %v4195 = vpop.f32.mrb[0].mxu0
    %v4196 = vadd.f32 0.0, %v4195
    %v4197 = vpop.f32.mrb[0].mxu0
    %v4198 = vadd.f32 0.0, %v4197
    %v4199 = vpop.f32.mrb[0].mxu0
    %v4200 = vadd.f32 0.0, %v4199
    %4201 = vdwg.mxu0
    %4202 = vmatprep.subr.bf16.mxu0 %v4084
    %4203 = vmatpush1.bf16.msra.mxu0 %v4083
    %4204 = vmatprep.subr.bf16.mxu0 %v4087
    %4205 = vmatpush1.bf16.msra.mxu0 %v4086
    %4206 = vmatprep.subr.bf16.mxu0 0
    %4207 = vmatpush1.bf16.msra.mxu0 0
    %4208 = vmatprep.subr.bf16.mxu0 0
    %4209 = vmatpush1.bf16.msra.mxu0 0
    %4210 = vmatprep.subr.bf16.mxu0 0
    %4211 = vmatpush1.bf16.msra.mxu0 0
    %4212 = vmatprep.subr.bf16.mxu0 0
    %4213 = vmatpush1.bf16.msra.mxu0 0
    %4214 = vmatprep.subr.bf16.mxu0 0
    %4215 = vmatpush1.bf16.msra.mxu0 0
    %4216 = vmatprep.subr.bf16.mxu0 0
    %4217 = vmatpush1.bf16.msra.mxu0 0
    %4218 = vmatprep.subr.bf16.mxu0 0
    %4219 = vmatpush1.bf16.msra.mxu0 0
    %4220 = vmatprep.subr.bf16.mxu0 0
    %4221 = vmatpush1.bf16.msra.mxu0 0
    %4222 = vmatprep.subr.bf16.mxu0 0
    %4223 = vmatpush1.bf16.msra.mxu0 0
    %4224 = vmatprep.subr.bf16.mxu0 0
    %4225 = vmatpush1.bf16.msra.mxu0 0
    %4226 = vmatprep.subr.bf16.mxu0 0
    %4227 = vmatpush1.bf16.msra.mxu0 0
    %4228 = vmatprep.subr.bf16.mxu0 0
    %4229 = vmatpush1.bf16.msra.mxu0 0
    %4230 = vmatprep.subr.bf16.mxu0 0
    %4231 = vmatpush1.bf16.msra.mxu0 0
    %4232 = vmatprep.subr.bf16.mxu0 0
    %4233 = vmatpush1.bf16.msra.mxu0 0
    %4234 = vmatprep.mubr.bf16.mxu0 0
    %4235 = vmatmul.mubr.bf16.gmra.mrb[0].mxu0 %v4144
    %v4236 = vpop.f32.mrb[0].mxu0
    %v4237 = vadd.f32 %v4184, %v4236
    %v4238 = vpop.f32.mrb[0].mxu0
    %v4239 = vadd.f32 %v4186, %v4238
    %v4240 = vpop.f32.mrb[0].mxu0
    %v4241 = vadd.f32 %v4188, %v4240
    %v4242 = vpop.f32.mrb[0].mxu0
    %v4243 = vadd.f32 %v4190, %v4242
    %4244 = vmatprep.mubr.bf16.mxu0 0
    %4245 = vmatmul.mubr.bf16.gmra.mrb[0].mxu0 %v4147
    %v4246 = vpop.f32.mrb[0].mxu0
    %v4247 = vadd.f32 %v4194, %v4246
    %v4248 = vpop.f32.mrb[0].mxu0
    %v4249 = vadd.f32 %v4196, %v4248
    %v4250 = vpop.f32.mrb[0].mxu0
    %v4251 = vadd.f32 %v4198, %v4250
    %v4252 = vpop.f32.mrb[0].mxu0
    %v4253 = vadd.f32 %v4200, %v4252
    %4254 = vdwg.mxu0
    %4255 = vmatprep.subr.bf16.mxu0 0
    %4256 = vmatpush1.bf16.msra.mxu0 %v4037
    %4257 = vmatprep.subr.bf16.mxu0 0
    %4258 = vmatpush1.bf16.msra.mxu0 %v4040
    %4259 = vmatprep.subr.bf16.mxu0 0
    %4260 = vmatpush1.bf16.msra.mxu0 %v4043
    %4261 = vmatprep.subr.bf16.mxu0 0
    %4262 = vmatpush1.bf16.msra.mxu0 %v4046
    %4263 = vmatprep.subr.bf16.mxu0 0
    %4264 = vmatpush1.bf16.msra.mxu0 %v4049
    %4265 = vmatprep.subr.bf16.mxu0 0
    %4266 = vmatpush1.bf16.msra.mxu0 %v4052
    %4267 = vmatprep.subr.bf16.mxu0 0
    %4268 = vmatpush1.bf16.msra.mxu0 %v4055
    %4269 = vmatprep.subr.bf16.mxu0 0
    %4270 = vmatpush1.bf16.msra.mxu0 %v4058
    %4271 = vmatprep.subr.bf16.mxu0 0
    %4272 = vmatpush1.bf16.msra.mxu0 %v4061
    %4273 = vmatprep.subr.bf16.mxu0 0
    %4274 = vmatpush1.bf16.msra.mxu0 %v4064
    %4275 = vmatprep.subr.bf16.mxu0 0
    %4276 = vmatpush1.bf16.msra.mxu0 %v4067
    %4277 = vmatprep.subr.bf16.mxu0 0
    %4278 = vmatpush1.bf16.msra.mxu0 %v4070
    %4279 = vmatprep.subr.bf16.mxu0 0
    %4280 = vmatpush1.bf16.msra.mxu0 %v4073
    %4281 = vmatprep.subr.bf16.mxu0 0
    %4282 = vmatpush1.bf16.msra.mxu0 %v4076
    %4283 = vmatprep.subr.bf16.mxu0 0
    %4284 = vmatpush1.bf16.msra.mxu0 %v4079
    %4285 = vmatprep.subr.bf16.mxu0 0
    %4286 = vmatpush1.bf16.msra.mxu0 %v4082
    %4287 = vmatprep.mubr.bf16.mxu0 %v3778
    %4288 = vmatmul.mubr.bf16.gmra.mrb[0].mxu0 %v3777
    %v4289 = vpop.f32.mrb[0].mxu0
    %v4290 = vadd.f32 0.0, %v4289
    %v4291 = vpop.f32.mrb[0].mxu0
    %v4292 = vpop.f32.mrb[0].mxu0
    %v4293 = vadd.f32 0.0, %v4292
    %v4294 = vpop.f32.mrb[0].mxu0
    %4295 = vmatprep.mubr.bf16.mxu0 %v3781
    %4296 = vmatmul.mubr.bf16.gmra.mrb[0].mxu0 %v3780
    %v4297 = vpop.f32.mrb[0].mxu0
    %v4298 = vadd.f32 0.0, %v4297
    %v4299 = vpop.f32.mrb[0].mxu0
    %v4300 = vpop.f32.mrb[0].mxu0
    %v4301 = vadd.f32 0.0, %v4300
    %v4302 = vpop.f32.mrb[0].mxu0
    %4303 = vdwg.mxu0
    %4304 = vmatprep.subr.bf16.mxu0 0
    %4305 = vmatpush1.bf16.msra.mxu0 %v4085
    %4306 = vmatprep.subr.bf16.mxu0 0
    %4307 = vmatpush1.bf16.msra.mxu0 %v4088
    %4308 = vmatprep.subr.bf16.mxu0 0
    %4309 = vmatpush1.bf16.msra.mxu0 0
    %4310 = vmatprep.subr.bf16.mxu0 0
    %4311 = vmatpush1.bf16.msra.mxu0 0
    %4312 = vmatprep.subr.bf16.mxu0 0
    %4313 = vmatpush1.bf16.msra.mxu0 0
    %4314 = vmatprep.subr.bf16.mxu0 0
    %4315 = vmatpush1.bf16.msra.mxu0 0
    %4316 = vmatprep.subr.bf16.mxu0 0
    %4317 = vmatpush1.bf16.msra.mxu0 0
    %4318 = vmatprep.subr.bf16.mxu0 0
    %4319 = vmatpush1.bf16.msra.mxu0 0
    %4320 = vmatprep.subr.bf16.mxu0 0
    %4321 = vmatpush1.bf16.msra.mxu0 0
    %4322 = vmatprep.subr.bf16.mxu0 0
    %4323 = vmatpush1.bf16.msra.mxu0 0
    %4324 = vmatprep.subr.bf16.mxu0 0
    %4325 = vmatpush1.bf16.msra.mxu0 0
    %4326 = vmatprep.subr.bf16.mxu0 0
    %4327 = vmatpush1.bf16.msra.mxu0 0
    %4328 = vmatprep.subr.bf16.mxu0 0
    %4329 = vmatpush1.bf16.msra.mxu0 0
    %4330 = vmatprep.subr.bf16.mxu0 0
    %4331 = vmatpush1.bf16.msra.mxu0 0
    %4332 = vmatprep.subr.bf16.mxu0 0
    %4333 = vmatpush1.bf16.msra.mxu0 0
    %4334 = vmatprep.subr.bf16.mxu0 0
    %4335 = vmatpush1.bf16.msra.mxu0 0
    %4336 = vmatprep.mubr.bf16.mxu0 0
    %4337 = vmatmul.mubr.bf16.gmra.mrb[0].mxu0 %v4144
    %v4338 = vpop.f32.mrb[0].mxu0
    %v4339 = vadd.f32 %v4290, %v4338
    %v4340 = vpop.f32.mrb[0].mxu0
    %v4341 = vpop.f32.mrb[0].mxu0
    %v4342 = vadd.f32 %v4293, %v4341
    %v4343 = vpop.f32.mrb[0].mxu0
    %4344 = vmatprep.mubr.bf16.mxu0 0
    %4345 = vmatmul.mubr.bf16.gmra.mrb[0].mxu0 %v4147
    %v4346 = vpop.f32.mrb[0].mxu0
    %v4347 = vadd.f32 %v4298, %v4346
    %v4348 = vpop.f32.mrb[0].mxu0
    %v4349 = vpop.f32.mrb[0].mxu0
    %v4350 = vadd.f32 %v4301, %v4349
    %v4351 = vpop.f32.mrb[0].mxu0
    %4352 = vdwg.mxu0
    %v4353 = vadd.f32 %v4237, %v4241
    %v4354 = vadd.f32 %v4353, %v4247
    %v4355 = vadd.f32 %v4354, %v4251
    %v4356 = vrot.slane %v4355, 4
    %v4357 = vadd.f32 %v4355, %v4356
    %v4358 = vrot.slane %v4357, 2
    %v4359 = vadd.f32 %v4357, %v4358
    %v4360 = vrot.slane %v4359, 1
    %v4361 = vadd.f32 %v4359, %v4360
    %v4362 = vadd.f32 %v4239, %v4243
    %v4363 = vadd.f32 %v4362, %v4249
    %v4364 = vadd.f32 %v4363, %v4253
    %v4365 = vrot.slane %v4364, 4
    %v4366 = vadd.f32 %v4364, %v4365
    %v4367 = vrot.slane %v4366, 2
    %v4368 = vadd.f32 %v4366, %v4367
    %v4369 = vrot.slane %v4368, 1
    %v4370 = vadd.f32 %v4368, %v4369
    %v4371 = vsel %vm425, %v4339, 0.0
    %v4372 = vsel %vm425, %v4342, 0.0
    %v4373 = vadd.f32 %v4371, %v4372
    %v4374 = vsel %vm425, %v4347, 0.0
    %v4375 = vadd.f32 %v4373, %v4374
    %v4376 = vsel %vm425, %v4350, 0.0
    %v4377 = vadd.f32 %v4375, %v4376
    %v4378 = vrot.slane %v4377, 4
    %v4379 = vadd.f32 %v4377, %v4378
    %v4380 = vrot.slane %v4379, 2
    %v4381 = vadd.f32 %v4379, %v4380
    %v4382 = vrot.slane %v4381, 1
    %v4383 = vadd.f32 %v4381, %v4382
    %v4384 = vmul.f32 %v4237, %v4237
    %v4385 = vmul.f32 %v4239, %v4239
    %v4386 = vmul.f32 %v4339, %v4339
    %v4387 = vmul.f32 %v4241, %v4241
    %v4388 = vmul.f32 %v4243, %v4243
    %v4389 = vmul.f32 %v4342, %v4342
    %v4390 = vmul.f32 %v4247, %v4247
    %v4391 = vmul.f32 %v4249, %v4249
    %v4392 = vmul.f32 %v4347, %v4347
    %v4393 = vmul.f32 %v4251, %v4251
    %v4394 = vmul.f32 %v4253, %v4253
    %v4395 = vmul.f32 %v4350, %v4350
    %v4396 = vadd.f32 %v4384, %v4387
    %v4397 = vadd.f32 %v4396, %v4390
    %v4398 = vadd.f32 %v4397, %v4393
    %v4399 = vrot.slane %v4398, 4
    %v4400 = vadd.f32 %v4398, %v4399
    %v4401 = vrot.slane %v4400, 2
    %v4402 = vadd.f32 %v4400, %v4401
    %v4403 = vrot.slane %v4402, 1
    %v4404 = vadd.f32 %v4402, %v4403
    %v4405 = vadd.f32 %v4385, %v4388
    %v4406 = vadd.f32 %v4405, %v4391
    %v4407 = vadd.f32 %v4406, %v4394
    %v4408 = vrot.slane %v4407, 4
    %v4409 = vadd.f32 %v4407, %v4408
    %v4410 = vrot.slane %v4409, 2
    %v4411 = vadd.f32 %v4409, %v4410
    %v4412 = vrot.slane %v4411, 1
    %v4413 = vadd.f32 %v4411, %v4412
    %v4414 = vsel %vm425, %v4386, 0.0
    %v4415 = vsel %vm425, %v4389, 0.0
    %v4416 = vadd.f32 %v4414, %v4415
    %v4417 = vsel %vm425, %v4392, 0.0
    %v4418 = vadd.f32 %v4416, %v4417
    %v4419 = vsel %vm425, %v4395, 0.0
    %v4420 = vadd.f32 %v4418, %v4419
    %v4421 = vrot.slane %v4420, 4
    %v4422 = vadd.f32 %v4420, %v4421
    %v4423 = vrot.slane %v4422, 2
    %v4424 = vadd.f32 %v4422, %v4423
    %v4425 = vrot.slane %v4424, 1
    %v4426 = vadd.f32 %v4424, %v4425
    %v4428 = vsel %vm425, %v4383, 0
    %4430 = vmatprep.subr.mxu0 0.0
    %4431 = vmatpush1.msra.mxu0 %v482
    %4432 = vmatprep.subr.mxu0 0.0
    %4433 = vmatpush1.msra.mxu0 %v483
    %4434 = vmatprep.subr.mxu0 0.0
    %4435 = vmatpush1.msra.mxu0 %v484
    %4436 = vmatprep.subr.mxu0 0.0
    %4437 = vmatpush1.msra.mxu0 %v485
    %4438 = vmatprep.subr.mxu0 0.0
    %4439 = vmatpush1.msra.mxu0 %v486
    %4440 = vmatprep.subr.mxu0 0.0
    %4441 = vmatpush1.msra.mxu0 %v487
    %4442 = vmatprep.subr.mxu0 0.0
    %4443 = vmatpush1.msra.mxu0 %v488
    %4444 = vmatprep.subr.mxu0 0.0
    %4445 = vmatpush1.msra.mxu0 %v489
    %4446 = vmatprep.subr.mxu0 0.0
    %4447 = vmatpush1.msra.mxu0 %v490
    %4448 = vmatprep.subr.mxu0 0.0
    %4449 = vmatpush1.msra.mxu0 %v491
    %4450 = vmatprep.subr.mxu0 0.0
    %4451 = vmatpush1.msra.mxu0 %v492
    %4452 = vmatprep.subr.mxu0 0.0
    %4453 = vmatpush1.msra.mxu0 %v493
    %4454 = vmatprep.subr.mxu0 0.0
    %4455 = vmatpush1.msra.mxu0 %v494
    %4456 = vmatprep.subr.mxu0 0.0
    %4457 = vmatpush1.msra.mxu0 %v495
    %4458 = vmatprep.subr.mxu0 0.0
    %4459 = vmatpush1.msra.mxu0 %v496
    %4460 = vmatprep.subr.mxu0 0.0
    %4461 = vmatpush1.msra.mxu0 %v497
    %4462 = vmatprep.subr.mxu0 0.0
    %4463 = vmatpush1.msra.mxu0 %v498
    %4464 = vmatprep.subr.mxu0 0.0
    %4465 = vmatpush1.msra.mxu0 %v499
    %4466 = vmatprep.subr.mxu0 0.0
    %4467 = vmatpush1.msra.mxu0 %v500
    %4468 = vmatprep.subr.mxu0 0.0
    %4469 = vmatpush1.msra.mxu0 %v501
    %4470 = vmatprep.subr.mxu0 0.0
    %4471 = vmatpush1.msra.mxu0 %v502
    %4472 = vmatprep.subr.mxu0 0.0
    %4473 = vmatpush1.msra.mxu0 %v503
    %4474 = vmatprep.subr.mxu0 0.0
    %4475 = vmatpush1.msra.mxu0 %v504
    %4476 = vmatprep.subr.mxu0 0.0
    %4477 = vmatpush1.msra.mxu0 %v505
    %4478 = vmatprep.subr.mxu0 0.0
    %4479 = vmatpush1.msra.mxu0 %v506
    %4480 = vmatprep.subr.mxu0 0.0
    %4481 = vmatpush1.msra.mxu0 %v507
    %4482 = vmatprep.subr.mxu0 0.0
    %4483 = vmatpush1.msra.mxu0 %v508
    %4484 = vmatprep.subr.mxu0 0.0
    %4485 = vmatpush1.msra.mxu0 %v509
    %4486 = vmatprep.subr.mxu0 0.0
    %4487 = vmatpush1.msra.mxu0 %v510
    %4488 = vmatprep.subr.mxu0 0.0
    %4489 = vmatpush1.msra.mxu0 %v511
    %4490 = vmatprep.subr.mxu0 0.0
    %4491 = vmatpush1.msra.mxu0 %v512
    %4492 = vmatprep.subr.mxu0 0.0
    %4493 = vmatpush1.msra.mxu0 %v513
    %4494 = vmatprep.mubr.f32.mxu0 %v4370
    %4495 = vmatmul.mubr.f32.gmra.mrb[0].mxu0 %v4361
    %v4496 = vpop.f32.mrb[0].mxu0
    %v4497 = vadd.f32 0.0, %v4496
    %v4498 = vpop.f32.mrb[0].mxu0
    %4499 = vdwg.mxu0
    %4500 = vmatprep.subr.mxu0 0.0
    %4501 = vmatpush1.msra.mxu0 %v514
    %4502 = vmatprep.subr.mxu0 0.0
    %4503 = vmatpush1.msra.mxu0 %v515
    %4504 = vmatprep.subr.mxu0 0.0
    %4505 = vmatpush1.msra.mxu0 %v516
    %4506 = vmatprep.subr.mxu0 0.0
    %4507 = vmatpush1.msra.mxu0 %v517
    %4508 = vmatprep.subr.mxu0 0.0
    %4509 = vmatpush1.msra.mxu0 0.0
    %4510 = vmatprep.subr.mxu0 0.0
    %4511 = vmatpush1.msra.mxu0 0.0
    %4512 = vmatprep.subr.mxu0 0.0
    %4513 = vmatpush1.msra.mxu0 0.0
    %4514 = vmatprep.subr.mxu0 0.0
    %4515 = vmatpush1.msra.mxu0 0.0
    %4516 = vmatprep.subr.mxu0 0.0
    %4517 = vmatpush1.msra.mxu0 0.0
    %4518 = vmatprep.subr.mxu0 0.0
    %4519 = vmatpush1.msra.mxu0 0.0
    %4520 = vmatprep.subr.mxu0 0.0
    %4521 = vmatpush1.msra.mxu0 0.0
    %4522 = vmatprep.subr.mxu0 0.0
    %4523 = vmatpush1.msra.mxu0 0.0
    %4524 = vmatprep.subr.mxu0 0.0
    %4525 = vmatpush1.msra.mxu0 0.0
    %4526 = vmatprep.subr.mxu0 0.0
    %4527 = vmatpush1.msra.mxu0 0.0
    %4528 = vmatprep.subr.mxu0 0.0
    %4529 = vmatpush1.msra.mxu0 0.0
    %4530 = vmatprep.subr.mxu0 0.0
    %4531 = vmatpush1.msra.mxu0 0.0
    %4532 = vmatprep.subr.mxu0 0.0
    %4533 = vmatpush1.msra.mxu0 0.0
    %4534 = vmatprep.subr.mxu0 0.0
    %4535 = vmatpush1.msra.mxu0 0.0
    %4536 = vmatprep.subr.mxu0 0.0
    %4537 = vmatpush1.msra.mxu0 0.0
    %4538 = vmatprep.subr.mxu0 0.0
    %4539 = vmatpush1.msra.mxu0 0.0
    %4540 = vmatprep.subr.mxu0 0.0
    %4541 = vmatpush1.msra.mxu0 0.0
    %4542 = vmatprep.subr.mxu0 0.0
    %4543 = vmatpush1.msra.mxu0 0.0
    %4544 = vmatprep.subr.mxu0 0.0
    %4545 = vmatpush1.msra.mxu0 0.0
    %4546 = vmatprep.subr.mxu0 0.0
    %4547 = vmatpush1.msra.mxu0 0.0
    %4548 = vmatprep.subr.mxu0 0.0
    %4549 = vmatpush1.msra.mxu0 0.0
    %4550 = vmatprep.subr.mxu0 0.0
    %4551 = vmatpush1.msra.mxu0 0.0
    %4552 = vmatprep.subr.mxu0 0.0
    %4553 = vmatpush1.msra.mxu0 0.0
    %4554 = vmatprep.subr.mxu0 0.0
    %4555 = vmatpush1.msra.mxu0 0.0
    %4556 = vmatprep.subr.mxu0 0.0
    %4557 = vmatpush1.msra.mxu0 0.0
    %4558 = vmatprep.subr.mxu0 0.0
    %4559 = vmatpush1.msra.mxu0 0.0
    %4560 = vmatprep.subr.mxu0 0.0
    %4561 = vmatpush1.msra.mxu0 0.0
    %4562 = vmatprep.subr.mxu0 0.0
    %4563 = vmatpush1.msra.mxu0 0.0
    %4564 = vmatprep.mubr.f32.mxu0 0.0
    %4565 = vmatmul.mubr.f32.gmra.mrb[0].mxu0 %v4428
    %v4566 = vpop.f32.mrb[0].mxu0
    %v4567 = vadd.f32 %v4497, %v4566
    %v4568 = vpop.f32.mrb[0].mxu0
    %4569 = vdwg.mxu0
    %v4570 = vmul.f32 %v4567, 0.0034722222
    %v4572 = vsel %vm425, %v4426, 0
    %4574 = vmatprep.subr.mxu0 0.0
    %4575 = vmatpush1.msra.mxu0 %v482
    %4576 = vmatprep.subr.mxu0 0.0
    %4577 = vmatpush1.msra.mxu0 %v483
    %4578 = vmatprep.subr.mxu0 0.0
    %4579 = vmatpush1.msra.mxu0 %v484
    %4580 = vmatprep.subr.mxu0 0.0
    %4581 = vmatpush1.msra.mxu0 %v485
    %4582 = vmatprep.subr.mxu0 0.0
    %4583 = vmatpush1.msra.mxu0 %v486
    %4584 = vmatprep.subr.mxu0 0.0
    %4585 = vmatpush1.msra.mxu0 %v487
    %4586 = vmatprep.subr.mxu0 0.0
    %4587 = vmatpush1.msra.mxu0 %v488
    %4588 = vmatprep.subr.mxu0 0.0
    %4589 = vmatpush1.msra.mxu0 %v489
    %4590 = vmatprep.subr.mxu0 0.0
    %4591 = vmatpush1.msra.mxu0 %v490
    %4592 = vmatprep.subr.mxu0 0.0
    %4593 = vmatpush1.msra.mxu0 %v491
    %4594 = vmatprep.subr.mxu0 0.0
    %4595 = vmatpush1.msra.mxu0 %v492
    %4596 = vmatprep.subr.mxu0 0.0
    %4597 = vmatpush1.msra.mxu0 %v493
    %4598 = vmatprep.subr.mxu0 0.0
    %4599 = vmatpush1.msra.mxu0 %v494
    %4600 = vmatprep.subr.mxu0 0.0
    %4601 = vmatpush1.msra.mxu0 %v495
    %4602 = vmatprep.subr.mxu0 0.0
    %4603 = vmatpush1.msra.mxu0 %v496
    %4604 = vmatprep.subr.mxu0 0.0
    %4605 = vmatpush1.msra.mxu0 %v497
    %4606 = vmatprep.subr.mxu0 0.0
    %4607 = vmatpush1.msra.mxu0 %v498
    %4608 = vmatprep.subr.mxu0 0.0
    %4609 = vmatpush1.msra.mxu0 %v499
    %4610 = vmatprep.subr.mxu0 0.0
    %4611 = vmatpush1.msra.mxu0 %v500
    %4612 = vmatprep.subr.mxu0 0.0
    %4613 = vmatpush1.msra.mxu0 %v501
    %4614 = vmatprep.subr.mxu0 0.0
    %4615 = vmatpush1.msra.mxu0 %v502
    %4616 = vmatprep.subr.mxu0 0.0
    %4617 = vmatpush1.msra.mxu0 %v503
    %4618 = vmatprep.subr.mxu0 0.0
    %4619 = vmatpush1.msra.mxu0 %v504
    %4620 = vmatprep.subr.mxu0 0.0
    %4621 = vmatpush1.msra.mxu0 %v505
    %4622 = vmatprep.subr.mxu0 0.0
    %4623 = vmatpush1.msra.mxu0 %v506
    %4624 = vmatprep.subr.mxu0 0.0
    %4625 = vmatpush1.msra.mxu0 %v507
    %4626 = vmatprep.subr.mxu0 0.0
    %4627 = vmatpush1.msra.mxu0 %v508
    %4628 = vmatprep.subr.mxu0 0.0
    %4629 = vmatpush1.msra.mxu0 %v509
    %4630 = vmatprep.subr.mxu0 0.0
    %4631 = vmatpush1.msra.mxu0 %v510
    %4632 = vmatprep.subr.mxu0 0.0
    %4633 = vmatpush1.msra.mxu0 %v511
    %4634 = vmatprep.subr.mxu0 0.0
    %4635 = vmatpush1.msra.mxu0 %v512
    %4636 = vmatprep.subr.mxu0 0.0
    %4637 = vmatpush1.msra.mxu0 %v513
    %4638 = vmatprep.mubr.f32.mxu0 %v4413
    %4639 = vmatmul.mubr.f32.gmra.mrb[0].mxu0 %v4404
    %v4640 = vpop.f32.mrb[0].mxu0
    %v4641 = vadd.f32 0.0, %v4640
    %v4642 = vpop.f32.mrb[0].mxu0
    %4643 = vdwg.mxu0
    %4644 = vmatprep.subr.mxu0 0.0
    %4645 = vmatpush1.msra.mxu0 %v514
    %4646 = vmatprep.subr.mxu0 0.0
    %4647 = vmatpush1.msra.mxu0 %v515
    %4648 = vmatprep.subr.mxu0 0.0
    %4649 = vmatpush1.msra.mxu0 %v516
    %4650 = vmatprep.subr.mxu0 0.0
    %4651 = vmatpush1.msra.mxu0 %v517
    %4652 = vmatprep.subr.mxu0 0.0
    %4653 = vmatpush1.msra.mxu0 0.0
    %4654 = vmatprep.subr.mxu0 0.0
    %4655 = vmatpush1.msra.mxu0 0.0
    %4656 = vmatprep.subr.mxu0 0.0
    %4657 = vmatpush1.msra.mxu0 0.0
    %4658 = vmatprep.subr.mxu0 0.0
    %4659 = vmatpush1.msra.mxu0 0.0
    %4660 = vmatprep.subr.mxu0 0.0
    %4661 = vmatpush1.msra.mxu0 0.0
    %4662 = vmatprep.subr.mxu0 0.0
    %4663 = vmatpush1.msra.mxu0 0.0
    %4664 = vmatprep.subr.mxu0 0.0
    %4665 = vmatpush1.msra.mxu0 0.0
    %4666 = vmatprep.subr.mxu0 0.0
    %4667 = vmatpush1.msra.mxu0 0.0
    %4668 = vmatprep.subr.mxu0 0.0
    %4669 = vmatpush1.msra.mxu0 0.0
    %4670 = vmatprep.subr.mxu0 0.0
    %4671 = vmatpush1.msra.mxu0 0.0
    %4672 = vmatprep.subr.mxu0 0.0
    %4673 = vmatpush1.msra.mxu0 0.0
    %4674 = vmatprep.subr.mxu0 0.0
    %4675 = vmatpush1.msra.mxu0 0.0
    %4676 = vmatprep.subr.mxu0 0.0
    %4677 = vmatpush1.msra.mxu0 0.0
    %4678 = vmatprep.subr.mxu0 0.0
    %4679 = vmatpush1.msra.mxu0 0.0
    %4680 = vmatprep.subr.mxu0 0.0
    %4681 = vmatpush1.msra.mxu0 0.0
    %4682 = vmatprep.subr.mxu0 0.0
    %4683 = vmatpush1.msra.mxu0 0.0
    %4684 = vmatprep.subr.mxu0 0.0
    %4685 = vmatpush1.msra.mxu0 0.0
    %4686 = vmatprep.subr.mxu0 0.0
    %4687 = vmatpush1.msra.mxu0 0.0
    %4688 = vmatprep.subr.mxu0 0.0
    %4689 = vmatpush1.msra.mxu0 0.0
    %4690 = vmatprep.subr.mxu0 0.0
    %4691 = vmatpush1.msra.mxu0 0.0
    %4692 = vmatprep.subr.mxu0 0.0
    %4693 = vmatpush1.msra.mxu0 0.0
    %4694 = vmatprep.subr.mxu0 0.0
    %4695 = vmatpush1.msra.mxu0 0.0
    %4696 = vmatprep.subr.mxu0 0.0
    %4697 = vmatpush1.msra.mxu0 0.0
    %4698 = vmatprep.subr.mxu0 0.0
    %4699 = vmatpush1.msra.mxu0 0.0
    %4700 = vmatprep.subr.mxu0 0.0
    %4701 = vmatpush1.msra.mxu0 0.0
    %4702 = vmatprep.subr.mxu0 0.0
    %4703 = vmatpush1.msra.mxu0 0.0
    %4704 = vmatprep.subr.mxu0 0.0
    %4705 = vmatpush1.msra.mxu0 0.0
    %4706 = vmatprep.subr.mxu0 0.0
    %4707 = vmatpush1.msra.mxu0 0.0
    %4708 = vmatprep.mubr.f32.mxu0 0.0
    %4709 = vmatmul.mubr.f32.gmra.mrb[0].mxu0 %v4572
    %v4710 = vpop.f32.mrb[0].mxu0
    %v4711 = vadd.f32 %v4641, %v4710
    %v4712 = vpop.f32.mrb[0].mxu0
    %4713 = vdwg.mxu0
    %v4714 = vmul.f32 %v4711, 0.0034722222
    %v4715 = vmul.f32 %v4570, %v4570
    %v4716 = vsub.f32 %v4714, %v4715
    %v4717 = vld [vmem:[%s23] sm:$0x1]
    %v4718 = vadd.f32 %v4716, 1e-05
    %v4719 = vrsqrt.pop %v4718
    %v4720 = vmul.f32 %v4717, %v4719
    %v4721 = vld [vmem:[%s25] sm:$0x1]
    %v4722 = vmul.f32 %v4570, %v4720
    %v4723 = vsub.f32 %v4721, %v4722
    %v4725 = vsel %vm425, %v4720, 0
    %4727 = vmatprep.subr.mxu0 %v816
    %4728 = vmatpush1.msra.mxu0 %v815
    %4729 = vmatprep.subr.mxu0 %v819
    %4730 = vmatpush1.msra.mxu0 %v818
    %4731 = vmatprep.subr.mxu0 %v822
    %4732 = vmatpush1.msra.mxu0 %v821
    %4733 = vmatprep.subr.mxu0 %v825
    %4734 = vmatpush1.msra.mxu0 %v824
    %4735 = vmatprep.subr.mxu0 0.0
    %4736 = vmatpush1.msra.mxu0 0.0
    %4737 = vmatprep.subr.mxu0 0.0
    %4738 = vmatpush1.msra.mxu0 0.0
    %4739 = vmatprep.subr.mxu0 0.0
    %4740 = vmatpush1.msra.mxu0 0.0
    %4741 = vmatprep.subr.mxu0 0.0
    %4742 = vmatpush1.msra.mxu0 0.0
    %4743 = vmatprep.subr.mxu0 0.0
    %4744 = vmatpush1.msra.mxu0 0.0
    %4745 = vmatprep.subr.mxu0 0.0
    %4746 = vmatpush1.msra.mxu0 0.0
    %4747 = vmatprep.subr.mxu0 0.0
    %4748 = vmatpush1.msra.mxu0 0.0
    %4749 = vmatprep.subr.mxu0 0.0
    %4750 = vmatpush1.msra.mxu0 0.0
    %4751 = vmatprep.subr.mxu0 0.0
    %4752 = vmatpush1.msra.mxu0 0.0
    %4753 = vmatprep.subr.mxu0 0.0
    %4754 = vmatpush1.msra.mxu0 0.0
    %4755 = vmatprep.subr.mxu0 0.0
    %4756 = vmatpush1.msra.mxu0 0.0
    %4757 = vmatprep.subr.mxu0 0.0
    %4758 = vmatpush1.msra.mxu0 0.0
    %4759 = vmatprep.subr.mxu0 0.0
    %4760 = vmatpush1.msra.mxu0 0.0
    %4761 = vmatprep.subr.mxu0 0.0
    %4762 = vmatpush1.msra.mxu0 0.0
    %4763 = vmatprep.subr.mxu0 0.0
    %4764 = vmatpush1.msra.mxu0 0.0
    %4765 = vmatprep.subr.mxu0 0.0
    %4766 = vmatpush1.msra.mxu0 0.0
    %4767 = vmatprep.subr.mxu0 0.0
    %4768 = vmatpush1.msra.mxu0 0.0
    %4769 = vmatprep.subr.mxu0 0.0
    %4770 = vmatpush1.msra.mxu0 0.0
    %4771 = vmatprep.subr.mxu0 0.0
    %4772 = vmatpush1.msra.mxu0 0.0
    %4773 = vmatprep.subr.mxu0 0.0
    %4774 = vmatpush1.msra.mxu0 0.0
    %4775 = vmatprep.subr.mxu0 0.0
    %4776 = vmatpush1.msra.mxu0 0.0
    %4777 = vmatprep.subr.mxu0 0.0
    %4778 = vmatpush1.msra.mxu0 0.0
    %4779 = vmatprep.subr.mxu0 0.0
    %4780 = vmatpush1.msra.mxu0 0.0
    %4781 = vmatprep.subr.mxu0 0.0
    %4782 = vmatpush1.msra.mxu0 0.0
    %4783 = vmatprep.subr.mxu0 0.0
    %4784 = vmatpush1.msra.mxu0 0.0
    %4785 = vmatprep.subr.mxu0 0.0
    %4786 = vmatpush1.msra.mxu0 0.0
    %4787 = vmatprep.subr.mxu0 0.0
    %4788 = vmatpush1.msra.mxu0 0.0
    %4789 = vmatprep.subr.mxu0 0.0
    %4790 = vmatpush1.msra.mxu0 0.0
    %4791 = vmatprep.mubr.f32.mxu0 0.0
    %4792 = vmatmul.mubr.f32.gmra.mrb[0].mxu0 %v4725
    %v4793 = vpop.f32.mrb[0].mxu0
    %v4794 = vadd.f32 0.0, %v4793
    %v4795 = vpop.f32.mrb[0].mxu0
    %v4796 = vadd.f32 0.0, %v4795
    %4797 = vdwg.mxu0
    %4798 = vmatprep.subr.mxu0 0.0
    %4799 = vmatpush1.msra.mxu0 %v817
    %4800 = vmatprep.subr.mxu0 0.0
    %4801 = vmatpush1.msra.mxu0 %v820
    %4802 = vmatprep.subr.mxu0 0.0
    %4803 = vmatpush1.msra.mxu0 %v823
    %4804 = vmatprep.subr.mxu0 0.0
    %4805 = vmatpush1.msra.mxu0 %v826
    %4806 = vmatprep.subr.mxu0 0.0
    %4807 = vmatpush1.msra.mxu0 0.0
    %4808 = vmatprep.subr.mxu0 0.0
    %4809 = vmatpush1.msra.mxu0 0.0
    %4810 = vmatprep.subr.mxu0 0.0
    %4811 = vmatpush1.msra.mxu0 0.0
    %4812 = vmatprep.subr.mxu0 0.0
    %4813 = vmatpush1.msra.mxu0 0.0
    %4814 = vmatprep.subr.mxu0 0.0
    %4815 = vmatpush1.msra.mxu0 0.0
    %4816 = vmatprep.subr.mxu0 0.0
    %4817 = vmatpush1.msra.mxu0 0.0
    %4818 = vmatprep.subr.mxu0 0.0
    %4819 = vmatpush1.msra.mxu0 0.0
    %4820 = vmatprep.subr.mxu0 0.0
    %4821 = vmatpush1.msra.mxu0 0.0
    %4822 = vmatprep.subr.mxu0 0.0
    %4823 = vmatpush1.msra.mxu0 0.0
    %4824 = vmatprep.subr.mxu0 0.0
    %4825 = vmatpush1.msra.mxu0 0.0
    %4826 = vmatprep.subr.mxu0 0.0
    %4827 = vmatpush1.msra.mxu0 0.0
    %4828 = vmatprep.subr.mxu0 0.0
    %4829 = vmatpush1.msra.mxu0 0.0
    %4830 = vmatprep.subr.mxu0 0.0
    %4831 = vmatpush1.msra.mxu0 0.0
    %4832 = vmatprep.subr.mxu0 0.0
    %4833 = vmatpush1.msra.mxu0 0.0
    %4834 = vmatprep.subr.mxu0 0.0
    %4835 = vmatpush1.msra.mxu0 0.0
    %4836 = vmatprep.subr.mxu0 0.0
    %4837 = vmatpush1.msra.mxu0 0.0
    %4838 = vmatprep.subr.mxu0 0.0
    %4839 = vmatpush1.msra.mxu0 0.0
    %4840 = vmatprep.subr.mxu0 0.0
    %4841 = vmatpush1.msra.mxu0 0.0
    %4842 = vmatprep.subr.mxu0 0.0
    %4843 = vmatpush1.msra.mxu0 0.0
    %4844 = vmatprep.subr.mxu0 0.0
    %4845 = vmatpush1.msra.mxu0 0.0
    %4846 = vmatprep.subr.mxu0 0.0
    %4847 = vmatpush1.msra.mxu0 0.0
    %4848 = vmatprep.subr.mxu0 0.0
    %4849 = vmatpush1.msra.mxu0 0.0
    %4850 = vmatprep.subr.mxu0 0.0
    %4851 = vmatpush1.msra.mxu0 0.0
    %4852 = vmatprep.subr.mxu0 0.0
    %4853 = vmatpush1.msra.mxu0 0.0
    %4854 = vmatprep.subr.mxu0 0.0
    %4855 = vmatpush1.msra.mxu0 0.0
    %4856 = vmatprep.subr.mxu0 0.0
    %4857 = vmatpush1.msra.mxu0 0.0
    %4858 = vmatprep.subr.mxu0 0.0
    %4859 = vmatpush1.msra.mxu0 0.0
    %4860 = vmatprep.subr.mxu0 0.0
    %4861 = vmatpush1.msra.mxu0 0.0
    %4862 = vmatprep.mubr.f32.mxu0 0.0
    %4863 = vmatmul.mubr.f32.gmra.mrb[0].mxu0 %v4725
    %v4864 = vpop.f32.mrb[0].mxu0
    %v4865 = vadd.f32 0.0, %v4864
    %v4866 = vpop.f32.mrb[0].mxu0
    %4867 = vdwg.mxu0
    %v4869 = vsel %vm425, %v4723, 0
    %4871 = vmatprep.subr.mxu0 %v816
    %4872 = vmatpush1.msra.mxu0 %v815
    %4873 = vmatprep.subr.mxu0 %v819
    %4874 = vmatpush1.msra.mxu0 %v818
    %4875 = vmatprep.subr.mxu0 %v822
    %4876 = vmatpush1.msra.mxu0 %v821
    %4877 = vmatprep.subr.mxu0 %v825
    %4878 = vmatpush1.msra.mxu0 %v824
    %4879 = vmatprep.subr.mxu0 0.0
    %4880 = vmatpush1.msra.mxu0 0.0
    %4881 = vmatprep.subr.mxu0 0.0
    %4882 = vmatpush1.msra.mxu0 0.0
    %4883 = vmatprep.subr.mxu0 0.0
    %4884 = vmatpush1.msra.mxu0 0.0
    %4885 = vmatprep.subr.mxu0 0.0
    %4886 = vmatpush1.msra.mxu0 0.0
    %4887 = vmatprep.subr.mxu0 0.0
    %4888 = vmatpush1.msra.mxu0 0.0
    %4889 = vmatprep.subr.mxu0 0.0
    %4890 = vmatpush1.msra.mxu0 0.0
    %4891 = vmatprep.subr.mxu0 0.0
    %4892 = vmatpush1.msra.mxu0 0.0
    %4893 = vmatprep.subr.mxu0 0.0
    %4894 = vmatpush1.msra.mxu0 0.0
    %4895 = vmatprep.subr.mxu0 0.0
    %4896 = vmatpush1.msra.mxu0 0.0
    %4897 = vmatprep.subr.mxu0 0.0
    %4898 = vmatpush1.msra.mxu0 0.0
    %4899 = vmatprep.subr.mxu0 0.0
    %4900 = vmatpush1.msra.mxu0 0.0
    %4901 = vmatprep.subr.mxu0 0.0
    %4902 = vmatpush1.msra.mxu0 0.0
    %4903 = vmatprep.subr.mxu0 0.0
    %4904 = vmatpush1.msra.mxu0 0.0
    %4905 = vmatprep.subr.mxu0 0.0
    %4906 = vmatpush1.msra.mxu0 0.0
    %4907 = vmatprep.subr.mxu0 0.0
    %4908 = vmatpush1.msra.mxu0 0.0
    %4909 = vmatprep.subr.mxu0 0.0
    %4910 = vmatpush1.msra.mxu0 0.0
    %4911 = vmatprep.subr.mxu0 0.0
    %4912 = vmatpush1.msra.mxu0 0.0
    %4913 = vmatprep.subr.mxu0 0.0
    %4914 = vmatpush1.msra.mxu0 0.0
    %4915 = vmatprep.subr.mxu0 0.0
    %4916 = vmatpush1.msra.mxu0 0.0
    %4917 = vmatprep.subr.mxu0 0.0
    %4918 = vmatpush1.msra.mxu0 0.0
    %4919 = vmatprep.subr.mxu0 0.0
    %4920 = vmatpush1.msra.mxu0 0.0
    %4921 = vmatprep.subr.mxu0 0.0
    %4922 = vmatpush1.msra.mxu0 0.0
    %4923 = vmatprep.subr.mxu0 0.0
    %4924 = vmatpush1.msra.mxu0 0.0
    %4925 = vmatprep.subr.mxu0 0.0
    %4926 = vmatpush1.msra.mxu0 0.0
    %4927 = vmatprep.subr.mxu0 0.0
    %4928 = vmatpush1.msra.mxu0 0.0
    %4929 = vmatprep.subr.mxu0 0.0
    %4930 = vmatpush1.msra.mxu0 0.0
    %4931 = vmatprep.subr.mxu0 0.0
    %4932 = vmatpush1.msra.mxu0 0.0
    %4933 = vmatprep.subr.mxu0 0.0
    %4934 = vmatpush1.msra.mxu0 0.0
    %4935 = vmatprep.mubr.f32.mxu0 0.0
    %4936 = vmatmul.mubr.f32.gmra.mrb[0].mxu0 %v4869
    %v4937 = vpop.f32.mrb[0].mxu0
    %v4938 = vadd.f32 0.0, %v4937
    %v4939 = vpop.f32.mrb[0].mxu0
    %v4940 = vadd.f32 0.0, %v4939
    %4941 = vdwg.mxu0
    %4942 = vmatprep.subr.mxu0 0.0
    %4943 = vmatpush1.msra.mxu0 %v817
    %4944 = vmatprep.subr.mxu0 0.0
    %4945 = vmatpush1.msra.mxu0 %v820
    %4946 = vmatprep.subr.mxu0 0.0
    %4947 = vmatpush1.msra.mxu0 %v823
    %4948 = vmatprep.subr.mxu0 0.0
    %4949 = vmatpush1.msra.mxu0 %v826
    %4950 = vmatprep.subr.mxu0 0.0
    %4951 = vmatpush1.msra.mxu0 0.0
    %4952 = vmatprep.subr.mxu0 0.0
    %4953 = vmatpush1.msra.mxu0 0.0
    %4954 = vmatprep.subr.mxu0 0.0
    %4955 = vmatpush1.msra.mxu0 0.0
    %4956 = vmatprep.subr.mxu0 0.0
    %4957 = vmatpush1.msra.mxu0 0.0
    %4958 = vmatprep.subr.mxu0 0.0
    %4959 = vmatpush1.msra.mxu0 0.0
    %4960 = vmatprep.subr.mxu0 0.0
    %4961 = vmatpush1.msra.mxu0 0.0
    %4962 = vmatprep.subr.mxu0 0.0
    %4963 = vmatpush1.msra.mxu0 0.0
    %4964 = vmatprep.subr.mxu0 0.0
    %4965 = vmatpush1.msra.mxu0 0.0
    %4966 = vmatprep.subr.mxu0 0.0
    %4967 = vmatpush1.msra.mxu0 0.0
    %4968 = vmatprep.subr.mxu0 0.0
    %4969 = vmatpush1.msra.mxu0 0.0
    %4970 = vmatprep.subr.mxu0 0.0
    %4971 = vmatpush1.msra.mxu0 0.0
    %4972 = vmatprep.subr.mxu0 0.0
    %4973 = vmatpush1.msra.mxu0 0.0
    %4974 = vmatprep.subr.mxu0 0.0
    %4975 = vmatpush1.msra.mxu0 0.0
    %4976 = vmatprep.subr.mxu0 0.0
    %4977 = vmatpush1.msra.mxu0 0.0
    %4978 = vmatprep.subr.mxu0 0.0
    %4979 = vmatpush1.msra.mxu0 0.0
    %4980 = vmatprep.subr.mxu0 0.0
    %4981 = vmatpush1.msra.mxu0 0.0
    %4982 = vmatprep.subr.mxu0 0.0
    %4983 = vmatpush1.msra.mxu0 0.0
    %4984 = vmatprep.subr.mxu0 0.0
    %4985 = vmatpush1.msra.mxu0 0.0
    %4986 = vmatprep.subr.mxu0 0.0
    %4987 = vmatpush1.msra.mxu0 0.0
    %4988 = vmatprep.subr.mxu0 0.0
    %4989 = vmatpush1.msra.mxu0 0.0
    %4990 = vmatprep.subr.mxu0 0.0
    %4991 = vmatpush1.msra.mxu0 0.0
    %4992 = vmatprep.subr.mxu0 0.0
    %4993 = vmatpush1.msra.mxu0 0.0
    %4994 = vmatprep.subr.mxu0 0.0
    %4995 = vmatpush1.msra.mxu0 0.0
    %4996 = vmatprep.subr.mxu0 0.0
    %4997 = vmatpush1.msra.mxu0 0.0
    %4998 = vmatprep.subr.mxu0 0.0
    %4999 = vmatpush1.msra.mxu0 0.0
    %5000 = vmatprep.subr.mxu0 0.0
    %5001 = vmatpush1.msra.mxu0 0.0
    %5002 = vmatprep.subr.mxu0 0.0
    %5003 = vmatpush1.msra.mxu0 0.0
    %5004 = vmatprep.subr.mxu0 0.0
    %5005 = vmatpush1.msra.mxu0 0.0
    %5006 = vmatprep.mubr.f32.mxu0 0.0
    %5007 = vmatmul.mubr.f32.gmra.mrb[0].mxu0 %v4869
    %v5008 = vpop.f32.mrb[0].mxu0
    %v5009 = vadd.f32 0.0, %v5008
    %v5010 = vpop.f32.mrb[0].mxu0
    %5011 = vdwg.mxu0
    %v5012 = vlaneseq
    %v5013 = vshrl.u32 %v5012, 7
    %v5014 = vsub.s32 0, %v5013
    %v5015 = vrot.slane %v4794, %v5014
    %v5016 = vlaneseq
    %v5017 = vshrl.u32 %v5016, 7
    %v5018 = vsub.s32 0, %v5017
    %v5019 = vrot.slane %v4796, %v5018
    %v5020 = vlaneseq
    %v5021 = vshrl.u32 %v5020, 7
    %v5022 = vsub.s32 0, %v5021
    %v5023 = vrot.slane %v4865, %v5022
    %v5024 = vmul.f32 %v4237, %v5015
    %v5025 = vmul.f32 %v4239, %v5019
    %v5026 = vmul.f32 %v4339, %v5023
    %v5027 = vmul.f32 %v4241, %v5015
    %v5028 = vmul.f32 %v4243, %v5019
    %v5029 = vmul.f32 %v4342, %v5023
    %v5030 = vmul.f32 %v4247, %v5015
    %v5031 = vmul.f32 %v4249, %v5019
    %v5032 = vmul.f32 %v4347, %v5023
    %v5033 = vmul.f32 %v4251, %v5015
    %v5034 = vmul.f32 %v4253, %v5019
    %v5035 = vmul.f32 %v4350, %v5023
    %v5036 = vlaneseq
    %v5037 = vshrl.u32 %v5036, 7
    %v5038 = vsub.s32 0, %v5037
    %v5039 = vrot.slane %v4938, %v5038
    %v5040 = vlaneseq
    %v5041 = vshrl.u32 %v5040, 7
    %v5042 = vsub.s32 0, %v5041
    %v5043 = vrot.slane %v4940, %v5042
    %v5044 = vlaneseq
    %v5045 = vshrl.u32 %v5044, 7
    %v5046 = vsub.s32 0, %v5045
    %v5047 = vrot.slane %v5009, %v5046
    %v5048 = vadd.f32 %v5024, %v5039
    %v5049 = vadd.f32 %v5025, %v5043
    %v5050 = vadd.f32 %v5026, %v5047
    %v5051 = vadd.f32 %v5027, %v5039
    %v5052 = vadd.f32 %v5028, %v5043
    %v5053 = vadd.f32 %v5029, %v5047
    %v5054 = vadd.f32 %v5030, %v5039
    %v5055 = vadd.f32 %v5031, %v5043
    %v5056 = vadd.f32 %v5032, %v5047
    %v5057 = vadd.f32 %v5033, %v5039
    %v5058 = vadd.f32 %v5034, %v5043
    %v5059 = vadd.f32 %v5035, %v5047
    %v5060 = vmax.f32 %v5048, 0.0
    %v5061 = vmax.f32 %v5049, 0.0
    %v5062 = vmax.f32 %v5050, 0.0
    %v5063 = vmax.f32 %v5051, 0.0
    %v5064 = vmax.f32 %v5052, 0.0
    %v5065 = vmax.f32 %v5053, 0.0
    %v5066 = vmax.f32 %v5054, 0.0
    %v5067 = vmax.f32 %v5055, 0.0
    %v5068 = vmax.f32 %v5056, 0.0
    %v5069 = vmax.f32 %v5057, 0.0
    %v5070 = vmax.f32 %v5058, 0.0
    %v5071 = vmax.f32 %v5059, 0.0
    %v5072 = vpack.c.bf16 %v5063, %v5060
    %v5073 = vpack.c.bf16 %v5064, %v5061
    %v5074 = vpack.c.bf16 %v5065, %v5062
    %v5075 = vpack.c.bf16 %v5069, %v5066
    %v5076 = vpack.c.bf16 %v5070, %v5067
    %v5077 = vpack.c.bf16 %v5071, %v5068
    %v5078 = vld [vmem:[#allocation11] sm:$0xff]
    %v5079 = vld [vmem:[#allocation11 + $0x8] sm:$0xf]
    %v5080 = vld [vmem:[#allocation11 + $0xc] sm:$0xff]
    %v5081 = vld [vmem:[#allocation11 + $0x14] sm:$0xf]
    %v5082 = vld [vmem:[#allocation11 + $0x18] sm:$0xff]
    %v5083 = vld [vmem:[#allocation11 + $0x20] sm:$0xf]
    %v5084 = vld [vmem:[#allocation11 + $0x24] sm:$0xff]
    %v5085 = vld [vmem:[#allocation11 + $0x2c] sm:$0xf]
    %v5086 = vld [vmem:[#allocation11 + $0x30] sm:$0xff]
    %v5087 = vld [vmem:[#allocation11 + $0x38] sm:$0xf]
    %v5088 = vld [vmem:[#allocation11 + $0x3c] sm:$0xff]
    %v5089 = vld [vmem:[#allocation11 + $0x44] sm:$0xf]
    %v5090 = vld [vmem:[#allocation11 + $0x48] sm:$0xff]
    %v5091 = vld [vmem:[#allocation11 + $0x50] sm:$0xf]
    %v5092 = vld [vmem:[#allocation11 + $0x54] sm:$0xff]
    %v5093 = vld [vmem:[#allocation11 + $0x5c] sm:$0xf]
    %v5094 = vld [vmem:[#allocation11 + $0x60] sm:$0xff]
    %v5095 = vld [vmem:[#allocation11 + $0x68] sm:$0xf]
    %v5096 = vld [vmem:[#allocation11 + $0x6c] sm:$0xff]
    %v5097 = vld [vmem:[#allocation11 + $0x74] sm:$0xf]
    %v5098 = vld [vmem:[#allocation11 + $0x78] sm:$0xff]
    %v5099 = vld [vmem:[#allocation11 + $0x80] sm:$0xf]
    %v5100 = vld [vmem:[#allocation11 + $0x84] sm:$0xff]
    %v5101 = vld [vmem:[#allocation11 + $0x8c] sm:$0xf]
    %v5102 = vld [vmem:[#allocation11 + $0x90] sm:$0xff]
    %v5103 = vld [vmem:[#allocation11 + $0x98] sm:$0xf]
    %v5104 = vld [vmem:[#allocation11 + $0x9c] sm:$0xff]
    %v5105 = vld [vmem:[#allocation11 + $0xa4] sm:$0xf]
    %v5106 = vld [vmem:[#allocation11 + $0xa8] sm:$0xff]
    %v5107 = vld [vmem:[#allocation11 + $0xb0] sm:$0xf]
    %v5108 = vld [vmem:[#allocation11 + $0xb4] sm:$0xff]
    %v5109 = vld [vmem:[#allocation11 + $0xbc] sm:$0xf]
    %v5110 = vld [vmem:[#allocation11 + $0xc0] sm:$0xff]
    %v5111 = vld [vmem:[#allocation11 + $0xc8] sm:$0xf]
    %v5112 = vld [vmem:[#allocation11 + $0xcc] sm:$0xff]
    %v5113 = vld [vmem:[#allocation11 + $0xd4] sm:$0xf]
    %v5114 = vld [vmem:[#allocation11 + $0xd8] sm:$0xff]
    %v5115 = vld [vmem:[#allocation11 + $0xe0] sm:$0xf]
    %v5116 = vld [vmem:[#allocation11 + $0xe4] sm:$0xff]
    %v5117 = vld [vmem:[#allocation11 + $0xec] sm:$0xf]
    %v5118 = vld [vmem:[#allocation11 + $0xf0] sm:$0xff]
    %v5119 = vld [vmem:[#allocation11 + $0xf8] sm:$0xf]
    %v5120 = vld [vmem:[#allocation11 + $0xfc] sm:$0xff]
    %v5121 = vld [vmem:[#allocation11 + $0x104] sm:$0xf]
    %v5122 = vld [vmem:[#allocation11 + $0x108] sm:$0xff]
    %v5123 = vld [vmem:[#allocation11 + $0x110] sm:$0xf]
    %v5124 = vld [vmem:[#allocation11 + $0x114] sm:$0xff]
    %v5125 = vld [vmem:[#allocation11 + $0x11c] sm:$0xf]
    %v5126 = vld [vmem:[#allocation11 + $0x120] sm:$0xff]
    %v5127 = vld [vmem:[#allocation11 + $0x128] sm:$0xf]
    %v5128 = vld [vmem:[#allocation11 + $0x12c] sm:$0xff]
    %v5129 = vld [vmem:[#allocation11 + $0x134] sm:$0xf]
    %v5130 = vld [vmem:[#allocation11 + $0x138] sm:$0xff]
    %v5131 = vld [vmem:[#allocation11 + $0x140] sm:$0xf]
    %v5132 = vld [vmem:[#allocation11 + $0x144] sm:$0xff]
    %v5133 = vld [vmem:[#allocation11 + $0x14c] sm:$0xf]
    %v5134 = vld [vmem:[#allocation11 + $0x150] sm:$0xff]
    %v5135 = vld [vmem:[#allocation11 + $0x158] sm:$0xf]
    %v5136 = vld [vmem:[#allocation11 + $0x15c] sm:$0xff]
    %v5137 = vld [vmem:[#allocation11 + $0x164] sm:$0xf]
    %v5138 = vld [vmem:[#allocation11 + $0x168] sm:$0xff]
    %v5139 = vld [vmem:[#allocation11 + $0x170] sm:$0xf]
    %v5140 = vld [vmem:[#allocation11 + $0x174] sm:$0xff]
    %v5141 = vld [vmem:[#allocation11 + $0x17c] sm:$0xf]
    %v5142 = vld [vmem:[#allocation11 + $0x180] sm:$0xff]
    %v5143 = vld [vmem:[#allocation11 + $0x188] sm:$0xf]
    %v5144 = vld [vmem:[#allocation11 + $0x18c] sm:$0xff]
    %v5145 = vld [vmem:[#allocation11 + $0x194] sm:$0xf]
    %v5146 = vld [vmem:[#allocation11 + $0x198] sm:$0xff]
    %v5147 = vld [vmem:[#allocation11 + $0x1a0] sm:$0xf]
    %v5148 = vld [vmem:[#allocation11 + $0x1a4] sm:$0xff]
    %v5149 = vld [vmem:[#allocation11 + $0x1ac] sm:$0xf]
    %v5222 = vunpack.c.l.b16 %v5078
    %v5223 = vunpack.c.h.b16 %v5078
    %v5224 = vunpack.c.l.b16 %v5079
    %v5225 = vunpack.c.l.b16 %v5080
    %v5226 = vunpack.c.h.b16 %v5080
    %v5227 = vunpack.c.l.b16 %v5081
    %v5228 = vunpack.c.l.b16 %v5082
    %v5229 = vunpack.c.h.b16 %v5082
    %v5230 = vunpack.c.l.b16 %v5083
    %v5231 = vunpack.c.l.b16 %v5084
    %v5232 = vunpack.c.h.b16 %v5084
    %v5233 = vunpack.c.l.b16 %v5085
    %v5234 = vunpack.c.l.b16 %v5086
    %v5235 = vunpack.c.h.b16 %v5086
    %v5236 = vunpack.c.l.b16 %v5087
    %v5237 = vunpack.c.l.b16 %v5088
    %v5238 = vunpack.c.h.b16 %v5088
    %v5239 = vunpack.c.l.b16 %v5089
    %v5240 = vunpack.c.l.b16 %v5090
    %v5241 = vunpack.c.h.b16 %v5090
    %v5242 = vunpack.c.l.b16 %v5091
    %v5243 = vunpack.c.l.b16 %v5092
    %v5244 = vunpack.c.h.b16 %v5092
    %v5245 = vunpack.c.l.b16 %v5093
    %v5246 = vunpack.c.l.b16 %v5094
    %v5247 = vunpack.c.h.b16 %v5094
    %v5248 = vunpack.c.l.b16 %v5095
    %v5249 = vunpack.c.l.b16 %v5096
    %v5250 = vunpack.c.h.b16 %v5096
    %v5251 = vunpack.c.l.b16 %v5097
    %v5252 = vunpack.c.l.b16 %v5098
    %v5253 = vunpack.c.h.b16 %v5098
    %v5254 = vunpack.c.l.b16 %v5099
    %v5255 = vunpack.c.l.b16 %v5100
    %v5256 = vunpack.c.h.b16 %v5100
    %v5257 = vunpack.c.l.b16 %v5101
    %v5258 = vunpack.c.l.b16 %v5102
    %v5259 = vunpack.c.h.b16 %v5102
    %v5260 = vunpack.c.l.b16 %v5103
    %v5261 = vunpack.c.l.b16 %v5104
    %v5262 = vunpack.c.h.b16 %v5104
    %v5263 = vunpack.c.l.b16 %v5105
    %v5264 = vunpack.c.l.b16 %v5106
    %v5265 = vunpack.c.h.b16 %v5106
    %v5266 = vunpack.c.l.b16 %v5107
    %v5267 = vunpack.c.l.b16 %v5108
    %v5268 = vunpack.c.h.b16 %v5108
    %v5269 = vunpack.c.l.b16 %v5109
    %v5270 = vunpack.c.l.b16 %v5110
    %v5271 = vunpack.c.h.b16 %v5110
    %v5272 = vunpack.c.l.b16 %v5111
    %v5273 = vunpack.c.l.b16 %v5112
    %v5274 = vunpack.c.h.b16 %v5112
    %v5275 = vunpack.c.l.b16 %v5113
    %v5276 = vunpack.c.l.b16 %v5114
    %v5277 = vunpack.c.h.b16 %v5114
    %v5278 = vunpack.c.l.b16 %v5115
    %v5279 = vunpack.c.l.b16 %v5116
    %v5280 = vunpack.c.h.b16 %v5116
    %v5281 = vunpack.c.l.b16 %v5117
    %v5282 = vunpack.c.l.b16 %v5118
    %v5283 = vunpack.c.h.b16 %v5118
    %v5284 = vunpack.c.l.b16 %v5119
    %v5285 = vunpack.c.l.b16 %v5120
    %v5286 = vunpack.c.h.b16 %v5120
    %v5287 = vunpack.c.l.b16 %v5121
    %v5288 = vunpack.c.l.b16 %v5122
    %v5289 = vunpack.c.h.b16 %v5122
    %v5290 = vunpack.c.l.b16 %v5123
    %v5291 = vunpack.c.l.b16 %v5124
    %v5292 = vunpack.c.h.b16 %v5124
    %v5293 = vunpack.c.l.b16 %v5125
    %v5294 = vunpack.c.l.b16 %v5126
    %v5295 = vunpack.c.h.b16 %v5126
    %v5296 = vunpack.c.l.b16 %v5127
    %v5297 = vunpack.c.l.b16 %v5128
    %v5298 = vunpack.c.h.b16 %v5128
    %v5299 = vunpack.c.l.b16 %v5129
    %v5300 = vunpack.c.l.b16 %v5130
    %v5301 = vunpack.c.h.b16 %v5130
    %v5302 = vunpack.c.l.b16 %v5131
    %v5303 = vunpack.c.l.b16 %v5132
    %v5304 = vunpack.c.h.b16 %v5132
    %v5305 = vunpack.c.l.b16 %v5133
    %v5306 = vunpack.c.l.b16 %v5134
    %v5307 = vunpack.c.h.b16 %v5134
    %v5308 = vunpack.c.l.b16 %v5135
    %v5309 = vunpack.c.l.b16 %v5136
    %v5310 = vunpack.c.h.b16 %v5136
    %v5311 = vunpack.c.l.b16 %v5137
    %v5312 = vunpack.c.l.b16 %v5138
    %v5313 = vunpack.c.h.b16 %v5138
    %v5314 = vunpack.c.l.b16 %v5139
    %v5315 = vunpack.c.l.b16 %v5140
    %v5316 = vunpack.c.h.b16 %v5140
    %v5317 = vunpack.c.l.b16 %v5141
    %v5318 = vunpack.c.l.b16 %v5142
    %v5319 = vunpack.c.h.b16 %v5142
    %v5320 = vunpack.c.l.b16 %v5143
    %v5321 = vunpack.c.l.b16 %v5144
    %v5322 = vunpack.c.h.b16 %v5144
    %v5323 = vunpack.c.l.b16 %v5145
    %v5324 = vunpack.c.l.b16 %v5146
    %v5325 = vunpack.c.h.b16 %v5146
    %v5326 = vunpack.c.l.b16 %v5147
    %v5327 = vunpack.c.l.b16 %v5148
    %v5328 = vunpack.c.h.b16 %v5148
    %v5329 = vunpack.c.l.b16 %v5149
    %v5330 = vpack.c.b16 %v5225, %v5222
    %v5331 = vpack.c.b16 %v5226, %v5223
    %v5332 = vpack.c.b16 %v5227, %v5224
    %v5333 = vpack.c.b16 %v5231, %v5228
    %v5334 = vpack.c.b16 %v5232, %v5229
    %v5335 = vpack.c.b16 %v5233, %v5230
    %v5336 = vpack.c.b16 %v5237, %v5234
    %v5337 = vpack.c.b16 %v5238, %v5235
    %v5338 = vpack.c.b16 %v5239, %v5236
    %v5339 = vpack.c.b16 %v5243, %v5240
    %v5340 = vpack.c.b16 %v5244, %v5241
    %v5341 = vpack.c.b16 %v5245, %v5242
    %v5342 = vpack.c.b16 %v5249, %v5246
    %v5343 = vpack.c.b16 %v5250, %v5247
    %v5344 = vpack.c.b16 %v5251, %v5248
    %v5345 = vpack.c.b16 %v5255, %v5252
    %v5346 = vpack.c.b16 %v5256, %v5253
    %v5347 = vpack.c.b16 %v5257, %v5254
    %v5348 = vpack.c.b16 %v5261, %v5258
    %v5349 = vpack.c.b16 %v5262, %v5259
    %v5350 = vpack.c.b16 %v5263, %v5260
    %v5351 = vpack.c.b16 %v5267, %v5264
    %v5352 = vpack.c.b16 %v5268, %v5265
    %v5353 = vpack.c.b16 %v5269, %v5266
    %v5354 = vpack.c.b16 %v5273, %v5270
    %v5355 = vpack.c.b16 %v5274, %v5271
    %v5356 = vpack.c.b16 %v5275, %v5272
    %v5357 = vpack.c.b16 %v5279, %v5276
    %v5358 = vpack.c.b16 %v5280, %v5277
    %v5359 = vpack.c.b16 %v5281, %v5278
    %v5360 = vpack.c.b16 %v5285, %v5282
    %v5361 = vpack.c.b16 %v5286, %v5283
    %v5362 = vpack.c.b16 %v5287, %v5284
    %v5363 = vpack.c.b16 %v5291, %v5288
    %v5364 = vpack.c.b16 %v5292, %v5289
    %v5365 = vpack.c.b16 %v5293, %v5290
    %v5366 = vpack.c.b16 %v5297, %v5294
    %v5367 = vpack.c.b16 %v5298, %v5295
    %v5368 = vpack.c.b16 %v5299, %v5296
    %v5369 = vpack.c.b16 %v5303, %v5300
    %v5370 = vpack.c.b16 %v5304, %v5301
    %v5371 = vpack.c.b16 %v5305, %v5302
    %v5372 = vpack.c.b16 %v5309, %v5306
    %v5373 = vpack.c.b16 %v5310, %v5307
    %v5374 = vpack.c.b16 %v5311, %v5308
    %v5375 = vpack.c.b16 %v5315, %v5312
    %v5376 = vpack.c.b16 %v5316, %v5313
    %v5377 = vpack.c.b16 %v5317, %v5314
    %v5378 = vpack.c.b16 %v5321, %v5318
    %v5379 = vpack.c.b16 %v5322, %v5319
    %v5380 = vpack.c.b16 %v5323, %v5320
    %v5381 = vpack.c.b16 %v5327, %v5324
    %v5382 = vpack.c.b16 %v5328, %v5325
    %v5383 = vpack.c.b16 %v5329, %v5326
    %v5439 = vsel %vm425, %v5074, 0
    %v5442 = vsel %vm425, %v5077, 0
    %5444 = vmatprep.subr.bf16.mxu0 %v5331
    %5445 = vmatpush1.bf16.msra.mxu0 %v5330
    %5446 = vmatprep.subr.bf16.mxu0 %v5334
    %5447 = vmatpush1.bf16.msra.mxu0 %v5333
    %5448 = vmatprep.subr.bf16.mxu0 %v5337
    %5449 = vmatpush1.bf16.msra.mxu0 %v5336
    %5450 = vmatprep.subr.bf16.mxu0 %v5340
    %5451 = vmatpush1.bf16.msra.mxu0 %v5339
    %5452 = vmatprep.subr.bf16.mxu0 %v5343
    %5453 = vmatpush1.bf16.msra.mxu0 %v5342
    %5454 = vmatprep.subr.bf16.mxu0 %v5346
    %5455 = vmatpush1.bf16.msra.mxu0 %v5345
    %5456 = vmatprep.subr.bf16.mxu0 %v5349
    %5457 = vmatpush1.bf16.msra.mxu0 %v5348
    %5458 = vmatprep.subr.bf16.mxu0 %v5352
    %5459 = vmatpush1.bf16.msra.mxu0 %v5351
    %5460 = vmatprep.subr.bf16.mxu0 %v5355
    %5461 = vmatpush1.bf16.msra.mxu0 %v5354
    %5462 = vmatprep.subr.bf16.mxu0 %v5358
    %5463 = vmatpush1.bf16.msra.mxu0 %v5357
    %5464 = vmatprep.subr.bf16.mxu0 %v5361
    %5465 = vmatpush1.bf16.msra.mxu0 %v5360
    %5466 = vmatprep.subr.bf16.mxu0 %v5364
    %5467 = vmatpush1.bf16.msra.mxu0 %v5363
    %5468 = vmatprep.subr.bf16.mxu0 %v5367
    %5469 = vmatpush1.bf16.msra.mxu0 %v5366
    %5470 = vmatprep.subr.bf16.mxu0 %v5370
    %5471 = vmatpush1.bf16.msra.mxu0 %v5369
    %5472 = vmatprep.subr.bf16.mxu0 %v5373
    %5473 = vmatpush1.bf16.msra.mxu0 %v5372
    %5474 = vmatprep.subr.bf16.mxu0 %v5376
    %5475 = vmatpush1.bf16.msra.mxu0 %v5375
    %5476 = vmatprep.mubr.bf16.mxu0 %v5073
    %5477 = vmatmul.mubr.bf16.gmra.mrb[0].mxu0 %v5072
    %v5478 = vpop.f32.mrb[0].mxu0
    %v5479 = vadd.f32 0.0, %v5478
    %v5480 = vpop.f32.mrb[0].mxu0
    %v5481 = vadd.f32 0.0, %v5480
    %v5482 = vpop.f32.mrb[0].mxu0
    %v5483 = vadd.f32 0.0, %v5482
    %v5484 = vpop.f32.mrb[0].mxu0
    %v5485 = vadd.f32 0.0, %v5484
    %5486 = vmatprep.mubr.bf16.mxu0 %v5076
    %5487 = vmatmul.mubr.bf16.gmra.mrb[0].mxu0 %v5075
    %v5488 = vpop.f32.mrb[0].mxu0
    %v5489 = vadd.f32 0.0, %v5488
    %v5490 = vpop.f32.mrb[0].mxu0
    %v5491 = vadd.f32 0.0, %v5490
    %v5492 = vpop.f32.mrb[0].mxu0
    %v5493 = vadd.f32 0.0, %v5492
    %v5494 = vpop.f32.mrb[0].mxu0
    %v5495 = vadd.f32 0.0, %v5494
    %5496 = vdwg.mxu0
    %5497 = vmatprep.subr.bf16.mxu0 %v5379
    %5498 = vmatpush1.bf16.msra.mxu0 %v5378
    %5499 = vmatprep.subr.bf16.mxu0 %v5382
    %5500 = vmatpush1.bf16.msra.mxu0 %v5381
    %5501 = vmatprep.subr.bf16.mxu0 0
    %5502 = vmatpush1.bf16.msra.mxu0 0
    %5503 = vmatprep.subr.bf16.mxu0 0
    %5504 = vmatpush1.bf16.msra.mxu0 0
    %5505 = vmatprep.subr.bf16.mxu0 0
    %5506 = vmatpush1.bf16.msra.mxu0 0
    %5507 = vmatprep.subr.bf16.mxu0 0
    %5508 = vmatpush1.bf16.msra.mxu0 0
    %5509 = vmatprep.subr.bf16.mxu0 0
    %5510 = vmatpush1.bf16.msra.mxu0 0
    %5511 = vmatprep.subr.bf16.mxu0 0
    %5512 = vmatpush1.bf16.msra.mxu0 0
    %5513 = vmatprep.subr.bf16.mxu0 0
    %5514 = vmatpush1.bf16.msra.mxu0 0
    %5515 = vmatprep.subr.bf16.mxu0 0
    %5516 = vmatpush1.bf16.msra.mxu0 0
    %5517 = vmatprep.subr.bf16.mxu0 0
    %5518 = vmatpush1.bf16.msra.mxu0 0
    %5519 = vmatprep.subr.bf16.mxu0 0
    %5520 = vmatpush1.bf16.msra.mxu0 0
    %5521 = vmatprep.subr.bf16.mxu0 0
    %5522 = vmatpush1.bf16.msra.mxu0 0
    %5523 = vmatprep.subr.bf16.mxu0 0
    %5524 = vmatpush1.bf16.msra.mxu0 0
    %5525 = vmatprep.subr.bf16.mxu0 0
    %5526 = vmatpush1.bf16.msra.mxu0 0
    %5527 = vmatprep.subr.bf16.mxu0 0
    %5528 = vmatpush1.bf16.msra.mxu0 0
    %5529 = vmatprep.mubr.bf16.mxu0 0
    %5530 = vmatmul.mubr.bf16.gmra.mrb[0].mxu0 %v5439
    %v5531 = vpop.f32.mrb[0].mxu0
    %v5532 = vadd.f32 %v5479, %v5531
    %v5533 = vpop.f32.mrb[0].mxu0
    %v5534 = vadd.f32 %v5481, %v5533
    %v5535 = vpop.f32.mrb[0].mxu0
    %v5536 = vadd.f32 %v5483, %v5535
    %v5537 = vpop.f32.mrb[0].mxu0
    %v5538 = vadd.f32 %v5485, %v5537
    %5539 = vmatprep.mubr.bf16.mxu0 0
    %5540 = vmatmul.mubr.bf16.gmra.mrb[0].mxu0 %v5442
    %v5541 = vpop.f32.mrb[0].mxu0
    %v5542 = vadd.f32 %v5489, %v5541
    %v5543 = vpop.f32.mrb[0].mxu0
    %v5544 = vadd.f32 %v5491, %v5543
    %v5545 = vpop.f32.mrb[0].mxu0
    %v5546 = vadd.f32 %v5493, %v5545
    %v5547 = vpop.f32.mrb[0].mxu0
    %v5548 = vadd.f32 %v5495, %v5547
    %5549 = vdwg.mxu0
    %5550 = vmatprep.subr.bf16.mxu0 0
    %5551 = vmatpush1.bf16.msra.mxu0 %v5332
    %5552 = vmatprep.subr.bf16.mxu0 0
    %5553 = vmatpush1.bf16.msra.mxu0 %v5335
    %5554 = vmatprep.subr.bf16.mxu0 0
    %5555 = vmatpush1.bf16.msra.mxu0 %v5338
    %5556 = vmatprep.subr.bf16.mxu0 0
    %5557 = vmatpush1.bf16.msra.mxu0 %v5341
    %5558 = vmatprep.subr.bf16.mxu0 0
    %5559 = vmatpush1.bf16.msra.mxu0 %v5344
    %5560 = vmatprep.subr.bf16.mxu0 0
    %5561 = vmatpush1.bf16.msra.mxu0 %v5347
    %5562 = vmatprep.subr.bf16.mxu0 0
    %5563 = vmatpush1.bf16.msra.mxu0 %v5350
    %5564 = vmatprep.subr.bf16.mxu0 0
    %5565 = vmatpush1.bf16.msra.mxu0 %v5353
    %5566 = vmatprep.subr.bf16.mxu0 0
    %5567 = vmatpush1.bf16.msra.mxu0 %v5356
    %5568 = vmatprep.subr.bf16.mxu0 0
    %5569 = vmatpush1.bf16.msra.mxu0 %v5359
    %5570 = vmatprep.subr.bf16.mxu0 0
    %5571 = vmatpush1.bf16.msra.mxu0 %v5362
    %5572 = vmatprep.subr.bf16.mxu0 0
    %5573 = vmatpush1.bf16.msra.mxu0 %v5365
    %5574 = vmatprep.subr.bf16.mxu0 0
    %5575 = vmatpush1.bf16.msra.mxu0 %v5368
    %5576 = vmatprep.subr.bf16.mxu0 0
    %5577 = vmatpush1.bf16.msra.mxu0 %v5371
    %5578 = vmatprep.subr.bf16.mxu0 0
    %5579 = vmatpush1.bf16.msra.mxu0 %v5374
    %5580 = vmatprep.subr.bf16.mxu0 0
    %5581 = vmatpush1.bf16.msra.mxu0 %v5377
    %5582 = vmatprep.mubr.bf16.mxu0 %v5073
    %5583 = vmatmul.mubr.bf16.gmra.mrb[0].mxu0 %v5072
    %v5584 = vpop.f32.mrb[0].mxu0
    %v5585 = vadd.f32 0.0, %v5584
    %v5586 = vpop.f32.mrb[0].mxu0
    %v5587 = vpop.f32.mrb[0].mxu0
    %v5588 = vadd.f32 0.0, %v5587
    %v5589 = vpop.f32.mrb[0].mxu0
    %5590 = vmatprep.mubr.bf16.mxu0 %v5076
    %5591 = vmatmul.mubr.bf16.gmra.mrb[0].mxu0 %v5075
    %v5592 = vpop.f32.mrb[0].mxu0
    %v5593 = vadd.f32 0.0, %v5592
    %v5594 = vpop.f32.mrb[0].mxu0
    %v5595 = vpop.f32.mrb[0].mxu0
    %v5596 = vadd.f32 0.0, %v5595
    %v5597 = vpop.f32.mrb[0].mxu0
    %5598 = vdwg.mxu0
    %5599 = vmatprep.subr.bf16.mxu0 0
    %5600 = vmatpush1.bf16.msra.mxu0 %v5380
    %5601 = vmatprep.subr.bf16.mxu0 0
    %5602 = vmatpush1.bf16.msra.mxu0 %v5383
    %5603 = vmatprep.subr.bf16.mxu0 0
    %5604 = vmatpush1.bf16.msra.mxu0 0
    %5605 = vmatprep.subr.bf16.mxu0 0
    %5606 = vmatpush1.bf16.msra.mxu0 0
    %5607 = vmatprep.subr.bf16.mxu0 0
    %5608 = vmatpush1.bf16.msra.mxu0 0
    %5609 = vmatprep.subr.bf16.mxu0 0
    %5610 = vmatpush1.bf16.msra.mxu0 0
    %5611 = vmatprep.subr.bf16.mxu0 0
    %5612 = vmatpush1.bf16.msra.mxu0 0
    %5613 = vmatprep.subr.bf16.mxu0 0
    %5614 = vmatpush1.bf16.msra.mxu0 0
    %5615 = vmatprep.subr.bf16.mxu0 0
    %5616 = vmatpush1.bf16.msra.mxu0 0
    %5617 = vmatprep.subr.bf16.mxu0 0
    %5618 = vmatpush1.bf16.msra.mxu0 0
    %5619 = vmatprep.subr.bf16.mxu0 0
    %5620 = vmatpush1.bf16.msra.mxu0 0
    %5621 = vmatprep.subr.bf16.mxu0 0
    %5622 = vmatpush1.bf16.msra.mxu0 0
    %5623 = vmatprep.subr.bf16.mxu0 0
    %5624 = vmatpush1.bf16.msra.mxu0 0
    %5625 = vmatprep.subr.bf16.mxu0 0
    %5626 = vmatpush1.bf16.msra.mxu0 0
    %5627 = vmatprep.subr.bf16.mxu0 0
    %5628 = vmatpush1.bf16.msra.mxu0 0
    %5629 = vmatprep.subr.bf16.mxu0 0
    %5630 = vmatpush1.bf16.msra.mxu0 0
    %5631 = vmatprep.mubr.bf16.mxu0 0
    %5632 = vmatmul.mubr.bf16.gmra.mrb[0].mxu0 %v5439
    %v5633 = vpop.f32.mrb[0].mxu0
    %v5634 = vadd.f32 %v5585, %v5633
    %v5635 = vpop.f32.mrb[0].mxu0
    %v5636 = vpop.f32.mrb[0].mxu0
    %v5637 = vadd.f32 %v5588, %v5636
    %v5638 = vpop.f32.mrb[0].mxu0
    %5639 = vmatprep.mubr.bf16.mxu0 0
    %5640 = vmatmul.mubr.bf16.gmra.mrb[0].mxu0 %v5442
    %v5641 = vpop.f32.mrb[0].mxu0
    %v5642 = vadd.f32 %v5593, %v5641
    %v5643 = vpop.f32.mrb[0].mxu0
    %v5644 = vpop.f32.mrb[0].mxu0
    %v5645 = vadd.f32 %v5596, %v5644
    %v5646 = vpop.f32.mrb[0].mxu0
    %5647 = vdwg.mxu0
    %v5648 = vadd.f32 %v5532, %v5536
    %v5649 = vadd.f32 %v5648, %v5542
    %v5650 = vadd.f32 %v5649, %v5546
    %v5651 = vrot.slane %v5650, 4
    %v5652 = vadd.f32 %v5650, %v5651
    %v5653 = vrot.slane %v5652, 2
    %v5654 = vadd.f32 %v5652, %v5653
    %v5655 = vrot.slane %v5654, 1
    %v5656 = vadd.f32 %v5654, %v5655
    %v5657 = vadd.f32 %v5534, %v5538
    %v5658 = vadd.f32 %v5657, %v5544
    %v5659 = vadd.f32 %v5658, %v5548
    %v5660 = vrot.slane %v5659, 4
    %v5661 = vadd.f32 %v5659, %v5660
    %v5662 = vrot.slane %v5661, 2
    %v5663 = vadd.f32 %v5661, %v5662
    %v5664 = vrot.slane %v5663, 1
    %v5665 = vadd.f32 %v5663, %v5664
    %v5666 = vsel %vm425, %v5634, 0.0
    %v5667 = vsel %vm425, %v5637, 0.0
    %v5668 = vadd.f32 %v5666, %v5667
    %v5669 = vsel %vm425, %v5642, 0.0
    %v5670 = vadd.f32 %v5668, %v5669
    %v5671 = vsel %vm425, %v5645, 0.0
    %v5672 = vadd.f32 %v5670, %v5671
    %v5673 = vrot.slane %v5672, 4
    %v5674 = vadd.f32 %v5672, %v5673
    %v5675 = vrot.slane %v5674, 2
    %v5676 = vadd.f32 %v5674, %v5675
    %v5677 = vrot.slane %v5676, 1
    %v5678 = vadd.f32 %v5676, %v5677
    %v5679 = vmul.f32 %v5532, %v5532
    %v5680 = vmul.f32 %v5534, %v5534
    %v5681 = vmul.f32 %v5634, %v5634
    %v5682 = vmul.f32 %v5536, %v5536
    %v5683 = vmul.f32 %v5538, %v5538
    %v5684 = vmul.f32 %v5637, %v5637
    %v5685 = vmul.f32 %v5542, %v5542
    %v5686 = vmul.f32 %v5544, %v5544
    %v5687 = vmul.f32 %v5642, %v5642
    %v5688 = vmul.f32 %v5546, %v5546
    %v5689 = vmul.f32 %v5548, %v5548
    %v5690 = vmul.f32 %v5645, %v5645
    %v5691 = vadd.f32 %v5679, %v5682
    %v5692 = vadd.f32 %v5691, %v5685
    %v5693 = vadd.f32 %v5692, %v5688
    %v5694 = vrot.slane %v5693, 4
    %v5695 = vadd.f32 %v5693, %v5694
    %v5696 = vrot.slane %v5695, 2
    %v5697 = vadd.f32 %v5695, %v5696
    %v5698 = vrot.slane %v5697, 1
    %v5699 = vadd.f32 %v5697, %v5698
    %v5700 = vadd.f32 %v5680, %v5683
    %v5701 = vadd.f32 %v5700, %v5686
    %v5702 = vadd.f32 %v5701, %v5689
    %v5703 = vrot.slane %v5702, 4
    %v5704 = vadd.f32 %v5702, %v5703
    %v5705 = vrot.slane %v5704, 2
    %v5706 = vadd.f32 %v5704, %v5705
    %v5707 = vrot.slane %v5706, 1
    %v5708 = vadd.f32 %v5706, %v5707
    %v5709 = vsel %vm425, %v5681, 0.0
    %v5710 = vsel %vm425, %v5684, 0.0
    %v5711 = vadd.f32 %v5709, %v5710
    %v5712 = vsel %vm425, %v5687, 0.0
    %v5713 = vadd.f32 %v5711, %v5712
    %v5714 = vsel %vm425, %v5690, 0.0
    %v5715 = vadd.f32 %v5713, %v5714
    %v5716 = vrot.slane %v5715, 4
    %v5717 = vadd.f32 %v5715, %v5716
    %v5718 = vrot.slane %v5717, 2
    %v5719 = vadd.f32 %v5717, %v5718
    %v5720 = vrot.slane %v5719, 1
    %v5721 = vadd.f32 %v5719, %v5720
    %v5723 = vsel %vm425, %v5678, 0
    %5725 = vmatprep.subr.mxu0 0.0
    %5726 = vmatpush1.msra.mxu0 %v482
    %5727 = vmatprep.subr.mxu0 0.0
    %5728 = vmatpush1.msra.mxu0 %v483
    %5729 = vmatprep.subr.mxu0 0.0
    %5730 = vmatpush1.msra.mxu0 %v484
    %5731 = vmatprep.subr.mxu0 0.0
    %5732 = vmatpush1.msra.mxu0 %v485
    %5733 = vmatprep.subr.mxu0 0.0
    %5734 = vmatpush1.msra.mxu0 %v486
    %5735 = vmatprep.subr.mxu0 0.0
    %5736 = vmatpush1.msra.mxu0 %v487
    %5737 = vmatprep.subr.mxu0 0.0
    %5738 = vmatpush1.msra.mxu0 %v488
    %5739 = vmatprep.subr.mxu0 0.0
    %5740 = vmatpush1.msra.mxu0 %v489
    %5741 = vmatprep.subr.mxu0 0.0
    %5742 = vmatpush1.msra.mxu0 %v490
    %5743 = vmatprep.subr.mxu0 0.0
    %5744 = vmatpush1.msra.mxu0 %v491
    %5745 = vmatprep.subr.mxu0 0.0
    %5746 = vmatpush1.msra.mxu0 %v492
    %5747 = vmatprep.subr.mxu0 0.0
    %5748 = vmatpush1.msra.mxu0 %v493
    %5749 = vmatprep.subr.mxu0 0.0
    %5750 = vmatpush1.msra.mxu0 %v494
    %5751 = vmatprep.subr.mxu0 0.0
    %5752 = vmatpush1.msra.mxu0 %v495
    %5753 = vmatprep.subr.mxu0 0.0
    %5754 = vmatpush1.msra.mxu0 %v496
    %5755 = vmatprep.subr.mxu0 0.0
    %5756 = vmatpush1.msra.mxu0 %v497
    %5757 = vmatprep.subr.mxu0 0.0
    %5758 = vmatpush1.msra.mxu0 %v498
    %5759 = vmatprep.subr.mxu0 0.0
    %5760 = vmatpush1.msra.mxu0 %v499
    %5761 = vmatprep.subr.mxu0 0.0
    %5762 = vmatpush1.msra.mxu0 %v500
    %5763 = vmatprep.subr.mxu0 0.0
    %5764 = vmatpush1.msra.mxu0 %v501
    %5765 = vmatprep.subr.mxu0 0.0
    %5766 = vmatpush1.msra.mxu0 %v502
    %5767 = vmatprep.subr.mxu0 0.0
    %5768 = vmatpush1.msra.mxu0 %v503
    %5769 = vmatprep.subr.mxu0 0.0
    %5770 = vmatpush1.msra.mxu0 %v504
    %5771 = vmatprep.subr.mxu0 0.0
    %5772 = vmatpush1.msra.mxu0 %v505
    %5773 = vmatprep.subr.mxu0 0.0
    %5774 = vmatpush1.msra.mxu0 %v506
    %5775 = vmatprep.subr.mxu0 0.0
    %5776 = vmatpush1.msra.mxu0 %v507
    %5777 = vmatprep.subr.mxu0 0.0
    %5778 = vmatpush1.msra.mxu0 %v508
    %5779 = vmatprep.subr.mxu0 0.0
    %5780 = vmatpush1.msra.mxu0 %v509
    %5781 = vmatprep.subr.mxu0 0.0
    %5782 = vmatpush1.msra.mxu0 %v510
    %5783 = vmatprep.subr.mxu0 0.0
    %5784 = vmatpush1.msra.mxu0 %v511
    %5785 = vmatprep.subr.mxu0 0.0
    %5786 = vmatpush1.msra.mxu0 %v512
    %5787 = vmatprep.subr.mxu0 0.0
    %5788 = vmatpush1.msra.mxu0 %v513
    %5789 = vmatprep.mubr.f32.mxu0 %v5665
    %5790 = vmatmul.mubr.f32.gmra.mrb[0].mxu0 %v5656
    %v5791 = vpop.f32.mrb[0].mxu0
    %v5792 = vadd.f32 0.0, %v5791
    %v5793 = vpop.f32.mrb[0].mxu0
    %5794 = vdwg.mxu0
    %5795 = vmatprep.subr.mxu0 0.0
    %5796 = vmatpush1.msra.mxu0 %v514
    %5797 = vmatprep.subr.mxu0 0.0
    %5798 = vmatpush1.msra.mxu0 %v515
    %5799 = vmatprep.subr.mxu0 0.0
    %5800 = vmatpush1.msra.mxu0 %v516
    %5801 = vmatprep.subr.mxu0 0.0
    %5802 = vmatpush1.msra.mxu0 %v517
    %5803 = vmatprep.subr.mxu0 0.0
    %5804 = vmatpush1.msra.mxu0 0.0
    %5805 = vmatprep.subr.mxu0 0.0
    %5806 = vmatpush1.msra.mxu0 0.0
    %5807 = vmatprep.subr.mxu0 0.0
    %5808 = vmatpush1.msra.mxu0 0.0
    %5809 = vmatprep.subr.mxu0 0.0
    %5810 = vmatpush1.msra.mxu0 0.0
    %5811 = vmatprep.subr.mxu0 0.0
    %5812 = vmatpush1.msra.mxu0 0.0
    %5813 = vmatprep.subr.mxu0 0.0
    %5814 = vmatpush1.msra.mxu0 0.0
    %5815 = vmatprep.subr.mxu0 0.0
    %5816 = vmatpush1.msra.mxu0 0.0
    %5817 = vmatprep.subr.mxu0 0.0
    %5818 = vmatpush1.msra.mxu0 0.0
    %5819 = vmatprep.subr.mxu0 0.0
    %5820 = vmatpush1.msra.mxu0 0.0
    %5821 = vmatprep.subr.mxu0 0.0
    %5822 = vmatpush1.msra.mxu0 0.0
    %5823 = vmatprep.subr.mxu0 0.0
    %5824 = vmatpush1.msra.mxu0 0.0
    %5825 = vmatprep.subr.mxu0 0.0
    %5826 = vmatpush1.msra.mxu0 0.0
    %5827 = vmatprep.subr.mxu0 0.0
    %5828 = vmatpush1.msra.mxu0 0.0
    %5829 = vmatprep.subr.mxu0 0.0
    %5830 = vmatpush1.msra.mxu0 0.0
    %5831 = vmatprep.subr.mxu0 0.0
    %5832 = vmatpush1.msra.mxu0 0.0
    %5833 = vmatprep.subr.mxu0 0.0
    %5834 = vmatpush1.msra.mxu0 0.0
    %5835 = vmatprep.subr.mxu0 0.0
    %5836 = vmatpush1.msra.mxu0 0.0
    %5837 = vmatprep.subr.mxu0 0.0
    %5838 = vmatpush1.msra.mxu0 0.0
    %5839 = vmatprep.subr.mxu0 0.0
    %5840 = vmatpush1.msra.mxu0 0.0
    %5841 = vmatprep.subr.mxu0 0.0
    %5842 = vmatpush1.msra.mxu0 0.0
    %5843 = vmatprep.subr.mxu0 0.0
    %5844 = vmatpush1.msra.mxu0 0.0
    %5845 = vmatprep.subr.mxu0 0.0
    %5846 = vmatpush1.msra.mxu0 0.0
    %5847 = vmatprep.subr.mxu0 0.0
    %5848 = vmatpush1.msra.mxu0 0.0
    %5849 = vmatprep.subr.mxu0 0.0
    %5850 = vmatpush1.msra.mxu0 0.0
    %5851 = vmatprep.subr.mxu0 0.0
    %5852 = vmatpush1.msra.mxu0 0.0
    %5853 = vmatprep.subr.mxu0 0.0
    %5854 = vmatpush1.msra.mxu0 0.0
    %5855 = vmatprep.subr.mxu0 0.0
    %5856 = vmatpush1.msra.mxu0 0.0
    %5857 = vmatprep.subr.mxu0 0.0
    %5858 = vmatpush1.msra.mxu0 0.0
    %5859 = vmatprep.mubr.f32.mxu0 0.0
    %5860 = vmatmul.mubr.f32.gmra.mrb[0].mxu0 %v5723
    %v5861 = vpop.f32.mrb[0].mxu0
    %v5862 = vadd.f32 %v5792, %v5861
    %v5863 = vpop.f32.mrb[0].mxu0
    %5864 = vdwg.mxu0
    %v5865 = vmul.f32 %v5862, 0.0034722222
    %v5867 = vsel %vm425, %v5721, 0
    %5869 = vmatprep.subr.mxu0 0.0
    %5870 = vmatpush1.msra.mxu0 %v482
    %5871 = vmatprep.subr.mxu0 0.0
    %5872 = vmatpush1.msra.mxu0 %v483
    %5873 = vmatprep.subr.mxu0 0.0
    %5874 = vmatpush1.msra.mxu0 %v484
    %5875 = vmatprep.subr.mxu0 0.0
    %5876 = vmatpush1.msra.mxu0 %v485
    %5877 = vmatprep.subr.mxu0 0.0
    %5878 = vmatpush1.msra.mxu0 %v486
    %5879 = vmatprep.subr.mxu0 0.0
    %5880 = vmatpush1.msra.mxu0 %v487
    %5881 = vmatprep.subr.mxu0 0.0
    %5882 = vmatpush1.msra.mxu0 %v488
    %5883 = vmatprep.subr.mxu0 0.0
    %5884 = vmatpush1.msra.mxu0 %v489
    %5885 = vmatprep.subr.mxu0 0.0
    %5886 = vmatpush1.msra.mxu0 %v490
    %5887 = vmatprep.subr.mxu0 0.0
    %5888 = vmatpush1.msra.mxu0 %v491
    %5889 = vmatprep.subr.mxu0 0.0
    %5890 = vmatpush1.msra.mxu0 %v492
    %5891 = vmatprep.subr.mxu0 0.0
    %5892 = vmatpush1.msra.mxu0 %v493
    %5893 = vmatprep.subr.mxu0 0.0
    %5894 = vmatpush1.msra.mxu0 %v494
    %5895 = vmatprep.subr.mxu0 0.0
    %5896 = vmatpush1.msra.mxu0 %v495
    %5897 = vmatprep.subr.mxu0 0.0
    %5898 = vmatpush1.msra.mxu0 %v496
    %5899 = vmatprep.subr.mxu0 0.0
    %5900 = vmatpush1.msra.mxu0 %v497
    %5901 = vmatprep.subr.mxu0 0.0
    %5902 = vmatpush1.msra.mxu0 %v498
    %5903 = vmatprep.subr.mxu0 0.0
    %5904 = vmatpush1.msra.mxu0 %v499
    %5905 = vmatprep.subr.mxu0 0.0
    %5906 = vmatpush1.msra.mxu0 %v500
    %5907 = vmatprep.subr.mxu0 0.0
    %5908 = vmatpush1.msra.mxu0 %v501
    %5909 = vmatprep.subr.mxu0 0.0
    %5910 = vmatpush1.msra.mxu0 %v502
    %5911 = vmatprep.subr.mxu0 0.0
    %5912 = vmatpush1.msra.mxu0 %v503
    %5913 = vmatprep.subr.mxu0 0.0
    %5914 = vmatpush1.msra.mxu0 %v504
    %5915 = vmatprep.subr.mxu0 0.0
    %5916 = vmatpush1.msra.mxu0 %v505
    %5917 = vmatprep.subr.mxu0 0.0
    %5918 = vmatpush1.msra.mxu0 %v506
    %5919 = vmatprep.subr.mxu0 0.0
    %5920 = vmatpush1.msra.mxu0 %v507
    %5921 = vmatprep.subr.mxu0 0.0
    %5922 = vmatpush1.msra.mxu0 %v508
    %5923 = vmatprep.subr.mxu0 0.0
    %5924 = vmatpush1.msra.mxu0 %v509
    %5925 = vmatprep.subr.mxu0 0.0
    %5926 = vmatpush1.msra.mxu0 %v510
    %5927 = vmatprep.subr.mxu0 0.0
    %5928 = vmatpush1.msra.mxu0 %v511
    %5929 = vmatprep.subr.mxu0 0.0
    %5930 = vmatpush1.msra.mxu0 %v512
    %5931 = vmatprep.subr.mxu0 0.0
    %5932 = vmatpush1.msra.mxu0 %v513
    %5933 = vmatprep.mubr.f32.mxu0 %v5708
    %5934 = vmatmul.mubr.f32.gmra.mrb[0].mxu0 %v5699
    %v5935 = vpop.f32.mrb[0].mxu0
    %v5936 = vadd.f32 0.0, %v5935
    %v5937 = vpop.f32.mrb[0].mxu0
    %5938 = vdwg.mxu0
    %5939 = vmatprep.subr.mxu0 0.0
    %5940 = vmatpush1.msra.mxu0 %v514
    %5941 = vmatprep.subr.mxu0 0.0
    %5942 = vmatpush1.msra.mxu0 %v515
    %5943 = vmatprep.subr.mxu0 0.0
    %5944 = vmatpush1.msra.mxu0 %v516
    %5945 = vmatprep.subr.mxu0 0.0
    %5946 = vmatpush1.msra.mxu0 %v517
    %5947 = vmatprep.subr.mxu0 0.0
    %5948 = vmatpush1.msra.mxu0 0.0
    %5949 = vmatprep.subr.mxu0 0.0
    %5950 = vmatpush1.msra.mxu0 0.0
    %5951 = vmatprep.subr.mxu0 0.0
    %5952 = vmatpush1.msra.mxu0 0.0
    %5953 = vmatprep.subr.mxu0 0.0
    %5954 = vmatpush1.msra.mxu0 0.0
    %5955 = vmatprep.subr.mxu0 0.0
    %5956 = vmatpush1.msra.mxu0 0.0
    %5957 = vmatprep.subr.mxu0 0.0
    %5958 = vmatpush1.msra.mxu0 0.0
    %5959 = vmatprep.subr.mxu0 0.0
    %5960 = vmatpush1.msra.mxu0 0.0
    %5961 = vmatprep.subr.mxu0 0.0
    %5962 = vmatpush1.msra.mxu0 0.0
    %5963 = vmatprep.subr.mxu0 0.0
    %5964 = vmatpush1.msra.mxu0 0.0
    %5965 = vmatprep.subr.mxu0 0.0
    %5966 = vmatpush1.msra.mxu0 0.0
    %5967 = vmatprep.subr.mxu0 0.0
    %5968 = vmatpush1.msra.mxu0 0.0
    %5969 = vmatprep.subr.mxu0 0.0
    %5970 = vmatpush1.msra.mxu0 0.0
    %5971 = vmatprep.subr.mxu0 0.0
    %5972 = vmatpush1.msra.mxu0 0.0
    %5973 = vmatprep.subr.mxu0 0.0
    %5974 = vmatpush1.msra.mxu0 0.0
    %5975 = vmatprep.subr.mxu0 0.0
    %5976 = vmatpush1.msra.mxu0 0.0
    %5977 = vmatprep.subr.mxu0 0.0
    %5978 = vmatpush1.msra.mxu0 0.0
    %5979 = vmatprep.subr.mxu0 0.0
    %5980 = vmatpush1.msra.mxu0 0.0
    %5981 = vmatprep.subr.mxu0 0.0
    %5982 = vmatpush1.msra.mxu0 0.0
    %5983 = vmatprep.subr.mxu0 0.0
    %5984 = vmatpush1.msra.mxu0 0.0
    %5985 = vmatprep.subr.mxu0 0.0
    %5986 = vmatpush1.msra.mxu0 0.0
    %5987 = vmatprep.subr.mxu0 0.0
    %5988 = vmatpush1.msra.mxu0 0.0
    %5989 = vmatprep.subr.mxu0 0.0
    %5990 = vmatpush1.msra.mxu0 0.0
    %5991 = vmatprep.subr.mxu0 0.0
    %5992 = vmatpush1.msra.mxu0 0.0
    %5993 = vmatprep.subr.mxu0 0.0
    %5994 = vmatpush1.msra.mxu0 0.0
    %5995 = vmatprep.subr.mxu0 0.0
    %5996 = vmatpush1.msra.mxu0 0.0
    %5997 = vmatprep.subr.mxu0 0.0
    %5998 = vmatpush1.msra.mxu0 0.0
    %5999 = vmatprep.subr.mxu0 0.0
    %6000 = vmatpush1.msra.mxu0 0.0
    %6001 = vmatprep.subr.mxu0 0.0
    %6002 = vmatpush1.msra.mxu0 0.0
    %6003 = vmatprep.mubr.f32.mxu0 0.0
    %6004 = vmatmul.mubr.f32.gmra.mrb[0].mxu0 %v5867
    %v6005 = vpop.f32.mrb[0].mxu0
    %v6006 = vadd.f32 %v5936, %v6005
    %v6007 = vpop.f32.mrb[0].mxu0
    %6008 = vdwg.mxu0
    %v6009 = vmul.f32 %v6006, 0.0034722222
    %v6010 = vmul.f32 %v5865, %v5865
    %v6011 = vsub.f32 %v6009, %v6010
    %v6012 = vld [vmem:[%s29] sm:$0x1]
    %v6013 = vadd.f32 %v6011, 1e-05
    %v6014 = vrsqrt.pop %v6013
    %v6015 = vmul.f32 %v6012, %v6014
    %v6016 = vld [vmem:[%s31] sm:$0x1]
    %v6017 = vmul.f32 %v5865, %v6015
    %v6018 = vsub.f32 %v6016, %v6017
    %v6020 = vsel %vm425, %v6015, 0
    %6022 = vmatprep.subr.mxu0 %v816
    %6023 = vmatpush1.msra.mxu0 %v815
    %6024 = vmatprep.subr.mxu0 %v819
    %6025 = vmatpush1.msra.mxu0 %v818
    %6026 = vmatprep.subr.mxu0 %v822
    %6027 = vmatpush1.msra.mxu0 %v821
    %6028 = vmatprep.subr.mxu0 %v825
    %6029 = vmatpush1.msra.mxu0 %v824
    %6030 = vmatprep.subr.mxu0 0.0
    %6031 = vmatpush1.msra.mxu0 0.0
    %6032 = vmatprep.subr.mxu0 0.0
    %6033 = vmatpush1.msra.mxu0 0.0
    %6034 = vmatprep.subr.mxu0 0.0
    %6035 = vmatpush1.msra.mxu0 0.0
    %6036 = vmatprep.subr.mxu0 0.0
    %6037 = vmatpush1.msra.mxu0 0.0
    %6038 = vmatprep.subr.mxu0 0.0
    %6039 = vmatpush1.msra.mxu0 0.0
    %6040 = vmatprep.subr.mxu0 0.0
    %6041 = vmatpush1.msra.mxu0 0.0
    %6042 = vmatprep.subr.mxu0 0.0
    %6043 = vmatpush1.msra.mxu0 0.0
    %6044 = vmatprep.subr.mxu0 0.0
    %6045 = vmatpush1.msra.mxu0 0.0
    %6046 = vmatprep.subr.mxu0 0.0
    %6047 = vmatpush1.msra.mxu0 0.0
    %6048 = vmatprep.subr.mxu0 0.0
    %6049 = vmatpush1.msra.mxu0 0.0
    %6050 = vmatprep.subr.mxu0 0.0
    %6051 = vmatpush1.msra.mxu0 0.0
    %6052 = vmatprep.subr.mxu0 0.0
    %6053 = vmatpush1.msra.mxu0 0.0
    %6054 = vmatprep.subr.mxu0 0.0
    %6055 = vmatpush1.msra.mxu0 0.0
    %6056 = vmatprep.subr.mxu0 0.0
    %6057 = vmatpush1.msra.mxu0 0.0
    %6058 = vmatprep.subr.mxu0 0.0
    %6059 = vmatpush1.msra.mxu0 0.0
    %6060 = vmatprep.subr.mxu0 0.0
    %6061 = vmatpush1.msra.mxu0 0.0
    %6062 = vmatprep.subr.mxu0 0.0
    %6063 = vmatpush1.msra.mxu0 0.0
    %6064 = vmatprep.subr.mxu0 0.0
    %6065 = vmatpush1.msra.mxu0 0.0
    %6066 = vmatprep.subr.mxu0 0.0
    %6067 = vmatpush1.msra.mxu0 0.0
    %6068 = vmatprep.subr.mxu0 0.0
    %6069 = vmatpush1.msra.mxu0 0.0
    %6070 = vmatprep.subr.mxu0 0.0
    %6071 = vmatpush1.msra.mxu0 0.0
    %6072 = vmatprep.subr.mxu0 0.0
    %6073 = vmatpush1.msra.mxu0 0.0
    %6074 = vmatprep.subr.mxu0 0.0
    %6075 = vmatpush1.msra.mxu0 0.0
    %6076 = vmatprep.subr.mxu0 0.0
    %6077 = vmatpush1.msra.mxu0 0.0
    %6078 = vmatprep.subr.mxu0 0.0
    %6079 = vmatpush1.msra.mxu0 0.0
    %6080 = vmatprep.subr.mxu0 0.0
    %6081 = vmatpush1.msra.mxu0 0.0
    %6082 = vmatprep.subr.mxu0 0.0
    %6083 = vmatpush1.msra.mxu0 0.0
    %6084 = vmatprep.subr.mxu0 0.0
    %6085 = vmatpush1.msra.mxu0 0.0
    %6086 = vmatprep.mubr.f32.mxu0 0.0
    %6087 = vmatmul.mubr.f32.gmra.mrb[0].mxu0 %v6020
    %v6088 = vpop.f32.mrb[0].mxu0
    %v6089 = vadd.f32 0.0, %v6088
    %v6090 = vpop.f32.mrb[0].mxu0
    %v6091 = vadd.f32 0.0, %v6090
    %6092 = vdwg.mxu0
    %6093 = vmatprep.subr.mxu0 0.0
    %6094 = vmatpush1.msra.mxu0 %v817
    %6095 = vmatprep.subr.mxu0 0.0
    %6096 = vmatpush1.msra.mxu0 %v820
    %6097 = vmatprep.subr.mxu0 0.0
    %6098 = vmatpush1.msra.mxu0 %v823
    %6099 = vmatprep.subr.mxu0 0.0
    %6100 = vmatpush1.msra.mxu0 %v826
    %6101 = vmatprep.subr.mxu0 0.0
    %6102 = vmatpush1.msra.mxu0 0.0
    %6103 = vmatprep.subr.mxu0 0.0
    %6104 = vmatpush1.msra.mxu0 0.0
    %6105 = vmatprep.subr.mxu0 0.0
    %6106 = vmatpush1.msra.mxu0 0.0
    %6107 = vmatprep.subr.mxu0 0.0
    %6108 = vmatpush1.msra.mxu0 0.0
    %6109 = vmatprep.subr.mxu0 0.0
    %6110 = vmatpush1.msra.mxu0 0.0
    %6111 = vmatprep.subr.mxu0 0.0
    %6112 = vmatpush1.msra.mxu0 0.0
    %6113 = vmatprep.subr.mxu0 0.0
    %6114 = vmatpush1.msra.mxu0 0.0
    %6115 = vmatprep.subr.mxu0 0.0
    %6116 = vmatpush1.msra.mxu0 0.0
    %6117 = vmatprep.subr.mxu0 0.0
    %6118 = vmatpush1.msra.mxu0 0.0
    %6119 = vmatprep.subr.mxu0 0.0
    %6120 = vmatpush1.msra.mxu0 0.0
    %6121 = vmatprep.subr.mxu0 0.0
    %6122 = vmatpush1.msra.mxu0 0.0
    %6123 = vmatprep.subr.mxu0 0.0
    %6124 = vmatpush1.msra.mxu0 0.0
    %6125 = vmatprep.subr.mxu0 0.0
    %6126 = vmatpush1.msra.mxu0 0.0
    %6127 = vmatprep.subr.mxu0 0.0
    %6128 = vmatpush1.msra.mxu0 0.0
    %6129 = vmatprep.subr.mxu0 0.0
    %6130 = vmatpush1.msra.mxu0 0.0
    %6131 = vmatprep.subr.mxu0 0.0
    %6132 = vmatpush1.msra.mxu0 0.0
    %6133 = vmatprep.subr.mxu0 0.0
    %6134 = vmatpush1.msra.mxu0 0.0
    %6135 = vmatprep.subr.mxu0 0.0
    %6136 = vmatpush1.msra.mxu0 0.0
    %6137 = vmatprep.subr.mxu0 0.0
    %6138 = vmatpush1.msra.mxu0 0.0
    %6139 = vmatprep.subr.mxu0 0.0
    %6140 = vmatpush1.msra.mxu0 0.0
    %6141 = vmatprep.subr.mxu0 0.0
    %6142 = vmatpush1.msra.mxu0 0.0
    %6143 = vmatprep.subr.mxu0 0.0
    %6144 = vmatpush1.msra.mxu0 0.0
    %6145 = vmatprep.subr.mxu0 0.0
    %6146 = vmatpush1.msra.mxu0 0.0
    %6147 = vmatprep.subr.mxu0 0.0
    %6148 = vmatpush1.msra.mxu0 0.0
    %6149 = vmatprep.subr.mxu0 0.0
    %6150 = vmatpush1.msra.mxu0 0.0
    %6151 = vmatprep.subr.mxu0 0.0
    %6152 = vmatpush1.msra.mxu0 0.0
    %6153 = vmatprep.subr.mxu0 0.0
    %6154 = vmatpush1.msra.mxu0 0.0
    %6155 = vmatprep.subr.mxu0 0.0
    %6156 = vmatpush1.msra.mxu0 0.0
    %6157 = vmatprep.mubr.f32.mxu0 0.0
    %6158 = vmatmul.mubr.f32.gmra.mrb[0].mxu0 %v6020
    %v6159 = vpop.f32.mrb[0].mxu0
    %v6160 = vadd.f32 0.0, %v6159
    %v6161 = vpop.f32.mrb[0].mxu0
    %6162 = vdwg.mxu0
    %v6164 = vsel %vm425, %v6018, 0
    %6166 = vmatprep.subr.mxu0 %v816
    %6167 = vmatpush1.msra.mxu0 %v815
    %6168 = vmatprep.subr.mxu0 %v819
    %6169 = vmatpush1.msra.mxu0 %v818
    %6170 = vmatprep.subr.mxu0 %v822
    %6171 = vmatpush1.msra.mxu0 %v821
    %6172 = vmatprep.subr.mxu0 %v825
    %6173 = vmatpush1.msra.mxu0 %v824
    %6174 = vmatprep.subr.mxu0 0.0
    %6175 = vmatpush1.msra.mxu0 0.0
    %6176 = vmatprep.subr.mxu0 0.0
    %6177 = vmatpush1.msra.mxu0 0.0
    %6178 = vmatprep.subr.mxu0 0.0
    %6179 = vmatpush1.msra.mxu0 0.0
    %6180 = vmatprep.subr.mxu0 0.0
    %6181 = vmatpush1.msra.mxu0 0.0
    %6182 = vmatprep.subr.mxu0 0.0
    %6183 = vmatpush1.msra.mxu0 0.0
    %6184 = vmatprep.subr.mxu0 0.0
    %6185 = vmatpush1.msra.mxu0 0.0
    %6186 = vmatprep.subr.mxu0 0.0
    %6187 = vmatpush1.msra.mxu0 0.0
    %6188 = vmatprep.subr.mxu0 0.0
    %6189 = vmatpush1.msra.mxu0 0.0
    %6190 = vmatprep.subr.mxu0 0.0
    %6191 = vmatpush1.msra.mxu0 0.0
    %6192 = vmatprep.subr.mxu0 0.0
    %6193 = vmatpush1.msra.mxu0 0.0
    %6194 = vmatprep.subr.mxu0 0.0
    %6195 = vmatpush1.msra.mxu0 0.0
    %6196 = vmatprep.subr.mxu0 0.0
    %6197 = vmatpush1.msra.mxu0 0.0
    %6198 = vmatprep.subr.mxu0 0.0
    %6199 = vmatpush1.msra.mxu0 0.0
    %6200 = vmatprep.subr.mxu0 0.0
    %6201 = vmatpush1.msra.mxu0 0.0
    %6202 = vmatprep.subr.mxu0 0.0
    %6203 = vmatpush1.msra.mxu0 0.0
    %6204 = vmatprep.subr.mxu0 0.0
    %6205 = vmatpush1.msra.mxu0 0.0
    %6206 = vmatprep.subr.mxu0 0.0
    %6207 = vmatpush1.msra.mxu0 0.0
    %6208 = vmatprep.subr.mxu0 0.0
    %6209 = vmatpush1.msra.mxu0 0.0
    %6210 = vmatprep.subr.mxu0 0.0
    %6211 = vmatpush1.msra.mxu0 0.0
    %6212 = vmatprep.subr.mxu0 0.0
    %6213 = vmatpush1.msra.mxu0 0.0
    %6214 = vmatprep.subr.mxu0 0.0
    %6215 = vmatpush1.msra.mxu0 0.0
    %6216 = vmatprep.subr.mxu0 0.0
    %6217 = vmatpush1.msra.mxu0 0.0
    %6218 = vmatprep.subr.mxu0 0.0
    %6219 = vmatpush1.msra.mxu0 0.0
    %6220 = vmatprep.subr.mxu0 0.0
    %6221 = vmatpush1.msra.mxu0 0.0
    %6222 = vmatprep.subr.mxu0 0.0
    %6223 = vmatpush1.msra.mxu0 0.0
    %6224 = vmatprep.subr.mxu0 0.0
    %6225 = vmatpush1.msra.mxu0 0.0
    %6226 = vmatprep.subr.mxu0 0.0
    %6227 = vmatpush1.msra.mxu0 0.0
    %6228 = vmatprep.subr.mxu0 0.0
    %6229 = vmatpush1.msra.mxu0 0.0
    %6230 = vmatprep.mubr.f32.mxu0 0.0
    %6231 = vmatmul.mubr.f32.gmra.mrb[0].mxu0 %v6164
    %v6232 = vpop.f32.mrb[0].mxu0
    %v6233 = vadd.f32 0.0, %v6232
    %v6234 = vpop.f32.mrb[0].mxu0
    %v6235 = vadd.f32 0.0, %v6234
    %6236 = vdwg.mxu0
    %6237 = vmatprep.subr.mxu0 0.0
    %6238 = vmatpush1.msra.mxu0 %v817
    %6239 = vmatprep.subr.mxu0 0.0
    %6240 = vmatpush1.msra.mxu0 %v820
    %6241 = vmatprep.subr.mxu0 0.0
    %6242 = vmatpush1.msra.mxu0 %v823
    %6243 = vmatprep.subr.mxu0 0.0
    %6244 = vmatpush1.msra.mxu0 %v826
    %6245 = vmatprep.subr.mxu0 0.0
    %6246 = vmatpush1.msra.mxu0 0.0
    %6247 = vmatprep.subr.mxu0 0.0
    %6248 = vmatpush1.msra.mxu0 0.0
    %6249 = vmatprep.subr.mxu0 0.0
    %6250 = vmatpush1.msra.mxu0 0.0
    %6251 = vmatprep.subr.mxu0 0.0
    %6252 = vmatpush1.msra.mxu0 0.0
    %6253 = vmatprep.subr.mxu0 0.0
    %6254 = vmatpush1.msra.mxu0 0.0
    %6255 = vmatprep.subr.mxu0 0.0
    %6256 = vmatpush1.msra.mxu0 0.0
    %6257 = vmatprep.subr.mxu0 0.0
    %6258 = vmatpush1.msra.mxu0 0.0
    %6259 = vmatprep.subr.mxu0 0.0
    %6260 = vmatpush1.msra.mxu0 0.0
    %6261 = vmatprep.subr.mxu0 0.0
    %6262 = vmatpush1.msra.mxu0 0.0
    %6263 = vmatprep.subr.mxu0 0.0
    %6264 = vmatpush1.msra.mxu0 0.0
    %6265 = vmatprep.subr.mxu0 0.0
    %6266 = vmatpush1.msra.mxu0 0.0
    %6267 = vmatprep.subr.mxu0 0.0
    %6268 = vmatpush1.msra.mxu0 0.0
    %6269 = vmatprep.subr.mxu0 0.0
    %6270 = vmatpush1.msra.mxu0 0.0
    %6271 = vmatprep.subr.mxu0 0.0
    %6272 = vmatpush1.msra.mxu0 0.0
    %6273 = vmatprep.subr.mxu0 0.0
    %6274 = vmatpush1.msra.mxu0 0.0
    %6275 = vmatprep.subr.mxu0 0.0
    %6276 = vmatpush1.msra.mxu0 0.0
    %6277 = vmatprep.subr.mxu0 0.0
    %6278 = vmatpush1.msra.mxu0 0.0
    %6279 = vmatprep.subr.mxu0 0.0
    %6280 = vmatpush1.msra.mxu0 0.0
    %6281 = vmatprep.subr.mxu0 0.0
    %6282 = vmatpush1.msra.mxu0 0.0
    %6283 = vmatprep.subr.mxu0 0.0
    %6284 = vmatpush1.msra.mxu0 0.0
    %6285 = vmatprep.subr.mxu0 0.0
    %6286 = vmatpush1.msra.mxu0 0.0
    %6287 = vmatprep.subr.mxu0 0.0
    %6288 = vmatpush1.msra.mxu0 0.0
    %6289 = vmatprep.subr.mxu0 0.0
    %6290 = vmatpush1.msra.mxu0 0.0
    %6291 = vmatprep.subr.mxu0 0.0
    %6292 = vmatpush1.msra.mxu0 0.0
    %6293 = vmatprep.subr.mxu0 0.0
    %6294 = vmatpush1.msra.mxu0 0.0
    %6295 = vmatprep.subr.mxu0 0.0
    %6296 = vmatpush1.msra.mxu0 0.0
    %6297 = vmatprep.subr.mxu0 0.0
    %6298 = vmatpush1.msra.mxu0 0.0
    %6299 = vmatprep.subr.mxu0 0.0
    %6300 = vmatpush1.msra.mxu0 0.0
    %6301 = vmatprep.mubr.f32.mxu0 0.0
    %6302 = vmatmul.mubr.f32.gmra.mrb[0].mxu0 %v6164
    %v6303 = vpop.f32.mrb[0].mxu0
    %v6304 = vadd.f32 0.0, %v6303
    %v6305 = vpop.f32.mrb[0].mxu0
    %6306 = vdwg.mxu0
    %v6307 = vlaneseq
    %v6308 = vshrl.u32 %v6307, 7
    %v6309 = vsub.s32 0, %v6308
    %v6310 = vrot.slane %v6089, %v6309
    %v6311 = vlaneseq
    %v6312 = vshrl.u32 %v6311, 7
    %v6313 = vsub.s32 0, %v6312
    %v6314 = vrot.slane %v6091, %v6313
    %v6315 = vlaneseq
    %v6316 = vshrl.u32 %v6315, 7
    %v6317 = vsub.s32 0, %v6316
    %v6318 = vrot.slane %v6160, %v6317
    %v6319 = vmul.f32 %v5532, %v6310
    %v6320 = vmul.f32 %v5534, %v6314
    %v6321 = vmul.f32 %v5634, %v6318
    %v6322 = vmul.f32 %v5536, %v6310
    %v6323 = vmul.f32 %v5538, %v6314
    %v6324 = vmul.f32 %v5637, %v6318
    %v6325 = vmul.f32 %v5542, %v6310
    %v6326 = vmul.f32 %v5544, %v6314
    %v6327 = vmul.f32 %v5642, %v6318
    %v6328 = vmul.f32 %v5546, %v6310
    %v6329 = vmul.f32 %v5548, %v6314
    %v6330 = vmul.f32 %v5645, %v6318
    %v6331 = vlaneseq
    %v6332 = vshrl.u32 %v6331, 7
    %v6333 = vsub.s32 0, %v6332
    %v6334 = vrot.slane %v6233, %v6333
    %v6335 = vlaneseq
    %v6336 = vshrl.u32 %v6335, 7
    %v6337 = vsub.s32 0, %v6336
    %v6338 = vrot.slane %v6235, %v6337
    %v6339 = vlaneseq
    %v6340 = vshrl.u32 %v6339, 7
    %v6341 = vsub.s32 0, %v6340
    %v6342 = vrot.slane %v6304, %v6341
    %v6343 = vadd.f32 %v6319, %v6334
    %v6344 = vadd.f32 %v6320, %v6338
    %v6345 = vadd.f32 %v6321, %v6342
    %v6346 = vadd.f32 %v6322, %v6334
    %v6347 = vadd.f32 %v6323, %v6338
    %v6348 = vadd.f32 %v6324, %v6342
    %v6349 = vadd.f32 %v6325, %v6334
    %v6350 = vadd.f32 %v6326, %v6338
    %v6351 = vadd.f32 %v6327, %v6342
    %v6352 = vadd.f32 %v6328, %v6334
    %v6353 = vadd.f32 %v6329, %v6338
    %v6354 = vadd.f32 %v6330, %v6342
    %v6355 = vadd.f32 %v6343, %v3765
    %v6356 = vadd.f32 %v6344, %v3766
    %v6357 = vadd.f32 %v6345, %v3767
    %v6358 = vadd.f32 %v6346, %v3768
    %v6359 = vadd.f32 %v6347, %v3769
    %v6360 = vadd.f32 %v6348, %v3770
    %v6361 = vadd.f32 %v6349, %v3771
    %v6362 = vadd.f32 %v6350, %v3772
    %v6363 = vadd.f32 %v6351, %v3773
    %v6364 = vadd.f32 %v6352, %v3774
    %v6365 = vadd.f32 %v6353, %v3775
    %v6366 = vadd.f32 %v6354, %v3776
    %v6367 = vmax.f32 %v6355, 0.0
    %v6368 = vmax.f32 %v6356, 0.0
    %v6369 = vmax.f32 %v6357, 0.0
    %v6370 = vmax.f32 %v6358, 0.0
    %v6371 = vmax.f32 %v6359, 0.0
    %v6372 = vmax.f32 %v6360, 0.0
    %v6373 = vmax.f32 %v6361, 0.0
    %v6374 = vmax.f32 %v6362, 0.0
    %v6375 = vmax.f32 %v6363, 0.0
    %v6376 = vmax.f32 %v6364, 0.0
    %v6377 = vmax.f32 %v6365, 0.0
    %v6378 = vmax.f32 %v6366, 0.0
    %v6379 = vpack.c.bf16 %v6370, %v6367
    %v6380 = vpack.c.bf16 %v6371, %v6368
    %v6381 = vpack.c.bf16 %v6372, %v6369
    %v6382 = vpack.c.bf16 %v6376, %v6373
    %v6383 = vpack.c.bf16 %v6377, %v6374
    %v6384 = vpack.c.bf16 %v6378, %v6375
    %v6385 = vld [vmem:[#allocation13] sm:$0xff]
    %v6386 = vld [vmem:[#allocation13 + $0x8] sm:$0xf]
    %v6387 = vld [vmem:[#allocation13 + $0xc] sm:$0xff]
    %v6388 = vld [vmem:[#allocation13 + $0x14] sm:$0xf]
    %v6389 = vld [vmem:[#allocation13 + $0x18] sm:$0xff]
    %v6390 = vld [vmem:[#allocation13 + $0x20] sm:$0xf]
    %v6391 = vld [vmem:[#allocation13 + $0x24] sm:$0xff]
    %v6392 = vld [vmem:[#allocation13 + $0x2c] sm:$0xf]
    %v6393 = vld [vmem:[#allocation13 + $0x30] sm:$0xff]
    %v6394 = vld [vmem:[#allocation13 + $0x38] sm:$0xf]
    %v6395 = vld [vmem:[#allocation13 + $0x3c] sm:$0xff]
    %v6396 = vld [vmem:[#allocation13 + $0x44] sm:$0xf]
    %v6397 = vld [vmem:[#allocation13 + $0x48] sm:$0xff]
    %v6398 = vld [vmem:[#allocation13 + $0x50] sm:$0xf]
    %v6399 = vld [vmem:[#allocation13 + $0x54] sm:$0xff]
    %v6400 = vld [vmem:[#allocation13 + $0x5c] sm:$0xf]
    %v6401 = vld [vmem:[#allocation13 + $0x60] sm:$0xff]
    %v6402 = vld [vmem:[#allocation13 + $0x68] sm:$0xf]
    %v6403 = vld [vmem:[#allocation13 + $0x6c] sm:$0xff]
    %v6404 = vld [vmem:[#allocation13 + $0x74] sm:$0xf]
    %v6405 = vld [vmem:[#allocation13 + $0x78] sm:$0xff]
    %v6406 = vld [vmem:[#allocation13 + $0x80] sm:$0xf]
    %v6407 = vld [vmem:[#allocation13 + $0x84] sm:$0xff]
    %v6408 = vld [vmem:[#allocation13 + $0x8c] sm:$0xf]
    %v6409 = vld [vmem:[#allocation13 + $0x90] sm:$0xff]
    %v6410 = vld [vmem:[#allocation13 + $0x98] sm:$0xf]
    %v6411 = vld [vmem:[#allocation13 + $0x9c] sm:$0xff]
    %v6412 = vld [vmem:[#allocation13 + $0xa4] sm:$0xf]
    %v6413 = vld [vmem:[#allocation13 + $0xa8] sm:$0xff]
    %v6414 = vld [vmem:[#allocation13 + $0xb0] sm:$0xf]
    %v6415 = vld [vmem:[#allocation13 + $0xb4] sm:$0xff]
    %v6416 = vld [vmem:[#allocation13 + $0xbc] sm:$0xf]
    %v6417 = vld [vmem:[#allocation13 + $0xc0] sm:$0xff]
    %v6418 = vld [vmem:[#allocation13 + $0xc8] sm:$0xf]
    %v6419 = vld [vmem:[#allocation13 + $0xcc] sm:$0xff]
    %v6420 = vld [vmem:[#allocation13 + $0xd4] sm:$0xf]
    %v6421 = vld [vmem:[#allocation13 + $0xd8] sm:$0xff]
    %v6422 = vld [vmem:[#allocation13 + $0xe0] sm:$0xf]
    %v6423 = vld [vmem:[#allocation13 + $0xe4] sm:$0xff]
    %v6424 = vld [vmem:[#allocation13 + $0xec] sm:$0xf]
    %v6425 = vld [vmem:[#allocation13 + $0xf0] sm:$0xff]
    %v6426 = vld [vmem:[#allocation13 + $0xf8] sm:$0xf]
    %v6427 = vld [vmem:[#allocation13 + $0xfc] sm:$0xff]
    %v6428 = vld [vmem:[#allocation13 + $0x104] sm:$0xf]
    %v6429 = vld [vmem:[#allocation13 + $0x108] sm:$0xff]
    %v6430 = vld [vmem:[#allocation13 + $0x110] sm:$0xf]
    %v6431 = vld [vmem:[#allocation13 + $0x114] sm:$0xff]
    %v6432 = vld [vmem:[#allocation13 + $0x11c] sm:$0xf]
    %v6433 = vld [vmem:[#allocation13 + $0x120] sm:$0xff]
    %v6434 = vld [vmem:[#allocation13 + $0x128] sm:$0xf]
    %v6435 = vld [vmem:[#allocation13 + $0x12c] sm:$0xff]
    %v6436 = vld [vmem:[#allocation13 + $0x134] sm:$0xf]
    %v6437 = vld [vmem:[#allocation13 + $0x138] sm:$0xff]
    %v6438 = vld [vmem:[#allocation13 + $0x140] sm:$0xf]
    %v6439 = vld [vmem:[#allocation13 + $0x144] sm:$0xff]
    %v6440 = vld [vmem:[#allocation13 + $0x14c] sm:$0xf]
    %v6441 = vld [vmem:[#allocation13 + $0x150] sm:$0xff]
    %v6442 = vld [vmem:[#allocation13 + $0x158] sm:$0xf]
    %v6443 = vld [vmem:[#allocation13 + $0x15c] sm:$0xff]
    %v6444 = vld [vmem:[#allocation13 + $0x164] sm:$0xf]
    %v6445 = vld [vmem:[#allocation13 + $0x168] sm:$0xff]
    %v6446 = vld [vmem:[#allocation13 + $0x170] sm:$0xf]
    %v6447 = vld [vmem:[#allocation13 + $0x174] sm:$0xff]
    %v6448 = vld [vmem:[#allocation13 + $0x17c] sm:$0xf]
    %v6449 = vld [vmem:[#allocation13 + $0x180] sm:$0xff]
    %v6450 = vld [vmem:[#allocation13 + $0x188] sm:$0xf]
    %v6451 = vld [vmem:[#allocation13 + $0x18c] sm:$0xff]
    %v6452 = vld [vmem:[#allocation13 + $0x194] sm:$0xf]
    %v6453 = vld [vmem:[#allocation13 + $0x198] sm:$0xff]
    %v6454 = vld [vmem:[#allocation13 + $0x1a0] sm:$0xf]
    %v6455 = vld [vmem:[#allocation13 + $0x1a4] sm:$0xff]
    %v6456 = vld [vmem:[#allocation13 + $0x1ac] sm:$0xf]
    %v6529 = vunpack.c.l.b16 %v6385
    %v6530 = vunpack.c.h.b16 %v6385
    %v6531 = vunpack.c.l.b16 %v6386
    %v6532 = vunpack.c.l.b16 %v6387
    %v6533 = vunpack.c.h.b16 %v6387
    %v6534 = vunpack.c.l.b16 %v6388
    %v6535 = vunpack.c.l.b16 %v6389
    %v6536 = vunpack.c.h.b16 %v6389
    %v6537 = vunpack.c.l.b16 %v6390
    %v6538 = vunpack.c.l.b16 %v6391
    %v6539 = vunpack.c.h.b16 %v6391
    %v6540 = vunpack.c.l.b16 %v6392
    %v6541 = vunpack.c.l.b16 %v6393
    %v6542 = vunpack.c.h.b16 %v6393
    %v6543 = vunpack.c.l.b16 %v6394
    %v6544 = vunpack.c.l.b16 %v6395
    %v6545 = vunpack.c.h.b16 %v6395
    %v6546 = vunpack.c.l.b16 %v6396
    %v6547 = vunpack.c.l.b16 %v6397
    %v6548 = vunpack.c.h.b16 %v6397
    %v6549 = vunpack.c.l.b16 %v6398
    %v6550 = vunpack.c.l.b16 %v6399
    %v6551 = vunpack.c.h.b16 %v6399
    %v6552 = vunpack.c.l.b16 %v6400
    %v6553 = vunpack.c.l.b16 %v6401
    %v6554 = vunpack.c.h.b16 %v6401
    %v6555 = vunpack.c.l.b16 %v6402
    %v6556 = vunpack.c.l.b16 %v6403
    %v6557 = vunpack.c.h.b16 %v6403
    %v6558 = vunpack.c.l.b16 %v6404
    %v6559 = vunpack.c.l.b16 %v6405
    %v6560 = vunpack.c.h.b16 %v6405
    %v6561 = vunpack.c.l.b16 %v6406
    %v6562 = vunpack.c.l.b16 %v6407
    %v6563 = vunpack.c.h.b16 %v6407
    %v6564 = vunpack.c.l.b16 %v6408
    %v6565 = vunpack.c.l.b16 %v6409
    %v6566 = vunpack.c.h.b16 %v6409
    %v6567 = vunpack.c.l.b16 %v6410
    %v6568 = vunpack.c.l.b16 %v6411
    %v6569 = vunpack.c.h.b16 %v6411
    %v6570 = vunpack.c.l.b16 %v6412
    %v6571 = vunpack.c.l.b16 %v6413
    %v6572 = vunpack.c.h.b16 %v6413
    %v6573 = vunpack.c.l.b16 %v6414
    %v6574 = vunpack.c.l.b16 %v6415
    %v6575 = vunpack.c.h.b16 %v6415
    %v6576 = vunpack.c.l.b16 %v6416
    %v6577 = vunpack.c.l.b16 %v6417
    %v6578 = vunpack.c.h.b16 %v6417
    %v6579 = vunpack.c.l.b16 %v6418
    %v6580 = vunpack.c.l.b16 %v6419
    %v6581 = vunpack.c.h.b16 %v6419
    %v6582 = vunpack.c.l.b16 %v6420
    %v6583 = vunpack.c.l.b16 %v6421
    %v6584 = vunpack.c.h.b16 %v6421
    %v6585 = vunpack.c.l.b16 %v6422
    %v6586 = vunpack.c.l.b16 %v6423
    %v6587 = vunpack.c.h.b16 %v6423
    %v6588 = vunpack.c.l.b16 %v6424
    %v6589 = vunpack.c.l.b16 %v6425
    %v6590 = vunpack.c.h.b16 %v6425
    %v6591 = vunpack.c.l.b16 %v6426
    %v6592 = vunpack.c.l.b16 %v6427
    %v6593 = vunpack.c.h.b16 %v6427
    %v6594 = vunpack.c.l.b16 %v6428
    %v6595 = vunpack.c.l.b16 %v6429
    %v6596 = vunpack.c.h.b16 %v6429
    %v6597 = vunpack.c.l.b16 %v6430
    %v6598 = vunpack.c.l.b16 %v6431
    %v6599 = vunpack.c.h.b16 %v6431
    %v6600 = vunpack.c.l.b16 %v6432
    %v6601 = vunpack.c.l.b16 %v6433
    %v6602 = vunpack.c.h.b16 %v6433
    %v6603 = vunpack.c.l.b16 %v6434
    %v6604 = vunpack.c.l.b16 %v6435
    %v6605 = vunpack.c.h.b16 %v6435
    %v6606 = vunpack.c.l.b16 %v6436
    %v6607 = vunpack.c.l.b16 %v6437
    %v6608 = vunpack.c.h.b16 %v6437
    %v6609 = vunpack.c.l.b16 %v6438
    %v6610 = vunpack.c.l.b16 %v6439
    %v6611 = vunpack.c.h.b16 %v6439
    %v6612 = vunpack.c.l.b16 %v6440
    %v6613 = vunpack.c.l.b16 %v6441
    %v6614 = vunpack.c.h.b16 %v6441
    %v6615 = vunpack.c.l.b16 %v6442
    %v6616 = vunpack.c.l.b16 %v6443
    %v6617 = vunpack.c.h.b16 %v6443
    %v6618 = vunpack.c.l.b16 %v6444
    %v6619 = vunpack.c.l.b16 %v6445
    %v6620 = vunpack.c.h.b16 %v6445
    %v6621 = vunpack.c.l.b16 %v6446
    %v6622 = vunpack.c.l.b16 %v6447
    %v6623 = vunpack.c.h.b16 %v6447
    %v6624 = vunpack.c.l.b16 %v6448
    %v6625 = vunpack.c.l.b16 %v6449
    %v6626 = vunpack.c.h.b16 %v6449
    %v6627 = vunpack.c.l.b16 %v6450
    %v6628 = vunpack.c.l.b16 %v6451
    %v6629 = vunpack.c.h.b16 %v6451
    %v6630 = vunpack.c.l.b16 %v6452
    %v6631 = vunpack.c.l.b16 %v6453
    %v6632 = vunpack.c.h.b16 %v6453
    %v6633 = vunpack.c.l.b16 %v6454
    %v6634 = vunpack.c.l.b16 %v6455
    %v6635 = vunpack.c.h.b16 %v6455
    %v6636 = vunpack.c.l.b16 %v6456
    %v6637 = vpack.c.b16 %v6532, %v6529
    %v6638 = vpack.c.b16 %v6533, %v6530
    %v6639 = vpack.c.b16 %v6534, %v6531
    %v6640 = vpack.c.b16 %v6538, %v6535
    %v6641 = vpack.c.b16 %v6539, %v6536
    %v6642 = vpack.c.b16 %v6540, %v6537
    %v6643 = vpack.c.b16 %v6544, %v6541
    %v6644 = vpack.c.b16 %v6545, %v6542
    %v6645 = vpack.c.b16 %v6546, %v6543
    %v6646 = vpack.c.b16 %v6550, %v6547
    %v6647 = vpack.c.b16 %v6551, %v6548
    %v6648 = vpack.c.b16 %v6552, %v6549
    %v6649 = vpack.c.b16 %v6556, %v6553
    %v6650 = vpack.c.b16 %v6557, %v6554
    %v6651 = vpack.c.b16 %v6558, %v6555
    %v6652 = vpack.c.b16 %v6562, %v6559
    %v6653 = vpack.c.b16 %v6563, %v6560
    %v6654 = vpack.c.b16 %v6564, %v6561
    %v6655 = vpack.c.b16 %v6568, %v6565
    %v6656 = vpack.c.b16 %v6569, %v6566
    %v6657 = vpack.c.b16 %v6570, %v6567
    %v6658 = vpack.c.b16 %v6574, %v6571
    %v6659 = vpack.c.b16 %v6575, %v6572
    %v6660 = vpack.c.b16 %v6576, %v6573
    %v6661 = vpack.c.b16 %v6580, %v6577
    %v6662 = vpack.c.b16 %v6581, %v6578
    %v6663 = vpack.c.b16 %v6582, %v6579
    %v6664 = vpack.c.b16 %v6586, %v6583
    %v6665 = vpack.c.b16 %v6587, %v6584
    %v6666 = vpack.c.b16 %v6588, %v6585
    %v6667 = vpack.c.b16 %v6592, %v6589
    %v6668 = vpack.c.b16 %v6593, %v6590
    %v6669 = vpack.c.b16 %v6594, %v6591
    %v6670 = vpack.c.b16 %v6598, %v6595
    %v6671 = vpack.c.b16 %v6599, %v6596
    %v6672 = vpack.c.b16 %v6600, %v6597
    %v6673 = vpack.c.b16 %v6604, %v6601
    %v6674 = vpack.c.b16 %v6605, %v6602
    %v6675 = vpack.c.b16 %v6606, %v6603
    %v6676 = vpack.c.b16 %v6610, %v6607
    %v6677 = vpack.c.b16 %v6611, %v6608
    %v6678 = vpack.c.b16 %v6612, %v6609
    %v6679 = vpack.c.b16 %v6616, %v6613
    %v6680 = vpack.c.b16 %v6617, %v6614
    %v6681 = vpack.c.b16 %v6618, %v6615
    %v6682 = vpack.c.b16 %v6622, %v6619
    %v6683 = vpack.c.b16 %v6623, %v6620
    %v6684 = vpack.c.b16 %v6624, %v6621
    %v6685 = vpack.c.b16 %v6628, %v6625
    %v6686 = vpack.c.b16 %v6629, %v6626
    %v6687 = vpack.c.b16 %v6630, %v6627
    %v6688 = vpack.c.b16 %v6634, %v6631
    %v6689 = vpack.c.b16 %v6635, %v6632
    %v6690 = vpack.c.b16 %v6636, %v6633
    %v6746 = vsel %vm425, %v6381, 0
    %v6749 = vsel %vm425, %v6384, 0
    %6751 = vmatprep.subr.bf16.mxu0 %v6638
    %6752 = vmatpush1.bf16.msra.mxu0 %v6637
    %6753 = vmatprep.subr.bf16.mxu0 %v6641
    %6754 = vmatpush1.bf16.msra.mxu0 %v6640
    %6755 = vmatprep.subr.bf16.mxu0 %v6644
    %6756 = vmatpush1.bf16.msra.mxu0 %v6643
    %6757 = vmatprep.subr.bf16.mxu0 %v6647
    %6758 = vmatpush1.bf16.msra.mxu0 %v6646
    %6759 = vmatprep.subr.bf16.mxu0 %v6650
    %6760 = vmatpush1.bf16.msra.mxu0 %v6649
    %6761 = vmatprep.subr.bf16.mxu0 %v6653
    %6762 = vmatpush1.bf16.msra.mxu0 %v6652
    %6763 = vmatprep.subr.bf16.mxu0 %v6656
    %6764 = vmatpush1.bf16.msra.mxu0 %v6655
    %6765 = vmatprep.subr.bf16.mxu0 %v6659
    %6766 = vmatpush1.bf16.msra.mxu0 %v6658
    %6767 = vmatprep.subr.bf16.mxu0 %v6662
    %6768 = vmatpush1.bf16.msra.mxu0 %v6661
    %6769 = vmatprep.subr.bf16.mxu0 %v6665
    %6770 = vmatpush1.bf16.msra.mxu0 %v6664
    %6771 = vmatprep.subr.bf16.mxu0 %v6668
    %6772 = vmatpush1.bf16.msra.mxu0 %v6667
    %6773 = vmatprep.subr.bf16.mxu0 %v6671
    %6774 = vmatpush1.bf16.msra.mxu0 %v6670
    %6775 = vmatprep.subr.bf16.mxu0 %v6674
    %6776 = vmatpush1.bf16.msra.mxu0 %v6673
    %6777 = vmatprep.subr.bf16.mxu0 %v6677
    %6778 = vmatpush1.bf16.msra.mxu0 %v6676
    %6779 = vmatprep.subr.bf16.mxu0 %v6680
    %6780 = vmatpush1.bf16.msra.mxu0 %v6679
    %6781 = vmatprep.subr.bf16.mxu0 %v6683
    %6782 = vmatpush1.bf16.msra.mxu0 %v6682
    %6783 = vmatprep.mubr.bf16.mxu0 %v6380
    %6784 = vmatmul.mubr.bf16.gmra.mrb[0].mxu0 %v6379
    %v6785 = vpop.f32.mrb[0].mxu0
    %v6786 = vadd.f32 0.0, %v6785
    %v6787 = vpop.f32.mrb[0].mxu0
    %v6788 = vadd.f32 0.0, %v6787
    %v6789 = vpop.f32.mrb[0].mxu0
    %v6790 = vadd.f32 0.0, %v6789
    %v6791 = vpop.f32.mrb[0].mxu0
    %v6792 = vadd.f32 0.0, %v6791
    %6793 = vmatprep.mubr.bf16.mxu0 %v6383
    %6794 = vmatmul.mubr.bf16.gmra.mrb[0].mxu0 %v6382
    %v6795 = vpop.f32.mrb[0].mxu0
    %v6796 = vadd.f32 0.0, %v6795
    %v6797 = vpop.f32.mrb[0].mxu0
    %v6798 = vadd.f32 0.0, %v6797
    %v6799 = vpop.f32.mrb[0].mxu0
    %v6800 = vadd.f32 0.0, %v6799
    %v6801 = vpop.f32.mrb[0].mxu0
    %v6802 = vadd.f32 0.0, %v6801
    %6803 = vdwg.mxu0
    %6804 = vmatprep.subr.bf16.mxu0 %v6686
    %6805 = vmatpush1.bf16.msra.mxu0 %v6685
    %6806 = vmatprep.subr.bf16.mxu0 %v6689
    %6807 = vmatpush1.bf16.msra.mxu0 %v6688
    %6808 = vmatprep.subr.bf16.mxu0 0
    %6809 = vmatpush1.bf16.msra.mxu0 0
    %6810 = vmatprep.subr.bf16.mxu0 0
    %6811 = vmatpush1.bf16.msra.mxu0 0
    %6812 = vmatprep.subr.bf16.mxu0 0
    %6813 = vmatpush1.bf16.msra.mxu0 0
    %6814 = vmatprep.subr.bf16.mxu0 0
    %6815 = vmatpush1.bf16.msra.mxu0 0
    %6816 = vmatprep.subr.bf16.mxu0 0
    %6817 = vmatpush1.bf16.msra.mxu0 0
    %6818 = vmatprep.subr.bf16.mxu0 0
    %6819 = vmatpush1.bf16.msra.mxu0 0
    %6820 = vmatprep.subr.bf16.mxu0 0
    %6821 = vmatpush1.bf16.msra.mxu0 0
    %6822 = vmatprep.subr.bf16.mxu0 0
    %6823 = vmatpush1.bf16.msra.mxu0 0
    %6824 = vmatprep.subr.bf16.mxu0 0
    %6825 = vmatpush1.bf16.msra.mxu0 0
    %6826 = vmatprep.subr.bf16.mxu0 0
    %6827 = vmatpush1.bf16.msra.mxu0 0
    %6828 = vmatprep.subr.bf16.mxu0 0
    %6829 = vmatpush1.bf16.msra.mxu0 0
    %6830 = vmatprep.subr.bf16.mxu0 0
    %6831 = vmatpush1.bf16.msra.mxu0 0
    %6832 = vmatprep.subr.bf16.mxu0 0
    %6833 = vmatpush1.bf16.msra.mxu0 0
    %6834 = vmatprep.subr.bf16.mxu0 0
    %6835 = vmatpush1.bf16.msra.mxu0 0
    %6836 = vmatprep.mubr.bf16.mxu0 0
    %6837 = vmatmul.mubr.bf16.gmra.mrb[0].mxu0 %v6746
    %v6838 = vpop.f32.mrb[0].mxu0
    %v6839 = vadd.f32 %v6786, %v6838
    %v6840 = vpop.f32.mrb[0].mxu0
    %v6841 = vadd.f32 %v6788, %v6840
    %v6842 = vpop.f32.mrb[0].mxu0
    %v6843 = vadd.f32 %v6790, %v6842
    %v6844 = vpop.f32.mrb[0].mxu0
    %v6845 = vadd.f32 %v6792, %v6844
    %6846 = vmatprep.mubr.bf16.mxu0 0
    %6847 = vmatmul.mubr.bf16.gmra.mrb[0].mxu0 %v6749
    %v6848 = vpop.f32.mrb[0].mxu0
    %v6849 = vadd.f32 %v6796, %v6848
    %v6850 = vpop.f32.mrb[0].mxu0
    %v6851 = vadd.f32 %v6798, %v6850
    %v6852 = vpop.f32.mrb[0].mxu0
    %v6853 = vadd.f32 %v6800, %v6852
    %v6854 = vpop.f32.mrb[0].mxu0
    %v6855 = vadd.f32 %v6802, %v6854
    %6856 = vdwg.mxu0
    %6857 = vmatprep.subr.bf16.mxu0 0
    %6858 = vmatpush1.bf16.msra.mxu0 %v6639
    %6859 = vmatprep.subr.bf16.mxu0 0
    %6860 = vmatpush1.bf16.msra.mxu0 %v6642
    %6861 = vmatprep.subr.bf16.mxu0 0
    %6862 = vmatpush1.bf16.msra.mxu0 %v6645
    %6863 = vmatprep.subr.bf16.mxu0 0
    %6864 = vmatpush1.bf16.msra.mxu0 %v6648
    %6865 = vmatprep.subr.bf16.mxu0 0
    %6866 = vmatpush1.bf16.msra.mxu0 %v6651
    %6867 = vmatprep.subr.bf16.mxu0 0
    %6868 = vmatpush1.bf16.msra.mxu0 %v6654
    %6869 = vmatprep.subr.bf16.mxu0 0
    %6870 = vmatpush1.bf16.msra.mxu0 %v6657
    %6871 = vmatprep.subr.bf16.mxu0 0
    %6872 = vmatpush1.bf16.msra.mxu0 %v6660
    %6873 = vmatprep.subr.bf16.mxu0 0
    %6874 = vmatpush1.bf16.msra.mxu0 %v6663
    %6875 = vmatprep.subr.bf16.mxu0 0
    %6876 = vmatpush1.bf16.msra.mxu0 %v6666
    %6877 = vmatprep.subr.bf16.mxu0 0
    %6878 = vmatpush1.bf16.msra.mxu0 %v6669
    %6879 = vmatprep.subr.bf16.mxu0 0
    %6880 = vmatpush1.bf16.msra.mxu0 %v6672
    %6881 = vmatprep.subr.bf16.mxu0 0
    %6882 = vmatpush1.bf16.msra.mxu0 %v6675
    %6883 = vmatprep.subr.bf16.mxu0 0
    %6884 = vmatpush1.bf16.msra.mxu0 %v6678
    %6885 = vmatprep.subr.bf16.mxu0 0
    %6886 = vmatpush1.bf16.msra.mxu0 %v6681
    %6887 = vmatprep.subr.bf16.mxu0 0
    %6888 = vmatpush1.bf16.msra.mxu0 %v6684
    %6889 = vmatprep.mubr.bf16.mxu0 %v6380
    %6890 = vmatmul.mubr.bf16.gmra.mrb[0].mxu0 %v6379
    %v6891 = vpop.f32.mrb[0].mxu0
    %v6892 = vadd.f32 0.0, %v6891
    %v6893 = vpop.f32.mrb[0].mxu0
    %v6894 = vpop.f32.mrb[0].mxu0
    %v6895 = vadd.f32 0.0, %v6894
    %v6896 = vpop.f32.mrb[0].mxu0
    %6897 = vmatprep.mubr.bf16.mxu0 %v6383
    %6898 = vmatmul.mubr.bf16.gmra.mrb[0].mxu0 %v6382
    %v6899 = vpop.f32.mrb[0].mxu0
    %v6900 = vadd.f32 0.0, %v6899
    %v6901 = vpop.f32.mrb[0].mxu0
    %v6902 = vpop.f32.mrb[0].mxu0
    %v6903 = vadd.f32 0.0, %v6902
    %v6904 = vpop.f32.mrb[0].mxu0
    %6905 = vdwg.mxu0
    %6906 = vmatprep.subr.bf16.mxu0 0
    %6907 = vmatpush1.bf16.msra.mxu0 %v6687
    %6908 = vmatprep.subr.bf16.mxu0 0
    %6909 = vmatpush1.bf16.msra.mxu0 %v6690
    %6910 = vmatprep.subr.bf16.mxu0 0
    %6911 = vmatpush1.bf16.msra.mxu0 0
    %6912 = vmatprep.subr.bf16.mxu0 0
    %6913 = vmatpush1.bf16.msra.mxu0 0
    %6914 = vmatprep.subr.bf16.mxu0 0
    %6915 = vmatpush1.bf16.msra.mxu0 0
    %6916 = vmatprep.subr.bf16.mxu0 0
    %6917 = vmatpush1.bf16.msra.mxu0 0
    %6918 = vmatprep.subr.bf16.mxu0 0
    %6919 = vmatpush1.bf16.msra.mxu0 0
    %6920 = vmatprep.subr.bf16.mxu0 0
    %6921 = vmatpush1.bf16.msra.mxu0 0
    %6922 = vmatprep.subr.bf16.mxu0 0
    %6923 = vmatpush1.bf16.msra.mxu0 0
    %6924 = vmatprep.subr.bf16.mxu0 0
    %6925 = vmatpush1.bf16.msra.mxu0 0
    %6926 = vmatprep.subr.bf16.mxu0 0
    %6927 = vmatpush1.bf16.msra.mxu0 0
    %6928 = vmatprep.subr.bf16.mxu0 0
    %6929 = vmatpush1.bf16.msra.mxu0 0
    %6930 = vmatprep.subr.bf16.mxu0 0
    %6931 = vmatpush1.bf16.msra.mxu0 0
    %6932 = vmatprep.subr.bf16.mxu0 0
    %6933 = vmatpush1.bf16.msra.mxu0 0
    %6934 = vmatprep.subr.bf16.mxu0 0
    %6935 = vmatpush1.bf16.msra.mxu0 0
    %6936 = vmatprep.subr.bf16.mxu0 0
    %6937 = vmatpush1.bf16.msra.mxu0 0
    %6938 = vmatprep.mubr.bf16.mxu0 0
    %6939 = vmatmul.mubr.bf16.gmra.mrb[0].mxu0 %v6746
    %v6940 = vpop.f32.mrb[0].mxu0
    %v6941 = vadd.f32 %v6892, %v6940
    %v6942 = vpop.f32.mrb[0].mxu0
    %v6943 = vpop.f32.mrb[0].mxu0
    %v6944 = vadd.f32 %v6895, %v6943
    %v6945 = vpop.f32.mrb[0].mxu0
    %6946 = vmatprep.mubr.bf16.mxu0 0
    %6947 = vmatmul.mubr.bf16.gmra.mrb[0].mxu0 %v6749
    %v6948 = vpop.f32.mrb[0].mxu0
    %v6949 = vadd.f32 %v6900, %v6948
    %v6950 = vpop.f32.mrb[0].mxu0
    %v6951 = vpop.f32.mrb[0].mxu0
    %v6952 = vadd.f32 %v6903, %v6951
    %v6953 = vpop.f32.mrb[0].mxu0
    %6954 = vdwg.mxu0
    %v6955 = vadd.f32 %v6839, %v6843
    %v6956 = vadd.f32 %v6955, %v6849
    %v6957 = vadd.f32 %v6956, %v6853
    %v6958 = vrot.slane %v6957, 4
    %v6959 = vadd.f32 %v6957, %v6958
    %v6960 = vrot.slane %v6959, 2
    %v6961 = vadd.f32 %v6959, %v6960
    %v6962 = vrot.slane %v6961, 1
    %v6963 = vadd.f32 %v6961, %v6962
    %v6964 = vadd.f32 %v6841, %v6845
    %v6965 = vadd.f32 %v6964, %v6851
    %v6966 = vadd.f32 %v6965, %v6855
    %v6967 = vrot.slane %v6966, 4
    %v6968 = vadd.f32 %v6966, %v6967
    %v6969 = vrot.slane %v6968, 2
    %v6970 = vadd.f32 %v6968, %v6969
    %v6971 = vrot.slane %v6970, 1
    %v6972 = vadd.f32 %v6970, %v6971
    %v6973 = vsel %vm425, %v6941, 0.0
    %v6974 = vsel %vm425, %v6944, 0.0
    %v6975 = vadd.f32 %v6973, %v6974
    %v6976 = vsel %vm425, %v6949, 0.0
    %v6977 = vadd.f32 %v6975, %v6976
    %v6978 = vsel %vm425, %v6952, 0.0
    %v6979 = vadd.f32 %v6977, %v6978
    %v6980 = vrot.slane %v6979, 4
    %v6981 = vadd.f32 %v6979, %v6980
    %v6982 = vrot.slane %v6981, 2
    %v6983 = vadd.f32 %v6981, %v6982
    %v6984 = vrot.slane %v6983, 1
    %v6985 = vadd.f32 %v6983, %v6984
    %v6986 = vmul.f32 %v6839, %v6839
    %v6987 = vmul.f32 %v6841, %v6841
    %v6988 = vmul.f32 %v6941, %v6941
    %v6989 = vmul.f32 %v6843, %v6843
    %v6990 = vmul.f32 %v6845, %v6845
    %v6991 = vmul.f32 %v6944, %v6944
    %v6992 = vmul.f32 %v6849, %v6849
    %v6993 = vmul.f32 %v6851, %v6851
    %v6994 = vmul.f32 %v6949, %v6949
    %v6995 = vmul.f32 %v6853, %v6853
    %v6996 = vmul.f32 %v6855, %v6855
    %v6997 = vmul.f32 %v6952, %v6952
    %v6998 = vadd.f32 %v6986, %v6989
    %v6999 = vadd.f32 %v6998, %v6992
    %v7000 = vadd.f32 %v6999, %v6995
    %v7001 = vrot.slane %v7000, 4
    %v7002 = vadd.f32 %v7000, %v7001
    %v7003 = vrot.slane %v7002, 2
    %v7004 = vadd.f32 %v7002, %v7003
    %v7005 = vrot.slane %v7004, 1
    %v7006 = vadd.f32 %v7004, %v7005
    %v7007 = vadd.f32 %v6987, %v6990
    %v7008 = vadd.f32 %v7007, %v6993
    %v7009 = vadd.f32 %v7008, %v6996
    %v7010 = vrot.slane %v7009, 4
    %v7011 = vadd.f32 %v7009, %v7010
    %v7012 = vrot.slane %v7011, 2
    %v7013 = vadd.f32 %v7011, %v7012
    %v7014 = vrot.slane %v7013, 1
    %v7015 = vadd.f32 %v7013, %v7014
    %v7016 = vsel %vm425, %v6988, 0.0
    %v7017 = vsel %vm425, %v6991, 0.0
    %v7018 = vadd.f32 %v7016, %v7017
    %v7019 = vsel %vm425, %v6994, 0.0
    %v7020 = vadd.f32 %v7018, %v7019
    %v7021 = vsel %vm425, %v6997, 0.0
    %v7022 = vadd.f32 %v7020, %v7021
    %v7023 = vrot.slane %v7022, 4
    %v7024 = vadd.f32 %v7022, %v7023
    %v7025 = vrot.slane %v7024, 2
    %v7026 = vadd.f32 %v7024, %v7025
    %v7027 = vrot.slane %v7026, 1
    %v7028 = vadd.f32 %v7026, %v7027
    %v7030 = vsel %vm425, %v6985, 0
    %7032 = vmatprep.subr.mxu0 0.0
    %7033 = vmatpush1.msra.mxu0 %v482
    %7034 = vmatprep.subr.mxu0 0.0
    %7035 = vmatpush1.msra.mxu0 %v483
    %7036 = vmatprep.subr.mxu0 0.0
    %7037 = vmatpush1.msra.mxu0 %v484
    %7038 = vmatprep.subr.mxu0 0.0
    %7039 = vmatpush1.msra.mxu0 %v485
    %7040 = vmatprep.subr.mxu0 0.0
    %7041 = vmatpush1.msra.mxu0 %v486
    %7042 = vmatprep.subr.mxu0 0.0
    %7043 = vmatpush1.msra.mxu0 %v487
    %7044 = vmatprep.subr.mxu0 0.0
    %7045 = vmatpush1.msra.mxu0 %v488
    %7046 = vmatprep.subr.mxu0 0.0
    %7047 = vmatpush1.msra.mxu0 %v489
    %7048 = vmatprep.subr.mxu0 0.0
    %7049 = vmatpush1.msra.mxu0 %v490
    %7050 = vmatprep.subr.mxu0 0.0
    %7051 = vmatpush1.msra.mxu0 %v491
    %7052 = vmatprep.subr.mxu0 0.0
    %7053 = vmatpush1.msra.mxu0 %v492
    %7054 = vmatprep.subr.mxu0 0.0
    %7055 = vmatpush1.msra.mxu0 %v493
    %7056 = vmatprep.subr.mxu0 0.0
    %7057 = vmatpush1.msra.mxu0 %v494
    %7058 = vmatprep.subr.mxu0 0.0
    %7059 = vmatpush1.msra.mxu0 %v495
    %7060 = vmatprep.subr.mxu0 0.0
    %7061 = vmatpush1.msra.mxu0 %v496
    %7062 = vmatprep.subr.mxu0 0.0
    %7063 = vmatpush1.msra.mxu0 %v497
    %7064 = vmatprep.subr.mxu0 0.0
    %7065 = vmatpush1.msra.mxu0 %v498
    %7066 = vmatprep.subr.mxu0 0.0
    %7067 = vmatpush1.msra.mxu0 %v499
    %7068 = vmatprep.subr.mxu0 0.0
    %7069 = vmatpush1.msra.mxu0 %v500
    %7070 = vmatprep.subr.mxu0 0.0
    %7071 = vmatpush1.msra.mxu0 %v501
    %7072 = vmatprep.subr.mxu0 0.0
    %7073 = vmatpush1.msra.mxu0 %v502
    %7074 = vmatprep.subr.mxu0 0.0
    %7075 = vmatpush1.msra.mxu0 %v503
    %7076 = vmatprep.subr.mxu0 0.0
    %7077 = vmatpush1.msra.mxu0 %v504
    %7078 = vmatprep.subr.mxu0 0.0
    %7079 = vmatpush1.msra.mxu0 %v505
    %7080 = vmatprep.subr.mxu0 0.0
    %7081 = vmatpush1.msra.mxu0 %v506
    %7082 = vmatprep.subr.mxu0 0.0
    %7083 = vmatpush1.msra.mxu0 %v507
    %7084 = vmatprep.subr.mxu0 0.0
    %7085 = vmatpush1.msra.mxu0 %v508
    %7086 = vmatprep.subr.mxu0 0.0
    %7087 = vmatpush1.msra.mxu0 %v509
    %7088 = vmatprep.subr.mxu0 0.0
    %7089 = vmatpush1.msra.mxu0 %v510
    %7090 = vmatprep.subr.mxu0 0.0
    %7091 = vmatpush1.msra.mxu0 %v511
    %7092 = vmatprep.subr.mxu0 0.0
    %7093 = vmatpush1.msra.mxu0 %v512
    %7094 = vmatprep.subr.mxu0 0.0
    %7095 = vmatpush1.msra.mxu0 %v513
    %7096 = vmatprep.mubr.f32.mxu0 %v6972
    %7097 = vmatmul.mubr.f32.gmra.mrb[0].mxu0 %v6963
    %v7098 = vpop.f32.mrb[0].mxu0
    %v7099 = vadd.f32 0.0, %v7098
    %v7100 = vpop.f32.mrb[0].mxu0
    %7101 = vdwg.mxu0
    %7102 = vmatprep.subr.mxu0 0.0
    %7103 = vmatpush1.msra.mxu0 %v514
    %7104 = vmatprep.subr.mxu0 0.0
    %7105 = vmatpush1.msra.mxu0 %v515
    %7106 = vmatprep.subr.mxu0 0.0
    %7107 = vmatpush1.msra.mxu0 %v516
    %7108 = vmatprep.subr.mxu0 0.0
    %7109 = vmatpush1.msra.mxu0 %v517
    %7110 = vmatprep.subr.mxu0 0.0
    %7111 = vmatpush1.msra.mxu0 0.0
    %7112 = vmatprep.subr.mxu0 0.0
    %7113 = vmatpush1.msra.mxu0 0.0
    %7114 = vmatprep.subr.mxu0 0.0
    %7115 = vmatpush1.msra.mxu0 0.0
    %7116 = vmatprep.subr.mxu0 0.0
    %7117 = vmatpush1.msra.mxu0 0.0
    %7118 = vmatprep.subr.mxu0 0.0
    %7119 = vmatpush1.msra.mxu0 0.0
    %7120 = vmatprep.subr.mxu0 0.0
    %7121 = vmatpush1.msra.mxu0 0.0
    %7122 = vmatprep.subr.mxu0 0.0
    %7123 = vmatpush1.msra.mxu0 0.0
    %7124 = vmatprep.subr.mxu0 0.0
    %7125 = vmatpush1.msra.mxu0 0.0
    %7126 = vmatprep.subr.mxu0 0.0
    %7127 = vmatpush1.msra.mxu0 0.0
    %7128 = vmatprep.subr.mxu0 0.0
    %7129 = vmatpush1.msra.mxu0 0.0
    %7130 = vmatprep.subr.mxu0 0.0
    %7131 = vmatpush1.msra.mxu0 0.0
    %7132 = vmatprep.subr.mxu0 0.0
    %7133 = vmatpush1.msra.mxu0 0.0
    %7134 = vmatprep.subr.mxu0 0.0
    %7135 = vmatpush1.msra.mxu0 0.0
    %7136 = vmatprep.subr.mxu0 0.0
    %7137 = vmatpush1.msra.mxu0 0.0
    %7138 = vmatprep.subr.mxu0 0.0
    %7139 = vmatpush1.msra.mxu0 0.0
    %7140 = vmatprep.subr.mxu0 0.0
    %7141 = vmatpush1.msra.mxu0 0.0
    %7142 = vmatprep.subr.mxu0 0.0
    %7143 = vmatpush1.msra.mxu0 0.0
    %7144 = vmatprep.subr.mxu0 0.0
    %7145 = vmatpush1.msra.mxu0 0.0
    %7146 = vmatprep.subr.mxu0 0.0
    %7147 = vmatpush1.msra.mxu0 0.0
    %7148 = vmatprep.subr.mxu0 0.0
    %7149 = vmatpush1.msra.mxu0 0.0
    %7150 = vmatprep.subr.mxu0 0.0
    %7151 = vmatpush1.msra.mxu0 0.0
    %7152 = vmatprep.subr.mxu0 0.0
    %7153 = vmatpush1.msra.mxu0 0.0
    %7154 = vmatprep.subr.mxu0 0.0
    %7155 = vmatpush1.msra.mxu0 0.0
    %7156 = vmatprep.subr.mxu0 0.0
    %7157 = vmatpush1.msra.mxu0 0.0
    %7158 = vmatprep.subr.mxu0 0.0
    %7159 = vmatpush1.msra.mxu0 0.0
    %7160 = vmatprep.subr.mxu0 0.0
    %7161 = vmatpush1.msra.mxu0 0.0
    %7162 = vmatprep.subr.mxu0 0.0
    %7163 = vmatpush1.msra.mxu0 0.0
    %7164 = vmatprep.subr.mxu0 0.0
    %7165 = vmatpush1.msra.mxu0 0.0
    %7166 = vmatprep.mubr.f32.mxu0 0.0
    %7167 = vmatmul.mubr.f32.gmra.mrb[0].mxu0 %v7030
    %v7168 = vpop.f32.mrb[0].mxu0
    %v7169 = vadd.f32 %v7099, %v7168
    %v7170 = vpop.f32.mrb[0].mxu0
    %7171 = vdwg.mxu0
    %v7172 = vmul.f32 %v7169, 0.0034722222
    %v7174 = vsel %vm425, %v7028, 0
    %7176 = vmatprep.subr.mxu0 0.0
    %7177 = vmatpush1.msra.mxu0 %v482
    %7178 = vmatprep.subr.mxu0 0.0
    %7179 = vmatpush1.msra.mxu0 %v483
    %7180 = vmatprep.subr.mxu0 0.0
    %7181 = vmatpush1.msra.mxu0 %v484
    %7182 = vmatprep.subr.mxu0 0.0
    %7183 = vmatpush1.msra.mxu0 %v485
    %7184 = vmatprep.subr.mxu0 0.0
    %7185 = vmatpush1.msra.mxu0 %v486
    %7186 = vmatprep.subr.mxu0 0.0
    %7187 = vmatpush1.msra.mxu0 %v487
    %7188 = vmatprep.subr.mxu0 0.0
    %7189 = vmatpush1.msra.mxu0 %v488
    %7190 = vmatprep.subr.mxu0 0.0
    %7191 = vmatpush1.msra.mxu0 %v489
    %7192 = vmatprep.subr.mxu0 0.0
    %7193 = vmatpush1.msra.mxu0 %v490
    %7194 = vmatprep.subr.mxu0 0.0
    %7195 = vmatpush1.msra.mxu0 %v491
    %7196 = vmatprep.subr.mxu0 0.0
    %7197 = vmatpush1.msra.mxu0 %v492
    %7198 = vmatprep.subr.mxu0 0.0
    %7199 = vmatpush1.msra.mxu0 %v493
    %7200 = vmatprep.subr.mxu0 0.0
    %7201 = vmatpush1.msra.mxu0 %v494
    %7202 = vmatprep.subr.mxu0 0.0
    %7203 = vmatpush1.msra.mxu0 %v495
    %7204 = vmatprep.subr.mxu0 0.0
    %7205 = vmatpush1.msra.mxu0 %v496
    %7206 = vmatprep.subr.mxu0 0.0
    %7207 = vmatpush1.msra.mxu0 %v497
    %7208 = vmatprep.subr.mxu0 0.0
    %7209 = vmatpush1.msra.mxu0 %v498
    %7210 = vmatprep.subr.mxu0 0.0
    %7211 = vmatpush1.msra.mxu0 %v499
    %7212 = vmatprep.subr.mxu0 0.0
    %7213 = vmatpush1.msra.mxu0 %v500
    %7214 = vmatprep.subr.mxu0 0.0
    %7215 = vmatpush1.msra.mxu0 %v501
    %7216 = vmatprep.subr.mxu0 0.0
    %7217 = vmatpush1.msra.mxu0 %v502
    %7218 = vmatprep.subr.mxu0 0.0
    %7219 = vmatpush1.msra.mxu0 %v503
    %7220 = vmatprep.subr.mxu0 0.0
    %7221 = vmatpush1.msra.mxu0 %v504
    %7222 = vmatprep.subr.mxu0 0.0
    %7223 = vmatpush1.msra.mxu0 %v505
    %7224 = vmatprep.subr.mxu0 0.0
    %7225 = vmatpush1.msra.mxu0 %v506
    %7226 = vmatprep.subr.mxu0 0.0
    %7227 = vmatpush1.msra.mxu0 %v507
    %7228 = vmatprep.subr.mxu0 0.0
    %7229 = vmatpush1.msra.mxu0 %v508
    %7230 = vmatprep.subr.mxu0 0.0
    %7231 = vmatpush1.msra.mxu0 %v509
    %7232 = vmatprep.subr.mxu0 0.0
    %7233 = vmatpush1.msra.mxu0 %v510
    %7234 = vmatprep.subr.mxu0 0.0
    %7235 = vmatpush1.msra.mxu0 %v511
    %7236 = vmatprep.subr.mxu0 0.0
    %7237 = vmatpush1.msra.mxu0 %v512
    %7238 = vmatprep.subr.mxu0 0.0
    %7239 = vmatpush1.msra.mxu0 %v513
    %7240 = vmatprep.mubr.f32.mxu0 %v7015
    %7241 = vmatmul.mubr.f32.gmra.mrb[0].mxu0 %v7006
    %v7242 = vpop.f32.mrb[0].mxu0
    %v7243 = vadd.f32 0.0, %v7242
    %v7244 = vpop.f32.mrb[0].mxu0
    %7245 = vdwg.mxu0
    %7246 = vmatprep.subr.mxu0 0.0
    %7247 = vmatpush1.msra.mxu0 %v514
    %7248 = vmatprep.subr.mxu0 0.0
    %7249 = vmatpush1.msra.mxu0 %v515
    %7250 = vmatprep.subr.mxu0 0.0
    %7251 = vmatpush1.msra.mxu0 %v516
    %7252 = vmatprep.subr.mxu0 0.0
    %7253 = vmatpush1.msra.mxu0 %v517
    %7254 = vmatprep.subr.mxu0 0.0
    %7255 = vmatpush1.msra.mxu0 0.0
    %7256 = vmatprep.subr.mxu0 0.0
    %7257 = vmatpush1.msra.mxu0 0.0
    %7258 = vmatprep.subr.mxu0 0.0
    %7259 = vmatpush1.msra.mxu0 0.0
    %7260 = vmatprep.subr.mxu0 0.0
    %7261 = vmatpush1.msra.mxu0 0.0
    %7262 = vmatprep.subr.mxu0 0.0
    %7263 = vmatpush1.msra.mxu0 0.0
    %7264 = vmatprep.subr.mxu0 0.0
    %7265 = vmatpush1.msra.mxu0 0.0
    %7266 = vmatprep.subr.mxu0 0.0
    %7267 = vmatpush1.msra.mxu0 0.0
    %7268 = vmatprep.subr.mxu0 0.0
    %7269 = vmatpush1.msra.mxu0 0.0
    %7270 = vmatprep.subr.mxu0 0.0
    %7271 = vmatpush1.msra.mxu0 0.0
    %7272 = vmatprep.subr.mxu0 0.0
    %7273 = vmatpush1.msra.mxu0 0.0
    %7274 = vmatprep.subr.mxu0 0.0
    %7275 = vmatpush1.msra.mxu0 0.0
    %7276 = vmatprep.subr.mxu0 0.0
    %7277 = vmatpush1.msra.mxu0 0.0
    %7278 = vmatprep.subr.mxu0 0.0
    %7279 = vmatpush1.msra.mxu0 0.0
    %7280 = vmatprep.subr.mxu0 0.0
    %7281 = vmatpush1.msra.mxu0 0.0
    %7282 = vmatprep.subr.mxu0 0.0
    %7283 = vmatpush1.msra.mxu0 0.0
    %7284 = vmatprep.subr.mxu0 0.0
    %7285 = vmatpush1.msra.mxu0 0.0
    %7286 = vmatprep.subr.mxu0 0.0
    %7287 = vmatpush1.msra.mxu0 0.0
    %7288 = vmatprep.subr.mxu0 0.0
    %7289 = vmatpush1.msra.mxu0 0.0
    %7290 = vmatprep.subr.mxu0 0.0
    %7291 = vmatpush1.msra.mxu0 0.0
    %7292 = vmatprep.subr.mxu0 0.0
    %7293 = vmatpush1.msra.mxu0 0.0
    %7294 = vmatprep.subr.mxu0 0.0
    %7295 = vmatpush1.msra.mxu0 0.0
    %7296 = vmatprep.subr.mxu0 0.0
    %7297 = vmatpush1.msra.mxu0 0.0
    %7298 = vmatprep.subr.mxu0 0.0
    %7299 = vmatpush1.msra.mxu0 0.0
    %7300 = vmatprep.subr.mxu0 0.0
    %7301 = vmatpush1.msra.mxu0 0.0
    %7302 = vmatprep.subr.mxu0 0.0
    %7303 = vmatpush1.msra.mxu0 0.0
    %7304 = vmatprep.subr.mxu0 0.0
    %7305 = vmatpush1.msra.mxu0 0.0
    %7306 = vmatprep.subr.mxu0 0.0
    %7307 = vmatpush1.msra.mxu0 0.0
    %7308 = vmatprep.subr.mxu0 0.0
    %7309 = vmatpush1.msra.mxu0 0.0
    %7310 = vmatprep.mubr.f32.mxu0 0.0
    %7311 = vmatmul.mubr.f32.gmra.mrb[0].mxu0 %v7174
    %v7312 = vpop.f32.mrb[0].mxu0
    %v7313 = vadd.f32 %v7243, %v7312
    %v7314 = vpop.f32.mrb[0].mxu0
    %7315 = vdwg.mxu0
    %v7316 = vmul.f32 %v7313, 0.0034722222
    %v7317 = vmul.f32 %v7172, %v7172
    %v7318 = vsub.f32 %v7316, %v7317
    %v7319 = vld [vmem:[%s35] sm:$0x1]
    %v7320 = vadd.f32 %v7318, 1e-05
    %v7321 = vrsqrt.pop %v7320
    %v7322 = vmul.f32 %v7319, %v7321
    %v7323 = vld [vmem:[%s37] sm:$0x1]
    %v7324 = vmul.f32 %v7172, %v7322
    %v7325 = vsub.f32 %v7323, %v7324
    %v7327 = vsel %vm425, %v7322, 0
    %7329 = vmatprep.subr.mxu0 %v816
    %7330 = vmatpush1.msra.mxu0 %v815
    %7331 = vmatprep.subr.mxu0 %v819
    %7332 = vmatpush1.msra.mxu0 %v818
    %7333 = vmatprep.subr.mxu0 %v822
    %7334 = vmatpush1.msra.mxu0 %v821
    %7335 = vmatprep.subr.mxu0 %v825
    %7336 = vmatpush1.msra.mxu0 %v824
    %7337 = vmatprep.subr.mxu0 0.0
    %7338 = vmatpush1.msra.mxu0 0.0
    %7339 = vmatprep.subr.mxu0 0.0
    %7340 = vmatpush1.msra.mxu0 0.0
    %7341 = vmatprep.subr.mxu0 0.0
    %7342 = vmatpush1.msra.mxu0 0.0
    %7343 = vmatprep.subr.mxu0 0.0
    %7344 = vmatpush1.msra.mxu0 0.0
    %7345 = vmatprep.subr.mxu0 0.0
    %7346 = vmatpush1.msra.mxu0 0.0
    %7347 = vmatprep.subr.mxu0 0.0
    %7348 = vmatpush1.msra.mxu0 0.0
    %7349 = vmatprep.subr.mxu0 0.0
    %7350 = vmatpush1.msra.mxu0 0.0
    %7351 = vmatprep.subr.mxu0 0.0
    %7352 = vmatpush1.msra.mxu0 0.0
    %7353 = vmatprep.subr.mxu0 0.0
    %7354 = vmatpush1.msra.mxu0 0.0
    %7355 = vmatprep.subr.mxu0 0.0
    %7356 = vmatpush1.msra.mxu0 0.0
    %7357 = vmatprep.subr.mxu0 0.0
    %7358 = vmatpush1.msra.mxu0 0.0
    %7359 = vmatprep.subr.mxu0 0.0
    %7360 = vmatpush1.msra.mxu0 0.0
    %7361 = vmatprep.subr.mxu0 0.0
    %7362 = vmatpush1.msra.mxu0 0.0
    %7363 = vmatprep.subr.mxu0 0.0
    %7364 = vmatpush1.msra.mxu0 0.0
    %7365 = vmatprep.subr.mxu0 0.0
    %7366 = vmatpush1.msra.mxu0 0.0
    %7367 = vmatprep.subr.mxu0 0.0
    %7368 = vmatpush1.msra.mxu0 0.0
    %7369 = vmatprep.subr.mxu0 0.0
    %7370 = vmatpush1.msra.mxu0 0.0
    %7371 = vmatprep.subr.mxu0 0.0
    %7372 = vmatpush1.msra.mxu0 0.0
    %7373 = vmatprep.subr.mxu0 0.0
    %7374 = vmatpush1.msra.mxu0 0.0
    %7375 = vmatprep.subr.mxu0 0.0
    %7376 = vmatpush1.msra.mxu0 0.0
    %7377 = vmatprep.subr.mxu0 0.0
    %7378 = vmatpush1.msra.mxu0 0.0
    %7379 = vmatprep.subr.mxu0 0.0
    %7380 = vmatpush1.msra.mxu0 0.0
    %7381 = vmatprep.subr.mxu0 0.0
    %7382 = vmatpush1.msra.mxu0 0.0
    %7383 = vmatprep.subr.mxu0 0.0
    %7384 = vmatpush1.msra.mxu0 0.0
    %7385 = vmatprep.subr.mxu0 0.0
    %7386 = vmatpush1.msra.mxu0 0.0
    %7387 = vmatprep.subr.mxu0 0.0
    %7388 = vmatpush1.msra.mxu0 0.0
    %7389 = vmatprep.subr.mxu0 0.0
    %7390 = vmatpush1.msra.mxu0 0.0
    %7391 = vmatprep.subr.mxu0 0.0
    %7392 = vmatpush1.msra.mxu0 0.0
    %7393 = vmatprep.mubr.f32.mxu0 0.0
    %7394 = vmatmul.mubr.f32.gmra.mrb[0].mxu0 %v7327
    %v7395 = vpop.f32.mrb[0].mxu0
    %v7396 = vadd.f32 0.0, %v7395
    %v7397 = vpop.f32.mrb[0].mxu0
    %v7398 = vadd.f32 0.0, %v7397
    %7399 = vdwg.mxu0
    %7400 = vmatprep.subr.mxu0 0.0
    %7401 = vmatpush1.msra.mxu0 %v817
    %7402 = vmatprep.subr.mxu0 0.0
    %7403 = vmatpush1.msra.mxu0 %v820
    %7404 = vmatprep.subr.mxu0 0.0
    %7405 = vmatpush1.msra.mxu0 %v823
    %7406 = vmatprep.subr.mxu0 0.0
    %7407 = vmatpush1.msra.mxu0 %v826
    %7408 = vmatprep.subr.mxu0 0.0
    %7409 = vmatpush1.msra.mxu0 0.0
    %7410 = vmatprep.subr.mxu0 0.0
    %7411 = vmatpush1.msra.mxu0 0.0
    %7412 = vmatprep.subr.mxu0 0.0
    %7413 = vmatpush1.msra.mxu0 0.0
    %7414 = vmatprep.subr.mxu0 0.0
    %7415 = vmatpush1.msra.mxu0 0.0
    %7416 = vmatprep.subr.mxu0 0.0
    %7417 = vmatpush1.msra.mxu0 0.0
    %7418 = vmatprep.subr.mxu0 0.0
    %7419 = vmatpush1.msra.mxu0 0.0
    %7420 = vmatprep.subr.mxu0 0.0
    %7421 = vmatpush1.msra.mxu0 0.0
    %7422 = vmatprep.subr.mxu0 0.0
    %7423 = vmatpush1.msra.mxu0 0.0
    %7424 = vmatprep.subr.mxu0 0.0
    %7425 = vmatpush1.msra.mxu0 0.0
    %7426 = vmatprep.subr.mxu0 0.0
    %7427 = vmatpush1.msra.mxu0 0.0
    %7428 = vmatprep.subr.mxu0 0.0
    %7429 = vmatpush1.msra.mxu0 0.0
    %7430 = vmatprep.subr.mxu0 0.0
    %7431 = vmatpush1.msra.mxu0 0.0
    %7432 = vmatprep.subr.mxu0 0.0
    %7433 = vmatpush1.msra.mxu0 0.0
    %7434 = vmatprep.subr.mxu0 0.0
    %7435 = vmatpush1.msra.mxu0 0.0
    %7436 = vmatprep.subr.mxu0 0.0
    %7437 = vmatpush1.msra.mxu0 0.0
    %7438 = vmatprep.subr.mxu0 0.0
    %7439 = vmatpush1.msra.mxu0 0.0
    %7440 = vmatprep.subr.mxu0 0.0
    %7441 = vmatpush1.msra.mxu0 0.0
    %7442 = vmatprep.subr.mxu0 0.0
    %7443 = vmatpush1.msra.mxu0 0.0
    %7444 = vmatprep.subr.mxu0 0.0
    %7445 = vmatpush1.msra.mxu0 0.0
    %7446 = vmatprep.subr.mxu0 0.0
    %7447 = vmatpush1.msra.mxu0 0.0
    %7448 = vmatprep.subr.mxu0 0.0
    %7449 = vmatpush1.msra.mxu0 0.0
    %7450 = vmatprep.subr.mxu0 0.0
    %7451 = vmatpush1.msra.mxu0 0.0
    %7452 = vmatprep.subr.mxu0 0.0
    %7453 = vmatpush1.msra.mxu0 0.0
    %7454 = vmatprep.subr.mxu0 0.0
    %7455 = vmatpush1.msra.mxu0 0.0
    %7456 = vmatprep.subr.mxu0 0.0
    %7457 = vmatpush1.msra.mxu0 0.0
    %7458 = vmatprep.subr.mxu0 0.0
    %7459 = vmatpush1.msra.mxu0 0.0
    %7460 = vmatprep.subr.mxu0 0.0
    %7461 = vmatpush1.msra.mxu0 0.0
    %7462 = vmatprep.subr.mxu0 0.0
    %7463 = vmatpush1.msra.mxu0 0.0
    %7464 = vmatprep.mubr.f32.mxu0 0.0
    %7465 = vmatmul.mubr.f32.gmra.mrb[0].mxu0 %v7327
    %v7466 = vpop.f32.mrb[0].mxu0
    %v7467 = vadd.f32 0.0, %v7466
    %v7468 = vpop.f32.mrb[0].mxu0
    %7469 = vdwg.mxu0
    %v7471 = vsel %vm425, %v7325, 0
    %7473 = vmatprep.subr.mxu0 %v816
    %7474 = vmatpush1.msra.mxu0 %v815
    %7475 = vmatprep.subr.mxu0 %v819
    %7476 = vmatpush1.msra.mxu0 %v818
    %7477 = vmatprep.subr.mxu0 %v822
    %7478 = vmatpush1.msra.mxu0 %v821
    %7479 = vmatprep.subr.mxu0 %v825
    %7480 = vmatpush1.msra.mxu0 %v824
    %7481 = vmatprep.subr.mxu0 0.0
    %7482 = vmatpush1.msra.mxu0 0.0
    %7483 = vmatprep.subr.mxu0 0.0
    %7484 = vmatpush1.msra.mxu0 0.0
    %7485 = vmatprep.subr.mxu0 0.0
    %7486 = vmatpush1.msra.mxu0 0.0
    %7487 = vmatprep.subr.mxu0 0.0
    %7488 = vmatpush1.msra.mxu0 0.0
    %7489 = vmatprep.subr.mxu0 0.0
    %7490 = vmatpush1.msra.mxu0 0.0
    %7491 = vmatprep.subr.mxu0 0.0
    %7492 = vmatpush1.msra.mxu0 0.0
    %7493 = vmatprep.subr.mxu0 0.0
    %7494 = vmatpush1.msra.mxu0 0.0
    %7495 = vmatprep.subr.mxu0 0.0
    %7496 = vmatpush1.msra.mxu0 0.0
    %7497 = vmatprep.subr.mxu0 0.0
    %7498 = vmatpush1.msra.mxu0 0.0
    %7499 = vmatprep.subr.mxu0 0.0
    %7500 = vmatpush1.msra.mxu0 0.0
    %7501 = vmatprep.subr.mxu0 0.0
    %7502 = vmatpush1.msra.mxu0 0.0
    %7503 = vmatprep.subr.mxu0 0.0
    %7504 = vmatpush1.msra.mxu0 0.0
    %7505 = vmatprep.subr.mxu0 0.0
    %7506 = vmatpush1.msra.mxu0 0.0
    %7507 = vmatprep.subr.mxu0 0.0
    %7508 = vmatpush1.msra.mxu0 0.0
    %7509 = vmatprep.subr.mxu0 0.0
    %7510 = vmatpush1.msra.mxu0 0.0
    %7511 = vmatprep.subr.mxu0 0.0
    %7512 = vmatpush1.msra.mxu0 0.0
    %7513 = vmatprep.subr.mxu0 0.0
    %7514 = vmatpush1.msra.mxu0 0.0
    %7515 = vmatprep.subr.mxu0 0.0
    %7516 = vmatpush1.msra.mxu0 0.0
    %7517 = vmatprep.subr.mxu0 0.0
    %7518 = vmatpush1.msra.mxu0 0.0
    %7519 = vmatprep.subr.mxu0 0.0
    %7520 = vmatpush1.msra.mxu0 0.0
    %7521 = vmatprep.subr.mxu0 0.0
    %7522 = vmatpush1.msra.mxu0 0.0
    %7523 = vmatprep.subr.mxu0 0.0
    %7524 = vmatpush1.msra.mxu0 0.0
    %7525 = vmatprep.subr.mxu0 0.0
    %7526 = vmatpush1.msra.mxu0 0.0
    %7527 = vmatprep.subr.mxu0 0.0
    %7528 = vmatpush1.msra.mxu0 0.0
    %7529 = vmatprep.subr.mxu0 0.0
    %7530 = vmatpush1.msra.mxu0 0.0
    %7531 = vmatprep.subr.mxu0 0.0
    %7532 = vmatpush1.msra.mxu0 0.0
    %7533 = vmatprep.subr.mxu0 0.0
    %7534 = vmatpush1.msra.mxu0 0.0
    %7535 = vmatprep.subr.mxu0 0.0
    %7536 = vmatpush1.msra.mxu0 0.0
    %7537 = vmatprep.mubr.f32.mxu0 0.0
    %7538 = vmatmul.mubr.f32.gmra.mrb[0].mxu0 %v7471
    %v7539 = vpop.f32.mrb[0].mxu0
    %v7540 = vadd.f32 0.0, %v7539
    %v7541 = vpop.f32.mrb[0].mxu0
    %v7542 = vadd.f32 0.0, %v7541
    %7543 = vdwg.mxu0
    %7544 = vmatprep.subr.mxu0 0.0
    %7545 = vmatpush1.msra.mxu0 %v817
    %7546 = vmatprep.subr.mxu0 0.0
    %7547 = vmatpush1.msra.mxu0 %v820
    %7548 = vmatprep.subr.mxu0 0.0
    %7549 = vmatpush1.msra.mxu0 %v823
    %7550 = vmatprep.subr.mxu0 0.0
    %7551 = vmatpush1.msra.mxu0 %v826
    %7552 = vmatprep.subr.mxu0 0.0
    %7553 = vmatpush1.msra.mxu0 0.0
    %7554 = vmatprep.subr.mxu0 0.0
    %7555 = vmatpush1.msra.mxu0 0.0
    %7556 = vmatprep.subr.mxu0 0.0
    %7557 = vmatpush1.msra.mxu0 0.0
    %7558 = vmatprep.subr.mxu0 0.0
    %7559 = vmatpush1.msra.mxu0 0.0
    %7560 = vmatprep.subr.mxu0 0.0
    %7561 = vmatpush1.msra.mxu0 0.0
    %7562 = vmatprep.subr.mxu0 0.0
    %7563 = vmatpush1.msra.mxu0 0.0
    %7564 = vmatprep.subr.mxu0 0.0
    %7565 = vmatpush1.msra.mxu0 0.0
    %7566 = vmatprep.subr.mxu0 0.0
    %7567 = vmatpush1.msra.mxu0 0.0
    %7568 = vmatprep.subr.mxu0 0.0
    %7569 = vmatpush1.msra.mxu0 0.0
    %7570 = vmatprep.subr.mxu0 0.0
    %7571 = vmatpush1.msra.mxu0 0.0
    %7572 = vmatprep.subr.mxu0 0.0
    %7573 = vmatpush1.msra.mxu0 0.0
    %7574 = vmatprep.subr.mxu0 0.0
    %7575 = vmatpush1.msra.mxu0 0.0
    %7576 = vmatprep.subr.mxu0 0.0
    %7577 = vmatpush1.msra.mxu0 0.0
    %7578 = vmatprep.subr.mxu0 0.0
    %7579 = vmatpush1.msra.mxu0 0.0
    %7580 = vmatprep.subr.mxu0 0.0
    %7581 = vmatpush1.msra.mxu0 0.0
    %7582 = vmatprep.subr.mxu0 0.0
    %7583 = vmatpush1.msra.mxu0 0.0
    %7584 = vmatprep.subr.mxu0 0.0
    %7585 = vmatpush1.msra.mxu0 0.0
    %7586 = vmatprep.subr.mxu0 0.0
    %7587 = vmatpush1.msra.mxu0 0.0
    %7588 = vmatprep.subr.mxu0 0.0
    %7589 = vmatpush1.msra.mxu0 0.0
    %7590 = vmatprep.subr.mxu0 0.0
    %7591 = vmatpush1.msra.mxu0 0.0
    %7592 = vmatprep.subr.mxu0 0.0
    %7593 = vmatpush1.msra.mxu0 0.0
    %7594 = vmatprep.subr.mxu0 0.0
    %7595 = vmatpush1.msra.mxu0 0.0
    %7596 = vmatprep.subr.mxu0 0.0
    %7597 = vmatpush1.msra.mxu0 0.0
    %7598 = vmatprep.subr.mxu0 0.0
    %7599 = vmatpush1.msra.mxu0 0.0
    %7600 = vmatprep.subr.mxu0 0.0
    %7601 = vmatpush1.msra.mxu0 0.0
    %7602 = vmatprep.subr.mxu0 0.0
    %7603 = vmatpush1.msra.mxu0 0.0
    %7604 = vmatprep.subr.mxu0 0.0
    %7605 = vmatpush1.msra.mxu0 0.0
    %7606 = vmatprep.subr.mxu0 0.0
    %7607 = vmatpush1.msra.mxu0 0.0
    %7608 = vmatprep.mubr.f32.mxu0 0.0
    %7609 = vmatmul.mubr.f32.gmra.mrb[0].mxu0 %v7471
    %v7610 = vpop.f32.mrb[0].mxu0
    %v7611 = vadd.f32 0.0, %v7610
    %v7612 = vpop.f32.mrb[0].mxu0
    %7613 = vdwg.mxu0
    %v7614 = vlaneseq
    %v7615 = vshrl.u32 %v7614, 7
    %v7616 = vsub.s32 0, %v7615
    %v7617 = vrot.slane %v7396, %v7616
    %v7618 = vlaneseq
    %v7619 = vshrl.u32 %v7618, 7
    %v7620 = vsub.s32 0, %v7619
    %v7621 = vrot.slane %v7398, %v7620
    %v7622 = vlaneseq
    %v7623 = vshrl.u32 %v7622, 7
    %v7624 = vsub.s32 0, %v7623
    %v7625 = vrot.slane %v7467, %v7624
    %v7626 = vmul.f32 %v6839, %v7617
    %v7627 = vmul.f32 %v6841, %v7621
    %v7628 = vmul.f32 %v6941, %v7625
    %v7629 = vmul.f32 %v6843, %v7617
    %v7630 = vmul.f32 %v6845, %v7621
    %v7631 = vmul.f32 %v6944, %v7625
    %v7632 = vmul.f32 %v6849, %v7617
    %v7633 = vmul.f32 %v6851, %v7621
    %v7634 = vmul.f32 %v6949, %v7625
    %v7635 = vmul.f32 %v6853, %v7617
    %v7636 = vmul.f32 %v6855, %v7621
    %v7637 = vmul.f32 %v6952, %v7625
    %v7638 = vlaneseq
    %v7639 = vshrl.u32 %v7638, 7
    %v7640 = vsub.s32 0, %v7639
    %v7641 = vrot.slane %v7540, %v7640
    %v7642 = vlaneseq
    %v7643 = vshrl.u32 %v7642, 7
    %v7644 = vsub.s32 0, %v7643
    %v7645 = vrot.slane %v7542, %v7644
    %v7646 = vlaneseq
    %v7647 = vshrl.u32 %v7646, 7
    %v7648 = vsub.s32 0, %v7647
    %v7649 = vrot.slane %v7611, %v7648
    %v7650 = vadd.f32 %v7626, %v7641
    %v7651 = vadd.f32 %v7627, %v7645
    %v7652 = vadd.f32 %v7628, %v7649
    %v7653 = vadd.f32 %v7629, %v7641
    %v7654 = vadd.f32 %v7630, %v7645
    %v7655 = vadd.f32 %v7631, %v7649
    %v7656 = vadd.f32 %v7632, %v7641
    %v7657 = vadd.f32 %v7633, %v7645
    %v7658 = vadd.f32 %v7634, %v7649
    %v7659 = vadd.f32 %v7635, %v7641
    %v7660 = vadd.f32 %v7636, %v7645
    %v7661 = vadd.f32 %v7637, %v7649
    %v7662 = vmax.f32 %v7650, 0.0
    %v7663 = vmax.f32 %v7651, 0.0
    %v7664 = vmax.f32 %v7652, 0.0
    %v7665 = vmax.f32 %v7653, 0.0
    %v7666 = vmax.f32 %v7654, 0.0
    %v7667 = vmax.f32 %v7655, 0.0
    %v7668 = vmax.f32 %v7656, 0.0
    %v7669 = vmax.f32 %v7657, 0.0
    %v7670 = vmax.f32 %v7658, 0.0
    %v7671 = vmax.f32 %v7659, 0.0
    %v7672 = vmax.f32 %v7660, 0.0
    %v7673 = vmax.f32 %v7661, 0.0
    %v7674 = vld [vmem:[%s39] sm:$0xf]
    %v7675 = vld [vmem:[%s39 + $0x4] sm:$0xf]
    %v7676 = vld [vmem:[%s39 + $0x8] sm:$0xf]
    %v7677 = vld [vmem:[%s39 + $0xc] sm:$0xf]
    %v7678 = vld [vmem:[%s39 + $0x10] sm:$0xf]
    %v7679 = vld [vmem:[%s39 + $0x14] sm:$0xf]
    %v7680 = vld [vmem:[%s39 + $0x18] sm:$0xf]
    %v7681 = vld [vmem:[%s39 + $0x1c] sm:$0xf]
    %v7682 = vld [vmem:[%s39 + $0x20] sm:$0xf]
    %v7683 = vld [vmem:[%s39 + $0x24] sm:$0xf]
    %v7684 = vld [vmem:[%s39 + $0x28] sm:$0xf]
    %v7685 = vld [vmem:[%s39 + $0x2c] sm:$0xf]
    %v7686 = vld [vmem:[%s39 + $0x30] sm:$0xf]
    %v7687 = vld [vmem:[%s39 + $0x34] sm:$0xf]
    %v7688 = vld [vmem:[%s39 + $0x38] sm:$0xf]
    %v7689 = vld [vmem:[%s39 + $0x3c] sm:$0xf]
    %v7690 = vld [vmem:[%s39 + $0x40] sm:$0xf]
    %v7691 = vld [vmem:[%s39 + $0x44] sm:$0xf]
    %v7692 = vld [vmem:[%s39 + $0x48] sm:$0xf]
    %v7693 = vld [vmem:[%s39 + $0x4c] sm:$0xf]
    %v7694 = vld [vmem:[%s39 + $0x50] sm:$0xf]
    %v7695 = vld [vmem:[%s39 + $0x54] sm:$0xf]
    %v7696 = vld [vmem:[%s39 + $0x58] sm:$0xf]
    %v7697 = vld [vmem:[%s39 + $0x5c] sm:$0xf]
    %v7698 = vld [vmem:[%s39 + $0x60] sm:$0xf]
    %v7699 = vld [vmem:[%s39 + $0x64] sm:$0xf]
    %v7700 = vld [vmem:[%s39 + $0x68] sm:$0xf]
    %v7701 = vld [vmem:[%s39 + $0x6c] sm:$0xf]
    %v7702 = vld [vmem:[%s39 + $0x70] sm:$0xf]
    %v7703 = vld [vmem:[%s39 + $0x74] sm:$0xf]
    %v7704 = vld [vmem:[%s39 + $0x78] sm:$0xf]
    %v7705 = vld [vmem:[%s39 + $0x7c] sm:$0xf]
    %v7706 = vld [vmem:[%s39 + $0x80] sm:$0xf]
    %v7707 = vld [vmem:[%s39 + $0x84] sm:$0xf]
    %v7708 = vld [vmem:[%s39 + $0x88] sm:$0xf]
    %v7709 = vld [vmem:[%s39 + $0x8c] sm:$0xf]
    %v7746 = vunpack.c.l.b16 %v7674
    %v7747 = vunpack.c.l.b16 %v7675
    %v7748 = vunpack.c.l.b16 %v7676
    %v7749 = vunpack.c.l.b16 %v7677
    %v7750 = vunpack.c.l.b16 %v7678
    %v7751 = vunpack.c.l.b16 %v7679
    %v7752 = vunpack.c.l.b16 %v7680
    %v7753 = vunpack.c.l.b16 %v7681
    %v7754 = vunpack.c.l.b16 %v7682
    %v7755 = vunpack.c.l.b16 %v7683
    %v7756 = vunpack.c.l.b16 %v7684
    %v7757 = vunpack.c.l.b16 %v7685
    %v7758 = vunpack.c.l.b16 %v7686
    %v7759 = vunpack.c.l.b16 %v7687
    %v7760 = vunpack.c.l.b16 %v7688
    %v7761 = vunpack.c.l.b16 %v7689
    %v7762 = vunpack.c.l.b16 %v7690
    %v7763 = vunpack.c.l.b16 %v7691
    %v7764 = vunpack.c.l.b16 %v7692
    %v7765 = vunpack.c.l.b16 %v7693
    %v7766 = vunpack.c.l.b16 %v7694
    %v7767 = vunpack.c.l.b16 %v7695
    %v7768 = vunpack.c.l.b16 %v7696
    %v7769 = vunpack.c.l.b16 %v7697
    %v7770 = vunpack.c.l.b16 %v7698
    %v7771 = vunpack.c.l.b16 %v7699
    %v7772 = vunpack.c.l.b16 %v7700
    %v7773 = vunpack.c.l.b16 %v7701
    %v7774 = vunpack.c.l.b16 %v7702
    %v7775 = vunpack.c.l.b16 %v7703
    %v7776 = vunpack.c.l.b16 %v7704
    %v7777 = vunpack.c.l.b16 %v7705
    %v7778 = vunpack.c.l.b16 %v7706
    %v7779 = vunpack.c.l.b16 %v7707
    %v7780 = vunpack.c.l.b16 %v7708
    %v7781 = vunpack.c.l.b16 %v7709
    %v7782 = vpack.c.b16 %v7747, %v7746
    %v7783 = vpack.c.b16 %v7749, %v7748
    %v7784 = vpack.c.b16 %v7751, %v7750
    %v7785 = vpack.c.b16 %v7753, %v7752
    %v7786 = vpack.c.b16 %v7755, %v7754
    %v7787 = vpack.c.b16 %v7757, %v7756
    %v7788 = vpack.c.b16 %v7759, %v7758
    %v7789 = vpack.c.b16 %v7761, %v7760
    %v7790 = vpack.c.b16 %v7763, %v7762
    %v7791 = vpack.c.b16 %v7765, %v7764
    %v7792 = vpack.c.b16 %v7767, %v7766
    %v7793 = vpack.c.b16 %v7769, %v7768
    %v7794 = vpack.c.b16 %v7771, %v7770
    %v7795 = vpack.c.b16 %v7773, %v7772
    %v7796 = vpack.c.b16 %v7775, %v7774
    %v7797 = vpack.c.b16 %v7777, %v7776
    %v7798 = vpack.c.b16 %v7779, %v7778
    %v7799 = vpack.c.b16 %v7781, %v7780
    %7818 = vmatprep.subr.bf16.mxu0 0
    %7819 = vmatpush1.bf16.msra.mxu0 %v7782
    %7820 = vmatprep.subr.bf16.mxu0 0
    %7821 = vmatpush1.bf16.msra.mxu0 %v7783
    %7822 = vmatprep.subr.bf16.mxu0 0
    %7823 = vmatpush1.bf16.msra.mxu0 %v7784
    %7824 = vmatprep.subr.bf16.mxu0 0
    %7825 = vmatpush1.bf16.msra.mxu0 %v7785
    %7826 = vmatprep.subr.bf16.mxu0 0
    %7827 = vmatpush1.bf16.msra.mxu0 %v7786
    %7828 = vmatprep.subr.bf16.mxu0 0
    %7829 = vmatpush1.bf16.msra.mxu0 %v7787
    %7830 = vmatprep.subr.bf16.mxu0 0
    %7831 = vmatpush1.bf16.msra.mxu0 %v7788
    %7832 = vmatprep.subr.bf16.mxu0 0
    %7833 = vmatpush1.bf16.msra.mxu0 %v7789
    %7834 = vmatprep.subr.bf16.mxu0 0
    %7835 = vmatpush1.bf16.msra.mxu0 %v7790
    %7836 = vmatprep.subr.bf16.mxu0 0
    %7837 = vmatpush1.bf16.msra.mxu0 %v7791
    %7838 = vmatprep.subr.bf16.mxu0 0
    %7839 = vmatpush1.bf16.msra.mxu0 %v7792
    %7840 = vmatprep.subr.bf16.mxu0 0
    %7841 = vmatpush1.bf16.msra.mxu0 %v7793
    %7842 = vmatprep.subr.bf16.mxu0 0
    %7843 = vmatpush1.bf16.msra.mxu0 %v7794
    %7844 = vmatprep.subr.bf16.mxu0 0
    %7845 = vmatpush1.bf16.msra.mxu0 %v7795
    %7846 = vmatprep.subr.bf16.mxu0 0
    %7847 = vmatpush1.bf16.msra.mxu0 %v7796
    %7848 = vmatprep.subr.bf16.mxu0 0
    %7849 = vmatpush1.bf16.msra.mxu0 %v7797
    %7850 = vmatprep.mubr.bf16.mxu0 %v6380
    %7851 = vmatmul.mubr.bf16.gmra.mrb[0].mxu0 %v6379
    %v7852 = vpop.f32.mrb[0].mxu0
    %v7853 = vadd.f32 0.0, %v7852
    %v7854 = vpop.f32.mrb[0].mxu0
    %v7855 = vpop.f32.mrb[0].mxu0
    %v7856 = vadd.f32 0.0, %v7855
    %v7857 = vpop.f32.mrb[0].mxu0
    %7858 = vmatprep.mubr.bf16.mxu0 %v6383
    %7859 = vmatmul.mubr.bf16.gmra.mrb[0].mxu0 %v6382
    %v7860 = vpop.f32.mrb[0].mxu0
    %v7861 = vadd.f32 0.0, %v7860
    %v7862 = vpop.f32.mrb[0].mxu0
    %v7863 = vpop.f32.mrb[0].mxu0
    %v7864 = vadd.f32 0.0, %v7863
    %v7865 = vpop.f32.mrb[0].mxu0
    %7866 = vdwg.mxu0
    %7867 = vmatprep.subr.bf16.mxu0 0
    %7868 = vmatpush1.bf16.msra.mxu0 %v7798
    %7869 = vmatprep.subr.bf16.mxu0 0
    %7870 = vmatpush1.bf16.msra.mxu0 %v7799
    %7871 = vmatprep.subr.bf16.mxu0 0
    %7872 = vmatpush1.bf16.msra.mxu0 0
    %7873 = vmatprep.subr.bf16.mxu0 0
    %7874 = vmatpush1.bf16.msra.mxu0 0
    %7875 = vmatprep.subr.bf16.mxu0 0
    %7876 = vmatpush1.bf16.msra.mxu0 0
    %7877 = vmatprep.subr.bf16.mxu0 0
    %7878 = vmatpush1.bf16.msra.mxu0 0
    %7879 = vmatprep.subr.bf16.mxu0 0
    %7880 = vmatpush1.bf16.msra.mxu0 0
    %7881 = vmatprep.subr.bf16.mxu0 0
    %7882 = vmatpush1.bf16.msra.mxu0 0
    %7883 = vmatprep.subr.bf16.mxu0 0
    %7884 = vmatpush1.bf16.msra.mxu0 0
    %7885 = vmatprep.subr.bf16.mxu0 0
    %7886 = vmatpush1.bf16.msra.mxu0 0
    %7887 = vmatprep.subr.bf16.mxu0 0
    %7888 = vmatpush1.bf16.msra.mxu0 0
    %7889 = vmatprep.subr.bf16.mxu0 0
    %7890 = vmatpush1.bf16.msra.mxu0 0
    %7891 = vmatprep.subr.bf16.mxu0 0
    %7892 = vmatpush1.bf16.msra.mxu0 0
    %7893 = vmatprep.subr.bf16.mxu0 0
    %7894 = vmatpush1.bf16.msra.mxu0 0
    %7895 = vmatprep.subr.bf16.mxu0 0
    %7896 = vmatpush1.bf16.msra.mxu0 0
    %7897 = vmatprep.subr.bf16.mxu0 0
    %7898 = vmatpush1.bf16.msra.mxu0 0
    %7899 = vmatprep.mubr.bf16.mxu0 0
    %7900 = vmatmul.mubr.bf16.gmra.mrb[0].mxu0 %v6746
    %v7901 = vpop.f32.mrb[0].mxu0
    %v7902 = vadd.f32 %v7853, %v7901
    %v7903 = vpop.f32.mrb[0].mxu0
    %v7904 = vpop.f32.mrb[0].mxu0
    %v7905 = vadd.f32 %v7856, %v7904
    %v7906 = vpop.f32.mrb[0].mxu0
    %7907 = vmatprep.mubr.bf16.mxu0 0
    %7908 = vmatmul.mubr.bf16.gmra.mrb[0].mxu0 %v6749
    %v7909 = vpop.f32.mrb[0].mxu0
    %v7910 = vadd.f32 %v7861, %v7909
    %v7911 = vpop.f32.mrb[0].mxu0
    %v7912 = vpop.f32.mrb[0].mxu0
    %v7913 = vadd.f32 %v7864, %v7912
    %v7914 = vpop.f32.mrb[0].mxu0
    %7915 = vdwg.mxu0
    %v7916 = vsel %vm285, %v7902, 0.0
    %v7917 = vsel %vm285, %v7905, 0.0
    %v7918 = vadd.f32 %v7916, %v7917
    %v7919 = vsel %vm285, %v7910, 0.0
    %v7920 = vadd.f32 %v7918, %v7919
    %v7921 = vsel %vm285, %v7913, 0.0
    %v7922 = vadd.f32 %v7920, %v7921
    %v7923 = vrot.slane %v7922, 4
    %v7924 = vadd.f32 %v7922, %v7923
    %v7925 = vrot.slane %v7924, 2
    %v7926 = vadd.f32 %v7924, %v7925
    %v7927 = vrot.slane %v7926, 1
    %v7928 = vadd.f32 %v7926, %v7927
    %v7929 = vmul.f32 %v7902, %v7902
    %v7930 = vmul.f32 %v7905, %v7905
    %v7931 = vmul.f32 %v7910, %v7910
    %v7932 = vmul.f32 %v7913, %v7913
    %v7933 = vsel %vm285, %v7929, 0.0
    %v7934 = vsel %vm285, %v7930, 0.0
    %v7935 = vadd.f32 %v7933, %v7934
    %v7936 = vsel %vm285, %v7931, 0.0
    %v7937 = vadd.f32 %v7935, %v7936
    %v7938 = vsel %vm285, %v7932, 0.0
    %v7939 = vadd.f32 %v7937, %v7938
    %v7940 = vrot.slane %v7939, 4
    %v7941 = vadd.f32 %v7939, %v7940
    %v7942 = vrot.slane %v7941, 2
    %v7943 = vadd.f32 %v7941, %v7942
    %v7944 = vrot.slane %v7943, 1
    %v7945 = vadd.f32 %v7943, %v7944
    %v7946 = vld [vmem:[%s49] sm:$0xff]
    %v7947 = vld [vmem:[%s49 + $0x8] sm:$0xff]
    %v7948 = vld [vmem:[%s49 + $0x10] sm:$0xff]
    %v7949 = vld [vmem:[%s49 + $0x18] sm:$0x7]
    %v7951 = vsel %vm285, %v7928, 0
    %vm7953 = vcmask 1042432
    %v7955 = vsel %vm7953, %v7949, 0
    %7957 = vmatprep.subr.mxu0 0.0
    %7958 = vmatpush1.msra.mxu0 %v7946
    %7959 = vmatprep.subr.mxu0 0.0
    %7960 = vmatpush1.msra.mxu0 %v7947
    %7961 = vmatprep.subr.mxu0 0.0
    %7962 = vmatpush1.msra.mxu0 %v7948
    %7963 = vmatprep.subr.mxu0 0.0
    %7964 = vmatpush1.msra.mxu0 %v7955
    %7965 = vmatprep.subr.mxu0 0.0
    %7966 = vmatpush1.msra.mxu0 0.0
    %7967 = vmatprep.subr.mxu0 0.0
    %7968 = vmatpush1.msra.mxu0 0.0
    %7969 = vmatprep.subr.mxu0 0.0
    %7970 = vmatpush1.msra.mxu0 0.0
    %7971 = vmatprep.subr.mxu0 0.0
    %7972 = vmatpush1.msra.mxu0 0.0
    %7973 = vmatprep.subr.mxu0 0.0
    %7974 = vmatpush1.msra.mxu0 0.0
    %7975 = vmatprep.subr.mxu0 0.0
    %7976 = vmatpush1.msra.mxu0 0.0
    %7977 = vmatprep.subr.mxu0 0.0
    %7978 = vmatpush1.msra.mxu0 0.0
    %7979 = vmatprep.subr.mxu0 0.0
    %7980 = vmatpush1.msra.mxu0 0.0
    %7981 = vmatprep.subr.mxu0 0.0
    %7982 = vmatpush1.msra.mxu0 0.0
    %7983 = vmatprep.subr.mxu0 0.0
    %7984 = vmatpush1.msra.mxu0 0.0
    %7985 = vmatprep.subr.mxu0 0.0
    %7986 = vmatpush1.msra.mxu0 0.0
    %7987 = vmatprep.subr.mxu0 0.0
    %7988 = vmatpush1.msra.mxu0 0.0
    %7989 = vmatprep.subr.mxu0 0.0
    %7990 = vmatpush1.msra.mxu0 0.0
    %7991 = vmatprep.subr.mxu0 0.0
    %7992 = vmatpush1.msra.mxu0 0.0
    %7993 = vmatprep.subr.mxu0 0.0
    %7994 = vmatpush1.msra.mxu0 0.0
    %7995 = vmatprep.subr.mxu0 0.0
    %7996 = vmatpush1.msra.mxu0 0.0
    %7997 = vmatprep.subr.mxu0 0.0
    %7998 = vmatpush1.msra.mxu0 0.0
    %7999 = vmatprep.subr.mxu0 0.0
    %8000 = vmatpush1.msra.mxu0 0.0
    %8001 = vmatprep.subr.mxu0 0.0
    %8002 = vmatpush1.msra.mxu0 0.0
    %8003 = vmatprep.subr.mxu0 0.0
    %8004 = vmatpush1.msra.mxu0 0.0
    %8005 = vmatprep.subr.mxu0 0.0
    %8006 = vmatpush1.msra.mxu0 0.0
    %8007 = vmatprep.subr.mxu0 0.0
    %8008 = vmatpush1.msra.mxu0 0.0
    %8009 = vmatprep.subr.mxu0 0.0
    %8010 = vmatpush1.msra.mxu0 0.0
    %8011 = vmatprep.subr.mxu0 0.0
    %8012 = vmatpush1.msra.mxu0 0.0
    %8013 = vmatprep.subr.mxu0 0.0
    %8014 = vmatpush1.msra.mxu0 0.0
    %8015 = vmatprep.subr.mxu0 0.0
    %8016 = vmatpush1.msra.mxu0 0.0
    %8017 = vmatprep.subr.mxu0 0.0
    %8018 = vmatpush1.msra.mxu0 0.0
    %8019 = vmatprep.subr.mxu0 0.0
    %8020 = vmatpush1.msra.mxu0 0.0
    %8021 = vmatprep.mubr.f32.mxu0 0.0
    %8022 = vmatmul.mubr.f32.gmra.mrb[0].mxu0 %v7951
    %v8023 = vpop.f32.mrb[0].mxu0
    %v8024 = vadd.f32 0.0, %v8023
    %v8025 = vpop.f32.mrb[0].mxu0
    %8026 = vdwg.mxu0
    %v8027 = vmul.f32 %v8024, 0.0034722222
    %v8029 = vsel %vm285, %v7945, 0
    %8031 = vmatprep.subr.mxu0 0.0
    %8032 = vmatpush1.msra.mxu0 %v7946
    %8033 = vmatprep.subr.mxu0 0.0
    %8034 = vmatpush1.msra.mxu0 %v7947
    %8035 = vmatprep.subr.mxu0 0.0
    %8036 = vmatpush1.msra.mxu0 %v7948
    %8037 = vmatprep.subr.mxu0 0.0
    %8038 = vmatpush1.msra.mxu0 %v7955
    %8039 = vmatprep.subr.mxu0 0.0
    %8040 = vmatpush1.msra.mxu0 0.0
    %8041 = vmatprep.subr.mxu0 0.0
    %8042 = vmatpush1.msra.mxu0 0.0
    %8043 = vmatprep.subr.mxu0 0.0
    %8044 = vmatpush1.msra.mxu0 0.0
    %8045 = vmatprep.subr.mxu0 0.0
    %8046 = vmatpush1.msra.mxu0 0.0
    %8047 = vmatprep.subr.mxu0 0.0
    %8048 = vmatpush1.msra.mxu0 0.0
    %8049 = vmatprep.subr.mxu0 0.0
    %8050 = vmatpush1.msra.mxu0 0.0
    %8051 = vmatprep.subr.mxu0 0.0
    %8052 = vmatpush1.msra.mxu0 0.0
    %8053 = vmatprep.subr.mxu0 0.0
    %8054 = vmatpush1.msra.mxu0 0.0
    %8055 = vmatprep.subr.mxu0 0.0
    %8056 = vmatpush1.msra.mxu0 0.0
    %8057 = vmatprep.subr.mxu0 0.0
    %8058 = vmatpush1.msra.mxu0 0.0
    %8059 = vmatprep.subr.mxu0 0.0
    %8060 = vmatpush1.msra.mxu0 0.0
    %8061 = vmatprep.subr.mxu0 0.0
    %8062 = vmatpush1.msra.mxu0 0.0
    %8063 = vmatprep.subr.mxu0 0.0
    %8064 = vmatpush1.msra.mxu0 0.0
    %8065 = vmatprep.subr.mxu0 0.0
    %8066 = vmatpush1.msra.mxu0 0.0
    %8067 = vmatprep.subr.mxu0 0.0
    %8068 = vmatpush1.msra.mxu0 0.0
    %8069 = vmatprep.subr.mxu0 0.0
    %8070 = vmatpush1.msra.mxu0 0.0
    %8071 = vmatprep.subr.mxu0 0.0
    %8072 = vmatpush1.msra.mxu0 0.0
    %8073 = vmatprep.subr.mxu0 0.0
    %8074 = vmatpush1.msra.mxu0 0.0
    %8075 = vmatprep.subr.mxu0 0.0
    %8076 = vmatpush1.msra.mxu0 0.0
    %8077 = vmatprep.subr.mxu0 0.0
    %8078 = vmatpush1.msra.mxu0 0.0
    %8079 = vmatprep.subr.mxu0 0.0
    %8080 = vmatpush1.msra.mxu0 0.0
    %8081 = vmatprep.subr.mxu0 0.0
    %8082 = vmatpush1.msra.mxu0 0.0
    %8083 = vmatprep.subr.mxu0 0.0
    %8084 = vmatpush1.msra.mxu0 0.0
    %8085 = vmatprep.subr.mxu0 0.0
    %8086 = vmatpush1.msra.mxu0 0.0
    %8087 = vmatprep.subr.mxu0 0.0
    %8088 = vmatpush1.msra.mxu0 0.0
    %8089 = vmatprep.subr.mxu0 0.0
    %8090 = vmatpush1.msra.mxu0 0.0
    %8091 = vmatprep.subr.mxu0 0.0
    %8092 = vmatpush1.msra.mxu0 0.0
    %8093 = vmatprep.subr.mxu0 0.0
    %8094 = vmatpush1.msra.mxu0 0.0
    %8095 = vmatprep.mubr.f32.mxu0 0.0
    %8096 = vmatmul.mubr.f32.gmra.mrb[0].mxu0 %v8029
    %v8097 = vpop.f32.mrb[0].mxu0
    %v8098 = vadd.f32 0.0, %v8097
    %v8099 = vpop.f32.mrb[0].mxu0
    %8100 = vdwg.mxu0
    %v8101 = vmul.f32 %v8098, 0.0034722222
    %v8102 = vmul.f32 %v8027, %v8027
    %v8103 = vsub.f32 %v8101, %v8102
    %v8104 = vld [vmem:[%s41] sm:$0x1]
    %v8105 = vadd.f32 %v8103, 1e-05
    %v8106 = vrsqrt.pop %v8105
    %v8107 = vmul.f32 %v8104, %v8106
    %v8108 = vld [vmem:[%s43] sm:$0x1]
    %v8109 = vmul.f32 %v8027, %v8107
    %v8110 = vsub.f32 %v8108, %v8109
    %v8111 = vld [vmem:[#allocation14] sm:$0x7]
    %vm8112 = vcmask 23552
    %v8114 = vsel %vm8112, %v8107, 0
    %v8117 = vsel %vm7953, %v8111, 0
    %8119 = vmatprep.subr.mxu0 0.0
    %8120 = vmatpush1.msra.mxu0 %v8117
    %8121 = vmatprep.subr.mxu0 0.0
    %8122 = vmatpush1.msra.mxu0 0.0
    %8123 = vmatprep.subr.mxu0 0.0
    %8124 = vmatpush1.msra.mxu0 0.0
    %8125 = vmatprep.subr.mxu0 0.0
    %8126 = vmatpush1.msra.mxu0 0.0
    %8127 = vmatprep.subr.mxu0 0.0
    %8128 = vmatpush1.msra.mxu0 0.0
    %8129 = vmatprep.subr.mxu0 0.0
    %8130 = vmatpush1.msra.mxu0 0.0
    %8131 = vmatprep.subr.mxu0 0.0
    %8132 = vmatpush1.msra.mxu0 0.0
    %8133 = vmatprep.subr.mxu0 0.0
    %8134 = vmatpush1.msra.mxu0 0.0
    %8135 = vmatprep.subr.mxu0 0.0
    %8136 = vmatpush1.msra.mxu0 0.0
    %8137 = vmatprep.subr.mxu0 0.0
    %8138 = vmatpush1.msra.mxu0 0.0
    %8139 = vmatprep.subr.mxu0 0.0
    %8140 = vmatpush1.msra.mxu0 0.0
    %8141 = vmatprep.subr.mxu0 0.0
    %8142 = vmatpush1.msra.mxu0 0.0
    %8143 = vmatprep.subr.mxu0 0.0
    %8144 = vmatpush1.msra.mxu0 0.0
    %8145 = vmatprep.subr.mxu0 0.0
    %8146 = vmatpush1.msra.mxu0 0.0
    %8147 = vmatprep.subr.mxu0 0.0
    %8148 = vmatpush1.msra.mxu0 0.0
    %8149 = vmatprep.subr.mxu0 0.0
    %8150 = vmatpush1.msra.mxu0 0.0
    %8151 = vmatprep.subr.mxu0 0.0
    %8152 = vmatpush1.msra.mxu0 0.0
    %8153 = vmatprep.subr.mxu0 0.0
    %8154 = vmatpush1.msra.mxu0 0.0
    %8155 = vmatprep.subr.mxu0 0.0
    %8156 = vmatpush1.msra.mxu0 0.0
    %8157 = vmatprep.subr.mxu0 0.0
    %8158 = vmatpush1.msra.mxu0 0.0
    %8159 = vmatprep.subr.mxu0 0.0
    %8160 = vmatpush1.msra.mxu0 0.0
    %8161 = vmatprep.subr.mxu0 0.0
    %8162 = vmatpush1.msra.mxu0 0.0
    %8163 = vmatprep.subr.mxu0 0.0
    %8164 = vmatpush1.msra.mxu0 0.0
    %8165 = vmatprep.subr.mxu0 0.0
    %8166 = vmatpush1.msra.mxu0 0.0
    %8167 = vmatprep.subr.mxu0 0.0
    %8168 = vmatpush1.msra.mxu0 0.0
    %8169 = vmatprep.subr.mxu0 0.0
    %8170 = vmatpush1.msra.mxu0 0.0
    %8171 = vmatprep.subr.mxu0 0.0
    %8172 = vmatpush1.msra.mxu0 0.0
    %8173 = vmatprep.subr.mxu0 0.0
    %8174 = vmatpush1.msra.mxu0 0.0
    %8175 = vmatprep.subr.mxu0 0.0
    %8176 = vmatpush1.msra.mxu0 0.0
    %8177 = vmatprep.subr.mxu0 0.0
    %8178 = vmatpush1.msra.mxu0 0.0
    %8179 = vmatprep.subr.mxu0 0.0
    %8180 = vmatpush1.msra.mxu0 0.0
    %8181 = vmatprep.subr.mxu0 0.0
    %8182 = vmatpush1.msra.mxu0 0.0
    %8183 = vmatprep.mubr.f32.mxu0 0.0
    %8184 = vmatmul.mubr.f32.gmra.mrb[0].mxu0 %v8114
    %v8185 = vpop.f32.mrb[0].mxu0
    %v8186 = vadd.f32 0.0, %v8185
    %v8187 = vpop.f32.mrb[0].mxu0
    %8188 = vdwg.mxu0
    %v8190 = vsel %vm8112, %v8110, 0
    %8192 = vmatprep.subr.mxu0 0.0
    %8193 = vmatpush1.msra.mxu0 %v8117
    %8194 = vmatprep.subr.mxu0 0.0
    %8195 = vmatpush1.msra.mxu0 0.0
    %8196 = vmatprep.subr.mxu0 0.0
    %8197 = vmatpush1.msra.mxu0 0.0
    %8198 = vmatprep.subr.mxu0 0.0
    %8199 = vmatpush1.msra.mxu0 0.0
    %8200 = vmatprep.subr.mxu0 0.0
    %8201 = vmatpush1.msra.mxu0 0.0
    %8202 = vmatprep.subr.mxu0 0.0
    %8203 = vmatpush1.msra.mxu0 0.0
    %8204 = vmatprep.subr.mxu0 0.0
    %8205 = vmatpush1.msra.mxu0 0.0
    %8206 = vmatprep.subr.mxu0 0.0
    %8207 = vmatpush1.msra.mxu0 0.0
    %8208 = vmatprep.subr.mxu0 0.0
    %8209 = vmatpush1.msra.mxu0 0.0
    %8210 = vmatprep.subr.mxu0 0.0
    %8211 = vmatpush1.msra.mxu0 0.0
    %8212 = vmatprep.subr.mxu0 0.0
    %8213 = vmatpush1.msra.mxu0 0.0
    %8214 = vmatprep.subr.mxu0 0.0
    %8215 = vmatpush1.msra.mxu0 0.0
    %8216 = vmatprep.subr.mxu0 0.0
    %8217 = vmatpush1.msra.mxu0 0.0
    %8218 = vmatprep.subr.mxu0 0.0
    %8219 = vmatpush1.msra.mxu0 0.0
    %8220 = vmatprep.subr.mxu0 0.0
    %8221 = vmatpush1.msra.mxu0 0.0
    %8222 = vmatprep.subr.mxu0 0.0
    %8223 = vmatpush1.msra.mxu0 0.0
    %8224 = vmatprep.subr.mxu0 0.0
    %8225 = vmatpush1.msra.mxu0 0.0
    %8226 = vmatprep.subr.mxu0 0.0
    %8227 = vmatpush1.msra.mxu0 0.0
    %8228 = vmatprep.subr.mxu0 0.0
    %8229 = vmatpush1.msra.mxu0 0.0
    %8230 = vmatprep.subr.mxu0 0.0
    %8231 = vmatpush1.msra.mxu0 0.0
    %8232 = vmatprep.subr.mxu0 0.0
    %8233 = vmatpush1.msra.mxu0 0.0
    %8234 = vmatprep.subr.mxu0 0.0
    %8235 = vmatpush1.msra.mxu0 0.0
    %8236 = vmatprep.subr.mxu0 0.0
    %8237 = vmatpush1.msra.mxu0 0.0
    %8238 = vmatprep.subr.mxu0 0.0
    %8239 = vmatpush1.msra.mxu0 0.0
    %8240 = vmatprep.subr.mxu0 0.0
    %8241 = vmatpush1.msra.mxu0 0.0
    %8242 = vmatprep.subr.mxu0 0.0
    %8243 = vmatpush1.msra.mxu0 0.0
    %8244 = vmatprep.subr.mxu0 0.0
    %8245 = vmatpush1.msra.mxu0 0.0
    %8246 = vmatprep.subr.mxu0 0.0
    %8247 = vmatpush1.msra.mxu0 0.0
    %8248 = vmatprep.subr.mxu0 0.0
    %8249 = vmatpush1.msra.mxu0 0.0
    %8250 = vmatprep.subr.mxu0 0.0
    %8251 = vmatpush1.msra.mxu0 0.0
    %8252 = vmatprep.subr.mxu0 0.0
    %8253 = vmatpush1.msra.mxu0 0.0
    %8254 = vmatprep.subr.mxu0 0.0
    %8255 = vmatpush1.msra.mxu0 0.0
    %8256 = vmatprep.mubr.f32.mxu0 0.0
    %8257 = vmatmul.mubr.f32.gmra.mrb[0].mxu0 %v8190
    %v8258 = vpop.f32.mrb[0].mxu0
    %v8259 = vadd.f32 0.0, %v8258
    %v8260 = vpop.f32.mrb[0].mxu0
    %8261 = vdwg.mxu0
    %v8262 = vlaneseq
    %v8263 = vshrl.u32 %v8262, 7
    %v8264 = vsub.s32 0, %v8263
    %v8265 = vrot.slane %v8186, %v8264
    %v8266 = vmul.f32 %v7902, %v8265
    %v8267 = vmul.f32 %v7905, %v8265
    %v8268 = vmul.f32 %v7910, %v8265
    %v8269 = vmul.f32 %v7913, %v8265
    %v8270 = vlaneseq
    %v8271 = vshrl.u32 %v8270, 7
    %v8272 = vsub.s32 0, %v8271
    %v8273 = vrot.slane %v8259, %v8272
    %v8274 = vadd.f32 %v8266, %v8273
    %v8275 = vadd.f32 %v8267, %v8273
    %v8276 = vadd.f32 %v8268, %v8273
    %v8277 = vadd.f32 %v8269, %v8273
    %v8278 = vmax.f32 %v8274, 0.0
    %v8279 = vmax.f32 %v8275, 0.0
    %v8280 = vmax.f32 %v8276, 0.0
    %v8281 = vmax.f32 %v8277, 0.0
    %v8282 = vld [vmem:[%s53] sm:$0xff]
    %v8283 = vld [vmem:[%s53 + $0x8] sm:$0xff]
    %v8284 = vld [vmem:[%s53 + $0x10] sm:$0xff]
    %v8285 = vld [vmem:[%s53 + $0x18] sm:$0xff]
    %v8286 = vld [vmem:[%s53 + $0x20] sm:$0xff]
    %v8287 = vld [vmem:[%s53 + $0x28] sm:$0xff]
    %v8288 = vld [vmem:[%s53 + $0x30] sm:$0xff]
    %v8289 = vld [vmem:[%s53 + $0x38] sm:$0xff]
    %v8290 = vld [vmem:[%s53 + $0x40] sm:$0xff]
    %v8291 = vld [vmem:[%s53 + $0x48] sm:$0xff]
    %v8292 = vld [vmem:[%s53 + $0x50] sm:$0xff]
    %v8293 = vld [vmem:[%s53 + $0x58] sm:$0xff]
    %v8294 = vld [vmem:[%s53 + $0x60] sm:$0xff]
    %v8295 = vld [vmem:[%s53 + $0x68] sm:$0xff]
    %v8296 = vld [vmem:[%s53 + $0x70] sm:$0xff]
    %v8297 = vld [vmem:[%s53 + $0x78] sm:$0xff]
    %v8298 = vld [vmem:[%s53 + $0x80] sm:$0xff]
    %v8299 = vld [vmem:[%s53 + $0x88] sm:$0xff]
    %v8300 = vld [vmem:[%s53 + $0x90] sm:$0xff]
    %v8301 = vld [vmem:[%s53 + $0x98] sm:$0xff]
    %v8302 = vld [vmem:[%s53 + $0xa0] sm:$0xff]
    %v8303 = vld [vmem:[%s53 + $0xa8] sm:$0xff]
    %v8304 = vld [vmem:[%s53 + $0xb0] sm:$0xff]
    %v8305 = vld [vmem:[%s53 + $0xb8] sm:$0xff]
    %v8306 = vld [vmem:[%s53 + $0xc0] sm:$0xff]
    %v8307 = vld [vmem:[%s53 + $0xc8] sm:$0xff]
    %v8308 = vld [vmem:[%s53 + $0xd0] sm:$0xff]
    %v8309 = vld [vmem:[%s53 + $0xd8] sm:$0xff]
    %v8310 = vld [vmem:[%s53 + $0xe0] sm:$0xff]
    %v8311 = vld [vmem:[%s53 + $0xe8] sm:$0xff]
    %v8312 = vld [vmem:[%s53 + $0xf0] sm:$0xff]
    %v8313 = vld [vmem:[%s53 + $0xf8] sm:$0xff]
    %v8314 = vld [vmem:[%s53 + $0x100] sm:$0xff]
    %v8315 = vld [vmem:[%s53 + $0x108] sm:$0xff]
    %v8316 = vld [vmem:[%s53 + $0x110] sm:$0xff]
    %v8317 = vld [vmem:[%s53 + $0x118] sm:$0xff]
    %v8318 = vld [vmem:[#allocation16] sm:$0x1]
    %v8320 = vlaneseq
    %v8321 = vshrl.u32 %v8320, 7
    %v8322 = vsub.s32 0, %v8321
    %v8323 = vrot.slane %v8318, %v8322
    %v8326 = vsel %vm425, %v7664, 0
    %v8329 = vsel %vm425, %v7667, 0
    %v8332 = vsel %vm425, %v7670, 0
    %v8335 = vsel %vm425, %v7673, 0
    %8337 = vmatprep.subr.mxu0 0.0
    %8338 = vmatpush1.msra.mxu0 %v8282
    %8339 = vmatprep.subr.mxu0 0.0
    %8340 = vmatpush1.msra.mxu0 %v8283
    %8341 = vmatprep.subr.mxu0 0.0
    %8342 = vmatpush1.msra.mxu0 %v8284
    %8343 = vmatprep.subr.mxu0 0.0
    %8344 = vmatpush1.msra.mxu0 %v8285
    %8345 = vmatprep.subr.mxu0 0.0
    %8346 = vmatpush1.msra.mxu0 %v8286
    %8347 = vmatprep.subr.mxu0 0.0
    %8348 = vmatpush1.msra.mxu0 %v8287
    %8349 = vmatprep.subr.mxu0 0.0
    %8350 = vmatpush1.msra.mxu0 %v8288
    %8351 = vmatprep.subr.mxu0 0.0
    %8352 = vmatpush1.msra.mxu0 %v8289
    %8353 = vmatprep.subr.mxu0 0.0
    %8354 = vmatpush1.msra.mxu0 %v8290
    %8355 = vmatprep.subr.mxu0 0.0
    %8356 = vmatpush1.msra.mxu0 %v8291
    %8357 = vmatprep.subr.mxu0 0.0
    %8358 = vmatpush1.msra.mxu0 %v8292
    %8359 = vmatprep.subr.mxu0 0.0
    %8360 = vmatpush1.msra.mxu0 %v8293
    %8361 = vmatprep.subr.mxu0 0.0
    %8362 = vmatpush1.msra.mxu0 %v8294
    %8363 = vmatprep.subr.mxu0 0.0
    %8364 = vmatpush1.msra.mxu0 %v8295
    %8365 = vmatprep.subr.mxu0 0.0
    %8366 = vmatpush1.msra.mxu0 %v8296
    %8367 = vmatprep.subr.mxu0 0.0
    %8368 = vmatpush1.msra.mxu0 %v8297
    %8369 = vmatprep.subr.mxu0 0.0
    %8370 = vmatpush1.msra.mxu0 %v8298
    %8371 = vmatprep.subr.mxu0 0.0
    %8372 = vmatpush1.msra.mxu0 %v8299
    %8373 = vmatprep.subr.mxu0 0.0
    %8374 = vmatpush1.msra.mxu0 %v8300
    %8375 = vmatprep.subr.mxu0 0.0
    %8376 = vmatpush1.msra.mxu0 %v8301
    %8377 = vmatprep.subr.mxu0 0.0
    %8378 = vmatpush1.msra.mxu0 %v8302
    %8379 = vmatprep.subr.mxu0 0.0
    %8380 = vmatpush1.msra.mxu0 %v8303
    %8381 = vmatprep.subr.mxu0 0.0
    %8382 = vmatpush1.msra.mxu0 %v8304
    %8383 = vmatprep.subr.mxu0 0.0
    %8384 = vmatpush1.msra.mxu0 %v8305
    %8385 = vmatprep.subr.mxu0 0.0
    %8386 = vmatpush1.msra.mxu0 %v8306
    %8387 = vmatprep.subr.mxu0 0.0
    %8388 = vmatpush1.msra.mxu0 %v8307
    %8389 = vmatprep.subr.mxu0 0.0
    %8390 = vmatpush1.msra.mxu0 %v8308
    %8391 = vmatprep.subr.mxu0 0.0
    %8392 = vmatpush1.msra.mxu0 %v8309
    %8393 = vmatprep.subr.mxu0 0.0
    %8394 = vmatpush1.msra.mxu0 %v8310
    %8395 = vmatprep.subr.mxu0 0.0
    %8396 = vmatpush1.msra.mxu0 %v8311
    %8397 = vmatprep.subr.mxu0 0.0
    %8398 = vmatpush1.msra.mxu0 %v8312
    %8399 = vmatprep.subr.mxu0 0.0
    %8400 = vmatpush1.msra.mxu0 %v8313
    %8401 = vmatprep.mubr.f32.mxu0 %v7663
    %8402 = vmatmul.mubr.f32.gmra.mrb[0].mxu0 %v7662
    %v8403 = vpop.f32.mrb[0].mxu0
    %v8404 = vadd.f32 %v8323, %v8403
    %v8405 = vpop.f32.mrb[0].mxu0
    %8406 = vmatprep.mubr.f32.mxu0 %v7666
    %8407 = vmatmul.mubr.f32.gmra.mrb[0].mxu0 %v7665
    %v8408 = vpop.f32.mrb[0].mxu0
    %v8409 = vadd.f32 %v8323, %v8408
    %v8410 = vpop.f32.mrb[0].mxu0
    %8411 = vmatprep.mubr.f32.mxu0 %v7669
    %8412 = vmatmul.mubr.f32.gmra.mrb[0].mxu0 %v7668
    %v8413 = vpop.f32.mrb[0].mxu0
    %v8414 = vadd.f32 %v8323, %v8413
    %v8415 = vpop.f32.mrb[0].mxu0
    %8416 = vmatprep.mubr.f32.mxu0 %v7672
    %8417 = vmatmul.mubr.f32.gmra.mrb[0].mxu0 %v7671
    %v8418 = vpop.f32.mrb[0].mxu0
    %v8419 = vadd.f32 %v8323, %v8418
    %v8420 = vpop.f32.mrb[0].mxu0
    %8421 = vdwg.mxu0
    %8422 = vmatprep.subr.mxu0 0.0
    %8423 = vmatpush1.msra.mxu0 %v8314
    %8424 = vmatprep.subr.mxu0 0.0
    %8425 = vmatpush1.msra.mxu0 %v8315
    %8426 = vmatprep.subr.mxu0 0.0
    %8427 = vmatpush1.msra.mxu0 %v8316
    %8428 = vmatprep.subr.mxu0 0.0
    %8429 = vmatpush1.msra.mxu0 %v8317
    %8430 = vmatprep.subr.mxu0 0.0
    %8431 = vmatpush1.msra.mxu0 0.0
    %8432 = vmatprep.subr.mxu0 0.0
    %8433 = vmatpush1.msra.mxu0 0.0
    %8434 = vmatprep.subr.mxu0 0.0
    %8435 = vmatpush1.msra.mxu0 0.0
    %8436 = vmatprep.subr.mxu0 0.0
    %8437 = vmatpush1.msra.mxu0 0.0
    %8438 = vmatprep.subr.mxu0 0.0
    %8439 = vmatpush1.msra.mxu0 0.0
    %8440 = vmatprep.subr.mxu0 0.0
    %8441 = vmatpush1.msra.mxu0 0.0
    %8442 = vmatprep.subr.mxu0 0.0
    %8443 = vmatpush1.msra.mxu0 0.0
    %8444 = vmatprep.subr.mxu0 0.0
    %8445 = vmatpush1.msra.mxu0 0.0
    %8446 = vmatprep.subr.mxu0 0.0
    %8447 = vmatpush1.msra.mxu0 0.0
    %8448 = vmatprep.subr.mxu0 0.0
    %8449 = vmatpush1.msra.mxu0 0.0
    %8450 = vmatprep.subr.mxu0 0.0
    %8451 = vmatpush1.msra.mxu0 0.0
    %8452 = vmatprep.subr.mxu0 0.0
    %8453 = vmatpush1.msra.mxu0 0.0
    %8454 = vmatprep.subr.mxu0 0.0
    %8455 = vmatpush1.msra.mxu0 0.0
    %8456 = vmatprep.subr.mxu0 0.0
    %8457 = vmatpush1.msra.mxu0 0.0
    %8458 = vmatprep.subr.mxu0 0.0
    %8459 = vmatpush1.msra.mxu0 0.0
    %8460 = vmatprep.subr.mxu0 0.0
    %8461 = vmatpush1.msra.mxu0 0.0
    %8462 = vmatprep.subr.mxu0 0.0
    %8463 = vmatpush1.msra.mxu0 0.0
    %8464 = vmatprep.subr.mxu0 0.0
    %8465 = vmatpush1.msra.mxu0 0.0
    %8466 = vmatprep.subr.mxu0 0.0
    %8467 = vmatpush1.msra.mxu0 0.0
    %8468 = vmatprep.subr.mxu0 0.0
    %8469 = vmatpush1.msra.mxu0 0.0
    %8470 = vmatprep.subr.mxu0 0.0
    %8471 = vmatpush1.msra.mxu0 0.0
    %8472 = vmatprep.subr.mxu0 0.0
    %8473 = vmatpush1.msra.mxu0 0.0
    %8474 = vmatprep.subr.mxu0 0.0
    %8475 = vmatpush1.msra.mxu0 0.0
    %8476 = vmatprep.subr.mxu0 0.0
    %8477 = vmatpush1.msra.mxu0 0.0
    %8478 = vmatprep.subr.mxu0 0.0
    %8479 = vmatpush1.msra.mxu0 0.0
    %8480 = vmatprep.subr.mxu0 0.0
    %8481 = vmatpush1.msra.mxu0 0.0
    %8482 = vmatprep.subr.mxu0 0.0
    %8483 = vmatpush1.msra.mxu0 0.0
    %8484 = vmatprep.subr.mxu0 0.0
    %8485 = vmatpush1.msra.mxu0 0.0
    %8486 = vmatprep.mubr.f32.mxu0 0.0
    %8487 = vmatmul.mubr.f32.gmra.mrb[0].mxu0 %v8326
    %v8488 = vpop.f32.mrb[0].mxu0
    %v8489 = vadd.f32 %v8404, %v8488
    %v8490 = vpop.f32.mrb[0].mxu0
    %8491 = vmatprep.mubr.f32.mxu0 0.0
    %8492 = vmatmul.mubr.f32.gmra.mrb[0].mxu0 %v8329
    %v8493 = vpop.f32.mrb[0].mxu0
    %v8494 = vadd.f32 %v8409, %v8493
    %v8495 = vpop.f32.mrb[0].mxu0
    %8496 = vmatprep.mubr.f32.mxu0 0.0
    %8497 = vmatmul.mubr.f32.gmra.mrb[0].mxu0 %v8332
    %v8498 = vpop.f32.mrb[0].mxu0
    %v8499 = vadd.f32 %v8414, %v8498
    %v8500 = vpop.f32.mrb[0].mxu0
    %8501 = vmatprep.mubr.f32.mxu0 0.0
    %8502 = vmatmul.mubr.f32.gmra.mrb[0].mxu0 %v8335
    %v8503 = vpop.f32.mrb[0].mxu0
    %v8504 = vadd.f32 %v8419, %v8503
    %v8505 = vpop.f32.mrb[0].mxu0
    %8506 = vdwg.mxu0
    %vm8507 = vcmask 72704
    %8508 = vst.msk [vmem:[%s61] sm:$0xff] %vm8507, %v8489
    %8509 = vst.msk [vmem:[%s61 + $0x8] sm:$0xff] %vm8507, %v8494
    %8510 = vst.msk [vmem:[%s61 + $0x10] sm:$0xff] %vm8507, %v8499
    %8511 = vst.msk [vmem:[%s61 + $0x18] sm:$0xff] %vm8507, %v8504
    %v8512 = vld [vmem:[%s57] sm:$0xff]
    %v8513 = vld [vmem:[%s57 + $0x8] sm:$0xff]
    %v8514 = vld [vmem:[%s57 + $0x10] sm:$0xff]
    %v8515 = vld [vmem:[%s57 + $0x18] sm:$0x7]
    %v8516 = vld [vmem:[#allocation2] sm:$0x1]
    %v8518 = vlaneseq
    %v8519 = vshrl.u32 %v8518, 7
    %v8520 = vsub.s32 0, %v8519
    %v8521 = vrot.slane %v8516, %v8520
    %v8524 = vsel %vm285, %v8278, 0
    %v8527 = vsel %vm285, %v8279, 0
    %v8530 = vsel %vm285, %v8280, 0
    %v8533 = vsel %vm285, %v8281, 0
    %v8536 = vsel %vm7953, %v8515, 0
    %8538 = vmatprep.subr.mxu0 0.0
    %8539 = vmatpush1.msra.mxu0 %v8512
    %8540 = vmatprep.subr.mxu0 0.0
    %8541 = vmatpush1.msra.mxu0 %v8513
    %8542 = vmatprep.subr.mxu0 0.0
    %8543 = vmatpush1.msra.mxu0 %v8514
    %8544 = vmatprep.subr.mxu0 0.0
    %8545 = vmatpush1.msra.mxu0 %v8536
    %8546 = vmatprep.subr.mxu0 0.0
    %8547 = vmatpush1.msra.mxu0 0.0
    %8548 = vmatprep.subr.mxu0 0.0
    %8549 = vmatpush1.msra.mxu0 0.0
    %8550 = vmatprep.subr.mxu0 0.0
    %8551 = vmatpush1.msra.mxu0 0.0
    %8552 = vmatprep.subr.mxu0 0.0
    %8553 = vmatpush1.msra.mxu0 0.0
    %8554 = vmatprep.subr.mxu0 0.0
    %8555 = vmatpush1.msra.mxu0 0.0
    %8556 = vmatprep.subr.mxu0 0.0
    %8557 = vmatpush1.msra.mxu0 0.0
    %8558 = vmatprep.subr.mxu0 0.0
    %8559 = vmatpush1.msra.mxu0 0.0
    %8560 = vmatprep.subr.mxu0 0.0
    %8561 = vmatpush1.msra.mxu0 0.0
    %8562 = vmatprep.subr.mxu0 0.0
    %8563 = vmatpush1.msra.mxu0 0.0
    %8564 = vmatprep.subr.mxu0 0.0
    %8565 = vmatpush1.msra.mxu0 0.0
    %8566 = vmatprep.subr.mxu0 0.0
    %8567 = vmatpush1.msra.mxu0 0.0
    %8568 = vmatprep.subr.mxu0 0.0
    %8569 = vmatpush1.msra.mxu0 0.0
    %8570 = vmatprep.subr.mxu0 0.0
    %8571 = vmatpush1.msra.mxu0 0.0
    %8572 = vmatprep.subr.mxu0 0.0
    %8573 = vmatpush1.msra.mxu0 0.0
    %8574 = vmatprep.subr.mxu0 0.0
    %8575 = vmatpush1.msra.mxu0 0.0
    %8576 = vmatprep.subr.mxu0 0.0
    %8577 = vmatpush1.msra.mxu0 0.0
    %8578 = vmatprep.subr.mxu0 0.0
    %8579 = vmatpush1.msra.mxu0 0.0
    %8580 = vmatprep.subr.mxu0 0.0
    %8581 = vmatpush1.msra.mxu0 0.0
    %8582 = vmatprep.subr.mxu0 0.0
    %8583 = vmatpush1.msra.mxu0 0.0
    %8584 = vmatprep.subr.mxu0 0.0
    %8585 = vmatpush1.msra.mxu0 0.0
    %8586 = vmatprep.subr.mxu0 0.0
    %8587 = vmatpush1.msra.mxu0 0.0
    %8588 = vmatprep.subr.mxu0 0.0
    %8589 = vmatpush1.msra.mxu0 0.0
    %8590 = vmatprep.subr.mxu0 0.0
    %8591 = vmatpush1.msra.mxu0 0.0
    %8592 = vmatprep.subr.mxu0 0.0
    %8593 = vmatpush1.msra.mxu0 0.0
    %8594 = vmatprep.subr.mxu0 0.0
    %8595 = vmatpush1.msra.mxu0 0.0
    %8596 = vmatprep.subr.mxu0 0.0
    %8597 = vmatpush1.msra.mxu0 0.0
    %8598 = vmatprep.subr.mxu0 0.0
    %8599 = vmatpush1.msra.mxu0 0.0
    %8600 = vmatprep.subr.mxu0 0.0
    %8601 = vmatpush1.msra.mxu0 0.0
    %8602 = vmatprep.mubr.f32.mxu0 0.0
    %8603 = vmatmul.mubr.f32.gmra.mrb[0].mxu0 %v8524
    %v8604 = vpop.f32.mrb[0].mxu0
    %v8605 = vadd.f32 %v8521, %v8604
    %v8606 = vpop.f32.mrb[0].mxu0
    %8607 = vmatprep.mubr.f32.mxu0 0.0
    %8608 = vmatmul.mubr.f32.gmra.mrb[0].mxu0 %v8527
    %v8609 = vpop.f32.mrb[0].mxu0
    %v8610 = vadd.f32 %v8521, %v8609
    %v8611 = vpop.f32.mrb[0].mxu0
    %8612 = vmatprep.mubr.f32.mxu0 0.0
    %8613 = vmatmul.mubr.f32.gmra.mrb[0].mxu0 %v8530
    %v8614 = vpop.f32.mrb[0].mxu0
    %v8615 = vadd.f32 %v8521, %v8614
    %v8616 = vpop.f32.mrb[0].mxu0
    %8617 = vmatprep.mubr.f32.mxu0 0.0
    %8618 = vmatmul.mubr.f32.gmra.mrb[0].mxu0 %v8533
    %v8619 = vpop.f32.mrb[0].mxu0
    %v8620 = vadd.f32 %v8521, %v8619
    %v8621 = vpop.f32.mrb[0].mxu0
    %8622 = vdwg.mxu0
    %v8623 = vtanh.pop %v8605
    %v8624 = vtanh.pop %v8610
    %v8625 = vtanh.pop %v8615
    %v8626 = vtanh.pop %v8620
    %vm8627 = vcmask 7168
    %8628 = vst.msk [vmem:[%s63] sm:$0xff] %vm8627, %v8623
    %8629 = vst.msk [vmem:[%s63 + $0x8] sm:$0xff] %vm8627, %v8624
    %8630 = vst.msk [vmem:[%s63 + $0x10] sm:$0xff] %vm8627, %v8625
    %8631 = vst.msk [vmem:[%s63 + $0x18] sm:$0xff] %vm8627, %v8626
    // Predicated region
    $region158: #{resnet_forward.1} parent=1 // pred_check
      _
    $region159: #{resnet_forward.1} parent=1 // pred_check_branch
      %8633 = sbr.rel (0) target = $region161
    $region160: #{resnet_forward.1} parent=1 // pred_region
      _
    $region161: #{resnet_forward.1} parent=1 // pred_fallthru
      _
    // Predicated region
    $region162: #{resnet_forward.1} parent=1 // pred_check
      _
    $region163: #{resnet_forward.1} parent=1 // pred_check_branch
      %8635 = sbr.rel (0) target = $region165
    $region164: #{resnet_forward.1} parent=1 // pred_region
      _
    $region165: #{resnet_forward.1} parent=1 // pred_fallthru
      _
    // Predicated region
    $region166: #{resnet_forward.1} parent=1 // pred_check
      _
    $region167: #{resnet_forward.1} parent=1 // pred_check_branch
      %8637 = sbr.rel (0) target = $region169
    $region168: #{resnet_forward.1} parent=1 // pred_region
      _
    $region169: #{resnet_forward.1} parent=1 // pred_fallthru
      _
    // Predicated region
    $region170: #{resnet_forward.1} parent=1 // pred_check
      _
    $region171: #{resnet_forward.1} parent=1 // pred_check_branch
      %8639 = sbr.rel (0) target = $region173
    $region172: #{resnet_forward.1} parent=1 // pred_region
      _
    $region173: #{resnet_forward.1} parent=1 // pred_fallthru
      _
    %8640 = vsyncpa [#allocation4], 1
    %8641 = vsyncpa [#allocation6], 1
    %8642 = vsyncpa [#allocation9], 1
    %8643 = vsyncpa [#allocation12], 1
    %8644 = vsyncpa [#allocation15], 1

</llo_original>
